<compile_context>
chip_gen: v7x
topology: tpu7x:2x2x1
jax: 0.10.0
libtpu: 0.0.40
codegen_flags: <defaults>
</compile_context>

<pallas_src>
import jax
import jax.numpy as jnp
from jax.experimental import pallas as pl
from jax.experimental.pallas import tpu as pltpu


def _cnn_kernel(p_ref, wc_ref, bc_ref, w1_ref, b1_ref, w2_ref, b2_ref, o_ref):
    # p_ref : (1, CKK, 4*B*P_pad) bf16  im2col patches, lanes ordered (q, b, p)
    # wc_ref: (OC, CKK)           bf16  conv weight flattened to a matrix
    # bc_ref: (OC, 1)             f32   conv bias (column vector)
    # w1_ref: (OC, P_pad, HID_pad) bf16 fc1 weight, zero-padded for p>=P, h>=HID
    # b1_ref: (1, HID_pad)        f32   fc1 bias, zero-padded
    # w2_ref: (HID_pad, NOUT)     f32   fc2 weight, zero rows for padded hidden
    # b2_ref: (1, NOUT)           f32
    # o_ref : (B, NOUT)           f32
    B = o_ref.shape[0]
    OC, P_pad, _ = w1_ref.shape
    BP = B * P_pad

    # Conv + bias + ReLU: a single MXU matmul whose N dimension spans all four
    # pool quadrants and the whole batch tile (every lane slab 128-aligned).
    conv = jnp.dot(wc_ref[...], p_ref[0],
                   preferred_element_type=jnp.float32)            # (OC, 4*B*P_pad)
    conv = jnp.maximum(conv + bc_ref[...], 0.0)

    # 2x2 max-pool: elementwise max over the 4 lane-aligned quadrant slabs
    # (relu/max commute, so pooling after relu matches the PyTorch module).
    pooled = jnp.maximum(
        jnp.maximum(conv[:, 0 * BP:1 * BP], conv[:, 1 * BP:2 * BP]),
        jnp.maximum(conv[:, 2 * BP:3 * BP], conv[:, 3 * BP:4 * BP]))  # (OC, B*P_pad)

    # fc1: one batched contraction over (oc, p); the batch tile is the M dim.
    # (Padded p lanes hit zero w1 rows, padded hidden columns are zero.)
    pooled3 = pooled.reshape(OC, B, P_pad).astype(jnp.bfloat16)     # (OC, B, P_pad)
    h_parts = jnp.einsum('obp,oph->obh', pooled3, w1_ref[...],
                         preferred_element_type=jnp.float32)        # (OC, B, HID_pad)
    h = jnp.maximum(jnp.sum(h_parts, axis=0) + b1_ref[...], 0.0)    # (B, HID_pad)

    # fc2 (tiny, keep f32).
    out = jnp.dot(h, w2_ref[...], preferred_element_type=jnp.float32) + b2_ref[...]
    o_ref[...] = out.astype(o_ref.dtype)


def cnn_forward(x, params, *, b_tile=8):
    """Pallas implementation of CNNClassifier.forward. x: (N, C, H, W) float32."""
    wc, bc, w1, b1, w2, b2 = params          # PyTorch-layout parameters
    N, C, H, W = x.shape
    OC, _, K, _ = wc.shape
    HID, FC1_IN = w1.shape
    NOUT = w2.shape[0]
    Ho, Wo = H - K + 1, W - K + 1
    Hp, Wp = Ho // 2, Wo // 2
    CKK = C * K * K
    P = Hp * Wp
    assert FC1_IN == OC * P, "input spatial size inconsistent with fc1 in-features"

    P_pad = ((P + 127) // 128) * 128         # 169 -> 256 (lane-dense pooling slabs)
    HID_pad = ((HID + 127) // 128) * 128     # 100 -> 128
    b_tile = int(max(8, min(b_tile, 64)))    # batch tile = M dim of fc matmuls
    NB = pl.cdiv(N, b_tile)
    N_pad = NB * b_tile

    # ---- glue: im2col grouped by pool quadrant, lane-padded, batch-blocked ----
    # TODO(synk): build the im2col inside the kernel (load (B,C,H,W) and use
    # static shifted slices) to avoid materializing this intermediate in HBM.
    pat = jnp.stack([x[:, :, kh:kh + Ho, kw:kw + Wo]
                     for kh in range(K) for kw in range(K)], axis=2)   # (N,C,KK,Ho,Wo)
    pat = pat[:, :, :, :2 * Hp, :2 * Wp].reshape(N, CKK, Hp, 2, Wp, 2)
    pat = jnp.transpose(pat, (0, 3, 5, 1, 2, 4)).reshape(N, 4, CKK, P)  # (N,4,CKK,P)
    pat = jnp.pad(pat, ((0, N_pad - N), (0, 0), (0, 0), (0, P_pad - P)))
    pat = pat.reshape(NB, b_tile, 4, CKK, P_pad)
    pat = jnp.transpose(pat, (0, 3, 2, 1, 4))          # (NB, CKK, 4, b_tile, P_pad)
    patches = pat.reshape(NB, CKK, 4 * b_tile * P_pad).astype(jnp.bfloat16)

    # ---- glue: parameter re-layout (zero padding so padded lanes cannot leak) ----
    wmat = wc.reshape(OC, CKK).astype(jnp.bfloat16)
    bcol = bc.reshape(OC, 1).astype(jnp.float32)
    w1r = jnp.transpose(w1.reshape(HID, OC, P), (1, 2, 0))              # (OC, P, HID)
    w1r = jnp.pad(w1r, ((0, 0), (0, P_pad - P), (0, HID_pad - HID))).astype(jnp.bfloat16)
    b1r = jnp.pad(b1.reshape(1, HID), ((0, 0), (0, HID_pad - HID))).astype(jnp.float32)
    w2p = jnp.pad(jnp.transpose(w2), ((0, HID_pad - HID), (0, 0))).astype(jnp.float32)
    b2r = b2.reshape(1, NOUT).astype(jnp.float32)

    QBP = 4 * b_tile * P_pad
    out = pl.pallas_call(
        _cnn_kernel,
        out_shape=jax.ShapeDtypeStruct((N_pad, NOUT), jnp.float32),
        grid=(NB,),
        in_specs=[
            pl.BlockSpec((1, CKK, QBP), lambda i: (i, 0, 0)),
            pl.BlockSpec((OC, CKK), lambda i: (0, 0)),
            pl.BlockSpec((OC, 1), lambda i: (0, 0)),
            pl.BlockSpec((OC, P_pad, HID_pad), lambda i: (0, 0, 0)),
            pl.BlockSpec((1, HID_pad), lambda i: (0, 0)),
            pl.BlockSpec((HID_pad, NOUT), lambda i: (0, 0)),
            pl.BlockSpec((1, NOUT), lambda i: (0, 0)),
        ],
        out_specs=pl.BlockSpec((b_tile, NOUT), lambda i: (i, 0)),
        compiler_params=pltpu.CompilerParams(
            dimension_semantics=("parallel",)),
    )(patches, wmat, bcol, w1r, b1r, w2p, b2r)
    return out[:N]


def init_params(key, in_channels, out_channels, n_out, k_size,
                fc1_in=5408, hidden=100):
    """Deterministic torch-default-style (uniform fan-in) initialization."""
    ks = jax.random.split(key, 6)
    s_c = 1.0 / (in_channels * k_size * k_size) ** 0.5
    wc = jax.random.uniform(ks[0], (out_channels, in_channels, k_size, k_size),
                            jnp.float32, -s_c, s_c)
    bc = jax.random.uniform(ks[1], (out_channels,), jnp.float32, -s_c, s_c)
    s1 = 1.0 / fc1_in ** 0.5
    w1 = jax.random.uniform(ks[2], (hidden, fc1_in), jnp.float32, -s1, s1)
    b1 = jax.random.uniform(ks[3], (hidden,), jnp.float32, -s1, s1)
    s2 = 1.0 / hidden ** 0.5
    w2 = jax.random.uniform(ks[4], (n_out, hidden), jnp.float32, -s2, s2)
    b2 = jax.random.uniform(ks[5], (n_out,), jnp.float32, -s2, s2)
    return (wc, bc, w1, b1, w2, b2)


def reference_forward(x, params):
    """Pure-JAX reference matching the PyTorch module semantics."""
    wc, bc, w1, b1, w2, b2 = params
    N, C, H, W = x.shape
    OC, _, K, _ = wc.shape
    Ho, Wo = H - K + 1, W - K + 1
    Hp, Wp = Ho // 2, Wo // 2
    hi = jax.lax.Precision.HIGHEST
    conv = jnp.zeros((N, OC, Ho, Wo), jnp.float32)
    for kh in range(K):
        for kw in range(K):
            conv = conv + jnp.einsum('nchw,oc->nohw',
                                     x[:, :, kh:kh + Ho, kw:kw + Wo],
                                     wc[:, :, kh, kw], precision=hi)
    conv = jnp.maximum(conv + bc[None, :, None, None], 0.0)
    pooled = jnp.max(conv[:, :, :2 * Hp, :2 * Wp].reshape(N, OC, Hp, 2, Wp, 2),
                     axis=(3, 5))
    feat = pooled.reshape(N, OC * Hp * Wp)
    h = jnp.maximum(jnp.dot(feat, w1.T, precision=hi) + b1, 0.0)
    return jnp.dot(h, w2.T, precision=hi) + b2


if __name__ == "__main__":
    # Module hard-codes fc1 in-features = 5408 = 32 * 13 * 13, which implies
    # out_channels=32, k_size=3 and 28x28 spatial input.
    in_channels, out_channels, n_out, k_size = 1, 32, 10, 3
    H = W = 28
    N = 16          # two batch tiles of 8 -> exercises the tiled grid

    key = jax.random.PRNGKey(0)
    kx, kp = jax.random.split(key)
    x = jax.random.normal(kx, (N, in_channels, H, W), jnp.float32)
    params = init_params(kp, in_channels, out_channels, n_out, k_size)

    out = cnn_forward(x, params, b_tile=8)
    out = jax.block_until_ready(out)
    assert out.shape == (N, n_out)

    ref = reference_forward(x, params)
    if not bool(jnp.allclose(out, ref, rtol=2e-2, atol=2e-2)):
        raise AssertionError(
            f"kernel/reference mismatch, max abs diff = {float(jnp.max(jnp.abs(out - ref)))}")

    print("KERNEL_OK")
</pallas_src>

<mosaic_0001>
module attributes {stable_mosaic.version = 11 : i64} {
  func.func @_cnn_kernel(%arg0: i32, %arg1: memref<1x9x8192xbf16, #tpu.memory_space<vmem>>, %arg2: memref<32x9xbf16, #tpu.memory_space<vmem>>, %arg3: memref<32x1xf32, #tpu.memory_space<vmem>>, %arg4: memref<32x256x128xbf16, #tpu.memory_space<vmem>>, %arg5: memref<1x128xf32, #tpu.memory_space<vmem>>, %arg6: memref<128x10xf32, #tpu.memory_space<vmem>>, %arg7: memref<1x10xf32, #tpu.memory_space<vmem>>, %arg8: memref<8x10xf32, #tpu.memory_space<vmem>>) attributes {dimension_semantics = [#tpu.dimension_semantics<parallel>], iteration_bounds = array<i64: 2>, scalar_prefetch = 0 : i64, scratch_operands = 0 : i64, tpu.core_type = #tpu.core_type<tc>, window_params = [{transform_indices = @transform_0, window_bounds = array<i64: 1, 9, 8192>}, {pipeline_mode = #tpu.pipeline_mode<synchronous>, transform_indices = @transform_1, window_bounds = array<i64: 32, 9>}, {pipeline_mode = #tpu.pipeline_mode<synchronous>, transform_indices = @transform_2, window_bounds = array<i64: 32, 1>}, {pipeline_mode = #tpu.pipeline_mode<synchronous>, transform_indices = @transform_3, window_bounds = array<i64: 32, 256, 128>}, {pipeline_mode = #tpu.pipeline_mode<synchronous>, transform_indices = @transform_4, window_bounds = array<i64: 1, 128>}, {pipeline_mode = #tpu.pipeline_mode<synchronous>, transform_indices = @transform_5, window_bounds = array<i64: 128, 10>}, {pipeline_mode = #tpu.pipeline_mode<synchronous>, transform_indices = @transform_6, window_bounds = array<i64: 1, 10>}, {transform_indices = @transform_7, window_bounds = array<i64: 8, 10>}]} {
    %c0 = arith.constant 0 : index
    %c0_0 = arith.constant 0 : index
    %0 = vector.load %arg2[%c0, %c0_0] : memref<32x9xbf16, #tpu.memory_space<vmem>>, vector<32x9xbf16>
    %c0_1 = arith.constant 0 : index
    %c0_2 = arith.constant 0 : index
    %c0_3 = arith.constant 0 : index
    %1 = vector.load %arg1[%c0_1, %c0_2, %c0_3] : memref<1x9x8192xbf16, #tpu.memory_space<vmem>>, vector<1x9x8192xbf16>
    %2 = vector.shape_cast %1 : vector<1x9x8192xbf16> to vector<9x8192xbf16>
    %cst = arith.constant dense<0.000000e+00> : vector<32x8192xf32>
    %3 = tpu.matmul %0, %2, %cst {dimension_numbers = #tpu.dot_dimension_numbers<[1], [0], [0], [1], [0, 0, 1, 1], [], []>} : vector<32x9xbf16>, vector<9x8192xbf16>, vector<32x8192xf32> -> vector<32x8192xf32>
    %c0_4 = arith.constant 0 : index
    %c0_5 = arith.constant 0 : index
    %4 = vector.load %arg3[%c0_4, %c0_5] : memref<32x1xf32, #tpu.memory_space<vmem>>, vector<32x1xf32>
    %5 = vector.broadcast %4 : vector<32x1xf32> to vector<32x8192xf32>
    %6 = arith.addf %3, %5 : vector<32x8192xf32>
    %cst_6 = arith.constant 0.000000e+00 : f32
    %7 = vector.broadcast %cst_6 : f32 to vector<32x8192xf32>
    %8 = arith.maximumf %6, %7 : vector<32x8192xf32>
    %9 = vector.extract_strided_slice %8 {offsets = [0, 0], sizes = [32, 2048], strides = [1, 1]} : vector<32x8192xf32> to vector<32x2048xf32>
    %10 = vector.extract_strided_slice %8 {offsets = [0, 2048], sizes = [32, 2048], strides = [1, 1]} : vector<32x8192xf32> to vector<32x2048xf32>
    %11 = arith.maximumf %9, %10 : vector<32x2048xf32>
    %12 = vector.extract_strided_slice %8 {offsets = [0, 4096], sizes = [32, 2048], strides = [1, 1]} : vector<32x8192xf32> to vector<32x2048xf32>
    %13 = vector.extract_strided_slice %8 {offsets = [0, 6144], sizes = [32, 2048], strides = [1, 1]} : vector<32x8192xf32> to vector<32x2048xf32>
    %14 = arith.maximumf %12, %13 : vector<32x2048xf32>
    %15 = arith.maximumf %11, %14 : vector<32x2048xf32>
    %16 = vector.shape_cast %15 : vector<32x2048xf32> to vector<32x8x256xf32>
    %17 = arith.truncf %16 : vector<32x8x256xf32> to vector<32x8x256xbf16>
    %c0_7 = arith.constant 0 : index
    %c0_8 = arith.constant 0 : index
    %c0_9 = arith.constant 0 : index
    %18 = vector.load %arg4[%c0_7, %c0_8, %c0_9] : memref<32x256x128xbf16, #tpu.memory_space<vmem>>, vector<32x256x128xbf16>
    "tpu.trace_start"() <{level = 10 : i32, message = "obp,oph->obh"}> : () -> ()
    %cst_10 = arith.constant dense<0.000000e+00> : vector<32x8x128xf32>
    %19 = tpu.matmul %17, %18, %cst_10 {dimension_numbers = #tpu.dot_dimension_numbers<[2], [1], [1], [2], [0, 0, 0, 1, 1, 2], [0], [0]>} : vector<32x8x256xbf16>, vector<32x256x128xbf16>, vector<32x8x128xf32> -> vector<32x8x128xf32>
    "tpu.trace_stop"() : () -> ()
    %cst_11 = arith.constant dense<0.000000e+00> : vector<8x128xf32>
    %20 = vector.multi_reduction <add>, %19, %cst_11 [0] : vector<32x8x128xf32> to vector<8x128xf32>
    %c0_12 = arith.constant 0 : index
    %c0_13 = arith.constant 0 : index
    %21 = vector.load %arg5[%c0_12, %c0_13] : memref<1x128xf32, #tpu.memory_space<vmem>>, vector<1x128xf32>
    %22 = vector.broadcast %21 : vector<1x128xf32> to vector<8x128xf32>
    %23 = arith.addf %20, %22 : vector<8x128xf32>
    %cst_14 = arith.constant 0.000000e+00 : f32
    %24 = vector.broadcast %cst_14 : f32 to vector<8x128xf32>
    %25 = arith.maximumf %23, %24 : vector<8x128xf32>
    %c0_15 = arith.constant 0 : index
    %c0_16 = arith.constant 0 : index
    %26 = vector.load %arg6[%c0_15, %c0_16] : memref<128x10xf32, #tpu.memory_space<vmem>>, vector<128x10xf32>
    %cst_17 = arith.constant dense<0.000000e+00> : vector<8x10xf32>
    %27 = tpu.matmul %25, %26, %cst_17 {dimension_numbers = #tpu.dot_dimension_numbers<[1], [0], [0], [1], [0, 0, 1, 1], [], []>} : vector<8x128xf32>, vector<128x10xf32>, vector<8x10xf32> -> vector<8x10xf32>
    %c0_18 = arith.constant 0 : index
    %c0_19 = arith.constant 0 : index
    %28 = vector.load %arg7[%c0_18, %c0_19] : memref<1x10xf32, #tpu.memory_space<vmem>>, vector<1x10xf32>
    %29 = vector.broadcast %28 : vector<1x10xf32> to vector<8x10xf32>
    %30 = arith.addf %27, %29 : vector<8x10xf32>
    %c0_20 = arith.constant 0 : index
    %c0_21 = arith.constant 0 : index
    %31 = vector.load %arg8[%c0_20, %c0_21] : memref<8x10xf32, #tpu.memory_space<vmem>>, vector<8x10xf32>
    tpu.vector_store %arg8[%c0_20, %c0_21], %30 {strides = array<i32>} : memref<8x10xf32, #tpu.memory_space<vmem>>, vector<8x10xf32>,
    return
  }
  func.func @transform_0(%arg0: i32) -> (i32, i32, i32) {
    %c0_i32 = arith.constant 0 : i32
    %c0_i32_0 = arith.constant 0 : i32
    %c0_i32_1 = arith.constant 0 : i32
    return %arg0, %c0_i32, %c0_i32_0 : i32, i32, i32
  }
  func.func @transform_1(%arg0: i32) -> (i32, i32) {
    %c0_i32 = arith.constant 0 : i32
    %c0_i32_0 = arith.constant 0 : i32
    %c0_i32_1 = arith.constant 0 : i32
    return %c0_i32, %c0_i32_0 : i32, i32
  }
  func.func @transform_2(%arg0: i32) -> (i32, i32) {
    %c0_i32 = arith.constant 0 : i32
    %c0_i32_0 = arith.constant 0 : i32
    %c0_i32_1 = arith.constant 0 : i32
    return %c0_i32, %c0_i32_0 : i32, i32
  }
  func.func @transform_3(%arg0: i32) -> (i32, i32, i32) {
    %c0_i32 = arith.constant 0 : i32
    %c0_i32_0 = arith.constant 0 : i32
    %c0_i32_1 = arith.constant 0 : i32
    %c0_i32_2 = arith.constant 0 : i32
    return %c0_i32, %c0_i32_0, %c0_i32_1 : i32, i32, i32
  }
  func.func @transform_4(%arg0: i32) -> (i32, i32) {
    %c0_i32 = arith.constant 0 : i32
    %c0_i32_0 = arith.constant 0 : i32
    %c0_i32_1 = arith.constant 0 : i32
    return %c0_i32, %c0_i32_0 : i32, i32
  }
  func.func @transform_5(%arg0: i32) -> (i32, i32) {
    %c0_i32 = arith.constant 0 : i32
    %c0_i32_0 = arith.constant 0 : i32
    %c0_i32_1 = arith.constant 0 : i32
    return %c0_i32, %c0_i32_0 : i32, i32
  }
  func.func @transform_6(%arg0: i32) -> (i32, i32) {
    %c0_i32 = arith.constant 0 : i32
    %c0_i32_0 = arith.constant 0 : i32
    %c0_i32_1 = arith.constant 0 : i32
    return %c0_i32, %c0_i32_0 : i32, i32
  }
  func.func @transform_7(%arg0: i32) -> (i32, i32) {
    %c0_i32 = arith.constant 0 : i32
    %c0_i32_0 = arith.constant 0 : i32
    return %arg0, %c0_i32 : i32, i32
  }
}

</mosaic_0001>

<llo_original>
// kernel: tpu_custom_call.1
$region0: #{tpu_custom_call.1}
  #allocation0 [shape = 'u32[]', space=smem, size = 0x4, offset = 0x4, fixed_abs, tag = 'smem constant byte address 0x4 - core index']
  #allocation1 [shape = 'u32[144,128]{1,0:T(1,128)}', space=vmem, size = 0x12000, scoped, tag = 'internal scratch']
  %s0 = inlined_call_operand.vmem [shape: bf16[2,9,8192], index: 0, kind: input, shape index: {}]
  %s1 = inlined_call_operand.vmem [shape: bf16[32,9], index: 1, kind: input, shape index: {}]
  %s2 = inlined_call_operand.vmem [shape: f32[32,1], index: 2, kind: input, shape index: {}]
  %s3 = inlined_call_operand.hbm [shape: bf16[32,256,128], index: 3, kind: input, shape index: {}]
  %s4 = inlined_call_operand.hbm [shape: f32[1,128], index: 4, kind: input, shape index: {}]
  %s5 = inlined_call_operand.vmem [shape: f32[128,10], index: 5, kind: input, shape index: {}]
  %s6 = inlined_call_operand.hbm [shape: f32[1,10], index: 6, kind: input, shape index: {}]
  %s7 = inlined_call_operand.hbm [shape: f32[16,10], index: 7, kind: output, shape index: {}]
  %s8 = sld [smem:[#allocation0]]
  $region73: #{tpu_custom_call.1} parent=0
    _
  %s10 = ssub.s32 1, %s8
  %s11 = scalar_select 0, %s10, %s8
  $region1: #{tpu_custom_call.1} parent=0
    #allocation2 [shape = 'u8[2097152]{0}', space=vmem, size = 0x200000, scoped, tag = 'input window, operand 3, single buffered']
    #allocation3 [shape = 's32[2]{0}', space=sflag, size = 0x8, scoped, tag = 'scoped memory for tpu_custom_call.1']
    #allocation4 [shape = 's32[2]{0}', space=sflag, size = 0x8, scoped, tag = 'scoped memory for tpu_custom_call.1']
    #allocation5 [shape = 'u8[512]{0}', space=vmem, size = 0x400, scoped, tag = 'input window, operand 4, single buffered']
    #allocation6 [shape = 's32[1]{0}', space=sflag, size = 0x4, scoped, tag = 'scoped memory for tpu_custom_call.1']
    #allocation7 [shape = 'u8[512]{0}', space=vmem, size = 0x400, scoped, tag = 'input window, operand 6, single buffered']
    #allocation8 [shape = 'u8[8192]{0}', space=vmem, size = 0x2000, scoped, tag = 'output window, operand 0']
    %12 = vsyncpa [#allocation3], 0
    %13 = vsyncpa [#allocation6], 0
    %14 = vsyncpa [#allocation4], 0
    %s15 = scalar_lea.sflag [#allocation4], 1
    %16 = vsyncpa %s15, 0
    loop: start=0, step=1, limit=4
    $region2: #{tpu_custom_call.1} parent=1 // loop_pre_header
      _
    $region3: #{tpu_custom_call.1} parent=1 // loop_header
      %s18 = sphi 0, %s22
      %p19 = scmp.ge.s32.totalorder %s18, 4
      %s28 = sphi 0, %s30
      %s31 = sphi 0, %s28
      %s32 = sphi 0, %s31
      %s48 = sphi 0, %s32
      %s52 = sphi 0, %s52
      %s54 = sphi 0, %s52
      %s55 = sphi 0, %s54
      %s69 = sphi 0, %s55
      %s73 = sphi 0, %s73
      %s75 = sphi 0, %s73
      %s76 = sphi 0, %s75
      %s90 = sphi 0, %s76
      %s94 = sphi 0, %s94
      %s96 = sphi 0, %s94
      %s97 = sphi 0, %s96
      %s111 = sphi 0, %s97
      %s115 = sphi 0, %s115
      %s117 = sphi 0, %s115
      %s118 = sphi 0, %s117
      %s132 = sphi 0, %s118
      %s136 = sphi 0, %s136
      %s138 = sphi 0, %s136
      %s139 = sphi 0, %s138
      %s153 = sphi 0, %s139
      %s157 = sphi 0, %s157
      %s159 = sphi 0, %s157
      %s160 = sphi 0, %s159
      %s174 = sphi 0, %s160
      %s180 = sphi 0, %s182
      %s183 = sphi 0, %s180
      %s184 = sphi 0, %s183
      %s200 = sphi 0, %s184
    $region4: #{tpu_custom_call.1} parent=1 // loop_header_branch
      %21 = sbr.rel (%p19) target = $region8
    $region5: #{tpu_custom_call.1} parent=1 // loop_body
      %s23 = ssub.s32 %s18, 1
      %s24 = ssub.s32 %s18, 2
      %s25 = sadd.s32 %s18, 1
      %s26 = ssub.s32 %s18, %s25
      %p27 = scmp.eq.s32.totalorder %s26, 0
      %s29 = sadd.s32 %s28, 1
      %s30 = scalar_select %p27, %s28, %s29
      %p33 = pneg %p27
      %p34 = scmp.eq.s32.totalorder %s18, 1
      %p35 = por %p33, %p34
      %p36 = scmp.ne.s32.totalorder %s28, %s31
      %p37 = scmp.eq.s32.totalorder %s18, 0
      %p38 = por %p36, %p37
      %p39 = scmp.ne.s32.totalorder %s28, %s31
      %p40 = scmp.eq.s32.totalorder %s23, 1
      %p41 = por %p39, %p40
      %p42 = scmp.ne.s32.totalorder %s31, %s32
      %p43 = scmp.eq.s32.totalorder %s23, 0
      %p44 = por %p42, %p43
      %p45 = scmp.ne.s32.totalorder %s31, %s32
      %p46 = scmp.eq.s32.totalorder %s24, 1
      %p47 = por %p45, %p46
      %p49 = scmp.ne.s32.totalorder %s32, %s48
      %p50 = scmp.eq.s32.totalorder %s24, 0
      %p51 = por %p49, %p50
      %s53 = sadd.s32 %s52, 1
      %p56 = scmp.eq.s32.totalorder %s18, 1
      %p57 = scmp.ne.s32.totalorder %s52, %s54
      %p58 = scmp.eq.s32.totalorder %s18, 0
      %p59 = por %p57, %p58
      %p60 = scmp.ne.s32.totalorder %s52, %s54
      %p61 = scmp.eq.s32.totalorder %s23, 1
      %p62 = por %p60, %p61
      %p63 = scmp.ne.s32.totalorder %s54, %s55
      %p64 = scmp.eq.s32.totalorder %s23, 0
      %p65 = por %p63, %p64
      %p66 = scmp.ne.s32.totalorder %s54, %s55
      %p67 = scmp.eq.s32.totalorder %s24, 1
      %p68 = por %p66, %p67
      %p70 = scmp.ne.s32.totalorder %s55, %s69
      %p71 = scmp.eq.s32.totalorder %s24, 0
      %p72 = por %p70, %p71
      %s74 = sadd.s32 %s73, 1
      %p77 = scmp.eq.s32.totalorder %s18, 1
      %p78 = scmp.ne.s32.totalorder %s73, %s75
      %p79 = scmp.eq.s32.totalorder %s18, 0
      %p80 = por %p78, %p79
      %p81 = scmp.ne.s32.totalorder %s73, %s75
      %p82 = scmp.eq.s32.totalorder %s23, 1
      %p83 = por %p81, %p82
      %p84 = scmp.ne.s32.totalorder %s75, %s76
      %p85 = scmp.eq.s32.totalorder %s23, 0
      %p86 = por %p84, %p85
      %p87 = scmp.ne.s32.totalorder %s75, %s76
      %p88 = scmp.eq.s32.totalorder %s24, 1
      %p89 = por %p87, %p88
      %p91 = scmp.ne.s32.totalorder %s76, %s90
      %p92 = scmp.eq.s32.totalorder %s24, 0
      %p93 = por %p91, %p92
      %s95 = sadd.s32 %s94, 1
      %p98 = scmp.eq.s32.totalorder %s18, 1
      %p99 = scmp.ne.s32.totalorder %s94, %s96
      %p100 = scmp.eq.s32.totalorder %s18, 0
      %p101 = por %p99, %p100
      %p102 = scmp.ne.s32.totalorder %s94, %s96
      %p103 = scmp.eq.s32.totalorder %s23, 1
      %p104 = por %p102, %p103
      %p105 = scmp.ne.s32.totalorder %s96, %s97
      %p106 = scmp.eq.s32.totalorder %s23, 0
      %p107 = por %p105, %p106
      %p108 = scmp.ne.s32.totalorder %s96, %s97
      %p109 = scmp.eq.s32.totalorder %s24, 1
      %p110 = por %p108, %p109
      %p112 = scmp.ne.s32.totalorder %s97, %s111
      %p113 = scmp.eq.s32.totalorder %s24, 0
      %p114 = por %p112, %p113
      %s116 = sadd.s32 %s115, 1
      %p119 = scmp.eq.s32.totalorder %s18, 1
      %p120 = scmp.ne.s32.totalorder %s115, %s117
      %p121 = scmp.eq.s32.totalorder %s18, 0
      %p122 = por %p120, %p121
      %p123 = scmp.ne.s32.totalorder %s115, %s117
      %p124 = scmp.eq.s32.totalorder %s23, 1
      %p125 = por %p123, %p124
      %p126 = scmp.ne.s32.totalorder %s117, %s118
      %p127 = scmp.eq.s32.totalorder %s23, 0
      %p128 = por %p126, %p127
      %p129 = scmp.ne.s32.totalorder %s117, %s118
      %p130 = scmp.eq.s32.totalorder %s24, 1
      %p131 = por %p129, %p130
      %p133 = scmp.ne.s32.totalorder %s118, %s132
      %p134 = scmp.eq.s32.totalorder %s24, 0
      %p135 = por %p133, %p134
      %s137 = sadd.s32 %s136, 1
      %p140 = scmp.eq.s32.totalorder %s18, 1
      %p141 = scmp.ne.s32.totalorder %s136, %s138
      %p142 = scmp.eq.s32.totalorder %s18, 0
      %p143 = por %p141, %p142
      %p144 = scmp.ne.s32.totalorder %s136, %s138
      %p145 = scmp.eq.s32.totalorder %s23, 1
      %p146 = por %p144, %p145
      %p147 = scmp.ne.s32.totalorder %s138, %s139
      %p148 = scmp.eq.s32.totalorder %s23, 0
      %p149 = por %p147, %p148
      %p150 = scmp.ne.s32.totalorder %s138, %s139
      %p151 = scmp.eq.s32.totalorder %s24, 1
      %p152 = por %p150, %p151
      %p154 = scmp.ne.s32.totalorder %s139, %s153
      %p155 = scmp.eq.s32.totalorder %s24, 0
      %p156 = por %p154, %p155
      %s158 = sadd.s32 %s157, 1
      %p161 = scmp.eq.s32.totalorder %s18, 1
      %p162 = scmp.ne.s32.totalorder %s157, %s159
      %p163 = scmp.eq.s32.totalorder %s18, 0
      %p164 = por %p162, %p163
      %p165 = scmp.ne.s32.totalorder %s157, %s159
      %p166 = scmp.eq.s32.totalorder %s23, 1
      %p167 = por %p165, %p166
      %p168 = scmp.ne.s32.totalorder %s159, %s160
      %p169 = scmp.eq.s32.totalorder %s23, 0
      %p170 = por %p168, %p169
      %p171 = scmp.ne.s32.totalorder %s159, %s160
      %p172 = scmp.eq.s32.totalorder %s24, 1
      %p173 = por %p171, %p172
      %p175 = scmp.ne.s32.totalorder %s160, %s174
      %p176 = scmp.eq.s32.totalorder %s24, 0
      %p177 = por %p175, %p176
      %s178 = ssub.s32 %s18, %s25
      %p179 = scmp.eq.s32.totalorder %s178, 0
      %s181 = sadd.s32 %s180, 1
      %s182 = scalar_select %p179, %s180, %s181
      %p185 = pneg %p179
      %p186 = scmp.eq.s32.totalorder %s18, 1
      %p187 = por %p185, %p186
      %p188 = scmp.ne.s32.totalorder %s180, %s183
      %p189 = scmp.eq.s32.totalorder %s18, 0
      %p190 = por %p188, %p189
      %p191 = scmp.ne.s32.totalorder %s180, %s183
      %p192 = scmp.eq.s32.totalorder %s23, 1
      %p193 = por %p191, %p192
      %p194 = scmp.ne.s32.totalorder %s183, %s184
      %p195 = scmp.eq.s32.totalorder %s23, 0
      %p196 = por %p194, %p195
      %p197 = scmp.ne.s32.totalorder %s183, %s184
      %p198 = scmp.eq.s32.totalorder %s24, 1
      %p199 = por %p197, %p198
      %p201 = scmp.ne.s32.totalorder %s184, %s200
      %p202 = scmp.eq.s32.totalorder %s24, 0
      %p203 = por %p201, %p202
      %p204 = scmp.le.s32.totalorder 1, %s18
      %p205 = scmp.lt.s32.totalorder %s18, 3
      %p206 = pnand %p204, %p205
      %p207 = pneg %p206
      // Predicated region
      $region9: #{tpu_custom_call.1} parent=5 // pred_check
        _
      $region10: #{tpu_custom_call.1} parent=5 // pred_check_branch
        %209 = sbr.rel (%p206) target = $region12
      $region11: #{tpu_custom_call.1} parent=5 // pred_region
        %s210 = ssub.s32 %s18, 1
        // Predicated region
        $region13: #{tpu_custom_call.1} parent=11 // pred_check
          %p211 = pneg %p65
        $region14: #{tpu_custom_call.1} parent=11 // pred_check_branch
          %213 = sbr.rel (%p211) target = $region16
        $region15: #{tpu_custom_call.1} parent=11 // pred_region
          _
        $region16: #{tpu_custom_call.1} parent=11 // pred_fallthru
          _
        // Predicated region
        $region17: #{tpu_custom_call.1} parent=11 // pred_check
          %p214 = pneg %p86
        $region18: #{tpu_custom_call.1} parent=11 // pred_check_branch
          %216 = sbr.rel (%p214) target = $region20
        $region19: #{tpu_custom_call.1} parent=11 // pred_region
          _
        $region20: #{tpu_custom_call.1} parent=11 // pred_fallthru
          _
        // Predicated region
        $region21: #{tpu_custom_call.1} parent=11 // pred_check
          %p217 = pneg %p107
        $region22: #{tpu_custom_call.1} parent=11 // pred_check_branch
          %219 = sbr.rel (%p217) target = $region24
        $region23: #{tpu_custom_call.1} parent=11 // pred_region
          %s221 = ssub.s32 65536, 65536
          %222 = vsyncadd [#allocation3], %s221
          %s223 = sshll.u32 [#allocation2], 4
          %s224 = int_to_ptr.vmem [resolvable:$true] %s223
          %229 = dma.hbm_to_vmem [thread:$0]  %s3, 65536, %s224, [#allocation3], 64, 64, 4
        $region24: #{tpu_custom_call.1} parent=11 // pred_fallthru
          _
        // Predicated region
        $region25: #{tpu_custom_call.1} parent=11 // pred_check
          %p230 = pneg %p128
        $region26: #{tpu_custom_call.1} parent=11 // pred_check_branch
          %232 = sbr.rel (%p230) target = $region28
        $region27: #{tpu_custom_call.1} parent=11 // pred_region
          %s234 = ssub.s32 16, 16
          %235 = vsyncadd [#allocation6], %s234
          %s237 = sshll.u32 [#allocation5], 4
          %s238 = int_to_ptr.vmem [resolvable:$true] %s237
          %240 = dma.hbm_to_vmem [thread:$0]  %s4, 16, %s238, [#allocation6]
        $region28: #{tpu_custom_call.1} parent=11 // pred_fallthru
          _
        // Predicated region
        $region29: #{tpu_custom_call.1} parent=11 // pred_check
          %p241 = pneg %p149
        $region30: #{tpu_custom_call.1} parent=11 // pred_check_branch
          %243 = sbr.rel (%p241) target = $region32
        $region31: #{tpu_custom_call.1} parent=11 // pred_region
          _
        $region32: #{tpu_custom_call.1} parent=11 // pred_fallthru
          _
        // Predicated region
        $region33: #{tpu_custom_call.1} parent=11 // pred_check
          %p244 = pneg %p170
        $region34: #{tpu_custom_call.1} parent=11 // pred_check_branch
          %246 = sbr.rel (%p244) target = $region36
        $region35: #{tpu_custom_call.1} parent=11 // pred_region
          %s248 = ssub.s32 16, 16
          %249 = vsyncadd [#allocation6], %s248
          %s251 = sshll.u32 [#allocation7], 4
          %s252 = int_to_ptr.vmem [resolvable:$true] %s251
          %254 = dma.hbm_to_vmem [thread:$0]  %s6, 16, %s252, [#allocation6]
        $region36: #{tpu_custom_call.1} parent=11 // pred_fallthru
          _
      $region12: #{tpu_custom_call.1} parent=5 // pred_fallthru
        _
      %p255 = scmp.lt.s32.totalorder %s18, 2
      // Predicated region
      $region37: #{tpu_custom_call.1} parent=5 // pred_check
        %p256 = pneg %p255
      $region38: #{tpu_custom_call.1} parent=5 // pred_check_branch
        %258 = sbr.rel (%p256) target = $region40
      $region39: #{tpu_custom_call.1} parent=5 // pred_region
        // Predicated region
        $region41: #{tpu_custom_call.1} parent=39 // pred_check
          %p259 = pneg %p38
        $region42: #{tpu_custom_call.1} parent=39 // pred_check_branch
          %261 = sbr.rel (%p259) target = $region44
        $region43: #{tpu_custom_call.1} parent=39 // pred_region
          %p262 = scmp.lt.s32.totalorder %s18, 1
          %s263 = scalar_select %p262, %s18, 1
          %s264 = smul.addr %s263, 128
          %s265 = smul.addr %s264, 4
          %s266 = scalar_lea.vmem %s0, %s265
        $region44: #{tpu_custom_call.1} parent=39 // pred_fallthru
          _
      $region40: #{tpu_custom_call.1} parent=5 // pred_fallthru
        _
      %p267 = scmp.le.s32.totalorder 1, %s18
      %p268 = scmp.lt.s32.totalorder %s18, 3
      %p269 = pnand %p267, %p268
      %p270 = pneg %p269
      // Predicated region
      $region45: #{tpu_custom_call.1} parent=5 // pred_check
        _
      $region46: #{tpu_custom_call.1} parent=5 // pred_check_branch
        %272 = sbr.rel (%p269) target = $region48
      $region47: #{tpu_custom_call.1} parent=5 // pred_region
        %s273 = ssub.s32 %s18, 1
        // Predicated region
        $region49: #{tpu_custom_call.1} parent=47 // pred_check
          %p274 = pneg %p107
        $region50: #{tpu_custom_call.1} parent=47 // pred_check_branch
          %276 = sbr.rel (%p274) target = $region52
        $region51: #{tpu_custom_call.1} parent=47 // pred_region
          %277 = dma.done [#allocation3], 65536
        $region52: #{tpu_custom_call.1} parent=47 // pred_fallthru
          _
        // Predicated region
        $region53: #{tpu_custom_call.1} parent=47 // pred_check
          %p278 = pneg %p128
        $region54: #{tpu_custom_call.1} parent=47 // pred_check_branch
          %280 = sbr.rel (%p278) target = $region56
        $region55: #{tpu_custom_call.1} parent=47 // pred_region
          %281 = dma.done [#allocation6], 16
        $region56: #{tpu_custom_call.1} parent=47 // pred_fallthru
          _
        // Predicated region
        $region57: #{tpu_custom_call.1} parent=47 // pred_check
          %p282 = pneg %p170
        $region58: #{tpu_custom_call.1} parent=47 // pred_check_branch
          %284 = sbr.rel (%p282) target = $region60
        $region59: #{tpu_custom_call.1} parent=47 // pred_region
          %285 = dma.done [#allocation6], 16
        $region60: #{tpu_custom_call.1} parent=47 // pred_fallthru
          _
        %p286 = scmp.lt.s32.totalorder %s23, 1
        %s287 = scalar_select %p286, %s23, 1
        %s288 = smul.addr %s287, 128
        %s289 = smul.addr %s288, 4
        %s290 = scalar_lea.vmem %s0, %s289
        %p291 = pneg %p44
        %p292 = pneg %p41
        %p293 = pneg %p65
        %p294 = pneg %p62
        %p295 = pneg %p86
        %p296 = pneg %p83
        %p297 = pneg %p107
        %p298 = pneg %p104
        %p299 = pneg %p128
        %p300 = pneg %p125
        %p301 = pneg %p149
        %p302 = pneg %p146
        %p303 = pneg %p170
        %p304 = pneg %p167
        %p305 = pneg %p196
        %p306 = pneg %p193
        %s307 = sand.u32 %s183, 1
        %s308 = scalar_lea.sflag [#allocation4], %s307
        %s309 = sand.u32 %s183, 1
        %s310 = smul.addr %s309, 8
        %s311 = scalar_lea.vmem [#allocation8], %s310
        %p312 = scmp.lt.s32.totalorder %s23, 1
        %s313 = scalar_select %p312, %s23, 1
        %s314 = smul.addr %s313, 128
        %s315 = smul.addr %s314, 4
        %s316 = scalar_lea.vmem %s0, %s315
        %v318 = vld [vmem:[%s1] sm:$0xf]
        %v319 = vld [vmem:[%s1 + $0x4] sm:$0xf]
        %v320 = vld [vmem:[%s1 + $0x8] sm:$0xf]
        %v321 = vld [vmem:[%s1 + $0xc] sm:$0xf]
        %v322 = vld [vmem:[%s316] sm:$0xff]
        %v323 = vld [vmem:[%s316 + $0x8] sm:$0xff]
        %v324 = vld [vmem:[%s316 + $0x10] sm:$0xff]
        %v325 = vld [vmem:[%s316 + $0x18] sm:$0xff]
        %v326 = vld [vmem:[%s316 + $0x20] sm:$0xff]
        %v327 = vld [vmem:[%s316 + $0x28] sm:$0xff]
        %v328 = vld [vmem:[%s316 + $0x30] sm:$0xff]
        %v329 = vld [vmem:[%s316 + $0x38] sm:$0xff]
        %v330 = vld [vmem:[%s316 + $0x40] sm:$0xff]
        %v331 = vld [vmem:[%s316 + $0x48] sm:$0xff]
        %v332 = vld [vmem:[%s316 + $0x50] sm:$0xff]
        %v333 = vld [vmem:[%s316 + $0x58] sm:$0xff]
        %v334 = vld [vmem:[%s316 + $0x60] sm:$0xff]
        %v335 = vld [vmem:[%s316 + $0x68] sm:$0xff]
        %v336 = vld [vmem:[%s316 + $0x70] sm:$0xff]
        %v337 = vld [vmem:[%s316 + $0x78] sm:$0xff]
        %v338 = vld [vmem:[%s316 + $0x80] sm:$0xff]
        %v339 = vld [vmem:[%s316 + $0x88] sm:$0xff]
        %v340 = vld [vmem:[%s316 + $0x90] sm:$0xff]
        %v341 = vld [vmem:[%s316 + $0x98] sm:$0xff]
        %v342 = vld [vmem:[%s316 + $0xa0] sm:$0xff]
        %v343 = vld [vmem:[%s316 + $0xa8] sm:$0xff]
        %v344 = vld [vmem:[%s316 + $0xb0] sm:$0xff]
        %v345 = vld [vmem:[%s316 + $0xb8] sm:$0xff]
        %v346 = vld [vmem:[%s316 + $0xc0] sm:$0xff]
        %v347 = vld [vmem:[%s316 + $0xc8] sm:$0xff]
        %v348 = vld [vmem:[%s316 + $0xd0] sm:$0xff]
        %v349 = vld [vmem:[%s316 + $0xd8] sm:$0xff]
        %v350 = vld [vmem:[%s316 + $0xe0] sm:$0xff]
        %v351 = vld [vmem:[%s316 + $0xe8] sm:$0xff]
        %v352 = vld [vmem:[%s316 + $0xf0] sm:$0xff]
        %v353 = vld [vmem:[%s316 + $0xf8] sm:$0xff]
        %v354 = vld [vmem:[%s316 + $0x100] sm:$0x11]
        %v355 = vld [vmem:[%s316 + $0x108] sm:$0x11]
        %v356 = vld [vmem:[%s316 + $0x110] sm:$0x11]
        %v357 = vld [vmem:[%s316 + $0x118] sm:$0x11]
        %v358 = vld [vmem:[%s316 + $0x120] sm:$0x11]
        %v359 = vld [vmem:[%s316 + $0x128] sm:$0x11]
        %v360 = vld [vmem:[%s316 + $0x130] sm:$0x11]
        %v361 = vld [vmem:[%s316 + $0x138] sm:$0x11]
        %v362 = vld [vmem:[%s316 + $0x140] sm:$0x11]
        %v363 = vld [vmem:[%s316 + $0x148] sm:$0x11]
        %v364 = vld [vmem:[%s316 + $0x150] sm:$0x11]
        %v365 = vld [vmem:[%s316 + $0x158] sm:$0x11]
        %v366 = vld [vmem:[%s316 + $0x160] sm:$0x11]
        %v367 = vld [vmem:[%s316 + $0x168] sm:$0x11]
        %v368 = vld [vmem:[%s316 + $0x170] sm:$0x11]
        %v369 = vld [vmem:[%s316 + $0x178] sm:$0x11]
        %v370 = vld [vmem:[%s316 + $0x180] sm:$0x11]
        %v371 = vld [vmem:[%s316 + $0x188] sm:$0x11]
        %v372 = vld [vmem:[%s316 + $0x190] sm:$0x11]
        %v373 = vld [vmem:[%s316 + $0x198] sm:$0x11]
        %v374 = vld [vmem:[%s316 + $0x1a0] sm:$0x11]
        %v375 = vld [vmem:[%s316 + $0x1a8] sm:$0x11]
        %v376 = vld [vmem:[%s316 + $0x1b0] sm:$0x11]
        %v377 = vld [vmem:[%s316 + $0x1b8] sm:$0x11]
        %v378 = vld [vmem:[%s316 + $0x1c0] sm:$0x11]
        %v379 = vld [vmem:[%s316 + $0x1c8] sm:$0x11]
        %v380 = vld [vmem:[%s316 + $0x1d0] sm:$0x11]
        %v381 = vld [vmem:[%s316 + $0x1d8] sm:$0x11]
        %v382 = vld [vmem:[%s316 + $0x1e0] sm:$0x11]
        %v383 = vld [vmem:[%s316 + $0x1e8] sm:$0x11]
        %v384 = vld [vmem:[%s316 + $0x1f0] sm:$0x11]
        %v385 = vld [vmem:[%s316 + $0x1f8] sm:$0x11]
        %v386 = vld [vmem:[%s2] sm:$0xff]
        %v387 = vld [vmem:[%s2 + $0x8] sm:$0xff]
        %v388 = vld [vmem:[%s2 + $0x10] sm:$0xff]
        %v389 = vld [vmem:[%s2 + $0x18] sm:$0xff]
        %391 = vset.pattern.permute.xlu0 0
        %392 = vperm.xlu0 %391, %v386
        %v393 = vpop.permute.xlu0 %392
        %396 = vset.pattern.permute.xlu0 0
        %397 = vperm.xlu0 %396, %v387
        %v398 = vpop.permute.xlu0 %397
        %401 = vset.pattern.permute.xlu0 0
        %402 = vperm.xlu0 %401, %v388
        %v403 = vpop.permute.xlu0 %402
        %406 = vset.pattern.permute.xlu0 0
        %407 = vperm.xlu0 %406, %v389
        %v408 = vpop.permute.xlu0 %407
        %v414 = vunpack.c.l.b16 %v318
        %v415 = vunpack.c.l.b16 %v319
        %v416 = vunpack.c.l.b16 %v320
        %v417 = vunpack.c.l.b16 %v321
        %v418 = vpack.c.b16 %v415, %v414
        %v419 = vpack.c.b16 %v417, %v416
        %v484 = vunpack.c.l.b16 %v322
        %v485 = vunpack.c.h.b16 %v322
        %v486 = vunpack.c.l.b16 %v323
        %v487 = vunpack.c.h.b16 %v323
        %v488 = vunpack.c.l.b16 %v324
        %v489 = vunpack.c.h.b16 %v324
        %v490 = vunpack.c.l.b16 %v325
        %v491 = vunpack.c.h.b16 %v325
        %v492 = vunpack.c.l.b16 %v326
        %v493 = vunpack.c.h.b16 %v326
        %v494 = vunpack.c.l.b16 %v327
        %v495 = vunpack.c.h.b16 %v327
        %v496 = vunpack.c.l.b16 %v328
        %v497 = vunpack.c.h.b16 %v328
        %v498 = vunpack.c.l.b16 %v329
        %v499 = vunpack.c.h.b16 %v329
        %v500 = vunpack.c.l.b16 %v330
        %v501 = vunpack.c.h.b16 %v330
        %v502 = vunpack.c.l.b16 %v331
        %v503 = vunpack.c.h.b16 %v331
        %v504 = vunpack.c.l.b16 %v332
        %v505 = vunpack.c.h.b16 %v332
        %v506 = vunpack.c.l.b16 %v333
        %v507 = vunpack.c.h.b16 %v333
        %v508 = vunpack.c.l.b16 %v334
        %v509 = vunpack.c.h.b16 %v334
        %v510 = vunpack.c.l.b16 %v335
        %v511 = vunpack.c.h.b16 %v335
        %v512 = vunpack.c.l.b16 %v336
        %v513 = vunpack.c.h.b16 %v336
        %v514 = vunpack.c.l.b16 %v337
        %v515 = vunpack.c.h.b16 %v337
        %v516 = vunpack.c.l.b16 %v338
        %v517 = vunpack.c.h.b16 %v338
        %v518 = vunpack.c.l.b16 %v339
        %v519 = vunpack.c.h.b16 %v339
        %v520 = vunpack.c.l.b16 %v340
        %v521 = vunpack.c.h.b16 %v340
        %v522 = vunpack.c.l.b16 %v341
        %v523 = vunpack.c.h.b16 %v341
        %v524 = vunpack.c.l.b16 %v342
        %v525 = vunpack.c.h.b16 %v342
        %v526 = vunpack.c.l.b16 %v343
        %v527 = vunpack.c.h.b16 %v343
        %v528 = vunpack.c.l.b16 %v344
        %v529 = vunpack.c.h.b16 %v344
        %v530 = vunpack.c.l.b16 %v345
        %v531 = vunpack.c.h.b16 %v345
        %v532 = vunpack.c.l.b16 %v346
        %v533 = vunpack.c.h.b16 %v346
        %v534 = vunpack.c.l.b16 %v347
        %v535 = vunpack.c.h.b16 %v347
        %v536 = vunpack.c.l.b16 %v348
        %v537 = vunpack.c.h.b16 %v348
        %v538 = vunpack.c.l.b16 %v349
        %v539 = vunpack.c.h.b16 %v349
        %v540 = vunpack.c.l.b16 %v350
        %v541 = vunpack.c.h.b16 %v350
        %v542 = vunpack.c.l.b16 %v351
        %v543 = vunpack.c.h.b16 %v351
        %v544 = vunpack.c.l.b16 %v352
        %v545 = vunpack.c.h.b16 %v352
        %v546 = vunpack.c.l.b16 %v353
        %v547 = vunpack.c.h.b16 %v353
        %v548 = vunpack.c.l.b16 %v354
        %v549 = vunpack.c.h.b16 %v354
        %v550 = vunpack.c.l.b16 %v355
        %v551 = vunpack.c.h.b16 %v355
        %v552 = vunpack.c.l.b16 %v356
        %v553 = vunpack.c.h.b16 %v356
        %v554 = vunpack.c.l.b16 %v357
        %v555 = vunpack.c.h.b16 %v357
        %v556 = vunpack.c.l.b16 %v358
        %v557 = vunpack.c.h.b16 %v358
        %v558 = vunpack.c.l.b16 %v359
        %v559 = vunpack.c.h.b16 %v359
        %v560 = vunpack.c.l.b16 %v360
        %v561 = vunpack.c.h.b16 %v360
        %v562 = vunpack.c.l.b16 %v361
        %v563 = vunpack.c.h.b16 %v361
        %v564 = vunpack.c.l.b16 %v362
        %v565 = vunpack.c.h.b16 %v362
        %v566 = vunpack.c.l.b16 %v363
        %v567 = vunpack.c.h.b16 %v363
        %v568 = vunpack.c.l.b16 %v364
        %v569 = vunpack.c.h.b16 %v364
        %v570 = vunpack.c.l.b16 %v365
        %v571 = vunpack.c.h.b16 %v365
        %v572 = vunpack.c.l.b16 %v366
        %v573 = vunpack.c.h.b16 %v366
        %v574 = vunpack.c.l.b16 %v367
        %v575 = vunpack.c.h.b16 %v367
        %v576 = vunpack.c.l.b16 %v368
        %v577 = vunpack.c.h.b16 %v368
        %v578 = vunpack.c.l.b16 %v369
        %v579 = vunpack.c.h.b16 %v369
        %v580 = vunpack.c.l.b16 %v370
        %v581 = vunpack.c.h.b16 %v370
        %v582 = vunpack.c.l.b16 %v371
        %v583 = vunpack.c.h.b16 %v371
        %v584 = vunpack.c.l.b16 %v372
        %v585 = vunpack.c.h.b16 %v372
        %v586 = vunpack.c.l.b16 %v373
        %v587 = vunpack.c.h.b16 %v373
        %v588 = vunpack.c.l.b16 %v374
        %v589 = vunpack.c.h.b16 %v374
        %v590 = vunpack.c.l.b16 %v375
        %v591 = vunpack.c.h.b16 %v375
        %v592 = vunpack.c.l.b16 %v376
        %v593 = vunpack.c.h.b16 %v376
        %v594 = vunpack.c.l.b16 %v377
        %v595 = vunpack.c.h.b16 %v377
        %v596 = vunpack.c.l.b16 %v378
        %v597 = vunpack.c.h.b16 %v378
        %v598 = vunpack.c.l.b16 %v379
        %v599 = vunpack.c.h.b16 %v379
        %v600 = vunpack.c.l.b16 %v380
        %v601 = vunpack.c.h.b16 %v380
        %v602 = vunpack.c.l.b16 %v381
        %v603 = vunpack.c.h.b16 %v381
        %v604 = vunpack.c.l.b16 %v382
        %v605 = vunpack.c.h.b16 %v382
        %v606 = vunpack.c.l.b16 %v383
        %v607 = vunpack.c.h.b16 %v383
        %v608 = vunpack.c.l.b16 %v384
        %v609 = vunpack.c.h.b16 %v384
        %v610 = vunpack.c.l.b16 %v385
        %v611 = vunpack.c.h.b16 %v385
        %v612 = vpack.c.b16 %v548, %v484
        %v613 = vpack.c.b16 %v549, %v485
        %v614 = vpack.c.b16 %v550, %v486
        %v615 = vpack.c.b16 %v551, %v487
        %v616 = vpack.c.b16 %v552, %v488
        %v617 = vpack.c.b16 %v553, %v489
        %v618 = vpack.c.b16 %v554, %v490
        %v619 = vpack.c.b16 %v555, %v491
        %v620 = vpack.c.b16 %v556, %v492
        %v621 = vpack.c.b16 %v557, %v493
        %v622 = vpack.c.b16 %v558, %v494
        %v623 = vpack.c.b16 %v559, %v495
        %v624 = vpack.c.b16 %v560, %v496
        %v625 = vpack.c.b16 %v561, %v497
        %v626 = vpack.c.b16 %v562, %v498
        %v627 = vpack.c.b16 %v563, %v499
        %v628 = vpack.c.b16 %v564, %v500
        %v629 = vpack.c.b16 %v565, %v501
        %v630 = vpack.c.b16 %v566, %v502
        %v631 = vpack.c.b16 %v567, %v503
        %v632 = vpack.c.b16 %v568, %v504
        %v633 = vpack.c.b16 %v569, %v505
        %v634 = vpack.c.b16 %v570, %v506
        %v635 = vpack.c.b16 %v571, %v507
        %v636 = vpack.c.b16 %v572, %v508
        %v637 = vpack.c.b16 %v573, %v509
        %v638 = vpack.c.b16 %v574, %v510
        %v639 = vpack.c.b16 %v575, %v511
        %v640 = vpack.c.b16 %v576, %v512
        %v641 = vpack.c.b16 %v577, %v513
        %v642 = vpack.c.b16 %v578, %v514
        %v643 = vpack.c.b16 %v579, %v515
        %v644 = vpack.c.b16 %v580, %v516
        %v645 = vpack.c.b16 %v581, %v517
        %v646 = vpack.c.b16 %v582, %v518
        %v647 = vpack.c.b16 %v583, %v519
        %v648 = vpack.c.b16 %v584, %v520
        %v649 = vpack.c.b16 %v585, %v521
        %v650 = vpack.c.b16 %v586, %v522
        %v651 = vpack.c.b16 %v587, %v523
        %v652 = vpack.c.b16 %v588, %v524
        %v653 = vpack.c.b16 %v589, %v525
        %v654 = vpack.c.b16 %v590, %v526
        %v655 = vpack.c.b16 %v591, %v527
        %v656 = vpack.c.b16 %v592, %v528
        %v657 = vpack.c.b16 %v593, %v529
        %v658 = vpack.c.b16 %v594, %v530
        %v659 = vpack.c.b16 %v595, %v531
        %v660 = vpack.c.b16 %v596, %v532
        %v661 = vpack.c.b16 %v597, %v533
        %v662 = vpack.c.b16 %v598, %v534
        %v663 = vpack.c.b16 %v599, %v535
        %v664 = vpack.c.b16 %v600, %v536
        %v665 = vpack.c.b16 %v601, %v537
        %v666 = vpack.c.b16 %v602, %v538
        %v667 = vpack.c.b16 %v603, %v539
        %v668 = vpack.c.b16 %v604, %v540
        %v669 = vpack.c.b16 %v605, %v541
        %v670 = vpack.c.b16 %v606, %v542
        %v671 = vpack.c.b16 %v607, %v543
        %v672 = vpack.c.b16 %v608, %v544
        %v673 = vpack.c.b16 %v609, %v545
        %v674 = vpack.c.b16 %v610, %v546
        %v675 = vpack.c.b16 %v611, %v547
        %vm676 = vcmask 72704
        %v678 = vsel %vm676, %v418, 0
        %v681 = vsel %vm676, %v419, 0
        %vm683 = vcmask 1043456
        %vm684 = vcmask 1044480
        %v685 = vsel %vm683, 4294967295, 65535
        %v686 = vsel %vm684, %v685, 0
        %v688 = vand.u32 %v612, %v686
        %v691 = vand.u32 %v613, %v686
        %v694 = vand.u32 %v614, %v686
        %v697 = vand.u32 %v615, %v686
        %v700 = vand.u32 %v616, %v686
        %v703 = vand.u32 %v617, %v686
        %v706 = vand.u32 %v618, %v686
        %v709 = vand.u32 %v619, %v686
        %v712 = vand.u32 %v620, %v686
        %v715 = vand.u32 %v621, %v686
        %v718 = vand.u32 %v622, %v686
        %v721 = vand.u32 %v623, %v686
        %v724 = vand.u32 %v624, %v686
        %v727 = vand.u32 %v625, %v686
        %v730 = vand.u32 %v626, %v686
        %v733 = vand.u32 %v627, %v686
        %v736 = vand.u32 %v628, %v686
        %v739 = vand.u32 %v629, %v686
        %v742 = vand.u32 %v630, %v686
        %v745 = vand.u32 %v631, %v686
        %v748 = vand.u32 %v632, %v686
        %v751 = vand.u32 %v633, %v686
        %v754 = vand.u32 %v634, %v686
        %v757 = vand.u32 %v635, %v686
        %v760 = vand.u32 %v636, %v686
        %v763 = vand.u32 %v637, %v686
        %v766 = vand.u32 %v638, %v686
        %v769 = vand.u32 %v639, %v686
        %v772 = vand.u32 %v640, %v686
        %v775 = vand.u32 %v641, %v686
        %v778 = vand.u32 %v642, %v686
        %v781 = vand.u32 %v643, %v686
        %v784 = vand.u32 %v644, %v686
        %v787 = vand.u32 %v645, %v686
        %v790 = vand.u32 %v646, %v686
        %v793 = vand.u32 %v647, %v686
        %v796 = vand.u32 %v648, %v686
        %v799 = vand.u32 %v649, %v686
        %v802 = vand.u32 %v650, %v686
        %v805 = vand.u32 %v651, %v686
        %v808 = vand.u32 %v652, %v686
        %v811 = vand.u32 %v653, %v686
        %v814 = vand.u32 %v654, %v686
        %v817 = vand.u32 %v655, %v686
        %v820 = vand.u32 %v656, %v686
        %v823 = vand.u32 %v657, %v686
        %v826 = vand.u32 %v658, %v686
        %v829 = vand.u32 %v659, %v686
        %v832 = vand.u32 %v660, %v686
        %v835 = vand.u32 %v661, %v686
        %v838 = vand.u32 %v662, %v686
        %v841 = vand.u32 %v663, %v686
        %v844 = vand.u32 %v664, %v686
        %v847 = vand.u32 %v665, %v686
        %v850 = vand.u32 %v666, %v686
        %v853 = vand.u32 %v667, %v686
        %v856 = vand.u32 %v668, %v686
        %v859 = vand.u32 %v669, %v686
        %v862 = vand.u32 %v670, %v686
        %v865 = vand.u32 %v671, %v686
        %v868 = vand.u32 %v672, %v686
        %v871 = vand.u32 %v673, %v686
        %v874 = vand.u32 %v674, %v686
        %v877 = vand.u32 %v675, %v686
        %879 = vmatprep.subr.bf16.mxu0 %v691
        %880 = vmatpush1.bf16.msra.mxu0 %v688
        %881 = vmatprep.subr.bf16.mxu0 0
        %882 = vmatpush1.bf16.msra.mxu0 0
        %883 = vmatprep.subr.bf16.mxu0 0
        %884 = vmatpush1.bf16.msra.mxu0 0
        %885 = vmatprep.subr.bf16.mxu0 0
        %886 = vmatpush1.bf16.msra.mxu0 0
        %887 = vmatprep.subr.bf16.mxu0 0
        %888 = vmatpush1.bf16.msra.mxu0 0
        %889 = vmatprep.subr.bf16.mxu0 0
        %890 = vmatpush1.bf16.msra.mxu0 0
        %891 = vmatprep.subr.bf16.mxu0 0
        %892 = vmatpush1.bf16.msra.mxu0 0
        %893 = vmatprep.subr.bf16.mxu0 0
        %894 = vmatpush1.bf16.msra.mxu0 0
        %895 = vmatprep.subr.bf16.mxu0 0
        %896 = vmatpush1.bf16.msra.mxu0 0
        %897 = vmatprep.subr.bf16.mxu0 0
        %898 = vmatpush1.bf16.msra.mxu0 0
        %899 = vmatprep.subr.bf16.mxu0 0
        %900 = vmatpush1.bf16.msra.mxu0 0
        %901 = vmatprep.subr.bf16.mxu0 0
        %902 = vmatpush1.bf16.msra.mxu0 0
        %903 = vmatprep.subr.bf16.mxu0 0
        %904 = vmatpush1.bf16.msra.mxu0 0
        %905 = vmatprep.subr.bf16.mxu0 0
        %906 = vmatpush1.bf16.msra.mxu0 0
        %907 = vmatprep.subr.bf16.mxu0 0
        %908 = vmatpush1.bf16.msra.mxu0 0
        %909 = vmatprep.subr.bf16.mxu0 0
        %910 = vmatpush1.bf16.msra.mxu0 0
        %911 = vmatprep.mubr.bf16.mxu0 0
        %912 = vmatmul.mubr.bf16.gmra.mrb[0].mxu0 %v678
        %v913 = vpop.f32.mrb[0].mxu0
        %v914 = vadd.f32 %v393, %v913
        %v915 = vpop.f32.mrb[0].mxu0
        %v916 = vadd.f32 %v393, %v915
        %v917 = vpop.f32.mrb[0].mxu0
        %v918 = vadd.f32 %v398, %v917
        %v919 = vpop.f32.mrb[0].mxu0
        %v920 = vadd.f32 %v398, %v919
        %921 = vmatprep.mubr.bf16.mxu0 0
        %922 = vmatmul.mubr.bf16.gmra.mrb[0].mxu0 %v681
        %v923 = vpop.f32.mrb[0].mxu0
        %v924 = vadd.f32 %v403, %v923
        %v925 = vpop.f32.mrb[0].mxu0
        %v926 = vadd.f32 %v403, %v925
        %v927 = vpop.f32.mrb[0].mxu0
        %v928 = vadd.f32 %v408, %v927
        %v929 = vpop.f32.mrb[0].mxu0
        %v930 = vadd.f32 %v408, %v929
        %931 = vdwg.mxu0
        %932 = vmatprep.subr.bf16.mxu0 %v697
        %933 = vmatpush1.bf16.msra.mxu0 %v694
        %934 = vmatprep.subr.bf16.mxu0 0
        %935 = vmatpush1.bf16.msra.mxu0 0
        %936 = vmatprep.subr.bf16.mxu0 0
        %937 = vmatpush1.bf16.msra.mxu0 0
        %938 = vmatprep.subr.bf16.mxu0 0
        %939 = vmatpush1.bf16.msra.mxu0 0
        %940 = vmatprep.subr.bf16.mxu0 0
        %941 = vmatpush1.bf16.msra.mxu0 0
        %942 = vmatprep.subr.bf16.mxu0 0
        %943 = vmatpush1.bf16.msra.mxu0 0
        %944 = vmatprep.subr.bf16.mxu0 0
        %945 = vmatpush1.bf16.msra.mxu0 0
        %946 = vmatprep.subr.bf16.mxu0 0
        %947 = vmatpush1.bf16.msra.mxu0 0
        %948 = vmatprep.subr.bf16.mxu0 0
        %949 = vmatpush1.bf16.msra.mxu0 0
        %950 = vmatprep.subr.bf16.mxu0 0
        %951 = vmatpush1.bf16.msra.mxu0 0
        %952 = vmatprep.subr.bf16.mxu0 0
        %953 = vmatpush1.bf16.msra.mxu0 0
        %954 = vmatprep.subr.bf16.mxu0 0
        %955 = vmatpush1.bf16.msra.mxu0 0
        %956 = vmatprep.subr.bf16.mxu0 0
        %957 = vmatpush1.bf16.msra.mxu0 0
        %958 = vmatprep.subr.bf16.mxu0 0
        %959 = vmatpush1.bf16.msra.mxu0 0
        %960 = vmatprep.subr.bf16.mxu0 0
        %961 = vmatpush1.bf16.msra.mxu0 0
        %962 = vmatprep.subr.bf16.mxu0 0
        %963 = vmatpush1.bf16.msra.mxu0 0
        %964 = vmatprep.mubr.bf16.mxu0 0
        %965 = vmatmul.mubr.bf16.gmra.mrb[0].mxu0 %v678
        %v966 = vpop.f32.mrb[0].mxu0
        %v967 = vadd.f32 %v393, %v966
        %v968 = vpop.f32.mrb[0].mxu0
        %v969 = vadd.f32 %v393, %v968
        %v970 = vpop.f32.mrb[0].mxu0
        %v971 = vadd.f32 %v398, %v970
        %v972 = vpop.f32.mrb[0].mxu0
        %v973 = vadd.f32 %v398, %v972
        %974 = vmatprep.mubr.bf16.mxu0 0
        %975 = vmatmul.mubr.bf16.gmra.mrb[0].mxu0 %v681
        %v976 = vpop.f32.mrb[0].mxu0
        %v977 = vadd.f32 %v403, %v976
        %v978 = vpop.f32.mrb[0].mxu0
        %v979 = vadd.f32 %v403, %v978
        %v980 = vpop.f32.mrb[0].mxu0
        %v981 = vadd.f32 %v408, %v980
        %v982 = vpop.f32.mrb[0].mxu0
        %v983 = vadd.f32 %v408, %v982
        %984 = vdwg.mxu0
        %985 = vmatprep.subr.bf16.mxu0 %v703
        %986 = vmatpush1.bf16.msra.mxu0 %v700
        %987 = vmatprep.subr.bf16.mxu0 0
        %988 = vmatpush1.bf16.msra.mxu0 0
        %989 = vmatprep.subr.bf16.mxu0 0
        %990 = vmatpush1.bf16.msra.mxu0 0
        %991 = vmatprep.subr.bf16.mxu0 0
        %992 = vmatpush1.bf16.msra.mxu0 0
        %993 = vmatprep.subr.bf16.mxu0 0
        %994 = vmatpush1.bf16.msra.mxu0 0
        %995 = vmatprep.subr.bf16.mxu0 0
        %996 = vmatpush1.bf16.msra.mxu0 0
        %997 = vmatprep.subr.bf16.mxu0 0
        %998 = vmatpush1.bf16.msra.mxu0 0
        %999 = vmatprep.subr.bf16.mxu0 0
        %1000 = vmatpush1.bf16.msra.mxu0 0
        %1001 = vmatprep.subr.bf16.mxu0 0
        %1002 = vmatpush1.bf16.msra.mxu0 0
        %1003 = vmatprep.subr.bf16.mxu0 0
        %1004 = vmatpush1.bf16.msra.mxu0 0
        %1005 = vmatprep.subr.bf16.mxu0 0
        %1006 = vmatpush1.bf16.msra.mxu0 0
        %1007 = vmatprep.subr.bf16.mxu0 0
        %1008 = vmatpush1.bf16.msra.mxu0 0
        %1009 = vmatprep.subr.bf16.mxu0 0
        %1010 = vmatpush1.bf16.msra.mxu0 0
        %1011 = vmatprep.subr.bf16.mxu0 0
        %1012 = vmatpush1.bf16.msra.mxu0 0
        %1013 = vmatprep.subr.bf16.mxu0 0
        %1014 = vmatpush1.bf16.msra.mxu0 0
        %1015 = vmatprep.subr.bf16.mxu0 0
        %1016 = vmatpush1.bf16.msra.mxu0 0
        %1017 = vmatprep.mubr.bf16.mxu0 0
        %1018 = vmatmul.mubr.bf16.gmra.mrb[0].mxu0 %v678
        %v1019 = vpop.f32.mrb[0].mxu0
        %v1020 = vadd.f32 %v393, %v1019
        %v1021 = vpop.f32.mrb[0].mxu0
        %v1022 = vadd.f32 %v393, %v1021
        %v1023 = vpop.f32.mrb[0].mxu0
        %v1024 = vadd.f32 %v398, %v1023
        %v1025 = vpop.f32.mrb[0].mxu0
        %v1026 = vadd.f32 %v398, %v1025
        %1027 = vmatprep.mubr.bf16.mxu0 0
        %1028 = vmatmul.mubr.bf16.gmra.mrb[0].mxu0 %v681
        %v1029 = vpop.f32.mrb[0].mxu0
        %v1030 = vadd.f32 %v403, %v1029
        %v1031 = vpop.f32.mrb[0].mxu0
        %v1032 = vadd.f32 %v403, %v1031
        %v1033 = vpop.f32.mrb[0].mxu0
        %v1034 = vadd.f32 %v408, %v1033
        %v1035 = vpop.f32.mrb[0].mxu0
        %v1036 = vadd.f32 %v408, %v1035
        %1037 = vdwg.mxu0
        %1038 = vmatprep.subr.bf16.mxu0 %v709
        %1039 = vmatpush1.bf16.msra.mxu0 %v706
        %1040 = vmatprep.subr.bf16.mxu0 0
        %1041 = vmatpush1.bf16.msra.mxu0 0
        %1042 = vmatprep.subr.bf16.mxu0 0
        %1043 = vmatpush1.bf16.msra.mxu0 0
        %1044 = vmatprep.subr.bf16.mxu0 0
        %1045 = vmatpush1.bf16.msra.mxu0 0
        %1046 = vmatprep.subr.bf16.mxu0 0
        %1047 = vmatpush1.bf16.msra.mxu0 0
        %1048 = vmatprep.subr.bf16.mxu0 0
        %1049 = vmatpush1.bf16.msra.mxu0 0
        %1050 = vmatprep.subr.bf16.mxu0 0
        %1051 = vmatpush1.bf16.msra.mxu0 0
        %1052 = vmatprep.subr.bf16.mxu0 0
        %1053 = vmatpush1.bf16.msra.mxu0 0
        %1054 = vmatprep.subr.bf16.mxu0 0
        %1055 = vmatpush1.bf16.msra.mxu0 0
        %1056 = vmatprep.subr.bf16.mxu0 0
        %1057 = vmatpush1.bf16.msra.mxu0 0
        %1058 = vmatprep.subr.bf16.mxu0 0
        %1059 = vmatpush1.bf16.msra.mxu0 0
        %1060 = vmatprep.subr.bf16.mxu0 0
        %1061 = vmatpush1.bf16.msra.mxu0 0
        %1062 = vmatprep.subr.bf16.mxu0 0
        %1063 = vmatpush1.bf16.msra.mxu0 0
        %1064 = vmatprep.subr.bf16.mxu0 0
        %1065 = vmatpush1.bf16.msra.mxu0 0
        %1066 = vmatprep.subr.bf16.mxu0 0
        %1067 = vmatpush1.bf16.msra.mxu0 0
        %1068 = vmatprep.subr.bf16.mxu0 0
        %1069 = vmatpush1.bf16.msra.mxu0 0
        %1070 = vmatprep.mubr.bf16.mxu0 0
        %1071 = vmatmul.mubr.bf16.gmra.mrb[0].mxu0 %v678
        %v1072 = vpop.f32.mrb[0].mxu0
        %v1073 = vadd.f32 %v393, %v1072
        %v1074 = vpop.f32.mrb[0].mxu0
        %v1075 = vadd.f32 %v393, %v1074
        %v1076 = vpop.f32.mrb[0].mxu0
        %v1077 = vadd.f32 %v398, %v1076
        %v1078 = vpop.f32.mrb[0].mxu0
        %v1079 = vadd.f32 %v398, %v1078
        %1080 = vmatprep.mubr.bf16.mxu0 0
        %1081 = vmatmul.mubr.bf16.gmra.mrb[0].mxu0 %v681
        %v1082 = vpop.f32.mrb[0].mxu0
        %v1083 = vadd.f32 %v403, %v1082
        %v1084 = vpop.f32.mrb[0].mxu0
        %v1085 = vadd.f32 %v403, %v1084
        %v1086 = vpop.f32.mrb[0].mxu0
        %v1087 = vadd.f32 %v408, %v1086
        %v1088 = vpop.f32.mrb[0].mxu0
        %v1089 = vadd.f32 %v408, %v1088
        %1090 = vdwg.mxu0
        %1091 = vmatprep.subr.bf16.mxu0 %v715
        %1092 = vmatpush1.bf16.msra.mxu0 %v712
        %1093 = vmatprep.subr.bf16.mxu0 0
        %1094 = vmatpush1.bf16.msra.mxu0 0
        %1095 = vmatprep.subr.bf16.mxu0 0
        %1096 = vmatpush1.bf16.msra.mxu0 0
        %1097 = vmatprep.subr.bf16.mxu0 0
        %1098 = vmatpush1.bf16.msra.mxu0 0
        %1099 = vmatprep.subr.bf16.mxu0 0
        %1100 = vmatpush1.bf16.msra.mxu0 0
        %1101 = vmatprep.subr.bf16.mxu0 0
        %1102 = vmatpush1.bf16.msra.mxu0 0
        %1103 = vmatprep.subr.bf16.mxu0 0
        %1104 = vmatpush1.bf16.msra.mxu0 0
        %1105 = vmatprep.subr.bf16.mxu0 0
        %1106 = vmatpush1.bf16.msra.mxu0 0
        %1107 = vmatprep.subr.bf16.mxu0 0
        %1108 = vmatpush1.bf16.msra.mxu0 0
        %1109 = vmatprep.subr.bf16.mxu0 0
        %1110 = vmatpush1.bf16.msra.mxu0 0
        %1111 = vmatprep.subr.bf16.mxu0 0
        %1112 = vmatpush1.bf16.msra.mxu0 0
        %1113 = vmatprep.subr.bf16.mxu0 0
        %1114 = vmatpush1.bf16.msra.mxu0 0
        %1115 = vmatprep.subr.bf16.mxu0 0
        %1116 = vmatpush1.bf16.msra.mxu0 0
        %1117 = vmatprep.subr.bf16.mxu0 0
        %1118 = vmatpush1.bf16.msra.mxu0 0
        %1119 = vmatprep.subr.bf16.mxu0 0
        %1120 = vmatpush1.bf16.msra.mxu0 0
        %1121 = vmatprep.subr.bf16.mxu0 0
        %1122 = vmatpush1.bf16.msra.mxu0 0
        %1123 = vmatprep.mubr.bf16.mxu0 0
        %1124 = vmatmul.mubr.bf16.gmra.mrb[0].mxu0 %v678
        %v1125 = vpop.f32.mrb[0].mxu0
        %v1126 = vadd.f32 %v393, %v1125
        %v1127 = vpop.f32.mrb[0].mxu0
        %v1128 = vadd.f32 %v393, %v1127
        %v1129 = vpop.f32.mrb[0].mxu0
        %v1130 = vadd.f32 %v398, %v1129
        %v1131 = vpop.f32.mrb[0].mxu0
        %v1132 = vadd.f32 %v398, %v1131
        %1133 = vmatprep.mubr.bf16.mxu0 0
        %1134 = vmatmul.mubr.bf16.gmra.mrb[0].mxu0 %v681
        %v1135 = vpop.f32.mrb[0].mxu0
        %v1136 = vadd.f32 %v403, %v1135
        %v1137 = vpop.f32.mrb[0].mxu0
        %v1138 = vadd.f32 %v403, %v1137
        %v1139 = vpop.f32.mrb[0].mxu0
        %v1140 = vadd.f32 %v408, %v1139
        %v1141 = vpop.f32.mrb[0].mxu0
        %v1142 = vadd.f32 %v408, %v1141
        %1143 = vdwg.mxu0
        %1144 = vmatprep.subr.bf16.mxu0 %v721
        %1145 = vmatpush1.bf16.msra.mxu0 %v718
        %1146 = vmatprep.subr.bf16.mxu0 0
        %1147 = vmatpush1.bf16.msra.mxu0 0
        %1148 = vmatprep.subr.bf16.mxu0 0
        %1149 = vmatpush1.bf16.msra.mxu0 0
        %1150 = vmatprep.subr.bf16.mxu0 0
        %1151 = vmatpush1.bf16.msra.mxu0 0
        %1152 = vmatprep.subr.bf16.mxu0 0
        %1153 = vmatpush1.bf16.msra.mxu0 0
        %1154 = vmatprep.subr.bf16.mxu0 0
        %1155 = vmatpush1.bf16.msra.mxu0 0
        %1156 = vmatprep.subr.bf16.mxu0 0
        %1157 = vmatpush1.bf16.msra.mxu0 0
        %1158 = vmatprep.subr.bf16.mxu0 0
        %1159 = vmatpush1.bf16.msra.mxu0 0
        %1160 = vmatprep.subr.bf16.mxu0 0
        %1161 = vmatpush1.bf16.msra.mxu0 0
        %1162 = vmatprep.subr.bf16.mxu0 0
        %1163 = vmatpush1.bf16.msra.mxu0 0
        %1164 = vmatprep.subr.bf16.mxu0 0
        %1165 = vmatpush1.bf16.msra.mxu0 0
        %1166 = vmatprep.subr.bf16.mxu0 0
        %1167 = vmatpush1.bf16.msra.mxu0 0
        %1168 = vmatprep.subr.bf16.mxu0 0
        %1169 = vmatpush1.bf16.msra.mxu0 0
        %1170 = vmatprep.subr.bf16.mxu0 0
        %1171 = vmatpush1.bf16.msra.mxu0 0
        %1172 = vmatprep.subr.bf16.mxu0 0
        %1173 = vmatpush1.bf16.msra.mxu0 0
        %1174 = vmatprep.subr.bf16.mxu0 0
        %1175 = vmatpush1.bf16.msra.mxu0 0
        %1176 = vmatprep.mubr.bf16.mxu0 0
        %1177 = vmatmul.mubr.bf16.gmra.mrb[0].mxu0 %v678
        %v1178 = vpop.f32.mrb[0].mxu0
        %v1179 = vadd.f32 %v393, %v1178
        %v1180 = vpop.f32.mrb[0].mxu0
        %v1181 = vadd.f32 %v393, %v1180
        %v1182 = vpop.f32.mrb[0].mxu0
        %v1183 = vadd.f32 %v398, %v1182
        %v1184 = vpop.f32.mrb[0].mxu0
        %v1185 = vadd.f32 %v398, %v1184
        %1186 = vmatprep.mubr.bf16.mxu0 0
        %1187 = vmatmul.mubr.bf16.gmra.mrb[0].mxu0 %v681
        %v1188 = vpop.f32.mrb[0].mxu0
        %v1189 = vadd.f32 %v403, %v1188
        %v1190 = vpop.f32.mrb[0].mxu0
        %v1191 = vadd.f32 %v403, %v1190
        %v1192 = vpop.f32.mrb[0].mxu0
        %v1193 = vadd.f32 %v408, %v1192
        %v1194 = vpop.f32.mrb[0].mxu0
        %v1195 = vadd.f32 %v408, %v1194
        %1196 = vdwg.mxu0
        %1197 = vmatprep.subr.bf16.mxu0 %v727
        %1198 = vmatpush1.bf16.msra.mxu0 %v724
        %1199 = vmatprep.subr.bf16.mxu0 0
        %1200 = vmatpush1.bf16.msra.mxu0 0
        %1201 = vmatprep.subr.bf16.mxu0 0
        %1202 = vmatpush1.bf16.msra.mxu0 0
        %1203 = vmatprep.subr.bf16.mxu0 0
        %1204 = vmatpush1.bf16.msra.mxu0 0
        %1205 = vmatprep.subr.bf16.mxu0 0
        %1206 = vmatpush1.bf16.msra.mxu0 0
        %1207 = vmatprep.subr.bf16.mxu0 0
        %1208 = vmatpush1.bf16.msra.mxu0 0
        %1209 = vmatprep.subr.bf16.mxu0 0
        %1210 = vmatpush1.bf16.msra.mxu0 0
        %1211 = vmatprep.subr.bf16.mxu0 0
        %1212 = vmatpush1.bf16.msra.mxu0 0
        %1213 = vmatprep.subr.bf16.mxu0 0
        %1214 = vmatpush1.bf16.msra.mxu0 0
        %1215 = vmatprep.subr.bf16.mxu0 0
        %1216 = vmatpush1.bf16.msra.mxu0 0
        %1217 = vmatprep.subr.bf16.mxu0 0
        %1218 = vmatpush1.bf16.msra.mxu0 0
        %1219 = vmatprep.subr.bf16.mxu0 0
        %1220 = vmatpush1.bf16.msra.mxu0 0
        %1221 = vmatprep.subr.bf16.mxu0 0
        %1222 = vmatpush1.bf16.msra.mxu0 0
        %1223 = vmatprep.subr.bf16.mxu0 0
        %1224 = vmatpush1.bf16.msra.mxu0 0
        %1225 = vmatprep.subr.bf16.mxu0 0
        %1226 = vmatpush1.bf16.msra.mxu0 0
        %1227 = vmatprep.subr.bf16.mxu0 0
        %1228 = vmatpush1.bf16.msra.mxu0 0
        %1229 = vmatprep.mubr.bf16.mxu0 0
        %1230 = vmatmul.mubr.bf16.gmra.mrb[0].mxu0 %v678
        %v1231 = vpop.f32.mrb[0].mxu0
        %v1232 = vadd.f32 %v393, %v1231
        %v1233 = vpop.f32.mrb[0].mxu0
        %v1234 = vadd.f32 %v393, %v1233
        %v1235 = vpop.f32.mrb[0].mxu0
        %v1236 = vadd.f32 %v398, %v1235
        %v1237 = vpop.f32.mrb[0].mxu0
        %v1238 = vadd.f32 %v398, %v1237
        %1239 = vmatprep.mubr.bf16.mxu0 0
        %1240 = vmatmul.mubr.bf16.gmra.mrb[0].mxu0 %v681
        %v1241 = vpop.f32.mrb[0].mxu0
        %v1242 = vadd.f32 %v403, %v1241
        %v1243 = vpop.f32.mrb[0].mxu0
        %v1244 = vadd.f32 %v403, %v1243
        %v1245 = vpop.f32.mrb[0].mxu0
        %v1246 = vadd.f32 %v408, %v1245
        %v1247 = vpop.f32.mrb[0].mxu0
        %v1248 = vadd.f32 %v408, %v1247
        %1249 = vdwg.mxu0
        %1250 = vmatprep.subr.bf16.mxu0 %v733
        %1251 = vmatpush1.bf16.msra.mxu0 %v730
        %1252 = vmatprep.subr.bf16.mxu0 0
        %1253 = vmatpush1.bf16.msra.mxu0 0
        %1254 = vmatprep.subr.bf16.mxu0 0
        %1255 = vmatpush1.bf16.msra.mxu0 0
        %1256 = vmatprep.subr.bf16.mxu0 0
        %1257 = vmatpush1.bf16.msra.mxu0 0
        %1258 = vmatprep.subr.bf16.mxu0 0
        %1259 = vmatpush1.bf16.msra.mxu0 0
        %1260 = vmatprep.subr.bf16.mxu0 0
        %1261 = vmatpush1.bf16.msra.mxu0 0
        %1262 = vmatprep.subr.bf16.mxu0 0
        %1263 = vmatpush1.bf16.msra.mxu0 0
        %1264 = vmatprep.subr.bf16.mxu0 0
        %1265 = vmatpush1.bf16.msra.mxu0 0
        %1266 = vmatprep.subr.bf16.mxu0 0
        %1267 = vmatpush1.bf16.msra.mxu0 0
        %1268 = vmatprep.subr.bf16.mxu0 0
        %1269 = vmatpush1.bf16.msra.mxu0 0
        %1270 = vmatprep.subr.bf16.mxu0 0
        %1271 = vmatpush1.bf16.msra.mxu0 0
        %1272 = vmatprep.subr.bf16.mxu0 0
        %1273 = vmatpush1.bf16.msra.mxu0 0
        %1274 = vmatprep.subr.bf16.mxu0 0
        %1275 = vmatpush1.bf16.msra.mxu0 0
        %1276 = vmatprep.subr.bf16.mxu0 0
        %1277 = vmatpush1.bf16.msra.mxu0 0
        %1278 = vmatprep.subr.bf16.mxu0 0
        %1279 = vmatpush1.bf16.msra.mxu0 0
        %1280 = vmatprep.subr.bf16.mxu0 0
        %1281 = vmatpush1.bf16.msra.mxu0 0
        %1282 = vmatprep.mubr.bf16.mxu0 0
        %1283 = vmatmul.mubr.bf16.gmra.mrb[0].mxu0 %v678
        %v1284 = vpop.f32.mrb[0].mxu0
        %v1285 = vadd.f32 %v393, %v1284
        %v1286 = vpop.f32.mrb[0].mxu0
        %v1287 = vadd.f32 %v393, %v1286
        %v1288 = vpop.f32.mrb[0].mxu0
        %v1289 = vadd.f32 %v398, %v1288
        %v1290 = vpop.f32.mrb[0].mxu0
        %v1291 = vadd.f32 %v398, %v1290
        %1292 = vmatprep.mubr.bf16.mxu0 0
        %1293 = vmatmul.mubr.bf16.gmra.mrb[0].mxu0 %v681
        %v1294 = vpop.f32.mrb[0].mxu0
        %v1295 = vadd.f32 %v403, %v1294
        %v1296 = vpop.f32.mrb[0].mxu0
        %v1297 = vadd.f32 %v403, %v1296
        %v1298 = vpop.f32.mrb[0].mxu0
        %v1299 = vadd.f32 %v408, %v1298
        %v1300 = vpop.f32.mrb[0].mxu0
        %v1301 = vadd.f32 %v408, %v1300
        %1302 = vdwg.mxu0
        %1303 = vmatprep.subr.bf16.mxu0 %v739
        %1304 = vmatpush1.bf16.msra.mxu0 %v736
        %1305 = vmatprep.subr.bf16.mxu0 0
        %1306 = vmatpush1.bf16.msra.mxu0 0
        %1307 = vmatprep.subr.bf16.mxu0 0
        %1308 = vmatpush1.bf16.msra.mxu0 0
        %1309 = vmatprep.subr.bf16.mxu0 0
        %1310 = vmatpush1.bf16.msra.mxu0 0
        %1311 = vmatprep.subr.bf16.mxu0 0
        %1312 = vmatpush1.bf16.msra.mxu0 0
        %1313 = vmatprep.subr.bf16.mxu0 0
        %1314 = vmatpush1.bf16.msra.mxu0 0
        %1315 = vmatprep.subr.bf16.mxu0 0
        %1316 = vmatpush1.bf16.msra.mxu0 0
        %1317 = vmatprep.subr.bf16.mxu0 0
        %1318 = vmatpush1.bf16.msra.mxu0 0
        %1319 = vmatprep.subr.bf16.mxu0 0
        %1320 = vmatpush1.bf16.msra.mxu0 0
        %1321 = vmatprep.subr.bf16.mxu0 0
        %1322 = vmatpush1.bf16.msra.mxu0 0
        %1323 = vmatprep.subr.bf16.mxu0 0
        %1324 = vmatpush1.bf16.msra.mxu0 0
        %1325 = vmatprep.subr.bf16.mxu0 0
        %1326 = vmatpush1.bf16.msra.mxu0 0
        %1327 = vmatprep.subr.bf16.mxu0 0
        %1328 = vmatpush1.bf16.msra.mxu0 0
        %1329 = vmatprep.subr.bf16.mxu0 0
        %1330 = vmatpush1.bf16.msra.mxu0 0
        %1331 = vmatprep.subr.bf16.mxu0 0
        %1332 = vmatpush1.bf16.msra.mxu0 0
        %1333 = vmatprep.subr.bf16.mxu0 0
        %1334 = vmatpush1.bf16.msra.mxu0 0
        %1335 = vmatprep.mubr.bf16.mxu0 0
        %1336 = vmatmul.mubr.bf16.gmra.mrb[0].mxu0 %v678
        %v1337 = vpop.f32.mrb[0].mxu0
        %v1338 = vadd.f32 %v393, %v1337
        %v1339 = vpop.f32.mrb[0].mxu0
        %v1340 = vadd.f32 %v393, %v1339
        %v1341 = vpop.f32.mrb[0].mxu0
        %v1342 = vadd.f32 %v398, %v1341
        %v1343 = vpop.f32.mrb[0].mxu0
        %v1344 = vadd.f32 %v398, %v1343
        %1345 = vmatprep.mubr.bf16.mxu0 0
        %1346 = vmatmul.mubr.bf16.gmra.mrb[0].mxu0 %v681
        %v1347 = vpop.f32.mrb[0].mxu0
        %v1348 = vadd.f32 %v403, %v1347
        %v1349 = vpop.f32.mrb[0].mxu0
        %v1350 = vadd.f32 %v403, %v1349
        %v1351 = vpop.f32.mrb[0].mxu0
        %v1352 = vadd.f32 %v408, %v1351
        %v1353 = vpop.f32.mrb[0].mxu0
        %v1354 = vadd.f32 %v408, %v1353
        %1355 = vdwg.mxu0
        %1356 = vmatprep.subr.bf16.mxu0 %v745
        %1357 = vmatpush1.bf16.msra.mxu0 %v742
        %1358 = vmatprep.subr.bf16.mxu0 0
        %1359 = vmatpush1.bf16.msra.mxu0 0
        %1360 = vmatprep.subr.bf16.mxu0 0
        %1361 = vmatpush1.bf16.msra.mxu0 0
        %1362 = vmatprep.subr.bf16.mxu0 0
        %1363 = vmatpush1.bf16.msra.mxu0 0
        %1364 = vmatprep.subr.bf16.mxu0 0
        %1365 = vmatpush1.bf16.msra.mxu0 0
        %1366 = vmatprep.subr.bf16.mxu0 0
        %1367 = vmatpush1.bf16.msra.mxu0 0
        %1368 = vmatprep.subr.bf16.mxu0 0
        %1369 = vmatpush1.bf16.msra.mxu0 0
        %1370 = vmatprep.subr.bf16.mxu0 0
        %1371 = vmatpush1.bf16.msra.mxu0 0
        %1372 = vmatprep.subr.bf16.mxu0 0
        %1373 = vmatpush1.bf16.msra.mxu0 0
        %1374 = vmatprep.subr.bf16.mxu0 0
        %1375 = vmatpush1.bf16.msra.mxu0 0
        %1376 = vmatprep.subr.bf16.mxu0 0
        %1377 = vmatpush1.bf16.msra.mxu0 0
        %1378 = vmatprep.subr.bf16.mxu0 0
        %1379 = vmatpush1.bf16.msra.mxu0 0
        %1380 = vmatprep.subr.bf16.mxu0 0
        %1381 = vmatpush1.bf16.msra.mxu0 0
        %1382 = vmatprep.subr.bf16.mxu0 0
        %1383 = vmatpush1.bf16.msra.mxu0 0
        %1384 = vmatprep.subr.bf16.mxu0 0
        %1385 = vmatpush1.bf16.msra.mxu0 0
        %1386 = vmatprep.subr.bf16.mxu0 0
        %1387 = vmatpush1.bf16.msra.mxu0 0
        %1388 = vmatprep.mubr.bf16.mxu0 0
        %1389 = vmatmul.mubr.bf16.gmra.mrb[0].mxu0 %v678
        %v1390 = vpop.f32.mrb[0].mxu0
        %v1391 = vadd.f32 %v393, %v1390
        %v1392 = vpop.f32.mrb[0].mxu0
        %v1393 = vadd.f32 %v393, %v1392
        %v1394 = vpop.f32.mrb[0].mxu0
        %v1395 = vadd.f32 %v398, %v1394
        %v1396 = vpop.f32.mrb[0].mxu0
        %v1397 = vadd.f32 %v398, %v1396
        %1398 = vmatprep.mubr.bf16.mxu0 0
        %1399 = vmatmul.mubr.bf16.gmra.mrb[0].mxu0 %v681
        %v1400 = vpop.f32.mrb[0].mxu0
        %v1401 = vadd.f32 %v403, %v1400
        %v1402 = vpop.f32.mrb[0].mxu0
        %v1403 = vadd.f32 %v403, %v1402
        %v1404 = vpop.f32.mrb[0].mxu0
        %v1405 = vadd.f32 %v408, %v1404
        %v1406 = vpop.f32.mrb[0].mxu0
        %v1407 = vadd.f32 %v408, %v1406
        %1408 = vdwg.mxu0
        %1409 = vmatprep.subr.bf16.mxu0 %v751
        %1410 = vmatpush1.bf16.msra.mxu0 %v748
        %1411 = vmatprep.subr.bf16.mxu0 0
        %1412 = vmatpush1.bf16.msra.mxu0 0
        %1413 = vmatprep.subr.bf16.mxu0 0
        %1414 = vmatpush1.bf16.msra.mxu0 0
        %1415 = vmatprep.subr.bf16.mxu0 0
        %1416 = vmatpush1.bf16.msra.mxu0 0
        %1417 = vmatprep.subr.bf16.mxu0 0
        %1418 = vmatpush1.bf16.msra.mxu0 0
        %1419 = vmatprep.subr.bf16.mxu0 0
        %1420 = vmatpush1.bf16.msra.mxu0 0
        %1421 = vmatprep.subr.bf16.mxu0 0
        %1422 = vmatpush1.bf16.msra.mxu0 0
        %1423 = vmatprep.subr.bf16.mxu0 0
        %1424 = vmatpush1.bf16.msra.mxu0 0
        %1425 = vmatprep.subr.bf16.mxu0 0
        %1426 = vmatpush1.bf16.msra.mxu0 0
        %1427 = vmatprep.subr.bf16.mxu0 0
        %1428 = vmatpush1.bf16.msra.mxu0 0
        %1429 = vmatprep.subr.bf16.mxu0 0
        %1430 = vmatpush1.bf16.msra.mxu0 0
        %1431 = vmatprep.subr.bf16.mxu0 0
        %1432 = vmatpush1.bf16.msra.mxu0 0
        %1433 = vmatprep.subr.bf16.mxu0 0
        %1434 = vmatpush1.bf16.msra.mxu0 0
        %1435 = vmatprep.subr.bf16.mxu0 0
        %1436 = vmatpush1.bf16.msra.mxu0 0
        %1437 = vmatprep.subr.bf16.mxu0 0
        %1438 = vmatpush1.bf16.msra.mxu0 0
        %1439 = vmatprep.subr.bf16.mxu0 0
        %1440 = vmatpush1.bf16.msra.mxu0 0
        %1441 = vmatprep.mubr.bf16.mxu0 0
        %1442 = vmatmul.mubr.bf16.gmra.mrb[0].mxu0 %v678
        %v1443 = vpop.f32.mrb[0].mxu0
        %v1444 = vadd.f32 %v393, %v1443
        %v1445 = vpop.f32.mrb[0].mxu0
        %v1446 = vadd.f32 %v393, %v1445
        %v1447 = vpop.f32.mrb[0].mxu0
        %v1448 = vadd.f32 %v398, %v1447
        %v1449 = vpop.f32.mrb[0].mxu0
        %v1450 = vadd.f32 %v398, %v1449
        %1451 = vmatprep.mubr.bf16.mxu0 0
        %1452 = vmatmul.mubr.bf16.gmra.mrb[0].mxu0 %v681
        %v1453 = vpop.f32.mrb[0].mxu0
        %v1454 = vadd.f32 %v403, %v1453
        %v1455 = vpop.f32.mrb[0].mxu0
        %v1456 = vadd.f32 %v403, %v1455
        %v1457 = vpop.f32.mrb[0].mxu0
        %v1458 = vadd.f32 %v408, %v1457
        %v1459 = vpop.f32.mrb[0].mxu0
        %v1460 = vadd.f32 %v408, %v1459
        %1461 = vdwg.mxu0
        %1462 = vmatprep.subr.bf16.mxu0 %v757
        %1463 = vmatpush1.bf16.msra.mxu0 %v754
        %1464 = vmatprep.subr.bf16.mxu0 0
        %1465 = vmatpush1.bf16.msra.mxu0 0
        %1466 = vmatprep.subr.bf16.mxu0 0
        %1467 = vmatpush1.bf16.msra.mxu0 0
        %1468 = vmatprep.subr.bf16.mxu0 0
        %1469 = vmatpush1.bf16.msra.mxu0 0
        %1470 = vmatprep.subr.bf16.mxu0 0
        %1471 = vmatpush1.bf16.msra.mxu0 0
        %1472 = vmatprep.subr.bf16.mxu0 0
        %1473 = vmatpush1.bf16.msra.mxu0 0
        %1474 = vmatprep.subr.bf16.mxu0 0
        %1475 = vmatpush1.bf16.msra.mxu0 0
        %1476 = vmatprep.subr.bf16.mxu0 0
        %1477 = vmatpush1.bf16.msra.mxu0 0
        %1478 = vmatprep.subr.bf16.mxu0 0
        %1479 = vmatpush1.bf16.msra.mxu0 0
        %1480 = vmatprep.subr.bf16.mxu0 0
        %1481 = vmatpush1.bf16.msra.mxu0 0
        %1482 = vmatprep.subr.bf16.mxu0 0
        %1483 = vmatpush1.bf16.msra.mxu0 0
        %1484 = vmatprep.subr.bf16.mxu0 0
        %1485 = vmatpush1.bf16.msra.mxu0 0
        %1486 = vmatprep.subr.bf16.mxu0 0
        %1487 = vmatpush1.bf16.msra.mxu0 0
        %1488 = vmatprep.subr.bf16.mxu0 0
        %1489 = vmatpush1.bf16.msra.mxu0 0
        %1490 = vmatprep.subr.bf16.mxu0 0
        %1491 = vmatpush1.bf16.msra.mxu0 0
        %1492 = vmatprep.subr.bf16.mxu0 0
        %1493 = vmatpush1.bf16.msra.mxu0 0
        %1494 = vmatprep.mubr.bf16.mxu0 0
        %1495 = vmatmul.mubr.bf16.gmra.mrb[0].mxu0 %v678
        %v1496 = vpop.f32.mrb[0].mxu0
        %v1497 = vadd.f32 %v393, %v1496
        %v1498 = vpop.f32.mrb[0].mxu0
        %v1499 = vadd.f32 %v393, %v1498
        %v1500 = vpop.f32.mrb[0].mxu0
        %v1501 = vadd.f32 %v398, %v1500
        %v1502 = vpop.f32.mrb[0].mxu0
        %v1503 = vadd.f32 %v398, %v1502
        %1504 = vmatprep.mubr.bf16.mxu0 0
        %1505 = vmatmul.mubr.bf16.gmra.mrb[0].mxu0 %v681
        %v1506 = vpop.f32.mrb[0].mxu0
        %v1507 = vadd.f32 %v403, %v1506
        %v1508 = vpop.f32.mrb[0].mxu0
        %v1509 = vadd.f32 %v403, %v1508
        %v1510 = vpop.f32.mrb[0].mxu0
        %v1511 = vadd.f32 %v408, %v1510
        %v1512 = vpop.f32.mrb[0].mxu0
        %v1513 = vadd.f32 %v408, %v1512
        %1514 = vdwg.mxu0
        %1515 = vmatprep.subr.bf16.mxu0 %v763
        %1516 = vmatpush1.bf16.msra.mxu0 %v760
        %1517 = vmatprep.subr.bf16.mxu0 0
        %1518 = vmatpush1.bf16.msra.mxu0 0
        %1519 = vmatprep.subr.bf16.mxu0 0
        %1520 = vmatpush1.bf16.msra.mxu0 0
        %1521 = vmatprep.subr.bf16.mxu0 0
        %1522 = vmatpush1.bf16.msra.mxu0 0
        %1523 = vmatprep.subr.bf16.mxu0 0
        %1524 = vmatpush1.bf16.msra.mxu0 0
        %1525 = vmatprep.subr.bf16.mxu0 0
        %1526 = vmatpush1.bf16.msra.mxu0 0
        %1527 = vmatprep.subr.bf16.mxu0 0
        %1528 = vmatpush1.bf16.msra.mxu0 0
        %1529 = vmatprep.subr.bf16.mxu0 0
        %1530 = vmatpush1.bf16.msra.mxu0 0
        %1531 = vmatprep.subr.bf16.mxu0 0
        %1532 = vmatpush1.bf16.msra.mxu0 0
        %1533 = vmatprep.subr.bf16.mxu0 0
        %1534 = vmatpush1.bf16.msra.mxu0 0
        %1535 = vmatprep.subr.bf16.mxu0 0
        %1536 = vmatpush1.bf16.msra.mxu0 0
        %1537 = vmatprep.subr.bf16.mxu0 0
        %1538 = vmatpush1.bf16.msra.mxu0 0
        %1539 = vmatprep.subr.bf16.mxu0 0
        %1540 = vmatpush1.bf16.msra.mxu0 0
        %1541 = vmatprep.subr.bf16.mxu0 0
        %1542 = vmatpush1.bf16.msra.mxu0 0
        %1543 = vmatprep.subr.bf16.mxu0 0
        %1544 = vmatpush1.bf16.msra.mxu0 0
        %1545 = vmatprep.subr.bf16.mxu0 0
        %1546 = vmatpush1.bf16.msra.mxu0 0
        %1547 = vmatprep.mubr.bf16.mxu0 0
        %1548 = vmatmul.mubr.bf16.gmra.mrb[0].mxu0 %v678
        %v1549 = vpop.f32.mrb[0].mxu0
        %v1550 = vadd.f32 %v393, %v1549
        %v1551 = vpop.f32.mrb[0].mxu0
        %v1552 = vadd.f32 %v393, %v1551
        %v1553 = vpop.f32.mrb[0].mxu0
        %v1554 = vadd.f32 %v398, %v1553
        %v1555 = vpop.f32.mrb[0].mxu0
        %v1556 = vadd.f32 %v398, %v1555
        %1557 = vmatprep.mubr.bf16.mxu0 0
        %1558 = vmatmul.mubr.bf16.gmra.mrb[0].mxu0 %v681
        %v1559 = vpop.f32.mrb[0].mxu0
        %v1560 = vadd.f32 %v403, %v1559
        %v1561 = vpop.f32.mrb[0].mxu0
        %v1562 = vadd.f32 %v403, %v1561
        %v1563 = vpop.f32.mrb[0].mxu0
        %v1564 = vadd.f32 %v408, %v1563
        %v1565 = vpop.f32.mrb[0].mxu0
        %v1566 = vadd.f32 %v408, %v1565
        %1567 = vdwg.mxu0
        %1568 = vmatprep.subr.bf16.mxu0 %v769
        %1569 = vmatpush1.bf16.msra.mxu0 %v766
        %1570 = vmatprep.subr.bf16.mxu0 0
        %1571 = vmatpush1.bf16.msra.mxu0 0
        %1572 = vmatprep.subr.bf16.mxu0 0
        %1573 = vmatpush1.bf16.msra.mxu0 0
        %1574 = vmatprep.subr.bf16.mxu0 0
        %1575 = vmatpush1.bf16.msra.mxu0 0
        %1576 = vmatprep.subr.bf16.mxu0 0
        %1577 = vmatpush1.bf16.msra.mxu0 0
        %1578 = vmatprep.subr.bf16.mxu0 0
        %1579 = vmatpush1.bf16.msra.mxu0 0
        %1580 = vmatprep.subr.bf16.mxu0 0
        %1581 = vmatpush1.bf16.msra.mxu0 0
        %1582 = vmatprep.subr.bf16.mxu0 0
        %1583 = vmatpush1.bf16.msra.mxu0 0
        %1584 = vmatprep.subr.bf16.mxu0 0
        %1585 = vmatpush1.bf16.msra.mxu0 0
        %1586 = vmatprep.subr.bf16.mxu0 0
        %1587 = vmatpush1.bf16.msra.mxu0 0
        %1588 = vmatprep.subr.bf16.mxu0 0
        %1589 = vmatpush1.bf16.msra.mxu0 0
        %1590 = vmatprep.subr.bf16.mxu0 0
        %1591 = vmatpush1.bf16.msra.mxu0 0
        %1592 = vmatprep.subr.bf16.mxu0 0
        %1593 = vmatpush1.bf16.msra.mxu0 0
        %1594 = vmatprep.subr.bf16.mxu0 0
        %1595 = vmatpush1.bf16.msra.mxu0 0
        %1596 = vmatprep.subr.bf16.mxu0 0
        %1597 = vmatpush1.bf16.msra.mxu0 0
        %1598 = vmatprep.subr.bf16.mxu0 0
        %1599 = vmatpush1.bf16.msra.mxu0 0
        %1600 = vmatprep.mubr.bf16.mxu0 0
        %1601 = vmatmul.mubr.bf16.gmra.mrb[0].mxu0 %v678
        %v1602 = vpop.f32.mrb[0].mxu0
        %v1603 = vadd.f32 %v393, %v1602
        %v1604 = vpop.f32.mrb[0].mxu0
        %v1605 = vadd.f32 %v393, %v1604
        %v1606 = vpop.f32.mrb[0].mxu0
        %v1607 = vadd.f32 %v398, %v1606
        %v1608 = vpop.f32.mrb[0].mxu0
        %v1609 = vadd.f32 %v398, %v1608
        %1610 = vmatprep.mubr.bf16.mxu0 0
        %1611 = vmatmul.mubr.bf16.gmra.mrb[0].mxu0 %v681
        %v1612 = vpop.f32.mrb[0].mxu0
        %v1613 = vadd.f32 %v403, %v1612
        %v1614 = vpop.f32.mrb[0].mxu0
        %v1615 = vadd.f32 %v403, %v1614
        %v1616 = vpop.f32.mrb[0].mxu0
        %v1617 = vadd.f32 %v408, %v1616
        %v1618 = vpop.f32.mrb[0].mxu0
        %v1619 = vadd.f32 %v408, %v1618
        %1620 = vdwg.mxu0
        %1621 = vmatprep.subr.bf16.mxu0 %v775
        %1622 = vmatpush1.bf16.msra.mxu0 %v772
        %1623 = vmatprep.subr.bf16.mxu0 0
        %1624 = vmatpush1.bf16.msra.mxu0 0
        %1625 = vmatprep.subr.bf16.mxu0 0
        %1626 = vmatpush1.bf16.msra.mxu0 0
        %1627 = vmatprep.subr.bf16.mxu0 0
        %1628 = vmatpush1.bf16.msra.mxu0 0
        %1629 = vmatprep.subr.bf16.mxu0 0
        %1630 = vmatpush1.bf16.msra.mxu0 0
        %1631 = vmatprep.subr.bf16.mxu0 0
        %1632 = vmatpush1.bf16.msra.mxu0 0
        %1633 = vmatprep.subr.bf16.mxu0 0
        %1634 = vmatpush1.bf16.msra.mxu0 0
        %1635 = vmatprep.subr.bf16.mxu0 0
        %1636 = vmatpush1.bf16.msra.mxu0 0
        %1637 = vmatprep.subr.bf16.mxu0 0
        %1638 = vmatpush1.bf16.msra.mxu0 0
        %1639 = vmatprep.subr.bf16.mxu0 0
        %1640 = vmatpush1.bf16.msra.mxu0 0
        %1641 = vmatprep.subr.bf16.mxu0 0
        %1642 = vmatpush1.bf16.msra.mxu0 0
        %1643 = vmatprep.subr.bf16.mxu0 0
        %1644 = vmatpush1.bf16.msra.mxu0 0
        %1645 = vmatprep.subr.bf16.mxu0 0
        %1646 = vmatpush1.bf16.msra.mxu0 0
        %1647 = vmatprep.subr.bf16.mxu0 0
        %1648 = vmatpush1.bf16.msra.mxu0 0
        %1649 = vmatprep.subr.bf16.mxu0 0
        %1650 = vmatpush1.bf16.msra.mxu0 0
        %1651 = vmatprep.subr.bf16.mxu0 0
        %1652 = vmatpush1.bf16.msra.mxu0 0
        %1653 = vmatprep.mubr.bf16.mxu0 0
        %1654 = vmatmul.mubr.bf16.gmra.mrb[0].mxu0 %v678
        %v1655 = vpop.f32.mrb[0].mxu0
        %v1656 = vadd.f32 %v393, %v1655
        %v1657 = vpop.f32.mrb[0].mxu0
        %v1658 = vadd.f32 %v393, %v1657
        %v1659 = vpop.f32.mrb[0].mxu0
        %v1660 = vadd.f32 %v398, %v1659
        %v1661 = vpop.f32.mrb[0].mxu0
        %v1662 = vadd.f32 %v398, %v1661
        %1663 = vmatprep.mubr.bf16.mxu0 0
        %1664 = vmatmul.mubr.bf16.gmra.mrb[0].mxu0 %v681
        %v1665 = vpop.f32.mrb[0].mxu0
        %v1666 = vadd.f32 %v403, %v1665
        %v1667 = vpop.f32.mrb[0].mxu0
        %v1668 = vadd.f32 %v403, %v1667
        %v1669 = vpop.f32.mrb[0].mxu0
        %v1670 = vadd.f32 %v408, %v1669
        %v1671 = vpop.f32.mrb[0].mxu0
        %v1672 = vadd.f32 %v408, %v1671
        %1673 = vdwg.mxu0
        %1674 = vmatprep.subr.bf16.mxu0 %v781
        %1675 = vmatpush1.bf16.msra.mxu0 %v778
        %1676 = vmatprep.subr.bf16.mxu0 0
        %1677 = vmatpush1.bf16.msra.mxu0 0
        %1678 = vmatprep.subr.bf16.mxu0 0
        %1679 = vmatpush1.bf16.msra.mxu0 0
        %1680 = vmatprep.subr.bf16.mxu0 0
        %1681 = vmatpush1.bf16.msra.mxu0 0
        %1682 = vmatprep.subr.bf16.mxu0 0
        %1683 = vmatpush1.bf16.msra.mxu0 0
        %1684 = vmatprep.subr.bf16.mxu0 0
        %1685 = vmatpush1.bf16.msra.mxu0 0
        %1686 = vmatprep.subr.bf16.mxu0 0
        %1687 = vmatpush1.bf16.msra.mxu0 0
        %1688 = vmatprep.subr.bf16.mxu0 0
        %1689 = vmatpush1.bf16.msra.mxu0 0
        %1690 = vmatprep.subr.bf16.mxu0 0
        %1691 = vmatpush1.bf16.msra.mxu0 0
        %1692 = vmatprep.subr.bf16.mxu0 0
        %1693 = vmatpush1.bf16.msra.mxu0 0
        %1694 = vmatprep.subr.bf16.mxu0 0
        %1695 = vmatpush1.bf16.msra.mxu0 0
        %1696 = vmatprep.subr.bf16.mxu0 0
        %1697 = vmatpush1.bf16.msra.mxu0 0
        %1698 = vmatprep.subr.bf16.mxu0 0
        %1699 = vmatpush1.bf16.msra.mxu0 0
        %1700 = vmatprep.subr.bf16.mxu0 0
        %1701 = vmatpush1.bf16.msra.mxu0 0
        %1702 = vmatprep.subr.bf16.mxu0 0
        %1703 = vmatpush1.bf16.msra.mxu0 0
        %1704 = vmatprep.subr.bf16.mxu0 0
        %1705 = vmatpush1.bf16.msra.mxu0 0
        %1706 = vmatprep.mubr.bf16.mxu0 0
        %1707 = vmatmul.mubr.bf16.gmra.mrb[0].mxu0 %v678
        %v1708 = vpop.f32.mrb[0].mxu0
        %v1709 = vadd.f32 %v393, %v1708
        %v1710 = vpop.f32.mrb[0].mxu0
        %v1711 = vadd.f32 %v393, %v1710
        %v1712 = vpop.f32.mrb[0].mxu0
        %v1713 = vadd.f32 %v398, %v1712
        %v1714 = vpop.f32.mrb[0].mxu0
        %v1715 = vadd.f32 %v398, %v1714
        %1716 = vmatprep.mubr.bf16.mxu0 0
        %1717 = vmatmul.mubr.bf16.gmra.mrb[0].mxu0 %v681
        %v1718 = vpop.f32.mrb[0].mxu0
        %v1719 = vadd.f32 %v403, %v1718
        %v1720 = vpop.f32.mrb[0].mxu0
        %v1721 = vadd.f32 %v403, %v1720
        %v1722 = vpop.f32.mrb[0].mxu0
        %v1723 = vadd.f32 %v408, %v1722
        %v1724 = vpop.f32.mrb[0].mxu0
        %v1725 = vadd.f32 %v408, %v1724
        %1726 = vdwg.mxu0
        %1727 = vmatprep.subr.bf16.mxu0 %v787
        %1728 = vmatpush1.bf16.msra.mxu0 %v784
        %1729 = vmatprep.subr.bf16.mxu0 0
        %1730 = vmatpush1.bf16.msra.mxu0 0
        %1731 = vmatprep.subr.bf16.mxu0 0
        %1732 = vmatpush1.bf16.msra.mxu0 0
        %1733 = vmatprep.subr.bf16.mxu0 0
        %1734 = vmatpush1.bf16.msra.mxu0 0
        %1735 = vmatprep.subr.bf16.mxu0 0
        %1736 = vmatpush1.bf16.msra.mxu0 0
        %1737 = vmatprep.subr.bf16.mxu0 0
        %1738 = vmatpush1.bf16.msra.mxu0 0
        %1739 = vmatprep.subr.bf16.mxu0 0
        %1740 = vmatpush1.bf16.msra.mxu0 0
        %1741 = vmatprep.subr.bf16.mxu0 0
        %1742 = vmatpush1.bf16.msra.mxu0 0
        %1743 = vmatprep.subr.bf16.mxu0 0
        %1744 = vmatpush1.bf16.msra.mxu0 0
        %1745 = vmatprep.subr.bf16.mxu0 0
        %1746 = vmatpush1.bf16.msra.mxu0 0
        %1747 = vmatprep.subr.bf16.mxu0 0
        %1748 = vmatpush1.bf16.msra.mxu0 0
        %1749 = vmatprep.subr.bf16.mxu0 0
        %1750 = vmatpush1.bf16.msra.mxu0 0
        %1751 = vmatprep.subr.bf16.mxu0 0
        %1752 = vmatpush1.bf16.msra.mxu0 0
        %1753 = vmatprep.subr.bf16.mxu0 0
        %1754 = vmatpush1.bf16.msra.mxu0 0
        %1755 = vmatprep.subr.bf16.mxu0 0
        %1756 = vmatpush1.bf16.msra.mxu0 0
        %1757 = vmatprep.subr.bf16.mxu0 0
        %1758 = vmatpush1.bf16.msra.mxu0 0
        %1759 = vmatprep.mubr.bf16.mxu0 0
        %1760 = vmatmul.mubr.bf16.gmra.mrb[0].mxu0 %v678
        %v1761 = vpop.f32.mrb[0].mxu0
        %v1762 = vadd.f32 %v393, %v1761
        %v1763 = vpop.f32.mrb[0].mxu0
        %v1764 = vadd.f32 %v393, %v1763
        %v1765 = vpop.f32.mrb[0].mxu0
        %v1766 = vadd.f32 %v398, %v1765
        %v1767 = vpop.f32.mrb[0].mxu0
        %v1768 = vadd.f32 %v398, %v1767
        %1769 = vmatprep.mubr.bf16.mxu0 0
        %1770 = vmatmul.mubr.bf16.gmra.mrb[0].mxu0 %v681
        %v1771 = vpop.f32.mrb[0].mxu0
        %v1772 = vadd.f32 %v403, %v1771
        %v1773 = vpop.f32.mrb[0].mxu0
        %v1774 = vadd.f32 %v403, %v1773
        %v1775 = vpop.f32.mrb[0].mxu0
        %v1776 = vadd.f32 %v408, %v1775
        %v1777 = vpop.f32.mrb[0].mxu0
        %v1778 = vadd.f32 %v408, %v1777
        %1779 = vdwg.mxu0
        %1780 = vmatprep.subr.bf16.mxu0 %v793
        %1781 = vmatpush1.bf16.msra.mxu0 %v790
        %1782 = vmatprep.subr.bf16.mxu0 0
        %1783 = vmatpush1.bf16.msra.mxu0 0
        %1784 = vmatprep.subr.bf16.mxu0 0
        %1785 = vmatpush1.bf16.msra.mxu0 0
        %1786 = vmatprep.subr.bf16.mxu0 0
        %1787 = vmatpush1.bf16.msra.mxu0 0
        %1788 = vmatprep.subr.bf16.mxu0 0
        %1789 = vmatpush1.bf16.msra.mxu0 0
        %1790 = vmatprep.subr.bf16.mxu0 0
        %1791 = vmatpush1.bf16.msra.mxu0 0
        %1792 = vmatprep.subr.bf16.mxu0 0
        %1793 = vmatpush1.bf16.msra.mxu0 0
        %1794 = vmatprep.subr.bf16.mxu0 0
        %1795 = vmatpush1.bf16.msra.mxu0 0
        %1796 = vmatprep.subr.bf16.mxu0 0
        %1797 = vmatpush1.bf16.msra.mxu0 0
        %1798 = vmatprep.subr.bf16.mxu0 0
        %1799 = vmatpush1.bf16.msra.mxu0 0
        %1800 = vmatprep.subr.bf16.mxu0 0
        %1801 = vmatpush1.bf16.msra.mxu0 0
        %1802 = vmatprep.subr.bf16.mxu0 0
        %1803 = vmatpush1.bf16.msra.mxu0 0
        %1804 = vmatprep.subr.bf16.mxu0 0
        %1805 = vmatpush1.bf16.msra.mxu0 0
        %1806 = vmatprep.subr.bf16.mxu0 0
        %1807 = vmatpush1.bf16.msra.mxu0 0
        %1808 = vmatprep.subr.bf16.mxu0 0
        %1809 = vmatpush1.bf16.msra.mxu0 0
        %1810 = vmatprep.subr.bf16.mxu0 0
        %1811 = vmatpush1.bf16.msra.mxu0 0
        %1812 = vmatprep.mubr.bf16.mxu0 0
        %1813 = vmatmul.mubr.bf16.gmra.mrb[0].mxu0 %v678
        %v1814 = vpop.f32.mrb[0].mxu0
        %v1815 = vadd.f32 %v393, %v1814
        %v1816 = vpop.f32.mrb[0].mxu0
        %v1817 = vadd.f32 %v393, %v1816
        %v1818 = vpop.f32.mrb[0].mxu0
        %v1819 = vadd.f32 %v398, %v1818
        %v1820 = vpop.f32.mrb[0].mxu0
        %v1821 = vadd.f32 %v398, %v1820
        %1822 = vmatprep.mubr.bf16.mxu0 0
        %1823 = vmatmul.mubr.bf16.gmra.mrb[0].mxu0 %v681
        %v1824 = vpop.f32.mrb[0].mxu0
        %v1825 = vadd.f32 %v403, %v1824
        %v1826 = vpop.f32.mrb[0].mxu0
        %v1827 = vadd.f32 %v403, %v1826
        %v1828 = vpop.f32.mrb[0].mxu0
        %v1829 = vadd.f32 %v408, %v1828
        %v1830 = vpop.f32.mrb[0].mxu0
        %v1831 = vadd.f32 %v408, %v1830
        %1832 = vdwg.mxu0
        %1833 = vmatprep.subr.bf16.mxu0 %v799
        %1834 = vmatpush1.bf16.msra.mxu0 %v796
        %1835 = vmatprep.subr.bf16.mxu0 0
        %1836 = vmatpush1.bf16.msra.mxu0 0
        %1837 = vmatprep.subr.bf16.mxu0 0
        %1838 = vmatpush1.bf16.msra.mxu0 0
        %1839 = vmatprep.subr.bf16.mxu0 0
        %1840 = vmatpush1.bf16.msra.mxu0 0
        %1841 = vmatprep.subr.bf16.mxu0 0
        %1842 = vmatpush1.bf16.msra.mxu0 0
        %1843 = vmatprep.subr.bf16.mxu0 0
        %1844 = vmatpush1.bf16.msra.mxu0 0
        %1845 = vmatprep.subr.bf16.mxu0 0
        %1846 = vmatpush1.bf16.msra.mxu0 0
        %1847 = vmatprep.subr.bf16.mxu0 0
        %1848 = vmatpush1.bf16.msra.mxu0 0
        %1849 = vmatprep.subr.bf16.mxu0 0
        %1850 = vmatpush1.bf16.msra.mxu0 0
        %1851 = vmatprep.subr.bf16.mxu0 0
        %1852 = vmatpush1.bf16.msra.mxu0 0
        %1853 = vmatprep.subr.bf16.mxu0 0
        %1854 = vmatpush1.bf16.msra.mxu0 0
        %1855 = vmatprep.subr.bf16.mxu0 0
        %1856 = vmatpush1.bf16.msra.mxu0 0
        %1857 = vmatprep.subr.bf16.mxu0 0
        %1858 = vmatpush1.bf16.msra.mxu0 0
        %1859 = vmatprep.subr.bf16.mxu0 0
        %1860 = vmatpush1.bf16.msra.mxu0 0
        %1861 = vmatprep.subr.bf16.mxu0 0
        %1862 = vmatpush1.bf16.msra.mxu0 0
        %1863 = vmatprep.subr.bf16.mxu0 0
        %1864 = vmatpush1.bf16.msra.mxu0 0
        %1865 = vmatprep.mubr.bf16.mxu0 0
        %1866 = vmatmul.mubr.bf16.gmra.mrb[0].mxu0 %v678
        %v1867 = vpop.f32.mrb[0].mxu0
        %v1868 = vadd.f32 %v393, %v1867
        %v1869 = vpop.f32.mrb[0].mxu0
        %v1870 = vadd.f32 %v393, %v1869
        %v1871 = vpop.f32.mrb[0].mxu0
        %v1872 = vadd.f32 %v398, %v1871
        %v1873 = vpop.f32.mrb[0].mxu0
        %v1874 = vadd.f32 %v398, %v1873
        %1875 = vmatprep.mubr.bf16.mxu0 0
        %1876 = vmatmul.mubr.bf16.gmra.mrb[0].mxu0 %v681
        %v1877 = vpop.f32.mrb[0].mxu0
        %v1878 = vadd.f32 %v403, %v1877
        %v1879 = vpop.f32.mrb[0].mxu0
        %v1880 = vadd.f32 %v403, %v1879
        %v1881 = vpop.f32.mrb[0].mxu0
        %v1882 = vadd.f32 %v408, %v1881
        %v1883 = vpop.f32.mrb[0].mxu0
        %v1884 = vadd.f32 %v408, %v1883
        %1885 = vdwg.mxu0
        %1886 = vmatprep.subr.bf16.mxu0 %v805
        %1887 = vmatpush1.bf16.msra.mxu0 %v802
        %1888 = vmatprep.subr.bf16.mxu0 0
        %1889 = vmatpush1.bf16.msra.mxu0 0
        %1890 = vmatprep.subr.bf16.mxu0 0
        %1891 = vmatpush1.bf16.msra.mxu0 0
        %1892 = vmatprep.subr.bf16.mxu0 0
        %1893 = vmatpush1.bf16.msra.mxu0 0
        %1894 = vmatprep.subr.bf16.mxu0 0
        %1895 = vmatpush1.bf16.msra.mxu0 0
        %1896 = vmatprep.subr.bf16.mxu0 0
        %1897 = vmatpush1.bf16.msra.mxu0 0
        %1898 = vmatprep.subr.bf16.mxu0 0
        %1899 = vmatpush1.bf16.msra.mxu0 0
        %1900 = vmatprep.subr.bf16.mxu0 0
        %1901 = vmatpush1.bf16.msra.mxu0 0
        %1902 = vmatprep.subr.bf16.mxu0 0
        %1903 = vmatpush1.bf16.msra.mxu0 0
        %1904 = vmatprep.subr.bf16.mxu0 0
        %1905 = vmatpush1.bf16.msra.mxu0 0
        %1906 = vmatprep.subr.bf16.mxu0 0
        %1907 = vmatpush1.bf16.msra.mxu0 0
        %1908 = vmatprep.subr.bf16.mxu0 0
        %1909 = vmatpush1.bf16.msra.mxu0 0
        %1910 = vmatprep.subr.bf16.mxu0 0
        %1911 = vmatpush1.bf16.msra.mxu0 0
        %1912 = vmatprep.subr.bf16.mxu0 0
        %1913 = vmatpush1.bf16.msra.mxu0 0
        %1914 = vmatprep.subr.bf16.mxu0 0
        %1915 = vmatpush1.bf16.msra.mxu0 0
        %1916 = vmatprep.subr.bf16.mxu0 0
        %1917 = vmatpush1.bf16.msra.mxu0 0
        %1918 = vmatprep.mubr.bf16.mxu0 0
        %1919 = vmatmul.mubr.bf16.gmra.mrb[0].mxu0 %v678
        %v1920 = vpop.f32.mrb[0].mxu0
        %v1921 = vadd.f32 %v393, %v1920
        %v1922 = vpop.f32.mrb[0].mxu0
        %v1923 = vadd.f32 %v393, %v1922
        %v1924 = vpop.f32.mrb[0].mxu0
        %v1925 = vadd.f32 %v398, %v1924
        %v1926 = vpop.f32.mrb[0].mxu0
        %v1927 = vadd.f32 %v398, %v1926
        %1928 = vmatprep.mubr.bf16.mxu0 0
        %1929 = vmatmul.mubr.bf16.gmra.mrb[0].mxu0 %v681
        %v1930 = vpop.f32.mrb[0].mxu0
        %v1931 = vadd.f32 %v403, %v1930
        %v1932 = vpop.f32.mrb[0].mxu0
        %v1933 = vadd.f32 %v403, %v1932
        %v1934 = vpop.f32.mrb[0].mxu0
        %v1935 = vadd.f32 %v408, %v1934
        %v1936 = vpop.f32.mrb[0].mxu0
        %v1937 = vadd.f32 %v408, %v1936
        %1938 = vdwg.mxu0
        %1939 = vmatprep.subr.bf16.mxu0 %v811
        %1940 = vmatpush1.bf16.msra.mxu0 %v808
        %1941 = vmatprep.subr.bf16.mxu0 0
        %1942 = vmatpush1.bf16.msra.mxu0 0
        %1943 = vmatprep.subr.bf16.mxu0 0
        %1944 = vmatpush1.bf16.msra.mxu0 0
        %1945 = vmatprep.subr.bf16.mxu0 0
        %1946 = vmatpush1.bf16.msra.mxu0 0
        %1947 = vmatprep.subr.bf16.mxu0 0
        %1948 = vmatpush1.bf16.msra.mxu0 0
        %1949 = vmatprep.subr.bf16.mxu0 0
        %1950 = vmatpush1.bf16.msra.mxu0 0
        %1951 = vmatprep.subr.bf16.mxu0 0
        %1952 = vmatpush1.bf16.msra.mxu0 0
        %1953 = vmatprep.subr.bf16.mxu0 0
        %1954 = vmatpush1.bf16.msra.mxu0 0
        %1955 = vmatprep.subr.bf16.mxu0 0
        %1956 = vmatpush1.bf16.msra.mxu0 0
        %1957 = vmatprep.subr.bf16.mxu0 0
        %1958 = vmatpush1.bf16.msra.mxu0 0
        %1959 = vmatprep.subr.bf16.mxu0 0
        %1960 = vmatpush1.bf16.msra.mxu0 0
        %1961 = vmatprep.subr.bf16.mxu0 0
        %1962 = vmatpush1.bf16.msra.mxu0 0
        %1963 = vmatprep.subr.bf16.mxu0 0
        %1964 = vmatpush1.bf16.msra.mxu0 0
        %1965 = vmatprep.subr.bf16.mxu0 0
        %1966 = vmatpush1.bf16.msra.mxu0 0
        %1967 = vmatprep.subr.bf16.mxu0 0
        %1968 = vmatpush1.bf16.msra.mxu0 0
        %1969 = vmatprep.subr.bf16.mxu0 0
        %1970 = vmatpush1.bf16.msra.mxu0 0
        %1971 = vmatprep.mubr.bf16.mxu0 0
        %1972 = vmatmul.mubr.bf16.gmra.mrb[0].mxu0 %v678
        %v1973 = vpop.f32.mrb[0].mxu0
        %v1974 = vadd.f32 %v393, %v1973
        %v1975 = vpop.f32.mrb[0].mxu0
        %v1976 = vadd.f32 %v393, %v1975
        %v1977 = vpop.f32.mrb[0].mxu0
        %v1978 = vadd.f32 %v398, %v1977
        %v1979 = vpop.f32.mrb[0].mxu0
        %v1980 = vadd.f32 %v398, %v1979
        %1981 = vmatprep.mubr.bf16.mxu0 0
        %1982 = vmatmul.mubr.bf16.gmra.mrb[0].mxu0 %v681
        %v1983 = vpop.f32.mrb[0].mxu0
        %v1984 = vadd.f32 %v403, %v1983
        %v1985 = vpop.f32.mrb[0].mxu0
        %v1986 = vadd.f32 %v403, %v1985
        %v1987 = vpop.f32.mrb[0].mxu0
        %v1988 = vadd.f32 %v408, %v1987
        %v1989 = vpop.f32.mrb[0].mxu0
        %v1990 = vadd.f32 %v408, %v1989
        %1991 = vdwg.mxu0
        %1992 = vmatprep.subr.bf16.mxu0 %v817
        %1993 = vmatpush1.bf16.msra.mxu0 %v814
        %1994 = vmatprep.subr.bf16.mxu0 0
        %1995 = vmatpush1.bf16.msra.mxu0 0
        %1996 = vmatprep.subr.bf16.mxu0 0
        %1997 = vmatpush1.bf16.msra.mxu0 0
        %1998 = vmatprep.subr.bf16.mxu0 0
        %1999 = vmatpush1.bf16.msra.mxu0 0
        %2000 = vmatprep.subr.bf16.mxu0 0
        %2001 = vmatpush1.bf16.msra.mxu0 0
        %2002 = vmatprep.subr.bf16.mxu0 0
        %2003 = vmatpush1.bf16.msra.mxu0 0
        %2004 = vmatprep.subr.bf16.mxu0 0
        %2005 = vmatpush1.bf16.msra.mxu0 0
        %2006 = vmatprep.subr.bf16.mxu0 0
        %2007 = vmatpush1.bf16.msra.mxu0 0
        %2008 = vmatprep.subr.bf16.mxu0 0
        %2009 = vmatpush1.bf16.msra.mxu0 0
        %2010 = vmatprep.subr.bf16.mxu0 0
        %2011 = vmatpush1.bf16.msra.mxu0 0
        %2012 = vmatprep.subr.bf16.mxu0 0
        %2013 = vmatpush1.bf16.msra.mxu0 0
        %2014 = vmatprep.subr.bf16.mxu0 0
        %2015 = vmatpush1.bf16.msra.mxu0 0
        %2016 = vmatprep.subr.bf16.mxu0 0
        %2017 = vmatpush1.bf16.msra.mxu0 0
        %2018 = vmatprep.subr.bf16.mxu0 0
        %2019 = vmatpush1.bf16.msra.mxu0 0
        %2020 = vmatprep.subr.bf16.mxu0 0
        %2021 = vmatpush1.bf16.msra.mxu0 0
        %2022 = vmatprep.subr.bf16.mxu0 0
        %2023 = vmatpush1.bf16.msra.mxu0 0
        %2024 = vmatprep.mubr.bf16.mxu0 0
        %2025 = vmatmul.mubr.bf16.gmra.mrb[0].mxu0 %v678
        %v2026 = vpop.f32.mrb[0].mxu0
        %v2027 = vadd.f32 %v393, %v2026
        %v2028 = vpop.f32.mrb[0].mxu0
        %v2029 = vadd.f32 %v393, %v2028
        %v2030 = vpop.f32.mrb[0].mxu0
        %v2031 = vadd.f32 %v398, %v2030
        %v2032 = vpop.f32.mrb[0].mxu0
        %v2033 = vadd.f32 %v398, %v2032
        %2034 = vmatprep.mubr.bf16.mxu0 0
        %2035 = vmatmul.mubr.bf16.gmra.mrb[0].mxu0 %v681
        %v2036 = vpop.f32.mrb[0].mxu0
        %v2037 = vadd.f32 %v403, %v2036
        %v2038 = vpop.f32.mrb[0].mxu0
        %v2039 = vadd.f32 %v403, %v2038
        %v2040 = vpop.f32.mrb[0].mxu0
        %v2041 = vadd.f32 %v408, %v2040
        %v2042 = vpop.f32.mrb[0].mxu0
        %v2043 = vadd.f32 %v408, %v2042
        %2044 = vdwg.mxu0
        %2045 = vmatprep.subr.bf16.mxu0 %v823
        %2046 = vmatpush1.bf16.msra.mxu0 %v820
        %2047 = vmatprep.subr.bf16.mxu0 0
        %2048 = vmatpush1.bf16.msra.mxu0 0
        %2049 = vmatprep.subr.bf16.mxu0 0
        %2050 = vmatpush1.bf16.msra.mxu0 0
        %2051 = vmatprep.subr.bf16.mxu0 0
        %2052 = vmatpush1.bf16.msra.mxu0 0
        %2053 = vmatprep.subr.bf16.mxu0 0
        %2054 = vmatpush1.bf16.msra.mxu0 0
        %2055 = vmatprep.subr.bf16.mxu0 0
        %2056 = vmatpush1.bf16.msra.mxu0 0
        %2057 = vmatprep.subr.bf16.mxu0 0
        %2058 = vmatpush1.bf16.msra.mxu0 0
        %2059 = vmatprep.subr.bf16.mxu0 0
        %2060 = vmatpush1.bf16.msra.mxu0 0
        %2061 = vmatprep.subr.bf16.mxu0 0
        %2062 = vmatpush1.bf16.msra.mxu0 0
        %2063 = vmatprep.subr.bf16.mxu0 0
        %2064 = vmatpush1.bf16.msra.mxu0 0
        %2065 = vmatprep.subr.bf16.mxu0 0
        %2066 = vmatpush1.bf16.msra.mxu0 0
        %2067 = vmatprep.subr.bf16.mxu0 0
        %2068 = vmatpush1.bf16.msra.mxu0 0
        %2069 = vmatprep.subr.bf16.mxu0 0
        %2070 = vmatpush1.bf16.msra.mxu0 0
        %2071 = vmatprep.subr.bf16.mxu0 0
        %2072 = vmatpush1.bf16.msra.mxu0 0
        %2073 = vmatprep.subr.bf16.mxu0 0
        %2074 = vmatpush1.bf16.msra.mxu0 0
        %2075 = vmatprep.subr.bf16.mxu0 0
        %2076 = vmatpush1.bf16.msra.mxu0 0
        %2077 = vmatprep.mubr.bf16.mxu0 0
        %2078 = vmatmul.mubr.bf16.gmra.mrb[0].mxu0 %v678
        %v2079 = vpop.f32.mrb[0].mxu0
        %v2080 = vadd.f32 %v393, %v2079
        %v2081 = vpop.f32.mrb[0].mxu0
        %v2082 = vadd.f32 %v393, %v2081
        %v2083 = vpop.f32.mrb[0].mxu0
        %v2084 = vadd.f32 %v398, %v2083
        %v2085 = vpop.f32.mrb[0].mxu0
        %v2086 = vadd.f32 %v398, %v2085
        %2087 = vmatprep.mubr.bf16.mxu0 0
        %2088 = vmatmul.mubr.bf16.gmra.mrb[0].mxu0 %v681
        %v2089 = vpop.f32.mrb[0].mxu0
        %v2090 = vadd.f32 %v403, %v2089
        %v2091 = vpop.f32.mrb[0].mxu0
        %v2092 = vadd.f32 %v403, %v2091
        %v2093 = vpop.f32.mrb[0].mxu0
        %v2094 = vadd.f32 %v408, %v2093
        %v2095 = vpop.f32.mrb[0].mxu0
        %v2096 = vadd.f32 %v408, %v2095
        %2097 = vdwg.mxu0
        %2098 = vmatprep.subr.bf16.mxu0 %v829
        %2099 = vmatpush1.bf16.msra.mxu0 %v826
        %2100 = vmatprep.subr.bf16.mxu0 0
        %2101 = vmatpush1.bf16.msra.mxu0 0
        %2102 = vmatprep.subr.bf16.mxu0 0
        %2103 = vmatpush1.bf16.msra.mxu0 0
        %2104 = vmatprep.subr.bf16.mxu0 0
        %2105 = vmatpush1.bf16.msra.mxu0 0
        %2106 = vmatprep.subr.bf16.mxu0 0
        %2107 = vmatpush1.bf16.msra.mxu0 0
        %2108 = vmatprep.subr.bf16.mxu0 0
        %2109 = vmatpush1.bf16.msra.mxu0 0
        %2110 = vmatprep.subr.bf16.mxu0 0
        %2111 = vmatpush1.bf16.msra.mxu0 0
        %2112 = vmatprep.subr.bf16.mxu0 0
        %2113 = vmatpush1.bf16.msra.mxu0 0
        %2114 = vmatprep.subr.bf16.mxu0 0
        %2115 = vmatpush1.bf16.msra.mxu0 0
        %2116 = vmatprep.subr.bf16.mxu0 0
        %2117 = vmatpush1.bf16.msra.mxu0 0
        %2118 = vmatprep.subr.bf16.mxu0 0
        %2119 = vmatpush1.bf16.msra.mxu0 0
        %2120 = vmatprep.subr.bf16.mxu0 0
        %2121 = vmatpush1.bf16.msra.mxu0 0
        %2122 = vmatprep.subr.bf16.mxu0 0
        %2123 = vmatpush1.bf16.msra.mxu0 0
        %2124 = vmatprep.subr.bf16.mxu0 0
        %2125 = vmatpush1.bf16.msra.mxu0 0
        %2126 = vmatprep.subr.bf16.mxu0 0
        %2127 = vmatpush1.bf16.msra.mxu0 0
        %2128 = vmatprep.subr.bf16.mxu0 0
        %2129 = vmatpush1.bf16.msra.mxu0 0
        %2130 = vmatprep.mubr.bf16.mxu0 0
        %2131 = vmatmul.mubr.bf16.gmra.mrb[0].mxu0 %v678
        %v2132 = vpop.f32.mrb[0].mxu0
        %v2133 = vadd.f32 %v393, %v2132
        %v2134 = vpop.f32.mrb[0].mxu0
        %v2135 = vadd.f32 %v393, %v2134
        %v2136 = vpop.f32.mrb[0].mxu0
        %v2137 = vadd.f32 %v398, %v2136
        %v2138 = vpop.f32.mrb[0].mxu0
        %v2139 = vadd.f32 %v398, %v2138
        %2140 = vmatprep.mubr.bf16.mxu0 0
        %2141 = vmatmul.mubr.bf16.gmra.mrb[0].mxu0 %v681
        %v2142 = vpop.f32.mrb[0].mxu0
        %v2143 = vadd.f32 %v403, %v2142
        %v2144 = vpop.f32.mrb[0].mxu0
        %v2145 = vadd.f32 %v403, %v2144
        %v2146 = vpop.f32.mrb[0].mxu0
        %v2147 = vadd.f32 %v408, %v2146
        %v2148 = vpop.f32.mrb[0].mxu0
        %v2149 = vadd.f32 %v408, %v2148
        %2150 = vdwg.mxu0
        %2151 = vmatprep.subr.bf16.mxu0 %v835
        %2152 = vmatpush1.bf16.msra.mxu0 %v832
        %2153 = vmatprep.subr.bf16.mxu0 0
        %2154 = vmatpush1.bf16.msra.mxu0 0
        %2155 = vmatprep.subr.bf16.mxu0 0
        %2156 = vmatpush1.bf16.msra.mxu0 0
        %2157 = vmatprep.subr.bf16.mxu0 0
        %2158 = vmatpush1.bf16.msra.mxu0 0
        %2159 = vmatprep.subr.bf16.mxu0 0
        %2160 = vmatpush1.bf16.msra.mxu0 0
        %2161 = vmatprep.subr.bf16.mxu0 0
        %2162 = vmatpush1.bf16.msra.mxu0 0
        %2163 = vmatprep.subr.bf16.mxu0 0
        %2164 = vmatpush1.bf16.msra.mxu0 0
        %2165 = vmatprep.subr.bf16.mxu0 0
        %2166 = vmatpush1.bf16.msra.mxu0 0
        %2167 = vmatprep.subr.bf16.mxu0 0
        %2168 = vmatpush1.bf16.msra.mxu0 0
        %2169 = vmatprep.subr.bf16.mxu0 0
        %2170 = vmatpush1.bf16.msra.mxu0 0
        %2171 = vmatprep.subr.bf16.mxu0 0
        %2172 = vmatpush1.bf16.msra.mxu0 0
        %2173 = vmatprep.subr.bf16.mxu0 0
        %2174 = vmatpush1.bf16.msra.mxu0 0
        %2175 = vmatprep.subr.bf16.mxu0 0
        %2176 = vmatpush1.bf16.msra.mxu0 0
        %2177 = vmatprep.subr.bf16.mxu0 0
        %2178 = vmatpush1.bf16.msra.mxu0 0
        %2179 = vmatprep.subr.bf16.mxu0 0
        %2180 = vmatpush1.bf16.msra.mxu0 0
        %2181 = vmatprep.subr.bf16.mxu0 0
        %2182 = vmatpush1.bf16.msra.mxu0 0
        %2183 = vmatprep.mubr.bf16.mxu0 0
        %2184 = vmatmul.mubr.bf16.gmra.mrb[0].mxu0 %v678
        %v2185 = vpop.f32.mrb[0].mxu0
        %v2186 = vadd.f32 %v393, %v2185
        %v2187 = vpop.f32.mrb[0].mxu0
        %v2188 = vadd.f32 %v393, %v2187
        %v2189 = vpop.f32.mrb[0].mxu0
        %v2190 = vadd.f32 %v398, %v2189
        %v2191 = vpop.f32.mrb[0].mxu0
        %v2192 = vadd.f32 %v398, %v2191
        %2193 = vmatprep.mubr.bf16.mxu0 0
        %2194 = vmatmul.mubr.bf16.gmra.mrb[0].mxu0 %v681
        %v2195 = vpop.f32.mrb[0].mxu0
        %v2196 = vadd.f32 %v403, %v2195
        %v2197 = vpop.f32.mrb[0].mxu0
        %v2198 = vadd.f32 %v403, %v2197
        %v2199 = vpop.f32.mrb[0].mxu0
        %v2200 = vadd.f32 %v408, %v2199
        %v2201 = vpop.f32.mrb[0].mxu0
        %v2202 = vadd.f32 %v408, %v2201
        %2203 = vdwg.mxu0
        %2204 = vmatprep.subr.bf16.mxu0 %v841
        %2205 = vmatpush1.bf16.msra.mxu0 %v838
        %2206 = vmatprep.subr.bf16.mxu0 0
        %2207 = vmatpush1.bf16.msra.mxu0 0
        %2208 = vmatprep.subr.bf16.mxu0 0
        %2209 = vmatpush1.bf16.msra.mxu0 0
        %2210 = vmatprep.subr.bf16.mxu0 0
        %2211 = vmatpush1.bf16.msra.mxu0 0
        %2212 = vmatprep.subr.bf16.mxu0 0
        %2213 = vmatpush1.bf16.msra.mxu0 0
        %2214 = vmatprep.subr.bf16.mxu0 0
        %2215 = vmatpush1.bf16.msra.mxu0 0
        %2216 = vmatprep.subr.bf16.mxu0 0
        %2217 = vmatpush1.bf16.msra.mxu0 0
        %2218 = vmatprep.subr.bf16.mxu0 0
        %2219 = vmatpush1.bf16.msra.mxu0 0
        %2220 = vmatprep.subr.bf16.mxu0 0
        %2221 = vmatpush1.bf16.msra.mxu0 0
        %2222 = vmatprep.subr.bf16.mxu0 0
        %2223 = vmatpush1.bf16.msra.mxu0 0
        %2224 = vmatprep.subr.bf16.mxu0 0
        %2225 = vmatpush1.bf16.msra.mxu0 0
        %2226 = vmatprep.subr.bf16.mxu0 0
        %2227 = vmatpush1.bf16.msra.mxu0 0
        %2228 = vmatprep.subr.bf16.mxu0 0
        %2229 = vmatpush1.bf16.msra.mxu0 0
        %2230 = vmatprep.subr.bf16.mxu0 0
        %2231 = vmatpush1.bf16.msra.mxu0 0
        %2232 = vmatprep.subr.bf16.mxu0 0
        %2233 = vmatpush1.bf16.msra.mxu0 0
        %2234 = vmatprep.subr.bf16.mxu0 0
        %2235 = vmatpush1.bf16.msra.mxu0 0
        %2236 = vmatprep.mubr.bf16.mxu0 0
        %2237 = vmatmul.mubr.bf16.gmra.mrb[0].mxu0 %v678
        %v2238 = vpop.f32.mrb[0].mxu0
        %v2239 = vadd.f32 %v393, %v2238
        %v2240 = vpop.f32.mrb[0].mxu0
        %v2241 = vadd.f32 %v393, %v2240
        %v2242 = vpop.f32.mrb[0].mxu0
        %v2243 = vadd.f32 %v398, %v2242
        %v2244 = vpop.f32.mrb[0].mxu0
        %v2245 = vadd.f32 %v398, %v2244
        %2246 = vmatprep.mubr.bf16.mxu0 0
        %2247 = vmatmul.mubr.bf16.gmra.mrb[0].mxu0 %v681
        %v2248 = vpop.f32.mrb[0].mxu0
        %v2249 = vadd.f32 %v403, %v2248
        %v2250 = vpop.f32.mrb[0].mxu0
        %v2251 = vadd.f32 %v403, %v2250
        %v2252 = vpop.f32.mrb[0].mxu0
        %v2253 = vadd.f32 %v408, %v2252
        %v2254 = vpop.f32.mrb[0].mxu0
        %v2255 = vadd.f32 %v408, %v2254
        %2256 = vdwg.mxu0
        %2257 = vmatprep.subr.bf16.mxu0 %v847
        %2258 = vmatpush1.bf16.msra.mxu0 %v844
        %2259 = vmatprep.subr.bf16.mxu0 0
        %2260 = vmatpush1.bf16.msra.mxu0 0
        %2261 = vmatprep.subr.bf16.mxu0 0
        %2262 = vmatpush1.bf16.msra.mxu0 0
        %2263 = vmatprep.subr.bf16.mxu0 0
        %2264 = vmatpush1.bf16.msra.mxu0 0
        %2265 = vmatprep.subr.bf16.mxu0 0
        %2266 = vmatpush1.bf16.msra.mxu0 0
        %2267 = vmatprep.subr.bf16.mxu0 0
        %2268 = vmatpush1.bf16.msra.mxu0 0
        %2269 = vmatprep.subr.bf16.mxu0 0
        %2270 = vmatpush1.bf16.msra.mxu0 0
        %2271 = vmatprep.subr.bf16.mxu0 0
        %2272 = vmatpush1.bf16.msra.mxu0 0
        %2273 = vmatprep.subr.bf16.mxu0 0
        %2274 = vmatpush1.bf16.msra.mxu0 0
        %2275 = vmatprep.subr.bf16.mxu0 0
        %2276 = vmatpush1.bf16.msra.mxu0 0
        %2277 = vmatprep.subr.bf16.mxu0 0
        %2278 = vmatpush1.bf16.msra.mxu0 0
        %2279 = vmatprep.subr.bf16.mxu0 0
        %2280 = vmatpush1.bf16.msra.mxu0 0
        %2281 = vmatprep.subr.bf16.mxu0 0
        %2282 = vmatpush1.bf16.msra.mxu0 0
        %2283 = vmatprep.subr.bf16.mxu0 0
        %2284 = vmatpush1.bf16.msra.mxu0 0
        %2285 = vmatprep.subr.bf16.mxu0 0
        %2286 = vmatpush1.bf16.msra.mxu0 0
        %2287 = vmatprep.subr.bf16.mxu0 0
        %2288 = vmatpush1.bf16.msra.mxu0 0
        %2289 = vmatprep.mubr.bf16.mxu0 0
        %2290 = vmatmul.mubr.bf16.gmra.mrb[0].mxu0 %v678
        %v2291 = vpop.f32.mrb[0].mxu0
        %v2292 = vadd.f32 %v393, %v2291
        %v2293 = vpop.f32.mrb[0].mxu0
        %v2294 = vadd.f32 %v393, %v2293
        %v2295 = vpop.f32.mrb[0].mxu0
        %v2296 = vadd.f32 %v398, %v2295
        %v2297 = vpop.f32.mrb[0].mxu0
        %v2298 = vadd.f32 %v398, %v2297
        %2299 = vmatprep.mubr.bf16.mxu0 0
        %2300 = vmatmul.mubr.bf16.gmra.mrb[0].mxu0 %v681
        %v2301 = vpop.f32.mrb[0].mxu0
        %v2302 = vadd.f32 %v403, %v2301
        %v2303 = vpop.f32.mrb[0].mxu0
        %v2304 = vadd.f32 %v403, %v2303
        %v2305 = vpop.f32.mrb[0].mxu0
        %v2306 = vadd.f32 %v408, %v2305
        %v2307 = vpop.f32.mrb[0].mxu0
        %v2308 = vadd.f32 %v408, %v2307
        %2309 = vdwg.mxu0
        %2310 = vmatprep.subr.bf16.mxu0 %v853
        %2311 = vmatpush1.bf16.msra.mxu0 %v850
        %2312 = vmatprep.subr.bf16.mxu0 0
        %2313 = vmatpush1.bf16.msra.mxu0 0
        %2314 = vmatprep.subr.bf16.mxu0 0
        %2315 = vmatpush1.bf16.msra.mxu0 0
        %2316 = vmatprep.subr.bf16.mxu0 0
        %2317 = vmatpush1.bf16.msra.mxu0 0
        %2318 = vmatprep.subr.bf16.mxu0 0
        %2319 = vmatpush1.bf16.msra.mxu0 0
        %2320 = vmatprep.subr.bf16.mxu0 0
        %2321 = vmatpush1.bf16.msra.mxu0 0
        %2322 = vmatprep.subr.bf16.mxu0 0
        %2323 = vmatpush1.bf16.msra.mxu0 0
        %2324 = vmatprep.subr.bf16.mxu0 0
        %2325 = vmatpush1.bf16.msra.mxu0 0
        %2326 = vmatprep.subr.bf16.mxu0 0
        %2327 = vmatpush1.bf16.msra.mxu0 0
        %2328 = vmatprep.subr.bf16.mxu0 0
        %2329 = vmatpush1.bf16.msra.mxu0 0
        %2330 = vmatprep.subr.bf16.mxu0 0
        %2331 = vmatpush1.bf16.msra.mxu0 0
        %2332 = vmatprep.subr.bf16.mxu0 0
        %2333 = vmatpush1.bf16.msra.mxu0 0
        %2334 = vmatprep.subr.bf16.mxu0 0
        %2335 = vmatpush1.bf16.msra.mxu0 0
        %2336 = vmatprep.subr.bf16.mxu0 0
        %2337 = vmatpush1.bf16.msra.mxu0 0
        %2338 = vmatprep.subr.bf16.mxu0 0
        %2339 = vmatpush1.bf16.msra.mxu0 0
        %2340 = vmatprep.subr.bf16.mxu0 0
        %2341 = vmatpush1.bf16.msra.mxu0 0
        %2342 = vmatprep.mubr.bf16.mxu0 0
        %2343 = vmatmul.mubr.bf16.gmra.mrb[0].mxu0 %v678
        %v2344 = vpop.f32.mrb[0].mxu0
        %v2345 = vadd.f32 %v393, %v2344
        %v2346 = vpop.f32.mrb[0].mxu0
        %v2347 = vadd.f32 %v393, %v2346
        %v2348 = vpop.f32.mrb[0].mxu0
        %v2349 = vadd.f32 %v398, %v2348
        %v2350 = vpop.f32.mrb[0].mxu0
        %v2351 = vadd.f32 %v398, %v2350
        %2352 = vmatprep.mubr.bf16.mxu0 0
        %2353 = vmatmul.mubr.bf16.gmra.mrb[0].mxu0 %v681
        %v2354 = vpop.f32.mrb[0].mxu0
        %v2355 = vadd.f32 %v403, %v2354
        %v2356 = vpop.f32.mrb[0].mxu0
        %v2357 = vadd.f32 %v403, %v2356
        %v2358 = vpop.f32.mrb[0].mxu0
        %v2359 = vadd.f32 %v408, %v2358
        %v2360 = vpop.f32.mrb[0].mxu0
        %v2361 = vadd.f32 %v408, %v2360
        %2362 = vdwg.mxu0
        %2363 = vmatprep.subr.bf16.mxu0 %v859
        %2364 = vmatpush1.bf16.msra.mxu0 %v856
        %2365 = vmatprep.subr.bf16.mxu0 0
        %2366 = vmatpush1.bf16.msra.mxu0 0
        %2367 = vmatprep.subr.bf16.mxu0 0
        %2368 = vmatpush1.bf16.msra.mxu0 0
        %2369 = vmatprep.subr.bf16.mxu0 0
        %2370 = vmatpush1.bf16.msra.mxu0 0
        %2371 = vmatprep.subr.bf16.mxu0 0
        %2372 = vmatpush1.bf16.msra.mxu0 0
        %2373 = vmatprep.subr.bf16.mxu0 0
        %2374 = vmatpush1.bf16.msra.mxu0 0
        %2375 = vmatprep.subr.bf16.mxu0 0
        %2376 = vmatpush1.bf16.msra.mxu0 0
        %2377 = vmatprep.subr.bf16.mxu0 0
        %2378 = vmatpush1.bf16.msra.mxu0 0
        %2379 = vmatprep.subr.bf16.mxu0 0
        %2380 = vmatpush1.bf16.msra.mxu0 0
        %2381 = vmatprep.subr.bf16.mxu0 0
        %2382 = vmatpush1.bf16.msra.mxu0 0
        %2383 = vmatprep.subr.bf16.mxu0 0
        %2384 = vmatpush1.bf16.msra.mxu0 0
        %2385 = vmatprep.subr.bf16.mxu0 0
        %2386 = vmatpush1.bf16.msra.mxu0 0
        %2387 = vmatprep.subr.bf16.mxu0 0
        %2388 = vmatpush1.bf16.msra.mxu0 0
        %2389 = vmatprep.subr.bf16.mxu0 0
        %2390 = vmatpush1.bf16.msra.mxu0 0
        %2391 = vmatprep.subr.bf16.mxu0 0
        %2392 = vmatpush1.bf16.msra.mxu0 0
        %2393 = vmatprep.subr.bf16.mxu0 0
        %2394 = vmatpush1.bf16.msra.mxu0 0
        %2395 = vmatprep.mubr.bf16.mxu0 0
        %2396 = vmatmul.mubr.bf16.gmra.mrb[0].mxu0 %v678
        %v2397 = vpop.f32.mrb[0].mxu0
        %v2398 = vadd.f32 %v393, %v2397
        %v2399 = vpop.f32.mrb[0].mxu0
        %v2400 = vadd.f32 %v393, %v2399
        %v2401 = vpop.f32.mrb[0].mxu0
        %v2402 = vadd.f32 %v398, %v2401
        %v2403 = vpop.f32.mrb[0].mxu0
        %v2404 = vadd.f32 %v398, %v2403
        %2405 = vmatprep.mubr.bf16.mxu0 0
        %2406 = vmatmul.mubr.bf16.gmra.mrb[0].mxu0 %v681
        %v2407 = vpop.f32.mrb[0].mxu0
        %v2408 = vadd.f32 %v403, %v2407
        %v2409 = vpop.f32.mrb[0].mxu0
        %v2410 = vadd.f32 %v403, %v2409
        %v2411 = vpop.f32.mrb[0].mxu0
        %v2412 = vadd.f32 %v408, %v2411
        %v2413 = vpop.f32.mrb[0].mxu0
        %v2414 = vadd.f32 %v408, %v2413
        %2415 = vdwg.mxu0
        %2416 = vmatprep.subr.bf16.mxu0 %v865
        %2417 = vmatpush1.bf16.msra.mxu0 %v862
        %2418 = vmatprep.subr.bf16.mxu0 0
        %2419 = vmatpush1.bf16.msra.mxu0 0
        %2420 = vmatprep.subr.bf16.mxu0 0
        %2421 = vmatpush1.bf16.msra.mxu0 0
        %2422 = vmatprep.subr.bf16.mxu0 0
        %2423 = vmatpush1.bf16.msra.mxu0 0
        %2424 = vmatprep.subr.bf16.mxu0 0
        %2425 = vmatpush1.bf16.msra.mxu0 0
        %2426 = vmatprep.subr.bf16.mxu0 0
        %2427 = vmatpush1.bf16.msra.mxu0 0
        %2428 = vmatprep.subr.bf16.mxu0 0
        %2429 = vmatpush1.bf16.msra.mxu0 0
        %2430 = vmatprep.subr.bf16.mxu0 0
        %2431 = vmatpush1.bf16.msra.mxu0 0
        %2432 = vmatprep.subr.bf16.mxu0 0
        %2433 = vmatpush1.bf16.msra.mxu0 0
        %2434 = vmatprep.subr.bf16.mxu0 0
        %2435 = vmatpush1.bf16.msra.mxu0 0
        %2436 = vmatprep.subr.bf16.mxu0 0
        %2437 = vmatpush1.bf16.msra.mxu0 0
        %2438 = vmatprep.subr.bf16.mxu0 0
        %2439 = vmatpush1.bf16.msra.mxu0 0
        %2440 = vmatprep.subr.bf16.mxu0 0
        %2441 = vmatpush1.bf16.msra.mxu0 0
        %2442 = vmatprep.subr.bf16.mxu0 0
        %2443 = vmatpush1.bf16.msra.mxu0 0
        %2444 = vmatprep.subr.bf16.mxu0 0
        %2445 = vmatpush1.bf16.msra.mxu0 0
        %2446 = vmatprep.subr.bf16.mxu0 0
        %2447 = vmatpush1.bf16.msra.mxu0 0
        %2448 = vmatprep.mubr.bf16.mxu0 0
        %2449 = vmatmul.mubr.bf16.gmra.mrb[0].mxu0 %v678
        %v2450 = vpop.f32.mrb[0].mxu0
        %v2451 = vadd.f32 %v393, %v2450
        %v2452 = vpop.f32.mrb[0].mxu0
        %v2453 = vadd.f32 %v393, %v2452
        %v2454 = vpop.f32.mrb[0].mxu0
        %v2455 = vadd.f32 %v398, %v2454
        %v2456 = vpop.f32.mrb[0].mxu0
        %v2457 = vadd.f32 %v398, %v2456
        %2458 = vmatprep.mubr.bf16.mxu0 0
        %2459 = vmatmul.mubr.bf16.gmra.mrb[0].mxu0 %v681
        %v2460 = vpop.f32.mrb[0].mxu0
        %v2461 = vadd.f32 %v403, %v2460
        %v2462 = vpop.f32.mrb[0].mxu0
        %v2463 = vadd.f32 %v403, %v2462
        %v2464 = vpop.f32.mrb[0].mxu0
        %v2465 = vadd.f32 %v408, %v2464
        %v2466 = vpop.f32.mrb[0].mxu0
        %v2467 = vadd.f32 %v408, %v2466
        %2468 = vdwg.mxu0
        %2469 = vmatprep.subr.bf16.mxu0 %v871
        %2470 = vmatpush1.bf16.msra.mxu0 %v868
        %2471 = vmatprep.subr.bf16.mxu0 0
        %2472 = vmatpush1.bf16.msra.mxu0 0
        %2473 = vmatprep.subr.bf16.mxu0 0
        %2474 = vmatpush1.bf16.msra.mxu0 0
        %2475 = vmatprep.subr.bf16.mxu0 0
        %2476 = vmatpush1.bf16.msra.mxu0 0
        %2477 = vmatprep.subr.bf16.mxu0 0
        %2478 = vmatpush1.bf16.msra.mxu0 0
        %2479 = vmatprep.subr.bf16.mxu0 0
        %2480 = vmatpush1.bf16.msra.mxu0 0
        %2481 = vmatprep.subr.bf16.mxu0 0
        %2482 = vmatpush1.bf16.msra.mxu0 0
        %2483 = vmatprep.subr.bf16.mxu0 0
        %2484 = vmatpush1.bf16.msra.mxu0 0
        %2485 = vmatprep.subr.bf16.mxu0 0
        %2486 = vmatpush1.bf16.msra.mxu0 0
        %2487 = vmatprep.subr.bf16.mxu0 0
        %2488 = vmatpush1.bf16.msra.mxu0 0
        %2489 = vmatprep.subr.bf16.mxu0 0
        %2490 = vmatpush1.bf16.msra.mxu0 0
        %2491 = vmatprep.subr.bf16.mxu0 0
        %2492 = vmatpush1.bf16.msra.mxu0 0
        %2493 = vmatprep.subr.bf16.mxu0 0
        %2494 = vmatpush1.bf16.msra.mxu0 0
        %2495 = vmatprep.subr.bf16.mxu0 0
        %2496 = vmatpush1.bf16.msra.mxu0 0
        %2497 = vmatprep.subr.bf16.mxu0 0
        %2498 = vmatpush1.bf16.msra.mxu0 0
        %2499 = vmatprep.subr.bf16.mxu0 0
        %2500 = vmatpush1.bf16.msra.mxu0 0
        %2501 = vmatprep.mubr.bf16.mxu0 0
        %2502 = vmatmul.mubr.bf16.gmra.mrb[0].mxu0 %v678
        %v2503 = vpop.f32.mrb[0].mxu0
        %v2504 = vadd.f32 %v393, %v2503
        %v2505 = vpop.f32.mrb[0].mxu0
        %v2506 = vadd.f32 %v393, %v2505
        %v2507 = vpop.f32.mrb[0].mxu0
        %v2508 = vadd.f32 %v398, %v2507
        %v2509 = vpop.f32.mrb[0].mxu0
        %v2510 = vadd.f32 %v398, %v2509
        %2511 = vmatprep.mubr.bf16.mxu0 0
        %2512 = vmatmul.mubr.bf16.gmra.mrb[0].mxu0 %v681
        %v2513 = vpop.f32.mrb[0].mxu0
        %v2514 = vadd.f32 %v403, %v2513
        %v2515 = vpop.f32.mrb[0].mxu0
        %v2516 = vadd.f32 %v403, %v2515
        %v2517 = vpop.f32.mrb[0].mxu0
        %v2518 = vadd.f32 %v408, %v2517
        %v2519 = vpop.f32.mrb[0].mxu0
        %v2520 = vadd.f32 %v408, %v2519
        %2521 = vdwg.mxu0
        %2522 = vmatprep.subr.bf16.mxu0 %v877
        %2523 = vmatpush1.bf16.msra.mxu0 %v874
        %2524 = vmatprep.subr.bf16.mxu0 0
        %2525 = vmatpush1.bf16.msra.mxu0 0
        %2526 = vmatprep.subr.bf16.mxu0 0
        %2527 = vmatpush1.bf16.msra.mxu0 0
        %2528 = vmatprep.subr.bf16.mxu0 0
        %2529 = vmatpush1.bf16.msra.mxu0 0
        %2530 = vmatprep.subr.bf16.mxu0 0
        %2531 = vmatpush1.bf16.msra.mxu0 0
        %2532 = vmatprep.subr.bf16.mxu0 0
        %2533 = vmatpush1.bf16.msra.mxu0 0
        %2534 = vmatprep.subr.bf16.mxu0 0
        %2535 = vmatpush1.bf16.msra.mxu0 0
        %2536 = vmatprep.subr.bf16.mxu0 0
        %2537 = vmatpush1.bf16.msra.mxu0 0
        %2538 = vmatprep.subr.bf16.mxu0 0
        %2539 = vmatpush1.bf16.msra.mxu0 0
        %2540 = vmatprep.subr.bf16.mxu0 0
        %2541 = vmatpush1.bf16.msra.mxu0 0
        %2542 = vmatprep.subr.bf16.mxu0 0
        %2543 = vmatpush1.bf16.msra.mxu0 0
        %2544 = vmatprep.subr.bf16.mxu0 0
        %2545 = vmatpush1.bf16.msra.mxu0 0
        %2546 = vmatprep.subr.bf16.mxu0 0
        %2547 = vmatpush1.bf16.msra.mxu0 0
        %2548 = vmatprep.subr.bf16.mxu0 0
        %2549 = vmatpush1.bf16.msra.mxu0 0
        %2550 = vmatprep.subr.bf16.mxu0 0
        %2551 = vmatpush1.bf16.msra.mxu0 0
        %2552 = vmatprep.subr.bf16.mxu0 0
        %2553 = vmatpush1.bf16.msra.mxu0 0
        %2554 = vmatprep.mubr.bf16.mxu0 0
        %2555 = vmatmul.mubr.bf16.gmra.mrb[0].mxu0 %v678
        %v2556 = vpop.f32.mrb[0].mxu0
        %v2557 = vadd.f32 %v393, %v2556
        %v2558 = vpop.f32.mrb[0].mxu0
        %v2559 = vadd.f32 %v393, %v2558
        %v2560 = vpop.f32.mrb[0].mxu0
        %v2561 = vadd.f32 %v398, %v2560
        %v2562 = vpop.f32.mrb[0].mxu0
        %v2563 = vadd.f32 %v398, %v2562
        %2564 = vmatprep.mubr.bf16.mxu0 0
        %2565 = vmatmul.mubr.bf16.gmra.mrb[0].mxu0 %v681
        %v2566 = vpop.f32.mrb[0].mxu0
        %v2567 = vadd.f32 %v403, %v2566
        %v2568 = vpop.f32.mrb[0].mxu0
        %v2569 = vadd.f32 %v403, %v2568
        %v2570 = vpop.f32.mrb[0].mxu0
        %v2571 = vadd.f32 %v408, %v2570
        %v2572 = vpop.f32.mrb[0].mxu0
        %v2573 = vadd.f32 %v408, %v2572
        %2574 = vdwg.mxu0
        %v2575 = vmax.f32 %v914, 0.0
        %v2576 = vmax.f32 %v916, 0.0
        %v2577 = vmax.f32 %v967, 0.0
        %v2578 = vmax.f32 %v969, 0.0
        %v2579 = vmax.f32 %v1020, 0.0
        %v2580 = vmax.f32 %v1022, 0.0
        %v2581 = vmax.f32 %v1073, 0.0
        %v2582 = vmax.f32 %v1075, 0.0
        %v2583 = vmax.f32 %v1126, 0.0
        %v2584 = vmax.f32 %v1128, 0.0
        %v2585 = vmax.f32 %v1179, 0.0
        %v2586 = vmax.f32 %v1181, 0.0
        %v2587 = vmax.f32 %v1232, 0.0
        %v2588 = vmax.f32 %v1234, 0.0
        %v2589 = vmax.f32 %v1285, 0.0
        %v2590 = vmax.f32 %v1287, 0.0
        %v2591 = vmax.f32 %v1338, 0.0
        %v2592 = vmax.f32 %v1340, 0.0
        %v2593 = vmax.f32 %v1391, 0.0
        %v2594 = vmax.f32 %v1393, 0.0
        %v2595 = vmax.f32 %v1444, 0.0
        %v2596 = vmax.f32 %v1446, 0.0
        %v2597 = vmax.f32 %v1497, 0.0
        %v2598 = vmax.f32 %v1499, 0.0
        %v2599 = vmax.f32 %v1550, 0.0
        %v2600 = vmax.f32 %v1552, 0.0
        %v2601 = vmax.f32 %v1603, 0.0
        %v2602 = vmax.f32 %v1605, 0.0
        %v2603 = vmax.f32 %v1656, 0.0
        %v2604 = vmax.f32 %v1658, 0.0
        %v2605 = vmax.f32 %v1709, 0.0
        %v2606 = vmax.f32 %v1711, 0.0
        %v2607 = vmax.f32 %v1762, 0.0
        %v2608 = vmax.f32 %v1764, 0.0
        %v2609 = vmax.f32 %v1815, 0.0
        %v2610 = vmax.f32 %v1817, 0.0
        %v2611 = vmax.f32 %v1868, 0.0
        %v2612 = vmax.f32 %v1870, 0.0
        %v2613 = vmax.f32 %v1921, 0.0
        %v2614 = vmax.f32 %v1923, 0.0
        %v2615 = vmax.f32 %v1974, 0.0
        %v2616 = vmax.f32 %v1976, 0.0
        %v2617 = vmax.f32 %v2027, 0.0
        %v2618 = vmax.f32 %v2029, 0.0
        %v2619 = vmax.f32 %v2080, 0.0
        %v2620 = vmax.f32 %v2082, 0.0
        %v2621 = vmax.f32 %v2133, 0.0
        %v2622 = vmax.f32 %v2135, 0.0
        %v2623 = vmax.f32 %v2186, 0.0
        %v2624 = vmax.f32 %v2188, 0.0
        %v2625 = vmax.f32 %v2239, 0.0
        %v2626 = vmax.f32 %v2241, 0.0
        %v2627 = vmax.f32 %v2292, 0.0
        %v2628 = vmax.f32 %v2294, 0.0
        %v2629 = vmax.f32 %v2345, 0.0
        %v2630 = vmax.f32 %v2347, 0.0
        %v2631 = vmax.f32 %v2398, 0.0
        %v2632 = vmax.f32 %v2400, 0.0
        %v2633 = vmax.f32 %v2451, 0.0
        %v2634 = vmax.f32 %v2453, 0.0
        %v2635 = vmax.f32 %v2504, 0.0
        %v2636 = vmax.f32 %v2506, 0.0
        %v2637 = vmax.f32 %v2557, 0.0
        %v2638 = vmax.f32 %v2559, 0.0
        %v2639 = vmax.f32 %v918, 0.0
        %v2640 = vmax.f32 %v920, 0.0
        %v2641 = vmax.f32 %v971, 0.0
        %v2642 = vmax.f32 %v973, 0.0
        %v2643 = vmax.f32 %v1024, 0.0
        %v2644 = vmax.f32 %v1026, 0.0
        %v2645 = vmax.f32 %v1077, 0.0
        %v2646 = vmax.f32 %v1079, 0.0
        %v2647 = vmax.f32 %v1130, 0.0
        %v2648 = vmax.f32 %v1132, 0.0
        %v2649 = vmax.f32 %v1183, 0.0
        %v2650 = vmax.f32 %v1185, 0.0
        %v2651 = vmax.f32 %v1236, 0.0
        %v2652 = vmax.f32 %v1238, 0.0
        %v2653 = vmax.f32 %v1289, 0.0
        %v2654 = vmax.f32 %v1291, 0.0
        %v2655 = vmax.f32 %v1342, 0.0
        %v2656 = vmax.f32 %v1344, 0.0
        %v2657 = vmax.f32 %v1395, 0.0
        %v2658 = vmax.f32 %v1397, 0.0
        %v2659 = vmax.f32 %v1448, 0.0
        %v2660 = vmax.f32 %v1450, 0.0
        %v2661 = vmax.f32 %v1501, 0.0
        %v2662 = vmax.f32 %v1503, 0.0
        %v2663 = vmax.f32 %v1554, 0.0
        %v2664 = vmax.f32 %v1556, 0.0
        %v2665 = vmax.f32 %v1607, 0.0
        %v2666 = vmax.f32 %v1609, 0.0
        %v2667 = vmax.f32 %v1660, 0.0
        %v2668 = vmax.f32 %v1662, 0.0
        %v2669 = vmax.f32 %v1713, 0.0
        %v2670 = vmax.f32 %v1715, 0.0
        %v2671 = vmax.f32 %v1766, 0.0
        %v2672 = vmax.f32 %v1768, 0.0
        %v2673 = vmax.f32 %v1819, 0.0
        %v2674 = vmax.f32 %v1821, 0.0
        %v2675 = vmax.f32 %v1872, 0.0
        %v2676 = vmax.f32 %v1874, 0.0
        %v2677 = vmax.f32 %v1925, 0.0
        %v2678 = vmax.f32 %v1927, 0.0
        %v2679 = vmax.f32 %v1978, 0.0
        %v2680 = vmax.f32 %v1980, 0.0
        %v2681 = vmax.f32 %v2031, 0.0
        %v2682 = vmax.f32 %v2033, 0.0
        %v2683 = vmax.f32 %v2084, 0.0
        %v2684 = vmax.f32 %v2086, 0.0
        %v2685 = vmax.f32 %v2137, 0.0
        %v2686 = vmax.f32 %v2139, 0.0
        %v2687 = vmax.f32 %v2190, 0.0
        %v2688 = vmax.f32 %v2192, 0.0
        %v2689 = vmax.f32 %v2243, 0.0
        %v2690 = vmax.f32 %v2245, 0.0
        %v2691 = vmax.f32 %v2296, 0.0
        %v2692 = vmax.f32 %v2298, 0.0
        %v2693 = vmax.f32 %v2349, 0.0
        %v2694 = vmax.f32 %v2351, 0.0
        %v2695 = vmax.f32 %v2402, 0.0
        %v2696 = vmax.f32 %v2404, 0.0
        %v2697 = vmax.f32 %v2455, 0.0
        %v2698 = vmax.f32 %v2457, 0.0
        %v2699 = vmax.f32 %v2508, 0.0
        %v2700 = vmax.f32 %v2510, 0.0
        %v2701 = vmax.f32 %v2561, 0.0
        %v2702 = vmax.f32 %v2563, 0.0
        %v2703 = vmax.f32 %v924, 0.0
        %v2704 = vmax.f32 %v926, 0.0
        %v2705 = vmax.f32 %v977, 0.0
        %v2706 = vmax.f32 %v979, 0.0
        %v2707 = vmax.f32 %v1030, 0.0
        %v2708 = vmax.f32 %v1032, 0.0
        %v2709 = vmax.f32 %v1083, 0.0
        %v2710 = vmax.f32 %v1085, 0.0
        %v2711 = vmax.f32 %v1136, 0.0
        %v2712 = vmax.f32 %v1138, 0.0
        %v2713 = vmax.f32 %v1189, 0.0
        %v2714 = vmax.f32 %v1191, 0.0
        %v2715 = vmax.f32 %v1242, 0.0
        %v2716 = vmax.f32 %v1244, 0.0
        %v2717 = vmax.f32 %v1295, 0.0
        %v2718 = vmax.f32 %v1297, 0.0
        %v2719 = vmax.f32 %v1348, 0.0
        %v2720 = vmax.f32 %v1350, 0.0
        %v2721 = vmax.f32 %v1401, 0.0
        %v2722 = vmax.f32 %v1403, 0.0
        %v2723 = vmax.f32 %v1454, 0.0
        %v2724 = vmax.f32 %v1456, 0.0
        %v2725 = vmax.f32 %v1507, 0.0
        %v2726 = vmax.f32 %v1509, 0.0
        %v2727 = vmax.f32 %v1560, 0.0
        %v2728 = vmax.f32 %v1562, 0.0
        %v2729 = vmax.f32 %v1613, 0.0
        %v2730 = vmax.f32 %v1615, 0.0
        %v2731 = vmax.f32 %v1666, 0.0
        %v2732 = vmax.f32 %v1668, 0.0
        %v2733 = vmax.f32 %v1719, 0.0
        %v2734 = vmax.f32 %v1721, 0.0
        %v2735 = vmax.f32 %v1772, 0.0
        %v2736 = vmax.f32 %v1774, 0.0
        %v2737 = vmax.f32 %v1825, 0.0
        %v2738 = vmax.f32 %v1827, 0.0
        %v2739 = vmax.f32 %v1878, 0.0
        %v2740 = vmax.f32 %v1880, 0.0
        %v2741 = vmax.f32 %v1931, 0.0
        %v2742 = vmax.f32 %v1933, 0.0
        %v2743 = vmax.f32 %v1984, 0.0
        %v2744 = vmax.f32 %v1986, 0.0
        %v2745 = vmax.f32 %v2037, 0.0
        %v2746 = vmax.f32 %v2039, 0.0
        %v2747 = vmax.f32 %v2090, 0.0
        %v2748 = vmax.f32 %v2092, 0.0
        %v2749 = vmax.f32 %v2143, 0.0
        %v2750 = vmax.f32 %v2145, 0.0
        %v2751 = vmax.f32 %v2196, 0.0
        %v2752 = vmax.f32 %v2198, 0.0
        %v2753 = vmax.f32 %v2249, 0.0
        %v2754 = vmax.f32 %v2251, 0.0
        %v2755 = vmax.f32 %v2302, 0.0
        %v2756 = vmax.f32 %v2304, 0.0
        %v2757 = vmax.f32 %v2355, 0.0
        %v2758 = vmax.f32 %v2357, 0.0
        %v2759 = vmax.f32 %v2408, 0.0
        %v2760 = vmax.f32 %v2410, 0.0
        %v2761 = vmax.f32 %v2461, 0.0
        %v2762 = vmax.f32 %v2463, 0.0
        %v2763 = vmax.f32 %v2514, 0.0
        %v2764 = vmax.f32 %v2516, 0.0
        %v2765 = vmax.f32 %v2567, 0.0
        %v2766 = vmax.f32 %v2569, 0.0
        %v2767 = vmax.f32 %v928, 0.0
        %v2768 = vmax.f32 %v930, 0.0
        %v2769 = vmax.f32 %v981, 0.0
        %v2770 = vmax.f32 %v983, 0.0
        %v2771 = vmax.f32 %v1034, 0.0
        %v2772 = vmax.f32 %v1036, 0.0
        %v2773 = vmax.f32 %v1087, 0.0
        %v2774 = vmax.f32 %v1089, 0.0
        %v2775 = vmax.f32 %v1140, 0.0
        %v2776 = vmax.f32 %v1142, 0.0
        %v2777 = vmax.f32 %v1193, 0.0
        %v2778 = vmax.f32 %v1195, 0.0
        %v2779 = vmax.f32 %v1246, 0.0
        %v2780 = vmax.f32 %v1248, 0.0
        %v2781 = vmax.f32 %v1299, 0.0
        %v2782 = vmax.f32 %v1301, 0.0
        %v2783 = vmax.f32 %v1352, 0.0
        %v2784 = vmax.f32 %v1354, 0.0
        %v2785 = vmax.f32 %v1405, 0.0
        %v2786 = vmax.f32 %v1407, 0.0
        %v2787 = vmax.f32 %v1458, 0.0
        %v2788 = vmax.f32 %v1460, 0.0
        %v2789 = vmax.f32 %v1511, 0.0
        %v2790 = vmax.f32 %v1513, 0.0
        %v2791 = vmax.f32 %v1564, 0.0
        %v2792 = vmax.f32 %v1566, 0.0
        %v2793 = vmax.f32 %v1617, 0.0
        %v2794 = vmax.f32 %v1619, 0.0
        %v2795 = vmax.f32 %v1670, 0.0
        %v2796 = vmax.f32 %v1672, 0.0
        %v2797 = vmax.f32 %v1723, 0.0
        %v2798 = vmax.f32 %v1725, 0.0
        %v2799 = vmax.f32 %v1776, 0.0
        %v2800 = vmax.f32 %v1778, 0.0
        %v2801 = vmax.f32 %v1829, 0.0
        %v2802 = vmax.f32 %v1831, 0.0
        %v2803 = vmax.f32 %v1882, 0.0
        %v2804 = vmax.f32 %v1884, 0.0
        %v2805 = vmax.f32 %v1935, 0.0
        %v2806 = vmax.f32 %v1937, 0.0
        %v2807 = vmax.f32 %v1988, 0.0
        %v2808 = vmax.f32 %v1990, 0.0
        %v2809 = vmax.f32 %v2041, 0.0
        %v2810 = vmax.f32 %v2043, 0.0
        %v2811 = vmax.f32 %v2094, 0.0
        %v2812 = vmax.f32 %v2096, 0.0
        %v2813 = vmax.f32 %v2147, 0.0
        %v2814 = vmax.f32 %v2149, 0.0
        %v2815 = vmax.f32 %v2200, 0.0
        %v2816 = vmax.f32 %v2202, 0.0
        %v2817 = vmax.f32 %v2253, 0.0
        %v2818 = vmax.f32 %v2255, 0.0
        %v2819 = vmax.f32 %v2306, 0.0
        %v2820 = vmax.f32 %v2308, 0.0
        %v2821 = vmax.f32 %v2359, 0.0
        %v2822 = vmax.f32 %v2361, 0.0
        %v2823 = vmax.f32 %v2412, 0.0
        %v2824 = vmax.f32 %v2414, 0.0
        %v2825 = vmax.f32 %v2465, 0.0
        %v2826 = vmax.f32 %v2467, 0.0
        %v2827 = vmax.f32 %v2518, 0.0
        %v2828 = vmax.f32 %v2520, 0.0
        %v2829 = vmax.f32 %v2571, 0.0
        %v2830 = vmax.f32 %v2573, 0.0
        %v2831 = vmax.f32 %v2575, %v2591
        %v2832 = vmax.f32 %v2576, %v2592
        %v2833 = vmax.f32 %v2577, %v2593
        %v2834 = vmax.f32 %v2578, %v2594
        %v2835 = vmax.f32 %v2579, %v2595
        %v2836 = vmax.f32 %v2580, %v2596
        %v2837 = vmax.f32 %v2581, %v2597
        %v2838 = vmax.f32 %v2582, %v2598
        %v2839 = vmax.f32 %v2583, %v2599
        %v2840 = vmax.f32 %v2584, %v2600
        %v2841 = vmax.f32 %v2585, %v2601
        %v2842 = vmax.f32 %v2586, %v2602
        %v2843 = vmax.f32 %v2587, %v2603
        %v2844 = vmax.f32 %v2588, %v2604
        %v2845 = vmax.f32 %v2589, %v2605
        %v2846 = vmax.f32 %v2590, %v2606
        %v2847 = vmax.f32 %v2639, %v2655
        %v2848 = vmax.f32 %v2640, %v2656
        %v2849 = vmax.f32 %v2641, %v2657
        %v2850 = vmax.f32 %v2642, %v2658
        %v2851 = vmax.f32 %v2643, %v2659
        %v2852 = vmax.f32 %v2644, %v2660
        %v2853 = vmax.f32 %v2645, %v2661
        %v2854 = vmax.f32 %v2646, %v2662
        %v2855 = vmax.f32 %v2647, %v2663
        %v2856 = vmax.f32 %v2648, %v2664
        %v2857 = vmax.f32 %v2649, %v2665
        %v2858 = vmax.f32 %v2650, %v2666
        %v2859 = vmax.f32 %v2651, %v2667
        %v2860 = vmax.f32 %v2652, %v2668
        %v2861 = vmax.f32 %v2653, %v2669
        %v2862 = vmax.f32 %v2654, %v2670
        %v2863 = vmax.f32 %v2703, %v2719
        %v2864 = vmax.f32 %v2704, %v2720
        %v2865 = vmax.f32 %v2705, %v2721
        %v2866 = vmax.f32 %v2706, %v2722
        %v2867 = vmax.f32 %v2707, %v2723
        %v2868 = vmax.f32 %v2708, %v2724
        %v2869 = vmax.f32 %v2709, %v2725
        %v2870 = vmax.f32 %v2710, %v2726
        %v2871 = vmax.f32 %v2711, %v2727
        %v2872 = vmax.f32 %v2712, %v2728
        %v2873 = vmax.f32 %v2713, %v2729
        %v2874 = vmax.f32 %v2714, %v2730
        %v2875 = vmax.f32 %v2715, %v2731
        %v2876 = vmax.f32 %v2716, %v2732
        %v2877 = vmax.f32 %v2717, %v2733
        %v2878 = vmax.f32 %v2718, %v2734
        %v2879 = vmax.f32 %v2767, %v2783
        %v2880 = vmax.f32 %v2768, %v2784
        %v2881 = vmax.f32 %v2769, %v2785
        %v2882 = vmax.f32 %v2770, %v2786
        %v2883 = vmax.f32 %v2771, %v2787
        %v2884 = vmax.f32 %v2772, %v2788
        %v2885 = vmax.f32 %v2773, %v2789
        %v2886 = vmax.f32 %v2774, %v2790
        %v2887 = vmax.f32 %v2775, %v2791
        %v2888 = vmax.f32 %v2776, %v2792
        %v2889 = vmax.f32 %v2777, %v2793
        %v2890 = vmax.f32 %v2778, %v2794
        %v2891 = vmax.f32 %v2779, %v2795
        %v2892 = vmax.f32 %v2780, %v2796
        %v2893 = vmax.f32 %v2781, %v2797
        %v2894 = vmax.f32 %v2782, %v2798
        %v2895 = vmax.f32 %v2607, %v2623
        %v2896 = vmax.f32 %v2608, %v2624
        %v2897 = vmax.f32 %v2609, %v2625
        %v2898 = vmax.f32 %v2610, %v2626
        %v2899 = vmax.f32 %v2611, %v2627
        %v2900 = vmax.f32 %v2612, %v2628
        %v2901 = vmax.f32 %v2613, %v2629
        %v2902 = vmax.f32 %v2614, %v2630
        %v2903 = vmax.f32 %v2615, %v2631
        %v2904 = vmax.f32 %v2616, %v2632
        %v2905 = vmax.f32 %v2617, %v2633
        %v2906 = vmax.f32 %v2618, %v2634
        %v2907 = vmax.f32 %v2619, %v2635
        %v2908 = vmax.f32 %v2620, %v2636
        %v2909 = vmax.f32 %v2621, %v2637
        %v2910 = vmax.f32 %v2622, %v2638
        %v2911 = vmax.f32 %v2671, %v2687
        %v2912 = vmax.f32 %v2672, %v2688
        %v2913 = vmax.f32 %v2673, %v2689
        %v2914 = vmax.f32 %v2674, %v2690
        %v2915 = vmax.f32 %v2675, %v2691
        %v2916 = vmax.f32 %v2676, %v2692
        %v2917 = vmax.f32 %v2677, %v2693
        %v2918 = vmax.f32 %v2678, %v2694
        %v2919 = vmax.f32 %v2679, %v2695
        %v2920 = vmax.f32 %v2680, %v2696
        %v2921 = vmax.f32 %v2681, %v2697
        %v2922 = vmax.f32 %v2682, %v2698
        %v2923 = vmax.f32 %v2683, %v2699
        %v2924 = vmax.f32 %v2684, %v2700
        %v2925 = vmax.f32 %v2685, %v2701
        %v2926 = vmax.f32 %v2686, %v2702
        %v2927 = vmax.f32 %v2735, %v2751
        %v2928 = vmax.f32 %v2736, %v2752
        %v2929 = vmax.f32 %v2737, %v2753
        %v2930 = vmax.f32 %v2738, %v2754
        %v2931 = vmax.f32 %v2739, %v2755
        %v2932 = vmax.f32 %v2740, %v2756
        %v2933 = vmax.f32 %v2741, %v2757
        %v2934 = vmax.f32 %v2742, %v2758
        %v2935 = vmax.f32 %v2743, %v2759
        %v2936 = vmax.f32 %v2744, %v2760
        %v2937 = vmax.f32 %v2745, %v2761
        %v2938 = vmax.f32 %v2746, %v2762
        %v2939 = vmax.f32 %v2747, %v2763
        %v2940 = vmax.f32 %v2748, %v2764
        %v2941 = vmax.f32 %v2749, %v2765
        %v2942 = vmax.f32 %v2750, %v2766
        %v2943 = vmax.f32 %v2799, %v2815
        %v2944 = vmax.f32 %v2800, %v2816
        %v2945 = vmax.f32 %v2801, %v2817
        %v2946 = vmax.f32 %v2802, %v2818
        %v2947 = vmax.f32 %v2803, %v2819
        %v2948 = vmax.f32 %v2804, %v2820
        %v2949 = vmax.f32 %v2805, %v2821
        %v2950 = vmax.f32 %v2806, %v2822
        %v2951 = vmax.f32 %v2807, %v2823
        %v2952 = vmax.f32 %v2808, %v2824
        %v2953 = vmax.f32 %v2809, %v2825
        %v2954 = vmax.f32 %v2810, %v2826
        %v2955 = vmax.f32 %v2811, %v2827
        %v2956 = vmax.f32 %v2812, %v2828
        %v2957 = vmax.f32 %v2813, %v2829
        %v2958 = vmax.f32 %v2814, %v2830
        %v2959 = vmax.f32 %v2831, %v2895
        %v2960 = vmax.f32 %v2832, %v2896
        %v2961 = vmax.f32 %v2833, %v2897
        %v2962 = vmax.f32 %v2834, %v2898
        %v2963 = vmax.f32 %v2835, %v2899
        %v2964 = vmax.f32 %v2836, %v2900
        %v2965 = vmax.f32 %v2837, %v2901
        %v2966 = vmax.f32 %v2838, %v2902
        %v2967 = vmax.f32 %v2839, %v2903
        %v2968 = vmax.f32 %v2840, %v2904
        %v2969 = vmax.f32 %v2841, %v2905
        %v2970 = vmax.f32 %v2842, %v2906
        %v2971 = vmax.f32 %v2843, %v2907
        %v2972 = vmax.f32 %v2844, %v2908
        %v2973 = vmax.f32 %v2845, %v2909
        %v2974 = vmax.f32 %v2846, %v2910
        %v2975 = vmax.f32 %v2847, %v2911
        %v2976 = vmax.f32 %v2848, %v2912
        %v2977 = vmax.f32 %v2849, %v2913
        %v2978 = vmax.f32 %v2850, %v2914
        %v2979 = vmax.f32 %v2851, %v2915
        %v2980 = vmax.f32 %v2852, %v2916
        %v2981 = vmax.f32 %v2853, %v2917
        %v2982 = vmax.f32 %v2854, %v2918
        %v2983 = vmax.f32 %v2855, %v2919
        %v2984 = vmax.f32 %v2856, %v2920
        %v2985 = vmax.f32 %v2857, %v2921
        %v2986 = vmax.f32 %v2858, %v2922
        %v2987 = vmax.f32 %v2859, %v2923
        %v2988 = vmax.f32 %v2860, %v2924
        %v2989 = vmax.f32 %v2861, %v2925
        %v2990 = vmax.f32 %v2862, %v2926
        %v2991 = vmax.f32 %v2863, %v2927
        %v2992 = vmax.f32 %v2864, %v2928
        %v2993 = vmax.f32 %v2865, %v2929
        %v2994 = vmax.f32 %v2866, %v2930
        %v2995 = vmax.f32 %v2867, %v2931
        %v2996 = vmax.f32 %v2868, %v2932
        %v2997 = vmax.f32 %v2869, %v2933
        %v2998 = vmax.f32 %v2870, %v2934
        %v2999 = vmax.f32 %v2871, %v2935
        %v3000 = vmax.f32 %v2872, %v2936
        %v3001 = vmax.f32 %v2873, %v2937
        %v3002 = vmax.f32 %v2874, %v2938
        %v3003 = vmax.f32 %v2875, %v2939
        %v3004 = vmax.f32 %v2876, %v2940
        %v3005 = vmax.f32 %v2877, %v2941
        %v3006 = vmax.f32 %v2878, %v2942
        %v3007 = vmax.f32 %v2879, %v2943
        %v3008 = vmax.f32 %v2880, %v2944
        %v3009 = vmax.f32 %v2881, %v2945
        %v3010 = vmax.f32 %v2882, %v2946
        %v3011 = vmax.f32 %v2883, %v2947
        %v3012 = vmax.f32 %v2884, %v2948
        %v3013 = vmax.f32 %v2885, %v2949
        %v3014 = vmax.f32 %v2886, %v2950
        %v3015 = vmax.f32 %v2887, %v2951
        %v3016 = vmax.f32 %v2888, %v2952
        %v3017 = vmax.f32 %v2889, %v2953
        %v3018 = vmax.f32 %v2890, %v2954
        %v3019 = vmax.f32 %v2891, %v2955
        %v3020 = vmax.f32 %v2892, %v2956
        %v3021 = vmax.f32 %v2893, %v2957
        %v3022 = vmax.f32 %v2894, %v2958
        %v3023 = vcombine.low %v2959, %v2963
        %v3024 = vcombine.high %v2959, %v2963
        %v3026 = vunpack.c.l.s4 1983009808
        %v3027 = vunpack.c.0.s8 %v3026
        %v3028 = vlaneseq
        %v3029 = vshrl.u32 %v3028, 7
        %v3030 = vsub.s32 %v3027, %v3029
        %v3031 = vrot.slane %v3023, %v3030
        %v3033 = vunpack.c.l.s4 1983009808
        %v3034 = vunpack.c.0.s8 %v3033
        %v3035 = vlaneseq
        %v3036 = vshrl.u32 %v3035, 7
        %v3037 = vsub.s32 %v3034, %v3036
        %v3038 = vrot.slane %v3024, %v3037
        %v3039 = vcombine.low %v2961, %v2965
        %v3040 = vcombine.high %v2961, %v2965
        %v3042 = vunpack.c.l.s4 1983009808
        %v3043 = vunpack.c.0.s8 %v3042
        %v3044 = vlaneseq
        %v3045 = vshrl.u32 %v3044, 7
        %v3046 = vsub.s32 %v3043, %v3045
        %v3047 = vrot.slane %v3039, %v3046
        %v3049 = vunpack.c.l.s4 1983009808
        %v3050 = vunpack.c.0.s8 %v3049
        %v3051 = vlaneseq
        %v3052 = vshrl.u32 %v3051, 7
        %v3053 = vsub.s32 %v3050, %v3052
        %v3054 = vrot.slane %v3040, %v3053
        %v3055 = vcombine.low %v2967, %v2971
        %v3056 = vcombine.high %v2967, %v2971
        %v3058 = vunpack.c.l.s4 1983009808
        %v3059 = vunpack.c.0.s8 %v3058
        %v3060 = vlaneseq
        %v3061 = vshrl.u32 %v3060, 7
        %v3062 = vsub.s32 %v3059, %v3061
        %v3063 = vrot.slane %v3055, %v3062
        %v3065 = vunpack.c.l.s4 1983009808
        %v3066 = vunpack.c.0.s8 %v3065
        %v3067 = vlaneseq
        %v3068 = vshrl.u32 %v3067, 7
        %v3069 = vsub.s32 %v3066, %v3068
        %v3070 = vrot.slane %v3056, %v3069
        %v3071 = vcombine.low %v2969, %v2973
        %v3072 = vcombine.high %v2969, %v2973
        %v3074 = vunpack.c.l.s4 1983009808
        %v3075 = vunpack.c.0.s8 %v3074
        %v3076 = vlaneseq
        %v3077 = vshrl.u32 %v3076, 7
        %v3078 = vsub.s32 %v3075, %v3077
        %v3079 = vrot.slane %v3071, %v3078
        %v3081 = vunpack.c.l.s4 1983009808
        %v3082 = vunpack.c.0.s8 %v3081
        %v3083 = vlaneseq
        %v3084 = vshrl.u32 %v3083, 7
        %v3085 = vsub.s32 %v3082, %v3084
        %v3086 = vrot.slane %v3072, %v3085
        %v3087 = vcombine.low %v3031, %v3047
        %v3088 = vcombine.high %v3031, %v3047
        %v3090 = vunpack.c.l.s4 1934713408
        %v3091 = vunpack.c.0.s8 %v3090
        %v3092 = vlaneseq
        %v3093 = vshrl.u32 %v3092, 7
        %v3094 = vsub.s32 %v3091, %v3093
        %v3095 = vrot.slane %v3087, %v3094
        %v3097 = vunpack.c.l.s4 1934713408
        %v3098 = vunpack.c.0.s8 %v3097
        %v3099 = vlaneseq
        %v3100 = vshrl.u32 %v3099, 7
        %v3101 = vsub.s32 %v3098, %v3100
        %v3102 = vrot.slane %v3088, %v3101
        %v3103 = vcombine.low %v3038, %v3054
        %v3104 = vcombine.high %v3038, %v3054
        %v3106 = vunpack.c.l.s4 1934713408
        %v3107 = vunpack.c.0.s8 %v3106
        %v3108 = vlaneseq
        %v3109 = vshrl.u32 %v3108, 7
        %v3110 = vsub.s32 %v3107, %v3109
        %v3111 = vrot.slane %v3103, %v3110
        %v3113 = vunpack.c.l.s4 1934713408
        %v3114 = vunpack.c.0.s8 %v3113
        %v3115 = vlaneseq
        %v3116 = vshrl.u32 %v3115, 7
        %v3117 = vsub.s32 %v3114, %v3116
        %v3118 = vrot.slane %v3104, %v3117
        %v3119 = vcombine.low %v3063, %v3079
        %v3120 = vcombine.high %v3063, %v3079
        %v3122 = vunpack.c.l.s4 1934713408
        %v3123 = vunpack.c.0.s8 %v3122
        %v3124 = vlaneseq
        %v3125 = vshrl.u32 %v3124, 7
        %v3126 = vsub.s32 %v3123, %v3125
        %v3127 = vrot.slane %v3119, %v3126
        %v3129 = vunpack.c.l.s4 1934713408
        %v3130 = vunpack.c.0.s8 %v3129
        %v3131 = vlaneseq
        %v3132 = vshrl.u32 %v3131, 7
        %v3133 = vsub.s32 %v3130, %v3132
        %v3134 = vrot.slane %v3120, %v3133
        %v3135 = vcombine.low %v3070, %v3086
        %v3136 = vcombine.high %v3070, %v3086
        %v3138 = vunpack.c.l.s4 1934713408
        %v3139 = vunpack.c.0.s8 %v3138
        %v3140 = vlaneseq
        %v3141 = vshrl.u32 %v3140, 7
        %v3142 = vsub.s32 %v3139, %v3141
        %v3143 = vrot.slane %v3135, %v3142
        %v3145 = vunpack.c.l.s4 1934713408
        %v3146 = vunpack.c.0.s8 %v3145
        %v3147 = vlaneseq
        %v3148 = vshrl.u32 %v3147, 7
        %v3149 = vsub.s32 %v3146, %v3148
        %v3150 = vrot.slane %v3136, %v3149
        %v3151 = vcombine.low %v3095, %v3127
        %v3152 = vcombine.high %v3095, %v3127
        %v3153 = vcombine.low %v3102, %v3134
        %v3154 = vcombine.high %v3102, %v3134
        %v3155 = vcombine.low %v3111, %v3143
        %v3156 = vcombine.high %v3111, %v3143
        %v3157 = vcombine.low %v3118, %v3150
        %v3158 = vcombine.high %v3118, %v3150
        %v3159 = vcombine.low %v2975, %v2979
        %v3160 = vcombine.high %v2975, %v2979
        %v3162 = vunpack.c.l.s4 1983009808
        %v3163 = vunpack.c.0.s8 %v3162
        %v3164 = vlaneseq
        %v3165 = vshrl.u32 %v3164, 7
        %v3166 = vsub.s32 %v3163, %v3165
        %v3167 = vrot.slane %v3159, %v3166
        %v3169 = vunpack.c.l.s4 1983009808
        %v3170 = vunpack.c.0.s8 %v3169
        %v3171 = vlaneseq
        %v3172 = vshrl.u32 %v3171, 7
        %v3173 = vsub.s32 %v3170, %v3172
        %v3174 = vrot.slane %v3160, %v3173
        %v3175 = vcombine.low %v2977, %v2981
        %v3176 = vcombine.high %v2977, %v2981
        %v3178 = vunpack.c.l.s4 1983009808
        %v3179 = vunpack.c.0.s8 %v3178
        %v3180 = vlaneseq
        %v3181 = vshrl.u32 %v3180, 7
        %v3182 = vsub.s32 %v3179, %v3181
        %v3183 = vrot.slane %v3175, %v3182
        %v3185 = vunpack.c.l.s4 1983009808
        %v3186 = vunpack.c.0.s8 %v3185
        %v3187 = vlaneseq
        %v3188 = vshrl.u32 %v3187, 7
        %v3189 = vsub.s32 %v3186, %v3188
        %v3190 = vrot.slane %v3176, %v3189
        %v3191 = vcombine.low %v2983, %v2987
        %v3192 = vcombine.high %v2983, %v2987
        %v3194 = vunpack.c.l.s4 1983009808
        %v3195 = vunpack.c.0.s8 %v3194
        %v3196 = vlaneseq
        %v3197 = vshrl.u32 %v3196, 7
        %v3198 = vsub.s32 %v3195, %v3197
        %v3199 = vrot.slane %v3191, %v3198
        %v3201 = vunpack.c.l.s4 1983009808
        %v3202 = vunpack.c.0.s8 %v3201
        %v3203 = vlaneseq
        %v3204 = vshrl.u32 %v3203, 7
        %v3205 = vsub.s32 %v3202, %v3204
        %v3206 = vrot.slane %v3192, %v3205
        %v3207 = vcombine.low %v2985, %v2989
        %v3208 = vcombine.high %v2985, %v2989
        %v3210 = vunpack.c.l.s4 1983009808
        %v3211 = vunpack.c.0.s8 %v3210
        %v3212 = vlaneseq
        %v3213 = vshrl.u32 %v3212, 7
        %v3214 = vsub.s32 %v3211, %v3213
        %v3215 = vrot.slane %v3207, %v3214
        %v3217 = vunpack.c.l.s4 1983009808
        %v3218 = vunpack.c.0.s8 %v3217
        %v3219 = vlaneseq
        %v3220 = vshrl.u32 %v3219, 7
        %v3221 = vsub.s32 %v3218, %v3220
        %v3222 = vrot.slane %v3208, %v3221
        %v3223 = vcombine.low %v3167, %v3183
        %v3224 = vcombine.high %v3167, %v3183
        %v3226 = vunpack.c.l.s4 1934713408
        %v3227 = vunpack.c.0.s8 %v3226
        %v3228 = vlaneseq
        %v3229 = vshrl.u32 %v3228, 7
        %v3230 = vsub.s32 %v3227, %v3229
        %v3231 = vrot.slane %v3223, %v3230
        %v3233 = vunpack.c.l.s4 1934713408
        %v3234 = vunpack.c.0.s8 %v3233
        %v3235 = vlaneseq
        %v3236 = vshrl.u32 %v3235, 7
        %v3237 = vsub.s32 %v3234, %v3236
        %v3238 = vrot.slane %v3224, %v3237
        %v3239 = vcombine.low %v3174, %v3190
        %v3240 = vcombine.high %v3174, %v3190
        %v3242 = vunpack.c.l.s4 1934713408
        %v3243 = vunpack.c.0.s8 %v3242
        %v3244 = vlaneseq
        %v3245 = vshrl.u32 %v3244, 7
        %v3246 = vsub.s32 %v3243, %v3245
        %v3247 = vrot.slane %v3239, %v3246
        %v3249 = vunpack.c.l.s4 1934713408
        %v3250 = vunpack.c.0.s8 %v3249
        %v3251 = vlaneseq
        %v3252 = vshrl.u32 %v3251, 7
        %v3253 = vsub.s32 %v3250, %v3252
        %v3254 = vrot.slane %v3240, %v3253
        %v3255 = vcombine.low %v3199, %v3215
        %v3256 = vcombine.high %v3199, %v3215
        %v3258 = vunpack.c.l.s4 1934713408
        %v3259 = vunpack.c.0.s8 %v3258
        %v3260 = vlaneseq
        %v3261 = vshrl.u32 %v3260, 7
        %v3262 = vsub.s32 %v3259, %v3261
        %v3263 = vrot.slane %v3255, %v3262
        %v3265 = vunpack.c.l.s4 1934713408
        %v3266 = vunpack.c.0.s8 %v3265
        %v3267 = vlaneseq
        %v3268 = vshrl.u32 %v3267, 7
        %v3269 = vsub.s32 %v3266, %v3268
        %v3270 = vrot.slane %v3256, %v3269
        %v3271 = vcombine.low %v3206, %v3222
        %v3272 = vcombine.high %v3206, %v3222
        %v3274 = vunpack.c.l.s4 1934713408
        %v3275 = vunpack.c.0.s8 %v3274
        %v3276 = vlaneseq
        %v3277 = vshrl.u32 %v3276, 7
        %v3278 = vsub.s32 %v3275, %v3277
        %v3279 = vrot.slane %v3271, %v3278
        %v3281 = vunpack.c.l.s4 1934713408
        %v3282 = vunpack.c.0.s8 %v3281
        %v3283 = vlaneseq
        %v3284 = vshrl.u32 %v3283, 7
        %v3285 = vsub.s32 %v3282, %v3284
        %v3286 = vrot.slane %v3272, %v3285
        %v3287 = vcombine.low %v3231, %v3263
        %v3288 = vcombine.high %v3231, %v3263
        %v3289 = vcombine.low %v3238, %v3270
        %v3290 = vcombine.high %v3238, %v3270
        %v3291 = vcombine.low %v3247, %v3279
        %v3292 = vcombine.high %v3247, %v3279
        %v3293 = vcombine.low %v3254, %v3286
        %v3294 = vcombine.high %v3254, %v3286
        %v3295 = vcombine.low %v2991, %v2995
        %v3296 = vcombine.high %v2991, %v2995
        %v3298 = vunpack.c.l.s4 1983009808
        %v3299 = vunpack.c.0.s8 %v3298
        %v3300 = vlaneseq
        %v3301 = vshrl.u32 %v3300, 7
        %v3302 = vsub.s32 %v3299, %v3301
        %v3303 = vrot.slane %v3295, %v3302
        %v3305 = vunpack.c.l.s4 1983009808
        %v3306 = vunpack.c.0.s8 %v3305
        %v3307 = vlaneseq
        %v3308 = vshrl.u32 %v3307, 7
        %v3309 = vsub.s32 %v3306, %v3308
        %v3310 = vrot.slane %v3296, %v3309
        %v3311 = vcombine.low %v2993, %v2997
        %v3312 = vcombine.high %v2993, %v2997
        %v3314 = vunpack.c.l.s4 1983009808
        %v3315 = vunpack.c.0.s8 %v3314
        %v3316 = vlaneseq
        %v3317 = vshrl.u32 %v3316, 7
        %v3318 = vsub.s32 %v3315, %v3317
        %v3319 = vrot.slane %v3311, %v3318
        %v3321 = vunpack.c.l.s4 1983009808
        %v3322 = vunpack.c.0.s8 %v3321
        %v3323 = vlaneseq
        %v3324 = vshrl.u32 %v3323, 7
        %v3325 = vsub.s32 %v3322, %v3324
        %v3326 = vrot.slane %v3312, %v3325
        %v3327 = vcombine.low %v2999, %v3003
        %v3328 = vcombine.high %v2999, %v3003
        %v3330 = vunpack.c.l.s4 1983009808
        %v3331 = vunpack.c.0.s8 %v3330
        %v3332 = vlaneseq
        %v3333 = vshrl.u32 %v3332, 7
        %v3334 = vsub.s32 %v3331, %v3333
        %v3335 = vrot.slane %v3327, %v3334
        %v3337 = vunpack.c.l.s4 1983009808
        %v3338 = vunpack.c.0.s8 %v3337
        %v3339 = vlaneseq
        %v3340 = vshrl.u32 %v3339, 7
        %v3341 = vsub.s32 %v3338, %v3340
        %v3342 = vrot.slane %v3328, %v3341
        %v3343 = vcombine.low %v3001, %v3005
        %v3344 = vcombine.high %v3001, %v3005
        %v3346 = vunpack.c.l.s4 1983009808
        %v3347 = vunpack.c.0.s8 %v3346
        %v3348 = vlaneseq
        %v3349 = vshrl.u32 %v3348, 7
        %v3350 = vsub.s32 %v3347, %v3349
        %v3351 = vrot.slane %v3343, %v3350
        %v3353 = vunpack.c.l.s4 1983009808
        %v3354 = vunpack.c.0.s8 %v3353
        %v3355 = vlaneseq
        %v3356 = vshrl.u32 %v3355, 7
        %v3357 = vsub.s32 %v3354, %v3356
        %v3358 = vrot.slane %v3344, %v3357
        %v3359 = vcombine.low %v3303, %v3319
        %v3360 = vcombine.high %v3303, %v3319
        %v3362 = vunpack.c.l.s4 1934713408
        %v3363 = vunpack.c.0.s8 %v3362
        %v3364 = vlaneseq
        %v3365 = vshrl.u32 %v3364, 7
        %v3366 = vsub.s32 %v3363, %v3365
        %v3367 = vrot.slane %v3359, %v3366
        %v3369 = vunpack.c.l.s4 1934713408
        %v3370 = vunpack.c.0.s8 %v3369
        %v3371 = vlaneseq
        %v3372 = vshrl.u32 %v3371, 7
        %v3373 = vsub.s32 %v3370, %v3372
        %v3374 = vrot.slane %v3360, %v3373
        %v3375 = vcombine.low %v3310, %v3326
        %v3376 = vcombine.high %v3310, %v3326
        %v3378 = vunpack.c.l.s4 1934713408
        %v3379 = vunpack.c.0.s8 %v3378
        %v3380 = vlaneseq
        %v3381 = vshrl.u32 %v3380, 7
        %v3382 = vsub.s32 %v3379, %v3381
        %v3383 = vrot.slane %v3375, %v3382
        %v3385 = vunpack.c.l.s4 1934713408
        %v3386 = vunpack.c.0.s8 %v3385
        %v3387 = vlaneseq
        %v3388 = vshrl.u32 %v3387, 7
        %v3389 = vsub.s32 %v3386, %v3388
        %v3390 = vrot.slane %v3376, %v3389
        %v3391 = vcombine.low %v3335, %v3351
        %v3392 = vcombine.high %v3335, %v3351
        %v3394 = vunpack.c.l.s4 1934713408
        %v3395 = vunpack.c.0.s8 %v3394
        %v3396 = vlaneseq
        %v3397 = vshrl.u32 %v3396, 7
        %v3398 = vsub.s32 %v3395, %v3397
        %v3399 = vrot.slane %v3391, %v3398
        %v3401 = vunpack.c.l.s4 1934713408
        %v3402 = vunpack.c.0.s8 %v3401
        %v3403 = vlaneseq
        %v3404 = vshrl.u32 %v3403, 7
        %v3405 = vsub.s32 %v3402, %v3404
        %v3406 = vrot.slane %v3392, %v3405
        %v3407 = vcombine.low %v3342, %v3358
        %v3408 = vcombine.high %v3342, %v3358
        %v3410 = vunpack.c.l.s4 1934713408
        %v3411 = vunpack.c.0.s8 %v3410
        %v3412 = vlaneseq
        %v3413 = vshrl.u32 %v3412, 7
        %v3414 = vsub.s32 %v3411, %v3413
        %v3415 = vrot.slane %v3407, %v3414
        %v3417 = vunpack.c.l.s4 1934713408
        %v3418 = vunpack.c.0.s8 %v3417
        %v3419 = vlaneseq
        %v3420 = vshrl.u32 %v3419, 7
        %v3421 = vsub.s32 %v3418, %v3420
        %v3422 = vrot.slane %v3408, %v3421
        %v3423 = vcombine.low %v3367, %v3399
        %v3424 = vcombine.high %v3367, %v3399
        %v3425 = vcombine.low %v3374, %v3406
        %v3426 = vcombine.high %v3374, %v3406
        %v3427 = vcombine.low %v3383, %v3415
        %v3428 = vcombine.high %v3383, %v3415
        %v3429 = vcombine.low %v3390, %v3422
        %v3430 = vcombine.high %v3390, %v3422
        %v3431 = vcombine.low %v3007, %v3011
        %v3432 = vcombine.high %v3007, %v3011
        %v3434 = vunpack.c.l.s4 1983009808
        %v3435 = vunpack.c.0.s8 %v3434
        %v3436 = vlaneseq
        %v3437 = vshrl.u32 %v3436, 7
        %v3438 = vsub.s32 %v3435, %v3437
        %v3439 = vrot.slane %v3431, %v3438
        %v3441 = vunpack.c.l.s4 1983009808
        %v3442 = vunpack.c.0.s8 %v3441
        %v3443 = vlaneseq
        %v3444 = vshrl.u32 %v3443, 7
        %v3445 = vsub.s32 %v3442, %v3444
        %v3446 = vrot.slane %v3432, %v3445
        %v3447 = vcombine.low %v3009, %v3013
        %v3448 = vcombine.high %v3009, %v3013
        %v3450 = vunpack.c.l.s4 1983009808
        %v3451 = vunpack.c.0.s8 %v3450
        %v3452 = vlaneseq
        %v3453 = vshrl.u32 %v3452, 7
        %v3454 = vsub.s32 %v3451, %v3453
        %v3455 = vrot.slane %v3447, %v3454
        %v3457 = vunpack.c.l.s4 1983009808
        %v3458 = vunpack.c.0.s8 %v3457
        %v3459 = vlaneseq
        %v3460 = vshrl.u32 %v3459, 7
        %v3461 = vsub.s32 %v3458, %v3460
        %v3462 = vrot.slane %v3448, %v3461
        %v3463 = vcombine.low %v3015, %v3019
        %v3464 = vcombine.high %v3015, %v3019
        %v3466 = vunpack.c.l.s4 1983009808
        %v3467 = vunpack.c.0.s8 %v3466
        %v3468 = vlaneseq
        %v3469 = vshrl.u32 %v3468, 7
        %v3470 = vsub.s32 %v3467, %v3469
        %v3471 = vrot.slane %v3463, %v3470
        %v3473 = vunpack.c.l.s4 1983009808
        %v3474 = vunpack.c.0.s8 %v3473
        %v3475 = vlaneseq
        %v3476 = vshrl.u32 %v3475, 7
        %v3477 = vsub.s32 %v3474, %v3476
        %v3478 = vrot.slane %v3464, %v3477
        %v3479 = vcombine.low %v3017, %v3021
        %v3480 = vcombine.high %v3017, %v3021
        %v3482 = vunpack.c.l.s4 1983009808
        %v3483 = vunpack.c.0.s8 %v3482
        %v3484 = vlaneseq
        %v3485 = vshrl.u32 %v3484, 7
        %v3486 = vsub.s32 %v3483, %v3485
        %v3487 = vrot.slane %v3479, %v3486
        %v3489 = vunpack.c.l.s4 1983009808
        %v3490 = vunpack.c.0.s8 %v3489
        %v3491 = vlaneseq
        %v3492 = vshrl.u32 %v3491, 7
        %v3493 = vsub.s32 %v3490, %v3492
        %v3494 = vrot.slane %v3480, %v3493
        %v3495 = vcombine.low %v3439, %v3455
        %v3496 = vcombine.high %v3439, %v3455
        %v3498 = vunpack.c.l.s4 1934713408
        %v3499 = vunpack.c.0.s8 %v3498
        %v3500 = vlaneseq
        %v3501 = vshrl.u32 %v3500, 7
        %v3502 = vsub.s32 %v3499, %v3501
        %v3503 = vrot.slane %v3495, %v3502
        %v3505 = vunpack.c.l.s4 1934713408
        %v3506 = vunpack.c.0.s8 %v3505
        %v3507 = vlaneseq
        %v3508 = vshrl.u32 %v3507, 7
        %v3509 = vsub.s32 %v3506, %v3508
        %v3510 = vrot.slane %v3496, %v3509
        %v3511 = vcombine.low %v3446, %v3462
        %v3512 = vcombine.high %v3446, %v3462
        %v3514 = vunpack.c.l.s4 1934713408
        %v3515 = vunpack.c.0.s8 %v3514
        %v3516 = vlaneseq
        %v3517 = vshrl.u32 %v3516, 7
        %v3518 = vsub.s32 %v3515, %v3517
        %v3519 = vrot.slane %v3511, %v3518
        %v3521 = vunpack.c.l.s4 1934713408
        %v3522 = vunpack.c.0.s8 %v3521
        %v3523 = vlaneseq
        %v3524 = vshrl.u32 %v3523, 7
        %v3525 = vsub.s32 %v3522, %v3524
        %v3526 = vrot.slane %v3512, %v3525
        %v3527 = vcombine.low %v3471, %v3487
        %v3528 = vcombine.high %v3471, %v3487
        %v3530 = vunpack.c.l.s4 1934713408
        %v3531 = vunpack.c.0.s8 %v3530
        %v3532 = vlaneseq
        %v3533 = vshrl.u32 %v3532, 7
        %v3534 = vsub.s32 %v3531, %v3533
        %v3535 = vrot.slane %v3527, %v3534
        %v3537 = vunpack.c.l.s4 1934713408
        %v3538 = vunpack.c.0.s8 %v3537
        %v3539 = vlaneseq
        %v3540 = vshrl.u32 %v3539, 7
        %v3541 = vsub.s32 %v3538, %v3540
        %v3542 = vrot.slane %v3528, %v3541
        %v3543 = vcombine.low %v3478, %v3494
        %v3544 = vcombine.high %v3478, %v3494
        %v3546 = vunpack.c.l.s4 1934713408
        %v3547 = vunpack.c.0.s8 %v3546
        %v3548 = vlaneseq
        %v3549 = vshrl.u32 %v3548, 7
        %v3550 = vsub.s32 %v3547, %v3549
        %v3551 = vrot.slane %v3543, %v3550
        %v3553 = vunpack.c.l.s4 1934713408
        %v3554 = vunpack.c.0.s8 %v3553
        %v3555 = vlaneseq
        %v3556 = vshrl.u32 %v3555, 7
        %v3557 = vsub.s32 %v3554, %v3556
        %v3558 = vrot.slane %v3544, %v3557
        %v3559 = vcombine.low %v3503, %v3535
        %v3560 = vcombine.high %v3503, %v3535
        %v3561 = vcombine.low %v3510, %v3542
        %v3562 = vcombine.high %v3510, %v3542
        %v3563 = vcombine.low %v3519, %v3551
        %v3564 = vcombine.high %v3519, %v3551
        %v3565 = vcombine.low %v3526, %v3558
        %v3566 = vcombine.high %v3526, %v3558
        %v3567 = vcombine.low %v2960, %v2964
        %v3568 = vcombine.high %v2960, %v2964
        %v3570 = vunpack.c.l.s4 1983009808
        %v3571 = vunpack.c.0.s8 %v3570
        %v3572 = vlaneseq
        %v3573 = vshrl.u32 %v3572, 7
        %v3574 = vsub.s32 %v3571, %v3573
        %v3575 = vrot.slane %v3567, %v3574
        %v3577 = vunpack.c.l.s4 1983009808
        %v3578 = vunpack.c.0.s8 %v3577
        %v3579 = vlaneseq
        %v3580 = vshrl.u32 %v3579, 7
        %v3581 = vsub.s32 %v3578, %v3580
        %v3582 = vrot.slane %v3568, %v3581
        %v3583 = vcombine.low %v2962, %v2966
        %v3584 = vcombine.high %v2962, %v2966
        %v3586 = vunpack.c.l.s4 1983009808
        %v3587 = vunpack.c.0.s8 %v3586
        %v3588 = vlaneseq
        %v3589 = vshrl.u32 %v3588, 7
        %v3590 = vsub.s32 %v3587, %v3589
        %v3591 = vrot.slane %v3583, %v3590
        %v3593 = vunpack.c.l.s4 1983009808
        %v3594 = vunpack.c.0.s8 %v3593
        %v3595 = vlaneseq
        %v3596 = vshrl.u32 %v3595, 7
        %v3597 = vsub.s32 %v3594, %v3596
        %v3598 = vrot.slane %v3584, %v3597
        %v3599 = vcombine.low %v2968, %v2972
        %v3600 = vcombine.high %v2968, %v2972
        %v3602 = vunpack.c.l.s4 1983009808
        %v3603 = vunpack.c.0.s8 %v3602
        %v3604 = vlaneseq
        %v3605 = vshrl.u32 %v3604, 7
        %v3606 = vsub.s32 %v3603, %v3605
        %v3607 = vrot.slane %v3599, %v3606
        %v3609 = vunpack.c.l.s4 1983009808
        %v3610 = vunpack.c.0.s8 %v3609
        %v3611 = vlaneseq
        %v3612 = vshrl.u32 %v3611, 7
        %v3613 = vsub.s32 %v3610, %v3612
        %v3614 = vrot.slane %v3600, %v3613
        %v3615 = vcombine.low %v2970, %v2974
        %v3616 = vcombine.high %v2970, %v2974
        %v3618 = vunpack.c.l.s4 1983009808
        %v3619 = vunpack.c.0.s8 %v3618
        %v3620 = vlaneseq
        %v3621 = vshrl.u32 %v3620, 7
        %v3622 = vsub.s32 %v3619, %v3621
        %v3623 = vrot.slane %v3615, %v3622
        %v3625 = vunpack.c.l.s4 1983009808
        %v3626 = vunpack.c.0.s8 %v3625
        %v3627 = vlaneseq
        %v3628 = vshrl.u32 %v3627, 7
        %v3629 = vsub.s32 %v3626, %v3628
        %v3630 = vrot.slane %v3616, %v3629
        %v3631 = vcombine.low %v3575, %v3591
        %v3632 = vcombine.high %v3575, %v3591
        %v3634 = vunpack.c.l.s4 1934713408
        %v3635 = vunpack.c.0.s8 %v3634
        %v3636 = vlaneseq
        %v3637 = vshrl.u32 %v3636, 7
        %v3638 = vsub.s32 %v3635, %v3637
        %v3639 = vrot.slane %v3631, %v3638
        %v3641 = vunpack.c.l.s4 1934713408
        %v3642 = vunpack.c.0.s8 %v3641
        %v3643 = vlaneseq
        %v3644 = vshrl.u32 %v3643, 7
        %v3645 = vsub.s32 %v3642, %v3644
        %v3646 = vrot.slane %v3632, %v3645
        %v3647 = vcombine.low %v3582, %v3598
        %v3648 = vcombine.high %v3582, %v3598
        %v3650 = vunpack.c.l.s4 1934713408
        %v3651 = vunpack.c.0.s8 %v3650
        %v3652 = vlaneseq
        %v3653 = vshrl.u32 %v3652, 7
        %v3654 = vsub.s32 %v3651, %v3653
        %v3655 = vrot.slane %v3647, %v3654
        %v3657 = vunpack.c.l.s4 1934713408
        %v3658 = vunpack.c.0.s8 %v3657
        %v3659 = vlaneseq
        %v3660 = vshrl.u32 %v3659, 7
        %v3661 = vsub.s32 %v3658, %v3660
        %v3662 = vrot.slane %v3648, %v3661
        %v3663 = vcombine.low %v3607, %v3623
        %v3664 = vcombine.high %v3607, %v3623
        %v3666 = vunpack.c.l.s4 1934713408
        %v3667 = vunpack.c.0.s8 %v3666
        %v3668 = vlaneseq
        %v3669 = vshrl.u32 %v3668, 7
        %v3670 = vsub.s32 %v3667, %v3669
        %v3671 = vrot.slane %v3663, %v3670
        %v3673 = vunpack.c.l.s4 1934713408
        %v3674 = vunpack.c.0.s8 %v3673
        %v3675 = vlaneseq
        %v3676 = vshrl.u32 %v3675, 7
        %v3677 = vsub.s32 %v3674, %v3676
        %v3678 = vrot.slane %v3664, %v3677
        %v3679 = vcombine.low %v3614, %v3630
        %v3680 = vcombine.high %v3614, %v3630
        %v3682 = vunpack.c.l.s4 1934713408
        %v3683 = vunpack.c.0.s8 %v3682
        %v3684 = vlaneseq
        %v3685 = vshrl.u32 %v3684, 7
        %v3686 = vsub.s32 %v3683, %v3685
        %v3687 = vrot.slane %v3679, %v3686
        %v3689 = vunpack.c.l.s4 1934713408
        %v3690 = vunpack.c.0.s8 %v3689
        %v3691 = vlaneseq
        %v3692 = vshrl.u32 %v3691, 7
        %v3693 = vsub.s32 %v3690, %v3692
        %v3694 = vrot.slane %v3680, %v3693
        %v3695 = vcombine.low %v3639, %v3671
        %v3696 = vcombine.high %v3639, %v3671
        %v3697 = vcombine.low %v3646, %v3678
        %v3698 = vcombine.high %v3646, %v3678
        %v3699 = vcombine.low %v3655, %v3687
        %v3700 = vcombine.high %v3655, %v3687
        %v3701 = vcombine.low %v3662, %v3694
        %v3702 = vcombine.high %v3662, %v3694
        %v3703 = vcombine.low %v2976, %v2980
        %v3704 = vcombine.high %v2976, %v2980
        %v3706 = vunpack.c.l.s4 1983009808
        %v3707 = vunpack.c.0.s8 %v3706
        %v3708 = vlaneseq
        %v3709 = vshrl.u32 %v3708, 7
        %v3710 = vsub.s32 %v3707, %v3709
        %v3711 = vrot.slane %v3703, %v3710
        %v3713 = vunpack.c.l.s4 1983009808
        %v3714 = vunpack.c.0.s8 %v3713
        %v3715 = vlaneseq
        %v3716 = vshrl.u32 %v3715, 7
        %v3717 = vsub.s32 %v3714, %v3716
        %v3718 = vrot.slane %v3704, %v3717
        %v3719 = vcombine.low %v2978, %v2982
        %v3720 = vcombine.high %v2978, %v2982
        %v3722 = vunpack.c.l.s4 1983009808
        %v3723 = vunpack.c.0.s8 %v3722
        %v3724 = vlaneseq
        %v3725 = vshrl.u32 %v3724, 7
        %v3726 = vsub.s32 %v3723, %v3725
        %v3727 = vrot.slane %v3719, %v3726
        %v3729 = vunpack.c.l.s4 1983009808
        %v3730 = vunpack.c.0.s8 %v3729
        %v3731 = vlaneseq
        %v3732 = vshrl.u32 %v3731, 7
        %v3733 = vsub.s32 %v3730, %v3732
        %v3734 = vrot.slane %v3720, %v3733
        %v3735 = vcombine.low %v2984, %v2988
        %v3736 = vcombine.high %v2984, %v2988
        %v3738 = vunpack.c.l.s4 1983009808
        %v3739 = vunpack.c.0.s8 %v3738
        %v3740 = vlaneseq
        %v3741 = vshrl.u32 %v3740, 7
        %v3742 = vsub.s32 %v3739, %v3741
        %v3743 = vrot.slane %v3735, %v3742
        %v3745 = vunpack.c.l.s4 1983009808
        %v3746 = vunpack.c.0.s8 %v3745
        %v3747 = vlaneseq
        %v3748 = vshrl.u32 %v3747, 7
        %v3749 = vsub.s32 %v3746, %v3748
        %v3750 = vrot.slane %v3736, %v3749
        %v3751 = vcombine.low %v2986, %v2990
        %v3752 = vcombine.high %v2986, %v2990
        %v3754 = vunpack.c.l.s4 1983009808
        %v3755 = vunpack.c.0.s8 %v3754
        %v3756 = vlaneseq
        %v3757 = vshrl.u32 %v3756, 7
        %v3758 = vsub.s32 %v3755, %v3757
        %v3759 = vrot.slane %v3751, %v3758
        %v3761 = vunpack.c.l.s4 1983009808
        %v3762 = vunpack.c.0.s8 %v3761
        %v3763 = vlaneseq
        %v3764 = vshrl.u32 %v3763, 7
        %v3765 = vsub.s32 %v3762, %v3764
        %v3766 = vrot.slane %v3752, %v3765
        %v3767 = vcombine.low %v3711, %v3727
        %v3768 = vcombine.high %v3711, %v3727
        %v3770 = vunpack.c.l.s4 1934713408
        %v3771 = vunpack.c.0.s8 %v3770
        %v3772 = vlaneseq
        %v3773 = vshrl.u32 %v3772, 7
        %v3774 = vsub.s32 %v3771, %v3773
        %v3775 = vrot.slane %v3767, %v3774
        %v3777 = vunpack.c.l.s4 1934713408
        %v3778 = vunpack.c.0.s8 %v3777
        %v3779 = vlaneseq
        %v3780 = vshrl.u32 %v3779, 7
        %v3781 = vsub.s32 %v3778, %v3780
        %v3782 = vrot.slane %v3768, %v3781
        %v3783 = vcombine.low %v3718, %v3734
        %v3784 = vcombine.high %v3718, %v3734
        %v3786 = vunpack.c.l.s4 1934713408
        %v3787 = vunpack.c.0.s8 %v3786
        %v3788 = vlaneseq
        %v3789 = vshrl.u32 %v3788, 7
        %v3790 = vsub.s32 %v3787, %v3789
        %v3791 = vrot.slane %v3783, %v3790
        %v3793 = vunpack.c.l.s4 1934713408
        %v3794 = vunpack.c.0.s8 %v3793
        %v3795 = vlaneseq
        %v3796 = vshrl.u32 %v3795, 7
        %v3797 = vsub.s32 %v3794, %v3796
        %v3798 = vrot.slane %v3784, %v3797
        %v3799 = vcombine.low %v3743, %v3759
        %v3800 = vcombine.high %v3743, %v3759
        %v3802 = vunpack.c.l.s4 1934713408
        %v3803 = vunpack.c.0.s8 %v3802
        %v3804 = vlaneseq
        %v3805 = vshrl.u32 %v3804, 7
        %v3806 = vsub.s32 %v3803, %v3805
        %v3807 = vrot.slane %v3799, %v3806
        %v3809 = vunpack.c.l.s4 1934713408
        %v3810 = vunpack.c.0.s8 %v3809
        %v3811 = vlaneseq
        %v3812 = vshrl.u32 %v3811, 7
        %v3813 = vsub.s32 %v3810, %v3812
        %v3814 = vrot.slane %v3800, %v3813
        %v3815 = vcombine.low %v3750, %v3766
        %v3816 = vcombine.high %v3750, %v3766
        %v3818 = vunpack.c.l.s4 1934713408
        %v3819 = vunpack.c.0.s8 %v3818
        %v3820 = vlaneseq
        %v3821 = vshrl.u32 %v3820, 7
        %v3822 = vsub.s32 %v3819, %v3821
        %v3823 = vrot.slane %v3815, %v3822
        %v3825 = vunpack.c.l.s4 1934713408
        %v3826 = vunpack.c.0.s8 %v3825
        %v3827 = vlaneseq
        %v3828 = vshrl.u32 %v3827, 7
        %v3829 = vsub.s32 %v3826, %v3828
        %v3830 = vrot.slane %v3816, %v3829
        %v3831 = vcombine.low %v3775, %v3807
        %v3832 = vcombine.high %v3775, %v3807
        %v3833 = vcombine.low %v3782, %v3814
        %v3834 = vcombine.high %v3782, %v3814
        %v3835 = vcombine.low %v3791, %v3823
        %v3836 = vcombine.high %v3791, %v3823
        %v3837 = vcombine.low %v3798, %v3830
        %v3838 = vcombine.high %v3798, %v3830
        %v3839 = vcombine.low %v2992, %v2996
        %v3840 = vcombine.high %v2992, %v2996
        %v3842 = vunpack.c.l.s4 1983009808
        %v3843 = vunpack.c.0.s8 %v3842
        %v3844 = vlaneseq
        %v3845 = vshrl.u32 %v3844, 7
        %v3846 = vsub.s32 %v3843, %v3845
        %v3847 = vrot.slane %v3839, %v3846
        %v3849 = vunpack.c.l.s4 1983009808
        %v3850 = vunpack.c.0.s8 %v3849
        %v3851 = vlaneseq
        %v3852 = vshrl.u32 %v3851, 7
        %v3853 = vsub.s32 %v3850, %v3852
        %v3854 = vrot.slane %v3840, %v3853
        %v3855 = vcombine.low %v2994, %v2998
        %v3856 = vcombine.high %v2994, %v2998
        %v3858 = vunpack.c.l.s4 1983009808
        %v3859 = vunpack.c.0.s8 %v3858
        %v3860 = vlaneseq
        %v3861 = vshrl.u32 %v3860, 7
        %v3862 = vsub.s32 %v3859, %v3861
        %v3863 = vrot.slane %v3855, %v3862
        %v3865 = vunpack.c.l.s4 1983009808
        %v3866 = vunpack.c.0.s8 %v3865
        %v3867 = vlaneseq
        %v3868 = vshrl.u32 %v3867, 7
        %v3869 = vsub.s32 %v3866, %v3868
        %v3870 = vrot.slane %v3856, %v3869
        %v3871 = vcombine.low %v3000, %v3004
        %v3872 = vcombine.high %v3000, %v3004
        %v3874 = vunpack.c.l.s4 1983009808
        %v3875 = vunpack.c.0.s8 %v3874
        %v3876 = vlaneseq
        %v3877 = vshrl.u32 %v3876, 7
        %v3878 = vsub.s32 %v3875, %v3877
        %v3879 = vrot.slane %v3871, %v3878
        %v3881 = vunpack.c.l.s4 1983009808
        %v3882 = vunpack.c.0.s8 %v3881
        %v3883 = vlaneseq
        %v3884 = vshrl.u32 %v3883, 7
        %v3885 = vsub.s32 %v3882, %v3884
        %v3886 = vrot.slane %v3872, %v3885
        %v3887 = vcombine.low %v3002, %v3006
        %v3888 = vcombine.high %v3002, %v3006
        %v3890 = vunpack.c.l.s4 1983009808
        %v3891 = vunpack.c.0.s8 %v3890
        %v3892 = vlaneseq
        %v3893 = vshrl.u32 %v3892, 7
        %v3894 = vsub.s32 %v3891, %v3893
        %v3895 = vrot.slane %v3887, %v3894
        %v3897 = vunpack.c.l.s4 1983009808
        %v3898 = vunpack.c.0.s8 %v3897
        %v3899 = vlaneseq
        %v3900 = vshrl.u32 %v3899, 7
        %v3901 = vsub.s32 %v3898, %v3900
        %v3902 = vrot.slane %v3888, %v3901
        %v3903 = vcombine.low %v3847, %v3863
        %v3904 = vcombine.high %v3847, %v3863
        %v3906 = vunpack.c.l.s4 1934713408
        %v3907 = vunpack.c.0.s8 %v3906
        %v3908 = vlaneseq
        %v3909 = vshrl.u32 %v3908, 7
        %v3910 = vsub.s32 %v3907, %v3909
        %v3911 = vrot.slane %v3903, %v3910
        %v3913 = vunpack.c.l.s4 1934713408
        %v3914 = vunpack.c.0.s8 %v3913
        %v3915 = vlaneseq
        %v3916 = vshrl.u32 %v3915, 7
        %v3917 = vsub.s32 %v3914, %v3916
        %v3918 = vrot.slane %v3904, %v3917
        %v3919 = vcombine.low %v3854, %v3870
        %v3920 = vcombine.high %v3854, %v3870
        %v3922 = vunpack.c.l.s4 1934713408
        %v3923 = vunpack.c.0.s8 %v3922
        %v3924 = vlaneseq
        %v3925 = vshrl.u32 %v3924, 7
        %v3926 = vsub.s32 %v3923, %v3925
        %v3927 = vrot.slane %v3919, %v3926
        %v3929 = vunpack.c.l.s4 1934713408
        %v3930 = vunpack.c.0.s8 %v3929
        %v3931 = vlaneseq
        %v3932 = vshrl.u32 %v3931, 7
        %v3933 = vsub.s32 %v3930, %v3932
        %v3934 = vrot.slane %v3920, %v3933
        %v3935 = vcombine.low %v3879, %v3895
        %v3936 = vcombine.high %v3879, %v3895
        %v3938 = vunpack.c.l.s4 1934713408
        %v3939 = vunpack.c.0.s8 %v3938
        %v3940 = vlaneseq
        %v3941 = vshrl.u32 %v3940, 7
        %v3942 = vsub.s32 %v3939, %v3941
        %v3943 = vrot.slane %v3935, %v3942
        %v3945 = vunpack.c.l.s4 1934713408
        %v3946 = vunpack.c.0.s8 %v3945
        %v3947 = vlaneseq
        %v3948 = vshrl.u32 %v3947, 7
        %v3949 = vsub.s32 %v3946, %v3948
        %v3950 = vrot.slane %v3936, %v3949
        %v3951 = vcombine.low %v3886, %v3902
        %v3952 = vcombine.high %v3886, %v3902
        %v3954 = vunpack.c.l.s4 1934713408
        %v3955 = vunpack.c.0.s8 %v3954
        %v3956 = vlaneseq
        %v3957 = vshrl.u32 %v3956, 7
        %v3958 = vsub.s32 %v3955, %v3957
        %v3959 = vrot.slane %v3951, %v3958
        %v3961 = vunpack.c.l.s4 1934713408
        %v3962 = vunpack.c.0.s8 %v3961
        %v3963 = vlaneseq
        %v3964 = vshrl.u32 %v3963, 7
        %v3965 = vsub.s32 %v3962, %v3964
        %v3966 = vrot.slane %v3952, %v3965
        %v3967 = vcombine.low %v3911, %v3943
        %v3968 = vcombine.high %v3911, %v3943
        %v3969 = vcombine.low %v3918, %v3950
        %v3970 = vcombine.high %v3918, %v3950
        %v3971 = vcombine.low %v3927, %v3959
        %v3972 = vcombine.high %v3927, %v3959
        %v3973 = vcombine.low %v3934, %v3966
        %v3974 = vcombine.high %v3934, %v3966
        %v3975 = vcombine.low %v3008, %v3012
        %v3976 = vcombine.high %v3008, %v3012
        %v3978 = vunpack.c.l.s4 1983009808
        %v3979 = vunpack.c.0.s8 %v3978
        %v3980 = vlaneseq
        %v3981 = vshrl.u32 %v3980, 7
        %v3982 = vsub.s32 %v3979, %v3981
        %v3983 = vrot.slane %v3975, %v3982
        %v3985 = vunpack.c.l.s4 1983009808
        %v3986 = vunpack.c.0.s8 %v3985
        %v3987 = vlaneseq
        %v3988 = vshrl.u32 %v3987, 7
        %v3989 = vsub.s32 %v3986, %v3988
        %v3990 = vrot.slane %v3976, %v3989
        %v3991 = vcombine.low %v3010, %v3014
        %v3992 = vcombine.high %v3010, %v3014
        %v3994 = vunpack.c.l.s4 1983009808
        %v3995 = vunpack.c.0.s8 %v3994
        %v3996 = vlaneseq
        %v3997 = vshrl.u32 %v3996, 7
        %v3998 = vsub.s32 %v3995, %v3997
        %v3999 = vrot.slane %v3991, %v3998
        %v4001 = vunpack.c.l.s4 1983009808
        %v4002 = vunpack.c.0.s8 %v4001
        %v4003 = vlaneseq
        %v4004 = vshrl.u32 %v4003, 7
        %v4005 = vsub.s32 %v4002, %v4004
        %v4006 = vrot.slane %v3992, %v4005
        %v4007 = vcombine.low %v3016, %v3020
        %v4008 = vcombine.high %v3016, %v3020
        %v4010 = vunpack.c.l.s4 1983009808
        %v4011 = vunpack.c.0.s8 %v4010
        %v4012 = vlaneseq
        %v4013 = vshrl.u32 %v4012, 7
        %v4014 = vsub.s32 %v4011, %v4013
        %v4015 = vrot.slane %v4007, %v4014
        %v4017 = vunpack.c.l.s4 1983009808
        %v4018 = vunpack.c.0.s8 %v4017
        %v4019 = vlaneseq
        %v4020 = vshrl.u32 %v4019, 7
        %v4021 = vsub.s32 %v4018, %v4020
        %v4022 = vrot.slane %v4008, %v4021
        %v4023 = vcombine.low %v3018, %v3022
        %v4024 = vcombine.high %v3018, %v3022
        %v4026 = vunpack.c.l.s4 1983009808
        %v4027 = vunpack.c.0.s8 %v4026
        %v4028 = vlaneseq
        %v4029 = vshrl.u32 %v4028, 7
        %v4030 = vsub.s32 %v4027, %v4029
        %v4031 = vrot.slane %v4023, %v4030
        %v4033 = vunpack.c.l.s4 1983009808
        %v4034 = vunpack.c.0.s8 %v4033
        %v4035 = vlaneseq
        %v4036 = vshrl.u32 %v4035, 7
        %v4037 = vsub.s32 %v4034, %v4036
        %v4038 = vrot.slane %v4024, %v4037
        %v4039 = vcombine.low %v3983, %v3999
        %v4040 = vcombine.high %v3983, %v3999
        %v4042 = vunpack.c.l.s4 1934713408
        %v4043 = vunpack.c.0.s8 %v4042
        %v4044 = vlaneseq
        %v4045 = vshrl.u32 %v4044, 7
        %v4046 = vsub.s32 %v4043, %v4045
        %v4047 = vrot.slane %v4039, %v4046
        %v4049 = vunpack.c.l.s4 1934713408
        %v4050 = vunpack.c.0.s8 %v4049
        %v4051 = vlaneseq
        %v4052 = vshrl.u32 %v4051, 7
        %v4053 = vsub.s32 %v4050, %v4052
        %v4054 = vrot.slane %v4040, %v4053
        %v4055 = vcombine.low %v3990, %v4006
        %v4056 = vcombine.high %v3990, %v4006
        %v4058 = vunpack.c.l.s4 1934713408
        %v4059 = vunpack.c.0.s8 %v4058
        %v4060 = vlaneseq
        %v4061 = vshrl.u32 %v4060, 7
        %v4062 = vsub.s32 %v4059, %v4061
        %v4063 = vrot.slane %v4055, %v4062
        %v4065 = vunpack.c.l.s4 1934713408
        %v4066 = vunpack.c.0.s8 %v4065
        %v4067 = vlaneseq
        %v4068 = vshrl.u32 %v4067, 7
        %v4069 = vsub.s32 %v4066, %v4068
        %v4070 = vrot.slane %v4056, %v4069
        %v4071 = vcombine.low %v4015, %v4031
        %v4072 = vcombine.high %v4015, %v4031
        %v4074 = vunpack.c.l.s4 1934713408
        %v4075 = vunpack.c.0.s8 %v4074
        %v4076 = vlaneseq
        %v4077 = vshrl.u32 %v4076, 7
        %v4078 = vsub.s32 %v4075, %v4077
        %v4079 = vrot.slane %v4071, %v4078
        %v4081 = vunpack.c.l.s4 1934713408
        %v4082 = vunpack.c.0.s8 %v4081
        %v4083 = vlaneseq
        %v4084 = vshrl.u32 %v4083, 7
        %v4085 = vsub.s32 %v4082, %v4084
        %v4086 = vrot.slane %v4072, %v4085
        %v4087 = vcombine.low %v4022, %v4038
        %v4088 = vcombine.high %v4022, %v4038
        %v4090 = vunpack.c.l.s4 1934713408
        %v4091 = vunpack.c.0.s8 %v4090
        %v4092 = vlaneseq
        %v4093 = vshrl.u32 %v4092, 7
        %v4094 = vsub.s32 %v4091, %v4093
        %v4095 = vrot.slane %v4087, %v4094
        %v4097 = vunpack.c.l.s4 1934713408
        %v4098 = vunpack.c.0.s8 %v4097
        %v4099 = vlaneseq
        %v4100 = vshrl.u32 %v4099, 7
        %v4101 = vsub.s32 %v4098, %v4100
        %v4102 = vrot.slane %v4088, %v4101
        %v4103 = vcombine.low %v4047, %v4079
        %v4104 = vcombine.high %v4047, %v4079
        %v4105 = vcombine.low %v4054, %v4086
        %v4106 = vcombine.high %v4054, %v4086
        %v4107 = vcombine.low %v4063, %v4095
        %v4108 = vcombine.high %v4063, %v4095
        %v4109 = vcombine.low %v4070, %v4102
        %v4110 = vcombine.high %v4070, %v4102
        %v4111 = vpack.c.bf16 %v3151, %v3151
        %v4112 = vpack.c.bf16 %v3695, %v3695
        %v4113 = vpack.c.bf16 %v3152, %v3152
        %v4114 = vpack.c.bf16 %v3696, %v3696
        %v4115 = vpack.c.bf16 %v3153, %v3153
        %v4116 = vpack.c.bf16 %v3697, %v3697
        %v4117 = vpack.c.bf16 %v3154, %v3154
        %v4118 = vpack.c.bf16 %v3698, %v3698
        %v4119 = vpack.c.bf16 %v3155, %v3155
        %v4120 = vpack.c.bf16 %v3699, %v3699
        %v4121 = vpack.c.bf16 %v3156, %v3156
        %v4122 = vpack.c.bf16 %v3700, %v3700
        %v4123 = vpack.c.bf16 %v3157, %v3157
        %v4124 = vpack.c.bf16 %v3701, %v3701
        %v4125 = vpack.c.bf16 %v3158, %v3158
        %v4126 = vpack.c.bf16 %v3702, %v3702
        %v4127 = vpack.c.bf16 %v3287, %v3287
        %v4128 = vpack.c.bf16 %v3831, %v3831
        %v4129 = vpack.c.bf16 %v3288, %v3288
        %v4130 = vpack.c.bf16 %v3832, %v3832
        %v4131 = vpack.c.bf16 %v3289, %v3289
        %v4132 = vpack.c.bf16 %v3833, %v3833
        %v4133 = vpack.c.bf16 %v3290, %v3290
        %v4134 = vpack.c.bf16 %v3834, %v3834
        %v4135 = vpack.c.bf16 %v3291, %v3291
        %v4136 = vpack.c.bf16 %v3835, %v3835
        %v4137 = vpack.c.bf16 %v3292, %v3292
        %v4138 = vpack.c.bf16 %v3836, %v3836
        %v4139 = vpack.c.bf16 %v3293, %v3293
        %v4140 = vpack.c.bf16 %v3837, %v3837
        %v4141 = vpack.c.bf16 %v3294, %v3294
        %v4142 = vpack.c.bf16 %v3838, %v3838
        %v4143 = vpack.c.bf16 %v3423, %v3423
        %v4144 = vpack.c.bf16 %v3967, %v3967
        %v4145 = vpack.c.bf16 %v3424, %v3424
        %v4146 = vpack.c.bf16 %v3968, %v3968
        %v4147 = vpack.c.bf16 %v3425, %v3425
        %v4148 = vpack.c.bf16 %v3969, %v3969
        %v4149 = vpack.c.bf16 %v3426, %v3426
        %v4150 = vpack.c.bf16 %v3970, %v3970
        %v4151 = vpack.c.bf16 %v3427, %v3427
        %v4152 = vpack.c.bf16 %v3971, %v3971
        %v4153 = vpack.c.bf16 %v3428, %v3428
        %v4154 = vpack.c.bf16 %v3972, %v3972
        %v4155 = vpack.c.bf16 %v3429, %v3429
        %v4156 = vpack.c.bf16 %v3973, %v3973
        %v4157 = vpack.c.bf16 %v3430, %v3430
        %v4158 = vpack.c.bf16 %v3974, %v3974
        %v4159 = vpack.c.bf16 %v3559, %v3559
        %v4160 = vpack.c.bf16 %v4103, %v4103
        %v4161 = vpack.c.bf16 %v3560, %v3560
        %v4162 = vpack.c.bf16 %v4104, %v4104
        %v4163 = vpack.c.bf16 %v3561, %v3561
        %v4164 = vpack.c.bf16 %v4105, %v4105
        %v4165 = vpack.c.bf16 %v3562, %v3562
        %v4166 = vpack.c.bf16 %v4106, %v4106
        %v4167 = vpack.c.bf16 %v3563, %v3563
        %v4168 = vpack.c.bf16 %v4107, %v4107
        %v4169 = vpack.c.bf16 %v3564, %v3564
        %v4170 = vpack.c.bf16 %v4108, %v4108
        %v4171 = vpack.c.bf16 %v3565, %v3565
        %v4172 = vpack.c.bf16 %v4109, %v4109
        %v4173 = vpack.c.bf16 %v3566, %v3566
        %v4174 = vpack.c.bf16 %v4110, %v4110
        %v4175 = vld [vmem:[#allocation2] sm:$0xf]
        %v4176 = vld [vmem:[#allocation2 + $0x4] sm:$0xf]
        %v4177 = vld [vmem:[#allocation2 + $0x8] sm:$0xf]
        %v4178 = vld [vmem:[#allocation2 + $0xc] sm:$0xf]
        %v4179 = vld [vmem:[#allocation2 + $0x10] sm:$0xf]
        %v4180 = vld [vmem:[#allocation2 + $0x14] sm:$0xf]
        %v4181 = vld [vmem:[#allocation2 + $0x18] sm:$0xf]
        %v4182 = vld [vmem:[#allocation2 + $0x1c] sm:$0xf]
        %v4183 = vld [vmem:[#allocation2 + $0x20] sm:$0xf]
        %v4184 = vld [vmem:[#allocation2 + $0x24] sm:$0xf]
        %v4185 = vld [vmem:[#allocation2 + $0x28] sm:$0xf]
        %v4186 = vld [vmem:[#allocation2 + $0x2c] sm:$0xf]
        %v4187 = vld [vmem:[#allocation2 + $0x30] sm:$0xf]
        %v4188 = vld [vmem:[#allocation2 + $0x34] sm:$0xf]
        %v4189 = vld [vmem:[#allocation2 + $0x38] sm:$0xf]
        %v4190 = vld [vmem:[#allocation2 + $0x3c] sm:$0xf]
        %v4191 = vld [vmem:[#allocation2 + $0x40] sm:$0xf]
        %v4192 = vld [vmem:[#allocation2 + $0x44] sm:$0xf]
        %v4193 = vld [vmem:[#allocation2 + $0x48] sm:$0xf]
        %v4194 = vld [vmem:[#allocation2 + $0x4c] sm:$0xf]
        %v4195 = vld [vmem:[#allocation2 + $0x50] sm:$0xf]
        %v4196 = vld [vmem:[#allocation2 + $0x54] sm:$0xf]
        %v4197 = vld [vmem:[#allocation2 + $0x58] sm:$0xf]
        %v4198 = vld [vmem:[#allocation2 + $0x5c] sm:$0xf]
        %v4199 = vld [vmem:[#allocation2 + $0x60] sm:$0xf]
        %v4200 = vld [vmem:[#allocation2 + $0x64] sm:$0xf]
        %v4201 = vld [vmem:[#allocation2 + $0x68] sm:$0xf]
        %v4202 = vld [vmem:[#allocation2 + $0x6c] sm:$0xf]
        %v4203 = vld [vmem:[#allocation2 + $0x70] sm:$0xf]
        %v4204 = vld [vmem:[#allocation2 + $0x74] sm:$0xf]
        %v4205 = vld [vmem:[#allocation2 + $0x78] sm:$0xf]
        %v4206 = vld [vmem:[#allocation2 + $0x7c] sm:$0xf]
        %v4207 = vld [vmem:[#allocation2 + $0x80] sm:$0xf]
        %v4208 = vld [vmem:[#allocation2 + $0x84] sm:$0xf]
        %v4209 = vld [vmem:[#allocation2 + $0x88] sm:$0xf]
        %v4210 = vld [vmem:[#allocation2 + $0x8c] sm:$0xf]
        %v4211 = vld [vmem:[#allocation2 + $0x90] sm:$0xf]
        %v4212 = vld [vmem:[#allocation2 + $0x94] sm:$0xf]
        %v4213 = vld [vmem:[#allocation2 + $0x98] sm:$0xf]
        %v4214 = vld [vmem:[#allocation2 + $0x9c] sm:$0xf]
        %v4215 = vld [vmem:[#allocation2 + $0xa0] sm:$0xf]
        %v4216 = vld [vmem:[#allocation2 + $0xa4] sm:$0xf]
        %v4217 = vld [vmem:[#allocation2 + $0xa8] sm:$0xf]
        %v4218 = vld [vmem:[#allocation2 + $0xac] sm:$0xf]
        %v4219 = vld [vmem:[#allocation2 + $0xb0] sm:$0xf]
        %v4220 = vld [vmem:[#allocation2 + $0xb4] sm:$0xf]
        %v4221 = vld [vmem:[#allocation2 + $0xb8] sm:$0xf]
        %v4222 = vld [vmem:[#allocation2 + $0xbc] sm:$0xf]
        %v4223 = vld [vmem:[#allocation2 + $0xc0] sm:$0xf]
        %v4224 = vld [vmem:[#allocation2 + $0xc4] sm:$0xf]
        %v4225 = vld [vmem:[#allocation2 + $0xc8] sm:$0xf]
        %v4226 = vld [vmem:[#allocation2 + $0xcc] sm:$0xf]
        %v4227 = vld [vmem:[#allocation2 + $0xd0] sm:$0xf]
        %v4228 = vld [vmem:[#allocation2 + $0xd4] sm:$0xf]
        %v4229 = vld [vmem:[#allocation2 + $0xd8] sm:$0xf]
        %v4230 = vld [vmem:[#allocation2 + $0xdc] sm:$0xf]
        %v4231 = vld [vmem:[#allocation2 + $0xe0] sm:$0xf]
        %v4232 = vld [vmem:[#allocation2 + $0xe4] sm:$0xf]
        %v4233 = vld [vmem:[#allocation2 + $0xe8] sm:$0xf]
        %v4234 = vld [vmem:[#allocation2 + $0xec] sm:$0xf]
        %v4235 = vld [vmem:[#allocation2 + $0xf0] sm:$0xf]
        %v4236 = vld [vmem:[#allocation2 + $0xf4] sm:$0xf]
        %v4237 = vld [vmem:[#allocation2 + $0xf8] sm:$0xf]
        %v4238 = vld [vmem:[#allocation2 + $0xfc] sm:$0xf]
        %v4239 = vld [vmem:[#allocation2 + $0x100] sm:$0xf]
        %v4240 = vld [vmem:[#allocation2 + $0x104] sm:$0xf]
        %v4241 = vld [vmem:[#allocation2 + $0x108] sm:$0xf]
        %v4242 = vld [vmem:[#allocation2 + $0x10c] sm:$0xf]
        %v4243 = vld [vmem:[#allocation2 + $0x110] sm:$0xf]
        %v4244 = vld [vmem:[#allocation2 + $0x114] sm:$0xf]
        %v4245 = vld [vmem:[#allocation2 + $0x118] sm:$0xf]
        %v4246 = vld [vmem:[#allocation2 + $0x11c] sm:$0xf]
        %v4247 = vld [vmem:[#allocation2 + $0x120] sm:$0xf]
        %v4248 = vld [vmem:[#allocation2 + $0x124] sm:$0xf]
        %v4249 = vld [vmem:[#allocation2 + $0x128] sm:$0xf]
        %v4250 = vld [vmem:[#allocation2 + $0x12c] sm:$0xf]
        %v4251 = vld [vmem:[#allocation2 + $0x130] sm:$0xf]
        %v4252 = vld [vmem:[#allocation2 + $0x134] sm:$0xf]
        %v4253 = vld [vmem:[#allocation2 + $0x138] sm:$0xf]
        %v4254 = vld [vmem:[#allocation2 + $0x13c] sm:$0xf]
        %v4255 = vld [vmem:[#allocation2 + $0x140] sm:$0xf]
        %v4256 = vld [vmem:[#allocation2 + $0x144] sm:$0xf]
        %v4257 = vld [vmem:[#allocation2 + $0x148] sm:$0xf]
        %v4258 = vld [vmem:[#allocation2 + $0x14c] sm:$0xf]
        %v4259 = vld [vmem:[#allocation2 + $0x150] sm:$0xf]
        %v4260 = vld [vmem:[#allocation2 + $0x154] sm:$0xf]
        %v4261 = vld [vmem:[#allocation2 + $0x158] sm:$0xf]
        %v4262 = vld [vmem:[#allocation2 + $0x15c] sm:$0xf]
        %v4263 = vld [vmem:[#allocation2 + $0x160] sm:$0xf]
        %v4264 = vld [vmem:[#allocation2 + $0x164] sm:$0xf]
        %v4265 = vld [vmem:[#allocation2 + $0x168] sm:$0xf]
        %v4266 = vld [vmem:[#allocation2 + $0x16c] sm:$0xf]
        %v4267 = vld [vmem:[#allocation2 + $0x170] sm:$0xf]
        %v4268 = vld [vmem:[#allocation2 + $0x174] sm:$0xf]
        %v4269 = vld [vmem:[#allocation2 + $0x178] sm:$0xf]
        %v4270 = vld [vmem:[#allocation2 + $0x17c] sm:$0xf]
        %v4271 = vld [vmem:[#allocation2 + $0x180] sm:$0xf]
        %v4272 = vld [vmem:[#allocation2 + $0x184] sm:$0xf]
        %v4273 = vld [vmem:[#allocation2 + $0x188] sm:$0xf]
        %v4274 = vld [vmem:[#allocation2 + $0x18c] sm:$0xf]
        %v4275 = vld [vmem:[#allocation2 + $0x190] sm:$0xf]
        %v4276 = vld [vmem:[#allocation2 + $0x194] sm:$0xf]
        %v4277 = vld [vmem:[#allocation2 + $0x198] sm:$0xf]
        %v4278 = vld [vmem:[#allocation2 + $0x19c] sm:$0xf]
        %v4279 = vld [vmem:[#allocation2 + $0x1a0] sm:$0xf]
        %v4280 = vld [vmem:[#allocation2 + $0x1a4] sm:$0xf]
        %v4281 = vld [vmem:[#allocation2 + $0x1a8] sm:$0xf]
        %v4282 = vld [vmem:[#allocation2 + $0x1ac] sm:$0xf]
        %v4283 = vld [vmem:[#allocation2 + $0x1b0] sm:$0xf]
        %v4284 = vld [vmem:[#allocation2 + $0x1b4] sm:$0xf]
        %v4285 = vld [vmem:[#allocation2 + $0x1b8] sm:$0xf]
        %v4286 = vld [vmem:[#allocation2 + $0x1bc] sm:$0xf]
        %v4287 = vld [vmem:[#allocation2 + $0x1c0] sm:$0xf]
        %v4288 = vld [vmem:[#allocation2 + $0x1c4] sm:$0xf]
        %v4289 = vld [vmem:[#allocation2 + $0x1c8] sm:$0xf]
        %v4290 = vld [vmem:[#allocation2 + $0x1cc] sm:$0xf]
        %v4291 = vld [vmem:[#allocation2 + $0x1d0] sm:$0xf]
        %v4292 = vld [vmem:[#allocation2 + $0x1d4] sm:$0xf]
        %v4293 = vld [vmem:[#allocation2 + $0x1d8] sm:$0xf]
        %v4294 = vld [vmem:[#allocation2 + $0x1dc] sm:$0xf]
        %v4295 = vld [vmem:[#allocation2 + $0x1e0] sm:$0xf]
        %v4296 = vld [vmem:[#allocation2 + $0x1e4] sm:$0xf]
        %v4297 = vld [vmem:[#allocation2 + $0x1e8] sm:$0xf]
        %v4298 = vld [vmem:[#allocation2 + $0x1ec] sm:$0xf]
        %v4299 = vld [vmem:[#allocation2 + $0x1f0] sm:$0xf]
        %v4300 = vld [vmem:[#allocation2 + $0x1f4] sm:$0xf]
        %v4301 = vld [vmem:[#allocation2 + $0x1f8] sm:$0xf]
        %v4302 = vld [vmem:[#allocation2 + $0x1fc] sm:$0xf]
        %v4303 = vld [vmem:[#allocation2 + $0x200] sm:$0xf]
        %v4304 = vld [vmem:[#allocation2 + $0x204] sm:$0xf]
        %v4305 = vld [vmem:[#allocation2 + $0x208] sm:$0xf]
        %v4306 = vld [vmem:[#allocation2 + $0x20c] sm:$0xf]
        %v4307 = vld [vmem:[#allocation2 + $0x210] sm:$0xf]
        %v4308 = vld [vmem:[#allocation2 + $0x214] sm:$0xf]
        %v4309 = vld [vmem:[#allocation2 + $0x218] sm:$0xf]
        %v4310 = vld [vmem:[#allocation2 + $0x21c] sm:$0xf]
        %v4311 = vld [vmem:[#allocation2 + $0x220] sm:$0xf]
        %v4312 = vld [vmem:[#allocation2 + $0x224] sm:$0xf]
        %v4313 = vld [vmem:[#allocation2 + $0x228] sm:$0xf]
        %v4314 = vld [vmem:[#allocation2 + $0x22c] sm:$0xf]
        %v4315 = vld [vmem:[#allocation2 + $0x230] sm:$0xf]
        %v4316 = vld [vmem:[#allocation2 + $0x234] sm:$0xf]
        %v4317 = vld [vmem:[#allocation2 + $0x238] sm:$0xf]
        %v4318 = vld [vmem:[#allocation2 + $0x23c] sm:$0xf]
        %v4319 = vld [vmem:[#allocation2 + $0x240] sm:$0xf]
        %v4320 = vld [vmem:[#allocation2 + $0x244] sm:$0xf]
        %v4321 = vld [vmem:[#allocation2 + $0x248] sm:$0xf]
        %v4322 = vld [vmem:[#allocation2 + $0x24c] sm:$0xf]
        %v4323 = vld [vmem:[#allocation2 + $0x250] sm:$0xf]
        %v4324 = vld [vmem:[#allocation2 + $0x254] sm:$0xf]
        %v4325 = vld [vmem:[#allocation2 + $0x258] sm:$0xf]
        %v4326 = vld [vmem:[#allocation2 + $0x25c] sm:$0xf]
        %v4327 = vld [vmem:[#allocation2 + $0x260] sm:$0xf]
        %v4328 = vld [vmem:[#allocation2 + $0x264] sm:$0xf]
        %v4329 = vld [vmem:[#allocation2 + $0x268] sm:$0xf]
        %v4330 = vld [vmem:[#allocation2 + $0x26c] sm:$0xf]
        %v4331 = vld [vmem:[#allocation2 + $0x270] sm:$0xf]
        %v4332 = vld [vmem:[#allocation2 + $0x274] sm:$0xf]
        %v4333 = vld [vmem:[#allocation2 + $0x278] sm:$0xf]
        %v4334 = vld [vmem:[#allocation2 + $0x27c] sm:$0xf]
        %v4335 = vld [vmem:[#allocation2 + $0x280] sm:$0xf]
        %v4336 = vld [vmem:[#allocation2 + $0x284] sm:$0xf]
        %v4337 = vld [vmem:[#allocation2 + $0x288] sm:$0xf]
        %v4338 = vld [vmem:[#allocation2 + $0x28c] sm:$0xf]
        %v4339 = vld [vmem:[#allocation2 + $0x290] sm:$0xf]
        %v4340 = vld [vmem:[#allocation2 + $0x294] sm:$0xf]
        %v4341 = vld [vmem:[#allocation2 + $0x298] sm:$0xf]
        %v4342 = vld [vmem:[#allocation2 + $0x29c] sm:$0xf]
        %v4343 = vld [vmem:[#allocation2 + $0x2a0] sm:$0xf]
        %v4344 = vld [vmem:[#allocation2 + $0x2a4] sm:$0xf]
        %v4345 = vld [vmem:[#allocation2 + $0x2a8] sm:$0xf]
        %v4346 = vld [vmem:[#allocation2 + $0x2ac] sm:$0xf]
        %v4347 = vld [vmem:[#allocation2 + $0x2b0] sm:$0xf]
        %v4348 = vld [vmem:[#allocation2 + $0x2b4] sm:$0xf]
        %v4349 = vld [vmem:[#allocation2 + $0x2b8] sm:$0xf]
        %v4350 = vld [vmem:[#allocation2 + $0x2bc] sm:$0xf]
        %v4351 = vld [vmem:[#allocation2 + $0x2c0] sm:$0xf]
        %v4352 = vld [vmem:[#allocation2 + $0x2c4] sm:$0xf]
        %v4353 = vld [vmem:[#allocation2 + $0x2c8] sm:$0xf]
        %v4354 = vld [vmem:[#allocation2 + $0x2cc] sm:$0xf]
        %v4355 = vld [vmem:[#allocation2 + $0x2d0] sm:$0xf]
        %v4356 = vld [vmem:[#allocation2 + $0x2d4] sm:$0xf]
        %v4357 = vld [vmem:[#allocation2 + $0x2d8] sm:$0xf]
        %v4358 = vld [vmem:[#allocation2 + $0x2dc] sm:$0xf]
        %v4359 = vld [vmem:[#allocation2 + $0x2e0] sm:$0xf]
        %v4360 = vld [vmem:[#allocation2 + $0x2e4] sm:$0xf]
        %v4361 = vld [vmem:[#allocation2 + $0x2e8] sm:$0xf]
        %v4362 = vld [vmem:[#allocation2 + $0x2ec] sm:$0xf]
        %v4363 = vld [vmem:[#allocation2 + $0x2f0] sm:$0xf]
        %v4364 = vld [vmem:[#allocation2 + $0x2f4] sm:$0xf]
        %v4365 = vld [vmem:[#allocation2 + $0x2f8] sm:$0xf]
        %v4366 = vld [vmem:[#allocation2 + $0x2fc] sm:$0xf]
        %v4367 = vld [vmem:[#allocation2 + $0x300] sm:$0xf]
        %v4368 = vld [vmem:[#allocation2 + $0x304] sm:$0xf]
        %v4369 = vld [vmem:[#allocation2 + $0x308] sm:$0xf]
        %v4370 = vld [vmem:[#allocation2 + $0x30c] sm:$0xf]
        %v4371 = vld [vmem:[#allocation2 + $0x310] sm:$0xf]
        %v4372 = vld [vmem:[#allocation2 + $0x314] sm:$0xf]
        %v4373 = vld [vmem:[#allocation2 + $0x318] sm:$0xf]
        %v4374 = vld [vmem:[#allocation2 + $0x31c] sm:$0xf]
        %v4375 = vld [vmem:[#allocation2 + $0x320] sm:$0xf]
        %v4376 = vld [vmem:[#allocation2 + $0x324] sm:$0xf]
        %v4377 = vld [vmem:[#allocation2 + $0x328] sm:$0xf]
        %v4378 = vld [vmem:[#allocation2 + $0x32c] sm:$0xf]
        %v4379 = vld [vmem:[#allocation2 + $0x330] sm:$0xf]
        %v4380 = vld [vmem:[#allocation2 + $0x334] sm:$0xf]
        %v4381 = vld [vmem:[#allocation2 + $0x338] sm:$0xf]
        %v4382 = vld [vmem:[#allocation2 + $0x33c] sm:$0xf]
        %v4383 = vld [vmem:[#allocation2 + $0x340] sm:$0xf]
        %v4384 = vld [vmem:[#allocation2 + $0x344] sm:$0xf]
        %v4385 = vld [vmem:[#allocation2 + $0x348] sm:$0xf]
        %v4386 = vld [vmem:[#allocation2 + $0x34c] sm:$0xf]
        %v4387 = vld [vmem:[#allocation2 + $0x350] sm:$0xf]
        %v4388 = vld [vmem:[#allocation2 + $0x354] sm:$0xf]
        %v4389 = vld [vmem:[#allocation2 + $0x358] sm:$0xf]
        %v4390 = vld [vmem:[#allocation2 + $0x35c] sm:$0xf]
        %v4391 = vld [vmem:[#allocation2 + $0x360] sm:$0xf]
        %v4392 = vld [vmem:[#allocation2 + $0x364] sm:$0xf]
        %v4393 = vld [vmem:[#allocation2 + $0x368] sm:$0xf]
        %v4394 = vld [vmem:[#allocation2 + $0x36c] sm:$0xf]
        %v4395 = vld [vmem:[#allocation2 + $0x370] sm:$0xf]
        %v4396 = vld [vmem:[#allocation2 + $0x374] sm:$0xf]
        %v4397 = vld [vmem:[#allocation2 + $0x378] sm:$0xf]
        %v4398 = vld [vmem:[#allocation2 + $0x37c] sm:$0xf]
        %v4399 = vld [vmem:[#allocation2 + $0x380] sm:$0xf]
        %v4400 = vld [vmem:[#allocation2 + $0x384] sm:$0xf]
        %v4401 = vld [vmem:[#allocation2 + $0x388] sm:$0xf]
        %v4402 = vld [vmem:[#allocation2 + $0x38c] sm:$0xf]
        %v4403 = vld [vmem:[#allocation2 + $0x390] sm:$0xf]
        %v4404 = vld [vmem:[#allocation2 + $0x394] sm:$0xf]
        %v4405 = vld [vmem:[#allocation2 + $0x398] sm:$0xf]
        %v4406 = vld [vmem:[#allocation2 + $0x39c] sm:$0xf]
        %v4407 = vld [vmem:[#allocation2 + $0x3a0] sm:$0xf]
        %v4408 = vld [vmem:[#allocation2 + $0x3a4] sm:$0xf]
        %v4409 = vld [vmem:[#allocation2 + $0x3a8] sm:$0xf]
        %v4410 = vld [vmem:[#allocation2 + $0x3ac] sm:$0xf]
        %v4411 = vld [vmem:[#allocation2 + $0x3b0] sm:$0xf]
        %v4412 = vld [vmem:[#allocation2 + $0x3b4] sm:$0xf]
        %v4413 = vld [vmem:[#allocation2 + $0x3b8] sm:$0xf]
        %v4414 = vld [vmem:[#allocation2 + $0x3bc] sm:$0xf]
        %v4415 = vld [vmem:[#allocation2 + $0x3c0] sm:$0xf]
        %v4416 = vld [vmem:[#allocation2 + $0x3c4] sm:$0xf]
        %v4417 = vld [vmem:[#allocation2 + $0x3c8] sm:$0xf]
        %v4418 = vld [vmem:[#allocation2 + $0x3cc] sm:$0xf]
        %v4419 = vld [vmem:[#allocation2 + $0x3d0] sm:$0xf]
        %v4420 = vld [vmem:[#allocation2 + $0x3d4] sm:$0xf]
        %v4421 = vld [vmem:[#allocation2 + $0x3d8] sm:$0xf]
        %v4422 = vld [vmem:[#allocation2 + $0x3dc] sm:$0xf]
        %v4423 = vld [vmem:[#allocation2 + $0x3e0] sm:$0xf]
        %v4424 = vld [vmem:[#allocation2 + $0x3e4] sm:$0xf]
        %v4425 = vld [vmem:[#allocation2 + $0x3e8] sm:$0xf]
        %v4426 = vld [vmem:[#allocation2 + $0x3ec] sm:$0xf]
        %v4427 = vld [vmem:[#allocation2 + $0x3f0] sm:$0xf]
        %v4428 = vld [vmem:[#allocation2 + $0x3f4] sm:$0xf]
        %v4429 = vld [vmem:[#allocation2 + $0x3f8] sm:$0xf]
        %v4430 = vld [vmem:[#allocation2 + $0x3fc] sm:$0xf]
        %v4431 = vld [vmem:[#allocation2 + $0x400] sm:$0xf]
        %v4432 = vld [vmem:[#allocation2 + $0x404] sm:$0xf]
        %v4433 = vld [vmem:[#allocation2 + $0x408] sm:$0xf]
        %v4434 = vld [vmem:[#allocation2 + $0x40c] sm:$0xf]
        %v4435 = vld [vmem:[#allocation2 + $0x410] sm:$0xf]
        %v4436 = vld [vmem:[#allocation2 + $0x414] sm:$0xf]
        %v4437 = vld [vmem:[#allocation2 + $0x418] sm:$0xf]
        %v4438 = vld [vmem:[#allocation2 + $0x41c] sm:$0xf]
        %v4439 = vld [vmem:[#allocation2 + $0x420] sm:$0xf]
        %v4440 = vld [vmem:[#allocation2 + $0x424] sm:$0xf]
        %v4441 = vld [vmem:[#allocation2 + $0x428] sm:$0xf]
        %v4442 = vld [vmem:[#allocation2 + $0x42c] sm:$0xf]
        %v4443 = vld [vmem:[#allocation2 + $0x430] sm:$0xf]
        %v4444 = vld [vmem:[#allocation2 + $0x434] sm:$0xf]
        %v4445 = vld [vmem:[#allocation2 + $0x438] sm:$0xf]
        %v4446 = vld [vmem:[#allocation2 + $0x43c] sm:$0xf]
        %v4447 = vld [vmem:[#allocation2 + $0x440] sm:$0xf]
        %v4448 = vld [vmem:[#allocation2 + $0x444] sm:$0xf]
        %v4449 = vld [vmem:[#allocation2 + $0x448] sm:$0xf]
        %v4450 = vld [vmem:[#allocation2 + $0x44c] sm:$0xf]
        %v4451 = vld [vmem:[#allocation2 + $0x450] sm:$0xf]
        %v4452 = vld [vmem:[#allocation2 + $0x454] sm:$0xf]
        %v4453 = vld [vmem:[#allocation2 + $0x458] sm:$0xf]
        %v4454 = vld [vmem:[#allocation2 + $0x45c] sm:$0xf]
        %v4455 = vld [vmem:[#allocation2 + $0x460] sm:$0xf]
        %v4456 = vld [vmem:[#allocation2 + $0x464] sm:$0xf]
        %v4457 = vld [vmem:[#allocation2 + $0x468] sm:$0xf]
        %v4458 = vld [vmem:[#allocation2 + $0x46c] sm:$0xf]
        %v4459 = vld [vmem:[#allocation2 + $0x470] sm:$0xf]
        %v4460 = vld [vmem:[#allocation2 + $0x474] sm:$0xf]
        %v4461 = vld [vmem:[#allocation2 + $0x478] sm:$0xf]
        %v4462 = vld [vmem:[#allocation2 + $0x47c] sm:$0xf]
        %v4463 = vld [vmem:[#allocation2 + $0x480] sm:$0xf]
        %v4464 = vld [vmem:[#allocation2 + $0x484] sm:$0xf]
        %v4465 = vld [vmem:[#allocation2 + $0x488] sm:$0xf]
        %v4466 = vld [vmem:[#allocation2 + $0x48c] sm:$0xf]
        %v4467 = vld [vmem:[#allocation2 + $0x490] sm:$0xf]
        %v4468 = vld [vmem:[#allocation2 + $0x494] sm:$0xf]
        %v4469 = vld [vmem:[#allocation2 + $0x498] sm:$0xf]
        %v4470 = vld [vmem:[#allocation2 + $0x49c] sm:$0xf]
        %v4471 = vld [vmem:[#allocation2 + $0x4a0] sm:$0xf]
        %v4472 = vld [vmem:[#allocation2 + $0x4a4] sm:$0xf]
        %v4473 = vld [vmem:[#allocation2 + $0x4a8] sm:$0xf]
        %v4474 = vld [vmem:[#allocation2 + $0x4ac] sm:$0xf]
        %v4475 = vld [vmem:[#allocation2 + $0x4b0] sm:$0xf]
        %v4476 = vld [vmem:[#allocation2 + $0x4b4] sm:$0xf]
        %v4477 = vld [vmem:[#allocation2 + $0x4b8] sm:$0xf]
        %v4478 = vld [vmem:[#allocation2 + $0x4bc] sm:$0xf]
        %v4479 = vld [vmem:[#allocation2 + $0x4c0] sm:$0xf]
        %v4480 = vld [vmem:[#allocation2 + $0x4c4] sm:$0xf]
        %v4481 = vld [vmem:[#allocation2 + $0x4c8] sm:$0xf]
        %v4482 = vld [vmem:[#allocation2 + $0x4cc] sm:$0xf]
        %v4483 = vld [vmem:[#allocation2 + $0x4d0] sm:$0xf]
        %v4484 = vld [vmem:[#allocation2 + $0x4d4] sm:$0xf]
        %v4485 = vld [vmem:[#allocation2 + $0x4d8] sm:$0xf]
        %v4486 = vld [vmem:[#allocation2 + $0x4dc] sm:$0xf]
        %v4487 = vld [vmem:[#allocation2 + $0x4e0] sm:$0xf]
        %v4488 = vld [vmem:[#allocation2 + $0x4e4] sm:$0xf]
        %v4489 = vld [vmem:[#allocation2 + $0x4e8] sm:$0xf]
        %v4490 = vld [vmem:[#allocation2 + $0x4ec] sm:$0xf]
        %v4491 = vld [vmem:[#allocation2 + $0x4f0] sm:$0xf]
        %v4492 = vld [vmem:[#allocation2 + $0x4f4] sm:$0xf]
        %v4493 = vld [vmem:[#allocation2 + $0x4f8] sm:$0xf]
        %v4494 = vld [vmem:[#allocation2 + $0x4fc] sm:$0xf]
        %v4495 = vld [vmem:[#allocation2 + $0x500] sm:$0xf]
        %v4496 = vld [vmem:[#allocation2 + $0x504] sm:$0xf]
        %v4497 = vld [vmem:[#allocation2 + $0x508] sm:$0xf]
        %v4498 = vld [vmem:[#allocation2 + $0x50c] sm:$0xf]
        %v4499 = vld [vmem:[#allocation2 + $0x510] sm:$0xf]
        %v4500 = vld [vmem:[#allocation2 + $0x514] sm:$0xf]
        %v4501 = vld [vmem:[#allocation2 + $0x518] sm:$0xf]
        %v4502 = vld [vmem:[#allocation2 + $0x51c] sm:$0xf]
        %v4503 = vld [vmem:[#allocation2 + $0x520] sm:$0xf]
        %v4504 = vld [vmem:[#allocation2 + $0x524] sm:$0xf]
        %v4505 = vld [vmem:[#allocation2 + $0x528] sm:$0xf]
        %v4506 = vld [vmem:[#allocation2 + $0x52c] sm:$0xf]
        %v4507 = vld [vmem:[#allocation2 + $0x530] sm:$0xf]
        %v4508 = vld [vmem:[#allocation2 + $0x534] sm:$0xf]
        %v4509 = vld [vmem:[#allocation2 + $0x538] sm:$0xf]
        %v4510 = vld [vmem:[#allocation2 + $0x53c] sm:$0xf]
        %v4511 = vld [vmem:[#allocation2 + $0x540] sm:$0xf]
        %v4512 = vld [vmem:[#allocation2 + $0x544] sm:$0xf]
        %v4513 = vld [vmem:[#allocation2 + $0x548] sm:$0xf]
        %v4514 = vld [vmem:[#allocation2 + $0x54c] sm:$0xf]
        %v4515 = vld [vmem:[#allocation2 + $0x550] sm:$0xf]
        %v4516 = vld [vmem:[#allocation2 + $0x554] sm:$0xf]
        %v4517 = vld [vmem:[#allocation2 + $0x558] sm:$0xf]
        %v4518 = vld [vmem:[#allocation2 + $0x55c] sm:$0xf]
        %v4519 = vld [vmem:[#allocation2 + $0x560] sm:$0xf]
        %v4520 = vld [vmem:[#allocation2 + $0x564] sm:$0xf]
        %v4521 = vld [vmem:[#allocation2 + $0x568] sm:$0xf]
        %v4522 = vld [vmem:[#allocation2 + $0x56c] sm:$0xf]
        %v4523 = vld [vmem:[#allocation2 + $0x570] sm:$0xf]
        %v4524 = vld [vmem:[#allocation2 + $0x574] sm:$0xf]
        %v4525 = vld [vmem:[#allocation2 + $0x578] sm:$0xf]
        %v4526 = vld [vmem:[#allocation2 + $0x57c] sm:$0xf]
        %v4527 = vld [vmem:[#allocation2 + $0x580] sm:$0xf]
        %v4528 = vld [vmem:[#allocation2 + $0x584] sm:$0xf]
        %v4529 = vld [vmem:[#allocation2 + $0x588] sm:$0xf]
        %v4530 = vld [vmem:[#allocation2 + $0x58c] sm:$0xf]
        %v4531 = vld [vmem:[#allocation2 + $0x590] sm:$0xf]
        %v4532 = vld [vmem:[#allocation2 + $0x594] sm:$0xf]
        %v4533 = vld [vmem:[#allocation2 + $0x598] sm:$0xf]
        %v4534 = vld [vmem:[#allocation2 + $0x59c] sm:$0xf]
        %v4535 = vld [vmem:[#allocation2 + $0x5a0] sm:$0xf]
        %v4536 = vld [vmem:[#allocation2 + $0x5a4] sm:$0xf]
        %v4537 = vld [vmem:[#allocation2 + $0x5a8] sm:$0xf]
        %v4538 = vld [vmem:[#allocation2 + $0x5ac] sm:$0xf]
        %v4539 = vld [vmem:[#allocation2 + $0x5b0] sm:$0xf]
        %v4540 = vld [vmem:[#allocation2 + $0x5b4] sm:$0xf]
        %v4541 = vld [vmem:[#allocation2 + $0x5b8] sm:$0xf]
        %v4542 = vld [vmem:[#allocation2 + $0x5bc] sm:$0xf]
        %v4543 = vld [vmem:[#allocation2 + $0x5c0] sm:$0xf]
        %v4544 = vld [vmem:[#allocation2 + $0x5c4] sm:$0xf]
        %v4545 = vld [vmem:[#allocation2 + $0x5c8] sm:$0xf]
        %v4546 = vld [vmem:[#allocation2 + $0x5cc] sm:$0xf]
        %v4547 = vld [vmem:[#allocation2 + $0x5d0] sm:$0xf]
        %v4548 = vld [vmem:[#allocation2 + $0x5d4] sm:$0xf]
        %v4549 = vld [vmem:[#allocation2 + $0x5d8] sm:$0xf]
        %v4550 = vld [vmem:[#allocation2 + $0x5dc] sm:$0xf]
        %v4551 = vld [vmem:[#allocation2 + $0x5e0] sm:$0xf]
        %v4552 = vld [vmem:[#allocation2 + $0x5e4] sm:$0xf]
        %v4553 = vld [vmem:[#allocation2 + $0x5e8] sm:$0xf]
        %v4554 = vld [vmem:[#allocation2 + $0x5ec] sm:$0xf]
        %v4555 = vld [vmem:[#allocation2 + $0x5f0] sm:$0xf]
        %v4556 = vld [vmem:[#allocation2 + $0x5f4] sm:$0xf]
        %v4557 = vld [vmem:[#allocation2 + $0x5f8] sm:$0xf]
        %v4558 = vld [vmem:[#allocation2 + $0x5fc] sm:$0xf]
        %v4559 = vld [vmem:[#allocation2 + $0x600] sm:$0xf]
        %v4560 = vld [vmem:[#allocation2 + $0x604] sm:$0xf]
        %v4561 = vld [vmem:[#allocation2 + $0x608] sm:$0xf]
        %v4562 = vld [vmem:[#allocation2 + $0x60c] sm:$0xf]
        %v4563 = vld [vmem:[#allocation2 + $0x610] sm:$0xf]
        %v4564 = vld [vmem:[#allocation2 + $0x614] sm:$0xf]
        %v4565 = vld [vmem:[#allocation2 + $0x618] sm:$0xf]
        %v4566 = vld [vmem:[#allocation2 + $0x61c] sm:$0xf]
        %v4567 = vld [vmem:[#allocation2 + $0x620] sm:$0xf]
        %v4568 = vld [vmem:[#allocation2 + $0x624] sm:$0xf]
        %v4569 = vld [vmem:[#allocation2 + $0x628] sm:$0xf]
        %v4570 = vld [vmem:[#allocation2 + $0x62c] sm:$0xf]
        %v4571 = vld [vmem:[#allocation2 + $0x630] sm:$0xf]
        %v4572 = vld [vmem:[#allocation2 + $0x634] sm:$0xf]
        %v4573 = vld [vmem:[#allocation2 + $0x638] sm:$0xf]
        %v4574 = vld [vmem:[#allocation2 + $0x63c] sm:$0xf]
        %v4575 = vld [vmem:[#allocation2 + $0x640] sm:$0xf]
        %v4576 = vld [vmem:[#allocation2 + $0x644] sm:$0xf]
        %v4577 = vld [vmem:[#allocation2 + $0x648] sm:$0xf]
        %v4578 = vld [vmem:[#allocation2 + $0x64c] sm:$0xf]
        %v4579 = vld [vmem:[#allocation2 + $0x650] sm:$0xf]
        %v4580 = vld [vmem:[#allocation2 + $0x654] sm:$0xf]
        %v4581 = vld [vmem:[#allocation2 + $0x658] sm:$0xf]
        %v4582 = vld [vmem:[#allocation2 + $0x65c] sm:$0xf]
        %v4583 = vld [vmem:[#allocation2 + $0x660] sm:$0xf]
        %v4584 = vld [vmem:[#allocation2 + $0x664] sm:$0xf]
        %v4585 = vld [vmem:[#allocation2 + $0x668] sm:$0xf]
        %v4586 = vld [vmem:[#allocation2 + $0x66c] sm:$0xf]
        %v4587 = vld [vmem:[#allocation2 + $0x670] sm:$0xf]
        %v4588 = vld [vmem:[#allocation2 + $0x674] sm:$0xf]
        %v4589 = vld [vmem:[#allocation2 + $0x678] sm:$0xf]
        %v4590 = vld [vmem:[#allocation2 + $0x67c] sm:$0xf]
        %v4591 = vld [vmem:[#allocation2 + $0x680] sm:$0xf]
        %v4592 = vld [vmem:[#allocation2 + $0x684] sm:$0xf]
        %v4593 = vld [vmem:[#allocation2 + $0x688] sm:$0xf]
        %v4594 = vld [vmem:[#allocation2 + $0x68c] sm:$0xf]
        %v4595 = vld [vmem:[#allocation2 + $0x690] sm:$0xf]
        %v4596 = vld [vmem:[#allocation2 + $0x694] sm:$0xf]
        %v4597 = vld [vmem:[#allocation2 + $0x698] sm:$0xf]
        %v4598 = vld [vmem:[#allocation2 + $0x69c] sm:$0xf]
        %v4599 = vld [vmem:[#allocation2 + $0x6a0] sm:$0xf]
        %v4600 = vld [vmem:[#allocation2 + $0x6a4] sm:$0xf]
        %v4601 = vld [vmem:[#allocation2 + $0x6a8] sm:$0xf]
        %v4602 = vld [vmem:[#allocation2 + $0x6ac] sm:$0xf]
        %v4603 = vld [vmem:[#allocation2 + $0x6b0] sm:$0xf]
        %v4604 = vld [vmem:[#allocation2 + $0x6b4] sm:$0xf]
        %v4605 = vld [vmem:[#allocation2 + $0x6b8] sm:$0xf]
        %v4606 = vld [vmem:[#allocation2 + $0x6bc] sm:$0xf]
        %v4607 = vld [vmem:[#allocation2 + $0x6c0] sm:$0xf]
        %v4608 = vld [vmem:[#allocation2 + $0x6c4] sm:$0xf]
        %v4609 = vld [vmem:[#allocation2 + $0x6c8] sm:$0xf]
        %v4610 = vld [vmem:[#allocation2 + $0x6cc] sm:$0xf]
        %v4611 = vld [vmem:[#allocation2 + $0x6d0] sm:$0xf]
        %v4612 = vld [vmem:[#allocation2 + $0x6d4] sm:$0xf]
        %v4613 = vld [vmem:[#allocation2 + $0x6d8] sm:$0xf]
        %v4614 = vld [vmem:[#allocation2 + $0x6dc] sm:$0xf]
        %v4615 = vld [vmem:[#allocation2 + $0x6e0] sm:$0xf]
        %v4616 = vld [vmem:[#allocation2 + $0x6e4] sm:$0xf]
        %v4617 = vld [vmem:[#allocation2 + $0x6e8] sm:$0xf]
        %v4618 = vld [vmem:[#allocation2 + $0x6ec] sm:$0xf]
        %v4619 = vld [vmem:[#allocation2 + $0x6f0] sm:$0xf]
        %v4620 = vld [vmem:[#allocation2 + $0x6f4] sm:$0xf]
        %v4621 = vld [vmem:[#allocation2 + $0x6f8] sm:$0xf]
        %v4622 = vld [vmem:[#allocation2 + $0x6fc] sm:$0xf]
        %v4623 = vld [vmem:[#allocation2 + $0x700] sm:$0xf]
        %v4624 = vld [vmem:[#allocation2 + $0x704] sm:$0xf]
        %v4625 = vld [vmem:[#allocation2 + $0x708] sm:$0xf]
        %v4626 = vld [vmem:[#allocation2 + $0x70c] sm:$0xf]
        %v4627 = vld [vmem:[#allocation2 + $0x710] sm:$0xf]
        %v4628 = vld [vmem:[#allocation2 + $0x714] sm:$0xf]
        %v4629 = vld [vmem:[#allocation2 + $0x718] sm:$0xf]
        %v4630 = vld [vmem:[#allocation2 + $0x71c] sm:$0xf]
        %v4631 = vld [vmem:[#allocation2 + $0x720] sm:$0xf]
        %v4632 = vld [vmem:[#allocation2 + $0x724] sm:$0xf]
        %v4633 = vld [vmem:[#allocation2 + $0x728] sm:$0xf]
        %v4634 = vld [vmem:[#allocation2 + $0x72c] sm:$0xf]
        %v4635 = vld [vmem:[#allocation2 + $0x730] sm:$0xf]
        %v4636 = vld [vmem:[#allocation2 + $0x734] sm:$0xf]
        %v4637 = vld [vmem:[#allocation2 + $0x738] sm:$0xf]
        %v4638 = vld [vmem:[#allocation2 + $0x73c] sm:$0xf]
        %v4639 = vld [vmem:[#allocation2 + $0x740] sm:$0xf]
        %v4640 = vld [vmem:[#allocation2 + $0x744] sm:$0xf]
        %v4641 = vld [vmem:[#allocation2 + $0x748] sm:$0xf]
        %v4642 = vld [vmem:[#allocation2 + $0x74c] sm:$0xf]
        %v4643 = vld [vmem:[#allocation2 + $0x750] sm:$0xf]
        %v4644 = vld [vmem:[#allocation2 + $0x754] sm:$0xf]
        %v4645 = vld [vmem:[#allocation2 + $0x758] sm:$0xf]
        %v4646 = vld [vmem:[#allocation2 + $0x75c] sm:$0xf]
        %v4647 = vld [vmem:[#allocation2 + $0x760] sm:$0xf]
        %v4648 = vld [vmem:[#allocation2 + $0x764] sm:$0xf]
        %v4649 = vld [vmem:[#allocation2 + $0x768] sm:$0xf]
        %v4650 = vld [vmem:[#allocation2 + $0x76c] sm:$0xf]
        %v4651 = vld [vmem:[#allocation2 + $0x770] sm:$0xf]
        %v4652 = vld [vmem:[#allocation2 + $0x774] sm:$0xf]
        %v4653 = vld [vmem:[#allocation2 + $0x778] sm:$0xf]
        %v4654 = vld [vmem:[#allocation2 + $0x77c] sm:$0xf]
        %v4655 = vld [vmem:[#allocation2 + $0x780] sm:$0xf]
        %v4656 = vld [vmem:[#allocation2 + $0x784] sm:$0xf]
        %v4657 = vld [vmem:[#allocation2 + $0x788] sm:$0xf]
        %v4658 = vld [vmem:[#allocation2 + $0x78c] sm:$0xf]
        %v4659 = vld [vmem:[#allocation2 + $0x790] sm:$0xf]
        %v4660 = vld [vmem:[#allocation2 + $0x794] sm:$0xf]
        %v4661 = vld [vmem:[#allocation2 + $0x798] sm:$0xf]
        %v4662 = vld [vmem:[#allocation2 + $0x79c] sm:$0xf]
        %v4663 = vld [vmem:[#allocation2 + $0x7a0] sm:$0xf]
        %v4664 = vld [vmem:[#allocation2 + $0x7a4] sm:$0xf]
        %v4665 = vld [vmem:[#allocation2 + $0x7a8] sm:$0xf]
        %v4666 = vld [vmem:[#allocation2 + $0x7ac] sm:$0xf]
        %v4667 = vld [vmem:[#allocation2 + $0x7b0] sm:$0xf]
        %v4668 = vld [vmem:[#allocation2 + $0x7b4] sm:$0xf]
        %v4669 = vld [vmem:[#allocation2 + $0x7b8] sm:$0xf]
        %v4670 = vld [vmem:[#allocation2 + $0x7bc] sm:$0xf]
        %v4671 = vld [vmem:[#allocation2 + $0x7c0] sm:$0xf]
        %v4672 = vld [vmem:[#allocation2 + $0x7c4] sm:$0xf]
        %v4673 = vld [vmem:[#allocation2 + $0x7c8] sm:$0xf]
        %v4674 = vld [vmem:[#allocation2 + $0x7cc] sm:$0xf]
        %v4675 = vld [vmem:[#allocation2 + $0x7d0] sm:$0xf]
        %v4676 = vld [vmem:[#allocation2 + $0x7d4] sm:$0xf]
        %v4677 = vld [vmem:[#allocation2 + $0x7d8] sm:$0xf]
        %v4678 = vld [vmem:[#allocation2 + $0x7dc] sm:$0xf]
        %v4679 = vld [vmem:[#allocation2 + $0x7e0] sm:$0xf]
        %v4680 = vld [vmem:[#allocation2 + $0x7e4] sm:$0xf]
        %v4681 = vld [vmem:[#allocation2 + $0x7e8] sm:$0xf]
        %v4682 = vld [vmem:[#allocation2 + $0x7ec] sm:$0xf]
        %v4683 = vld [vmem:[#allocation2 + $0x7f0] sm:$0xf]
        %v4684 = vld [vmem:[#allocation2 + $0x7f4] sm:$0xf]
        %v4685 = vld [vmem:[#allocation2 + $0x7f8] sm:$0xf]
        %v4686 = vld [vmem:[#allocation2 + $0x7fc] sm:$0xf]
        %v4687 = vld [vmem:[#allocation2 + $0x800] sm:$0xf]
        %v4688 = vld [vmem:[#allocation2 + $0x804] sm:$0xf]
        %v4689 = vld [vmem:[#allocation2 + $0x808] sm:$0xf]
        %v4690 = vld [vmem:[#allocation2 + $0x80c] sm:$0xf]
        %v4691 = vld [vmem:[#allocation2 + $0x810] sm:$0xf]
        %v4692 = vld [vmem:[#allocation2 + $0x814] sm:$0xf]
        %v4693 = vld [vmem:[#allocation2 + $0x818] sm:$0xf]
        %v4694 = vld [vmem:[#allocation2 + $0x81c] sm:$0xf]
        %v4695 = vld [vmem:[#allocation2 + $0x820] sm:$0xf]
        %v4696 = vld [vmem:[#allocation2 + $0x824] sm:$0xf]
        %v4697 = vld [vmem:[#allocation2 + $0x828] sm:$0xf]
        %v4698 = vld [vmem:[#allocation2 + $0x82c] sm:$0xf]
        %v4699 = vld [vmem:[#allocation2 + $0x830] sm:$0xf]
        %v4700 = vld [vmem:[#allocation2 + $0x834] sm:$0xf]
        %v4701 = vld [vmem:[#allocation2 + $0x838] sm:$0xf]
        %v4702 = vld [vmem:[#allocation2 + $0x83c] sm:$0xf]
        %v4703 = vld [vmem:[#allocation2 + $0x840] sm:$0xf]
        %v4704 = vld [vmem:[#allocation2 + $0x844] sm:$0xf]
        %v4705 = vld [vmem:[#allocation2 + $0x848] sm:$0xf]
        %v4706 = vld [vmem:[#allocation2 + $0x84c] sm:$0xf]
        %v4707 = vld [vmem:[#allocation2 + $0x850] sm:$0xf]
        %v4708 = vld [vmem:[#allocation2 + $0x854] sm:$0xf]
        %v4709 = vld [vmem:[#allocation2 + $0x858] sm:$0xf]
        %v4710 = vld [vmem:[#allocation2 + $0x85c] sm:$0xf]
        %v4711 = vld [vmem:[#allocation2 + $0x860] sm:$0xf]
        %v4712 = vld [vmem:[#allocation2 + $0x864] sm:$0xf]
        %v4713 = vld [vmem:[#allocation2 + $0x868] sm:$0xf]
        %v4714 = vld [vmem:[#allocation2 + $0x86c] sm:$0xf]
        %v4715 = vld [vmem:[#allocation2 + $0x870] sm:$0xf]
        %v4716 = vld [vmem:[#allocation2 + $0x874] sm:$0xf]
        %v4717 = vld [vmem:[#allocation2 + $0x878] sm:$0xf]
        %v4718 = vld [vmem:[#allocation2 + $0x87c] sm:$0xf]
        %v4719 = vld [vmem:[#allocation2 + $0x880] sm:$0xf]
        %v4720 = vld [vmem:[#allocation2 + $0x884] sm:$0xf]
        %v4721 = vld [vmem:[#allocation2 + $0x888] sm:$0xf]
        %v4722 = vld [vmem:[#allocation2 + $0x88c] sm:$0xf]
        %v4723 = vld [vmem:[#allocation2 + $0x890] sm:$0xf]
        %v4724 = vld [vmem:[#allocation2 + $0x894] sm:$0xf]
        %v4725 = vld [vmem:[#allocation2 + $0x898] sm:$0xf]
        %v4726 = vld [vmem:[#allocation2 + $0x89c] sm:$0xf]
        %v4727 = vld [vmem:[#allocation2 + $0x8a0] sm:$0xf]
        %v4728 = vld [vmem:[#allocation2 + $0x8a4] sm:$0xf]
        %v4729 = vld [vmem:[#allocation2 + $0x8a8] sm:$0xf]
        %v4730 = vld [vmem:[#allocation2 + $0x8ac] sm:$0xf]
        %v4731 = vld [vmem:[#allocation2 + $0x8b0] sm:$0xf]
        %v4732 = vld [vmem:[#allocation2 + $0x8b4] sm:$0xf]
        %v4733 = vld [vmem:[#allocation2 + $0x8b8] sm:$0xf]
        %v4734 = vld [vmem:[#allocation2 + $0x8bc] sm:$0xf]
        %v4735 = vld [vmem:[#allocation2 + $0x8c0] sm:$0xf]
        %v4736 = vld [vmem:[#allocation2 + $0x8c4] sm:$0xf]
        %v4737 = vld [vmem:[#allocation2 + $0x8c8] sm:$0xf]
        %v4738 = vld [vmem:[#allocation2 + $0x8cc] sm:$0xf]
        %v4739 = vld [vmem:[#allocation2 + $0x8d0] sm:$0xf]
        %v4740 = vld [vmem:[#allocation2 + $0x8d4] sm:$0xf]
        %v4741 = vld [vmem:[#allocation2 + $0x8d8] sm:$0xf]
        %v4742 = vld [vmem:[#allocation2 + $0x8dc] sm:$0xf]
        %v4743 = vld [vmem:[#allocation2 + $0x8e0] sm:$0xf]
        %v4744 = vld [vmem:[#allocation2 + $0x8e4] sm:$0xf]
        %v4745 = vld [vmem:[#allocation2 + $0x8e8] sm:$0xf]
        %v4746 = vld [vmem:[#allocation2 + $0x8ec] sm:$0xf]
        %v4747 = vld [vmem:[#allocation2 + $0x8f0] sm:$0xf]
        %v4748 = vld [vmem:[#allocation2 + $0x8f4] sm:$0xf]
        %v4749 = vld [vmem:[#allocation2 + $0x8f8] sm:$0xf]
        %v4750 = vld [vmem:[#allocation2 + $0x8fc] sm:$0xf]
        %v4751 = vld [vmem:[#allocation2 + $0x900] sm:$0xf]
        %v4752 = vld [vmem:[#allocation2 + $0x904] sm:$0xf]
        %v4753 = vld [vmem:[#allocation2 + $0x908] sm:$0xf]
        %v4754 = vld [vmem:[#allocation2 + $0x90c] sm:$0xf]
        %v4755 = vld [vmem:[#allocation2 + $0x910] sm:$0xf]
        %v4756 = vld [vmem:[#allocation2 + $0x914] sm:$0xf]
        %v4757 = vld [vmem:[#allocation2 + $0x918] sm:$0xf]
        %v4758 = vld [vmem:[#allocation2 + $0x91c] sm:$0xf]
        %v4759 = vld [vmem:[#allocation2 + $0x920] sm:$0xf]
        %v4760 = vld [vmem:[#allocation2 + $0x924] sm:$0xf]
        %v4761 = vld [vmem:[#allocation2 + $0x928] sm:$0xf]
        %v4762 = vld [vmem:[#allocation2 + $0x92c] sm:$0xf]
        %v4763 = vld [vmem:[#allocation2 + $0x930] sm:$0xf]
        %v4764 = vld [vmem:[#allocation2 + $0x934] sm:$0xf]
        %v4765 = vld [vmem:[#allocation2 + $0x938] sm:$0xf]
        %v4766 = vld [vmem:[#allocation2 + $0x93c] sm:$0xf]
        %v4767 = vld [vmem:[#allocation2 + $0x940] sm:$0xf]
        %v4768 = vld [vmem:[#allocation2 + $0x944] sm:$0xf]
        %v4769 = vld [vmem:[#allocation2 + $0x948] sm:$0xf]
        %v4770 = vld [vmem:[#allocation2 + $0x94c] sm:$0xf]
        %v4771 = vld [vmem:[#allocation2 + $0x950] sm:$0xf]
        %v4772 = vld [vmem:[#allocation2 + $0x954] sm:$0xf]
        %v4773 = vld [vmem:[#allocation2 + $0x958] sm:$0xf]
        %v4774 = vld [vmem:[#allocation2 + $0x95c] sm:$0xf]
        %v4775 = vld [vmem:[#allocation2 + $0x960] sm:$0xf]
        %v4776 = vld [vmem:[#allocation2 + $0x964] sm:$0xf]
        %v4777 = vld [vmem:[#allocation2 + $0x968] sm:$0xf]
        %v4778 = vld [vmem:[#allocation2 + $0x96c] sm:$0xf]
        %v4779 = vld [vmem:[#allocation2 + $0x970] sm:$0xf]
        %v4780 = vld [vmem:[#allocation2 + $0x974] sm:$0xf]
        %v4781 = vld [vmem:[#allocation2 + $0x978] sm:$0xf]
        %v4782 = vld [vmem:[#allocation2 + $0x97c] sm:$0xf]
        %v4783 = vld [vmem:[#allocation2 + $0x980] sm:$0xf]
        %v4784 = vld [vmem:[#allocation2 + $0x984] sm:$0xf]
        %v4785 = vld [vmem:[#allocation2 + $0x988] sm:$0xf]
        %v4786 = vld [vmem:[#allocation2 + $0x98c] sm:$0xf]
        %v4787 = vld [vmem:[#allocation2 + $0x990] sm:$0xf]
        %v4788 = vld [vmem:[#allocation2 + $0x994] sm:$0xf]
        %v4789 = vld [vmem:[#allocation2 + $0x998] sm:$0xf]
        %v4790 = vld [vmem:[#allocation2 + $0x99c] sm:$0xf]
        %v4791 = vld [vmem:[#allocation2 + $0x9a0] sm:$0xf]
        %v4792 = vld [vmem:[#allocation2 + $0x9a4] sm:$0xf]
        %v4793 = vld [vmem:[#allocation2 + $0x9a8] sm:$0xf]
        %v4794 = vld [vmem:[#allocation2 + $0x9ac] sm:$0xf]
        %v4795 = vld [vmem:[#allocation2 + $0x9b0] sm:$0xf]
        %v4796 = vld [vmem:[#allocation2 + $0x9b4] sm:$0xf]
        %v4797 = vld [vmem:[#allocation2 + $0x9b8] sm:$0xf]
        %v4798 = vld [vmem:[#allocation2 + $0x9bc] sm:$0xf]
        %v4799 = vld [vmem:[#allocation2 + $0x9c0] sm:$0xf]
        %v4800 = vld [vmem:[#allocation2 + $0x9c4] sm:$0xf]
        %v4801 = vld [vmem:[#allocation2 + $0x9c8] sm:$0xf]
        %v4802 = vld [vmem:[#allocation2 + $0x9cc] sm:$0xf]
        %v4803 = vld [vmem:[#allocation2 + $0x9d0] sm:$0xf]
        %v4804 = vld [vmem:[#allocation2 + $0x9d4] sm:$0xf]
        %v4805 = vld [vmem:[#allocation2 + $0x9d8] sm:$0xf]
        %v4806 = vld [vmem:[#allocation2 + $0x9dc] sm:$0xf]
        %v4807 = vld [vmem:[#allocation2 + $0x9e0] sm:$0xf]
        %v4808 = vld [vmem:[#allocation2 + $0x9e4] sm:$0xf]
        %v4809 = vld [vmem:[#allocation2 + $0x9e8] sm:$0xf]
        %v4810 = vld [vmem:[#allocation2 + $0x9ec] sm:$0xf]
        %v4811 = vld [vmem:[#allocation2 + $0x9f0] sm:$0xf]
        %v4812 = vld [vmem:[#allocation2 + $0x9f4] sm:$0xf]
        %v4813 = vld [vmem:[#allocation2 + $0x9f8] sm:$0xf]
        %v4814 = vld [vmem:[#allocation2 + $0x9fc] sm:$0xf]
        %v4815 = vld [vmem:[#allocation2 + $0xa00] sm:$0xf]
        %v4816 = vld [vmem:[#allocation2 + $0xa04] sm:$0xf]
        %v4817 = vld [vmem:[#allocation2 + $0xa08] sm:$0xf]
        %v4818 = vld [vmem:[#allocation2 + $0xa0c] sm:$0xf]
        %v4819 = vld [vmem:[#allocation2 + $0xa10] sm:$0xf]
        %v4820 = vld [vmem:[#allocation2 + $0xa14] sm:$0xf]
        %v4821 = vld [vmem:[#allocation2 + $0xa18] sm:$0xf]
        %v4822 = vld [vmem:[#allocation2 + $0xa1c] sm:$0xf]
        %v4823 = vld [vmem:[#allocation2 + $0xa20] sm:$0xf]
        %v4824 = vld [vmem:[#allocation2 + $0xa24] sm:$0xf]
        %v4825 = vld [vmem:[#allocation2 + $0xa28] sm:$0xf]
        %v4826 = vld [vmem:[#allocation2 + $0xa2c] sm:$0xf]
        %v4827 = vld [vmem:[#allocation2 + $0xa30] sm:$0xf]
        %v4828 = vld [vmem:[#allocation2 + $0xa34] sm:$0xf]
        %v4829 = vld [vmem:[#allocation2 + $0xa38] sm:$0xf]
        %v4830 = vld [vmem:[#allocation2 + $0xa3c] sm:$0xf]
        %v4831 = vld [vmem:[#allocation2 + $0xa40] sm:$0xf]
        %v4832 = vld [vmem:[#allocation2 + $0xa44] sm:$0xf]
        %v4833 = vld [vmem:[#allocation2 + $0xa48] sm:$0xf]
        %v4834 = vld [vmem:[#allocation2 + $0xa4c] sm:$0xf]
        %v4835 = vld [vmem:[#allocation2 + $0xa50] sm:$0xf]
        %v4836 = vld [vmem:[#allocation2 + $0xa54] sm:$0xf]
        %v4837 = vld [vmem:[#allocation2 + $0xa58] sm:$0xf]
        %v4838 = vld [vmem:[#allocation2 + $0xa5c] sm:$0xf]
        %v4839 = vld [vmem:[#allocation2 + $0xa60] sm:$0xf]
        %v4840 = vld [vmem:[#allocation2 + $0xa64] sm:$0xf]
        %v4841 = vld [vmem:[#allocation2 + $0xa68] sm:$0xf]
        %v4842 = vld [vmem:[#allocation2 + $0xa6c] sm:$0xf]
        %v4843 = vld [vmem:[#allocation2 + $0xa70] sm:$0xf]
        %v4844 = vld [vmem:[#allocation2 + $0xa74] sm:$0xf]
        %v4845 = vld [vmem:[#allocation2 + $0xa78] sm:$0xf]
        %v4846 = vld [vmem:[#allocation2 + $0xa7c] sm:$0xf]
        %v4847 = vld [vmem:[#allocation2 + $0xa80] sm:$0xf]
        %v4848 = vld [vmem:[#allocation2 + $0xa84] sm:$0xf]
        %v4849 = vld [vmem:[#allocation2 + $0xa88] sm:$0xf]
        %v4850 = vld [vmem:[#allocation2 + $0xa8c] sm:$0xf]
        %v4851 = vld [vmem:[#allocation2 + $0xa90] sm:$0xf]
        %v4852 = vld [vmem:[#allocation2 + $0xa94] sm:$0xf]
        %v4853 = vld [vmem:[#allocation2 + $0xa98] sm:$0xf]
        %v4854 = vld [vmem:[#allocation2 + $0xa9c] sm:$0xf]
        %v4855 = vld [vmem:[#allocation2 + $0xaa0] sm:$0xf]
        %v4856 = vld [vmem:[#allocation2 + $0xaa4] sm:$0xf]
        %v4857 = vld [vmem:[#allocation2 + $0xaa8] sm:$0xf]
        %v4858 = vld [vmem:[#allocation2 + $0xaac] sm:$0xf]
        %v4859 = vld [vmem:[#allocation2 + $0xab0] sm:$0xf]
        %v4860 = vld [vmem:[#allocation2 + $0xab4] sm:$0xf]
        %v4861 = vld [vmem:[#allocation2 + $0xab8] sm:$0xf]
        %v4862 = vld [vmem:[#allocation2 + $0xabc] sm:$0xf]
        %v4863 = vld [vmem:[#allocation2 + $0xac0] sm:$0xf]
        %v4864 = vld [vmem:[#allocation2 + $0xac4] sm:$0xf]
        %v4865 = vld [vmem:[#allocation2 + $0xac8] sm:$0xf]
        %v4866 = vld [vmem:[#allocation2 + $0xacc] sm:$0xf]
        %v4867 = vld [vmem:[#allocation2 + $0xad0] sm:$0xf]
        %v4868 = vld [vmem:[#allocation2 + $0xad4] sm:$0xf]
        %v4869 = vld [vmem:[#allocation2 + $0xad8] sm:$0xf]
        %v4870 = vld [vmem:[#allocation2 + $0xadc] sm:$0xf]
        %v4871 = vld [vmem:[#allocation2 + $0xae0] sm:$0xf]
        %v4872 = vld [vmem:[#allocation2 + $0xae4] sm:$0xf]
        %v4873 = vld [vmem:[#allocation2 + $0xae8] sm:$0xf]
        %v4874 = vld [vmem:[#allocation2 + $0xaec] sm:$0xf]
        %v4875 = vld [vmem:[#allocation2 + $0xaf0] sm:$0xf]
        %v4876 = vld [vmem:[#allocation2 + $0xaf4] sm:$0xf]
        %v4877 = vld [vmem:[#allocation2 + $0xaf8] sm:$0xf]
        %v4878 = vld [vmem:[#allocation2 + $0xafc] sm:$0xf]
        %v4879 = vld [vmem:[#allocation2 + $0xb00] sm:$0xf]
        %v4880 = vld [vmem:[#allocation2 + $0xb04] sm:$0xf]
        %v4881 = vld [vmem:[#allocation2 + $0xb08] sm:$0xf]
        %v4882 = vld [vmem:[#allocation2 + $0xb0c] sm:$0xf]
        %v4883 = vld [vmem:[#allocation2 + $0xb10] sm:$0xf]
        %v4884 = vld [vmem:[#allocation2 + $0xb14] sm:$0xf]
        %v4885 = vld [vmem:[#allocation2 + $0xb18] sm:$0xf]
        %v4886 = vld [vmem:[#allocation2 + $0xb1c] sm:$0xf]
        %v4887 = vld [vmem:[#allocation2 + $0xb20] sm:$0xf]
        %v4888 = vld [vmem:[#allocation2 + $0xb24] sm:$0xf]
        %v4889 = vld [vmem:[#allocation2 + $0xb28] sm:$0xf]
        %v4890 = vld [vmem:[#allocation2 + $0xb2c] sm:$0xf]
        %v4891 = vld [vmem:[#allocation2 + $0xb30] sm:$0xf]
        %v4892 = vld [vmem:[#allocation2 + $0xb34] sm:$0xf]
        %v4893 = vld [vmem:[#allocation2 + $0xb38] sm:$0xf]
        %v4894 = vld [vmem:[#allocation2 + $0xb3c] sm:$0xf]
        %v4895 = vld [vmem:[#allocation2 + $0xb40] sm:$0xf]
        %v4896 = vld [vmem:[#allocation2 + $0xb44] sm:$0xf]
        %v4897 = vld [vmem:[#allocation2 + $0xb48] sm:$0xf]
        %v4898 = vld [vmem:[#allocation2 + $0xb4c] sm:$0xf]
        %v4899 = vld [vmem:[#allocation2 + $0xb50] sm:$0xf]
        %v4900 = vld [vmem:[#allocation2 + $0xb54] sm:$0xf]
        %v4901 = vld [vmem:[#allocation2 + $0xb58] sm:$0xf]
        %v4902 = vld [vmem:[#allocation2 + $0xb5c] sm:$0xf]
        %v4903 = vld [vmem:[#allocation2 + $0xb60] sm:$0xf]
        %v4904 = vld [vmem:[#allocation2 + $0xb64] sm:$0xf]
        %v4905 = vld [vmem:[#allocation2 + $0xb68] sm:$0xf]
        %v4906 = vld [vmem:[#allocation2 + $0xb6c] sm:$0xf]
        %v4907 = vld [vmem:[#allocation2 + $0xb70] sm:$0xf]
        %v4908 = vld [vmem:[#allocation2 + $0xb74] sm:$0xf]
        %v4909 = vld [vmem:[#allocation2 + $0xb78] sm:$0xf]
        %v4910 = vld [vmem:[#allocation2 + $0xb7c] sm:$0xf]
        %v4911 = vld [vmem:[#allocation2 + $0xb80] sm:$0xf]
        %v4912 = vld [vmem:[#allocation2 + $0xb84] sm:$0xf]
        %v4913 = vld [vmem:[#allocation2 + $0xb88] sm:$0xf]
        %v4914 = vld [vmem:[#allocation2 + $0xb8c] sm:$0xf]
        %v4915 = vld [vmem:[#allocation2 + $0xb90] sm:$0xf]
        %v4916 = vld [vmem:[#allocation2 + $0xb94] sm:$0xf]
        %v4917 = vld [vmem:[#allocation2 + $0xb98] sm:$0xf]
        %v4918 = vld [vmem:[#allocation2 + $0xb9c] sm:$0xf]
        %v4919 = vld [vmem:[#allocation2 + $0xba0] sm:$0xf]
        %v4920 = vld [vmem:[#allocation2 + $0xba4] sm:$0xf]
        %v4921 = vld [vmem:[#allocation2 + $0xba8] sm:$0xf]
        %v4922 = vld [vmem:[#allocation2 + $0xbac] sm:$0xf]
        %v4923 = vld [vmem:[#allocation2 + $0xbb0] sm:$0xf]
        %v4924 = vld [vmem:[#allocation2 + $0xbb4] sm:$0xf]
        %v4925 = vld [vmem:[#allocation2 + $0xbb8] sm:$0xf]
        %v4926 = vld [vmem:[#allocation2 + $0xbbc] sm:$0xf]
        %v4927 = vld [vmem:[#allocation2 + $0xbc0] sm:$0xf]
        %v4928 = vld [vmem:[#allocation2 + $0xbc4] sm:$0xf]
        %v4929 = vld [vmem:[#allocation2 + $0xbc8] sm:$0xf]
        %v4930 = vld [vmem:[#allocation2 + $0xbcc] sm:$0xf]
        %v4931 = vld [vmem:[#allocation2 + $0xbd0] sm:$0xf]
        %v4932 = vld [vmem:[#allocation2 + $0xbd4] sm:$0xf]
        %v4933 = vld [vmem:[#allocation2 + $0xbd8] sm:$0xf]
        %v4934 = vld [vmem:[#allocation2 + $0xbdc] sm:$0xf]
        %v4935 = vld [vmem:[#allocation2 + $0xbe0] sm:$0xf]
        %v4936 = vld [vmem:[#allocation2 + $0xbe4] sm:$0xf]
        %v4937 = vld [vmem:[#allocation2 + $0xbe8] sm:$0xf]
        %v4938 = vld [vmem:[#allocation2 + $0xbec] sm:$0xf]
        %v4939 = vld [vmem:[#allocation2 + $0xbf0] sm:$0xf]
        %v4940 = vld [vmem:[#allocation2 + $0xbf4] sm:$0xf]
        %v4941 = vld [vmem:[#allocation2 + $0xbf8] sm:$0xf]
        %v4942 = vld [vmem:[#allocation2 + $0xbfc] sm:$0xf]
        %v4943 = vld [vmem:[#allocation2 + $0xc00] sm:$0xf]
        %v4944 = vld [vmem:[#allocation2 + $0xc04] sm:$0xf]
        %v4945 = vld [vmem:[#allocation2 + $0xc08] sm:$0xf]
        %v4946 = vld [vmem:[#allocation2 + $0xc0c] sm:$0xf]
        %v4947 = vld [vmem:[#allocation2 + $0xc10] sm:$0xf]
        %v4948 = vld [vmem:[#allocation2 + $0xc14] sm:$0xf]
        %v4949 = vld [vmem:[#allocation2 + $0xc18] sm:$0xf]
        %v4950 = vld [vmem:[#allocation2 + $0xc1c] sm:$0xf]
        %v4951 = vld [vmem:[#allocation2 + $0xc20] sm:$0xf]
        %v4952 = vld [vmem:[#allocation2 + $0xc24] sm:$0xf]
        %v4953 = vld [vmem:[#allocation2 + $0xc28] sm:$0xf]
        %v4954 = vld [vmem:[#allocation2 + $0xc2c] sm:$0xf]
        %v4955 = vld [vmem:[#allocation2 + $0xc30] sm:$0xf]
        %v4956 = vld [vmem:[#allocation2 + $0xc34] sm:$0xf]
        %v4957 = vld [vmem:[#allocation2 + $0xc38] sm:$0xf]
        %v4958 = vld [vmem:[#allocation2 + $0xc3c] sm:$0xf]
        %v4959 = vld [vmem:[#allocation2 + $0xc40] sm:$0xf]
        %v4960 = vld [vmem:[#allocation2 + $0xc44] sm:$0xf]
        %v4961 = vld [vmem:[#allocation2 + $0xc48] sm:$0xf]
        %v4962 = vld [vmem:[#allocation2 + $0xc4c] sm:$0xf]
        %v4963 = vld [vmem:[#allocation2 + $0xc50] sm:$0xf]
        %v4964 = vld [vmem:[#allocation2 + $0xc54] sm:$0xf]
        %v4965 = vld [vmem:[#allocation2 + $0xc58] sm:$0xf]
        %v4966 = vld [vmem:[#allocation2 + $0xc5c] sm:$0xf]
        %v4967 = vld [vmem:[#allocation2 + $0xc60] sm:$0xf]
        %v4968 = vld [vmem:[#allocation2 + $0xc64] sm:$0xf]
        %v4969 = vld [vmem:[#allocation2 + $0xc68] sm:$0xf]
        %v4970 = vld [vmem:[#allocation2 + $0xc6c] sm:$0xf]
        %v4971 = vld [vmem:[#allocation2 + $0xc70] sm:$0xf]
        %v4972 = vld [vmem:[#allocation2 + $0xc74] sm:$0xf]
        %v4973 = vld [vmem:[#allocation2 + $0xc78] sm:$0xf]
        %v4974 = vld [vmem:[#allocation2 + $0xc7c] sm:$0xf]
        %v4975 = vld [vmem:[#allocation2 + $0xc80] sm:$0xf]
        %v4976 = vld [vmem:[#allocation2 + $0xc84] sm:$0xf]
        %v4977 = vld [vmem:[#allocation2 + $0xc88] sm:$0xf]
        %v4978 = vld [vmem:[#allocation2 + $0xc8c] sm:$0xf]
        %v4979 = vld [vmem:[#allocation2 + $0xc90] sm:$0xf]
        %v4980 = vld [vmem:[#allocation2 + $0xc94] sm:$0xf]
        %v4981 = vld [vmem:[#allocation2 + $0xc98] sm:$0xf]
        %v4982 = vld [vmem:[#allocation2 + $0xc9c] sm:$0xf]
        %v4983 = vld [vmem:[#allocation2 + $0xca0] sm:$0xf]
        %v4984 = vld [vmem:[#allocation2 + $0xca4] sm:$0xf]
        %v4985 = vld [vmem:[#allocation2 + $0xca8] sm:$0xf]
        %v4986 = vld [vmem:[#allocation2 + $0xcac] sm:$0xf]
        %v4987 = vld [vmem:[#allocation2 + $0xcb0] sm:$0xf]
        %v4988 = vld [vmem:[#allocation2 + $0xcb4] sm:$0xf]
        %v4989 = vld [vmem:[#allocation2 + $0xcb8] sm:$0xf]
        %v4990 = vld [vmem:[#allocation2 + $0xcbc] sm:$0xf]
        %v4991 = vld [vmem:[#allocation2 + $0xcc0] sm:$0xf]
        %v4992 = vld [vmem:[#allocation2 + $0xcc4] sm:$0xf]
        %v4993 = vld [vmem:[#allocation2 + $0xcc8] sm:$0xf]
        %v4994 = vld [vmem:[#allocation2 + $0xccc] sm:$0xf]
        %v4995 = vld [vmem:[#allocation2 + $0xcd0] sm:$0xf]
        %v4996 = vld [vmem:[#allocation2 + $0xcd4] sm:$0xf]
        %v4997 = vld [vmem:[#allocation2 + $0xcd8] sm:$0xf]
        %v4998 = vld [vmem:[#allocation2 + $0xcdc] sm:$0xf]
        %v4999 = vld [vmem:[#allocation2 + $0xce0] sm:$0xf]
        %v5000 = vld [vmem:[#allocation2 + $0xce4] sm:$0xf]
        %v5001 = vld [vmem:[#allocation2 + $0xce8] sm:$0xf]
        %v5002 = vld [vmem:[#allocation2 + $0xcec] sm:$0xf]
        %v5003 = vld [vmem:[#allocation2 + $0xcf0] sm:$0xf]
        %v5004 = vld [vmem:[#allocation2 + $0xcf4] sm:$0xf]
        %v5005 = vld [vmem:[#allocation2 + $0xcf8] sm:$0xf]
        %v5006 = vld [vmem:[#allocation2 + $0xcfc] sm:$0xf]
        %v5007 = vld [vmem:[#allocation2 + $0xd00] sm:$0xf]
        %v5008 = vld [vmem:[#allocation2 + $0xd04] sm:$0xf]
        %v5009 = vld [vmem:[#allocation2 + $0xd08] sm:$0xf]
        %v5010 = vld [vmem:[#allocation2 + $0xd0c] sm:$0xf]
        %v5011 = vld [vmem:[#allocation2 + $0xd10] sm:$0xf]
        %v5012 = vld [vmem:[#allocation2 + $0xd14] sm:$0xf]
        %v5013 = vld [vmem:[#allocation2 + $0xd18] sm:$0xf]
        %v5014 = vld [vmem:[#allocation2 + $0xd1c] sm:$0xf]
        %v5015 = vld [vmem:[#allocation2 + $0xd20] sm:$0xf]
        %v5016 = vld [vmem:[#allocation2 + $0xd24] sm:$0xf]
        %v5017 = vld [vmem:[#allocation2 + $0xd28] sm:$0xf]
        %v5018 = vld [vmem:[#allocation2 + $0xd2c] sm:$0xf]
        %v5019 = vld [vmem:[#allocation2 + $0xd30] sm:$0xf]
        %v5020 = vld [vmem:[#allocation2 + $0xd34] sm:$0xf]
        %v5021 = vld [vmem:[#allocation2 + $0xd38] sm:$0xf]
        %v5022 = vld [vmem:[#allocation2 + $0xd3c] sm:$0xf]
        %v5023 = vld [vmem:[#allocation2 + $0xd40] sm:$0xf]
        %v5024 = vld [vmem:[#allocation2 + $0xd44] sm:$0xf]
        %v5025 = vld [vmem:[#allocation2 + $0xd48] sm:$0xf]
        %v5026 = vld [vmem:[#allocation2 + $0xd4c] sm:$0xf]
        %v5027 = vld [vmem:[#allocation2 + $0xd50] sm:$0xf]
        %v5028 = vld [vmem:[#allocation2 + $0xd54] sm:$0xf]
        %v5029 = vld [vmem:[#allocation2 + $0xd58] sm:$0xf]
        %v5030 = vld [vmem:[#allocation2 + $0xd5c] sm:$0xf]
        %v5031 = vld [vmem:[#allocation2 + $0xd60] sm:$0xf]
        %v5032 = vld [vmem:[#allocation2 + $0xd64] sm:$0xf]
        %v5033 = vld [vmem:[#allocation2 + $0xd68] sm:$0xf]
        %v5034 = vld [vmem:[#allocation2 + $0xd6c] sm:$0xf]
        %v5035 = vld [vmem:[#allocation2 + $0xd70] sm:$0xf]
        %v5036 = vld [vmem:[#allocation2 + $0xd74] sm:$0xf]
        %v5037 = vld [vmem:[#allocation2 + $0xd78] sm:$0xf]
        %v5038 = vld [vmem:[#allocation2 + $0xd7c] sm:$0xf]
        %v5039 = vld [vmem:[#allocation2 + $0xd80] sm:$0xf]
        %v5040 = vld [vmem:[#allocation2 + $0xd84] sm:$0xf]
        %v5041 = vld [vmem:[#allocation2 + $0xd88] sm:$0xf]
        %v5042 = vld [vmem:[#allocation2 + $0xd8c] sm:$0xf]
        %v5043 = vld [vmem:[#allocation2 + $0xd90] sm:$0xf]
        %v5044 = vld [vmem:[#allocation2 + $0xd94] sm:$0xf]
        %v5045 = vld [vmem:[#allocation2 + $0xd98] sm:$0xf]
        %v5046 = vld [vmem:[#allocation2 + $0xd9c] sm:$0xf]
        %v5047 = vld [vmem:[#allocation2 + $0xda0] sm:$0xf]
        %v5048 = vld [vmem:[#allocation2 + $0xda4] sm:$0xf]
        %v5049 = vld [vmem:[#allocation2 + $0xda8] sm:$0xf]
        %v5050 = vld [vmem:[#allocation2 + $0xdac] sm:$0xf]
        %v5051 = vld [vmem:[#allocation2 + $0xdb0] sm:$0xf]
        %v5052 = vld [vmem:[#allocation2 + $0xdb4] sm:$0xf]
        %v5053 = vld [vmem:[#allocation2 + $0xdb8] sm:$0xf]
        %v5054 = vld [vmem:[#allocation2 + $0xdbc] sm:$0xf]
        %v5055 = vld [vmem:[#allocation2 + $0xdc0] sm:$0xf]
        %v5056 = vld [vmem:[#allocation2 + $0xdc4] sm:$0xf]
        %v5057 = vld [vmem:[#allocation2 + $0xdc8] sm:$0xf]
        %v5058 = vld [vmem:[#allocation2 + $0xdcc] sm:$0xf]
        %v5059 = vld [vmem:[#allocation2 + $0xdd0] sm:$0xf]
        %v5060 = vld [vmem:[#allocation2 + $0xdd4] sm:$0xf]
        %v5061 = vld [vmem:[#allocation2 + $0xdd8] sm:$0xf]
        %v5062 = vld [vmem:[#allocation2 + $0xddc] sm:$0xf]
        %v5063 = vld [vmem:[#allocation2 + $0xde0] sm:$0xf]
        %v5064 = vld [vmem:[#allocation2 + $0xde4] sm:$0xf]
        %v5065 = vld [vmem:[#allocation2 + $0xde8] sm:$0xf]
        %v5066 = vld [vmem:[#allocation2 + $0xdec] sm:$0xf]
        %v5067 = vld [vmem:[#allocation2 + $0xdf0] sm:$0xf]
        %v5068 = vld [vmem:[#allocation2 + $0xdf4] sm:$0xf]
        %v5069 = vld [vmem:[#allocation2 + $0xdf8] sm:$0xf]
        %v5070 = vld [vmem:[#allocation2 + $0xdfc] sm:$0xf]
        %v5071 = vld [vmem:[#allocation2 + $0xe00] sm:$0xf]
        %v5072 = vld [vmem:[#allocation2 + $0xe04] sm:$0xf]
        %v5073 = vld [vmem:[#allocation2 + $0xe08] sm:$0xf]
        %v5074 = vld [vmem:[#allocation2 + $0xe0c] sm:$0xf]
        %v5075 = vld [vmem:[#allocation2 + $0xe10] sm:$0xf]
        %v5076 = vld [vmem:[#allocation2 + $0xe14] sm:$0xf]
        %v5077 = vld [vmem:[#allocation2 + $0xe18] sm:$0xf]
        %v5078 = vld [vmem:[#allocation2 + $0xe1c] sm:$0xf]
        %v5079 = vld [vmem:[#allocation2 + $0xe20] sm:$0xf]
        %v5080 = vld [vmem:[#allocation2 + $0xe24] sm:$0xf]
        %v5081 = vld [vmem:[#allocation2 + $0xe28] sm:$0xf]
        %v5082 = vld [vmem:[#allocation2 + $0xe2c] sm:$0xf]
        %v5083 = vld [vmem:[#allocation2 + $0xe30] sm:$0xf]
        %v5084 = vld [vmem:[#allocation2 + $0xe34] sm:$0xf]
        %v5085 = vld [vmem:[#allocation2 + $0xe38] sm:$0xf]
        %v5086 = vld [vmem:[#allocation2 + $0xe3c] sm:$0xf]
        %v5087 = vld [vmem:[#allocation2 + $0xe40] sm:$0xf]
        %v5088 = vld [vmem:[#allocation2 + $0xe44] sm:$0xf]
        %v5089 = vld [vmem:[#allocation2 + $0xe48] sm:$0xf]
        %v5090 = vld [vmem:[#allocation2 + $0xe4c] sm:$0xf]
        %v5091 = vld [vmem:[#allocation2 + $0xe50] sm:$0xf]
        %v5092 = vld [vmem:[#allocation2 + $0xe54] sm:$0xf]
        %v5093 = vld [vmem:[#allocation2 + $0xe58] sm:$0xf]
        %v5094 = vld [vmem:[#allocation2 + $0xe5c] sm:$0xf]
        %v5095 = vld [vmem:[#allocation2 + $0xe60] sm:$0xf]
        %v5096 = vld [vmem:[#allocation2 + $0xe64] sm:$0xf]
        %v5097 = vld [vmem:[#allocation2 + $0xe68] sm:$0xf]
        %v5098 = vld [vmem:[#allocation2 + $0xe6c] sm:$0xf]
        %v5099 = vld [vmem:[#allocation2 + $0xe70] sm:$0xf]
        %v5100 = vld [vmem:[#allocation2 + $0xe74] sm:$0xf]
        %v5101 = vld [vmem:[#allocation2 + $0xe78] sm:$0xf]
        %v5102 = vld [vmem:[#allocation2 + $0xe7c] sm:$0xf]
        %v5103 = vld [vmem:[#allocation2 + $0xe80] sm:$0xf]
        %v5104 = vld [vmem:[#allocation2 + $0xe84] sm:$0xf]
        %v5105 = vld [vmem:[#allocation2 + $0xe88] sm:$0xf]
        %v5106 = vld [vmem:[#allocation2 + $0xe8c] sm:$0xf]
        %v5107 = vld [vmem:[#allocation2 + $0xe90] sm:$0xf]
        %v5108 = vld [vmem:[#allocation2 + $0xe94] sm:$0xf]
        %v5109 = vld [vmem:[#allocation2 + $0xe98] sm:$0xf]
        %v5110 = vld [vmem:[#allocation2 + $0xe9c] sm:$0xf]
        %v5111 = vld [vmem:[#allocation2 + $0xea0] sm:$0xf]
        %v5112 = vld [vmem:[#allocation2 + $0xea4] sm:$0xf]
        %v5113 = vld [vmem:[#allocation2 + $0xea8] sm:$0xf]
        %v5114 = vld [vmem:[#allocation2 + $0xeac] sm:$0xf]
        %v5115 = vld [vmem:[#allocation2 + $0xeb0] sm:$0xf]
        %v5116 = vld [vmem:[#allocation2 + $0xeb4] sm:$0xf]
        %v5117 = vld [vmem:[#allocation2 + $0xeb8] sm:$0xf]
        %v5118 = vld [vmem:[#allocation2 + $0xebc] sm:$0xf]
        %v5119 = vld [vmem:[#allocation2 + $0xec0] sm:$0xf]
        %v5120 = vld [vmem:[#allocation2 + $0xec4] sm:$0xf]
        %v5121 = vld [vmem:[#allocation2 + $0xec8] sm:$0xf]
        %v5122 = vld [vmem:[#allocation2 + $0xecc] sm:$0xf]
        %v5123 = vld [vmem:[#allocation2 + $0xed0] sm:$0xf]
        %v5124 = vld [vmem:[#allocation2 + $0xed4] sm:$0xf]
        %v5125 = vld [vmem:[#allocation2 + $0xed8] sm:$0xf]
        %v5126 = vld [vmem:[#allocation2 + $0xedc] sm:$0xf]
        %v5127 = vld [vmem:[#allocation2 + $0xee0] sm:$0xf]
        %v5128 = vld [vmem:[#allocation2 + $0xee4] sm:$0xf]
        %v5129 = vld [vmem:[#allocation2 + $0xee8] sm:$0xf]
        %v5130 = vld [vmem:[#allocation2 + $0xeec] sm:$0xf]
        %v5131 = vld [vmem:[#allocation2 + $0xef0] sm:$0xf]
        %v5132 = vld [vmem:[#allocation2 + $0xef4] sm:$0xf]
        %v5133 = vld [vmem:[#allocation2 + $0xef8] sm:$0xf]
        %v5134 = vld [vmem:[#allocation2 + $0xefc] sm:$0xf]
        %v5135 = vld [vmem:[#allocation2 + $0xf00] sm:$0xf]
        %v5136 = vld [vmem:[#allocation2 + $0xf04] sm:$0xf]
        %v5137 = vld [vmem:[#allocation2 + $0xf08] sm:$0xf]
        %v5138 = vld [vmem:[#allocation2 + $0xf0c] sm:$0xf]
        %v5139 = vld [vmem:[#allocation2 + $0xf10] sm:$0xf]
        %v5140 = vld [vmem:[#allocation2 + $0xf14] sm:$0xf]
        %v5141 = vld [vmem:[#allocation2 + $0xf18] sm:$0xf]
        %v5142 = vld [vmem:[#allocation2 + $0xf1c] sm:$0xf]
        %v5143 = vld [vmem:[#allocation2 + $0xf20] sm:$0xf]
        %v5144 = vld [vmem:[#allocation2 + $0xf24] sm:$0xf]
        %v5145 = vld [vmem:[#allocation2 + $0xf28] sm:$0xf]
        %v5146 = vld [vmem:[#allocation2 + $0xf2c] sm:$0xf]
        %v5147 = vld [vmem:[#allocation2 + $0xf30] sm:$0xf]
        %v5148 = vld [vmem:[#allocation2 + $0xf34] sm:$0xf]
        %v5149 = vld [vmem:[#allocation2 + $0xf38] sm:$0xf]
        %v5150 = vld [vmem:[#allocation2 + $0xf3c] sm:$0xf]
        %v5151 = vld [vmem:[#allocation2 + $0xf40] sm:$0xf]
        %v5152 = vld [vmem:[#allocation2 + $0xf44] sm:$0xf]
        %v5153 = vld [vmem:[#allocation2 + $0xf48] sm:$0xf]
        %v5154 = vld [vmem:[#allocation2 + $0xf4c] sm:$0xf]
        %v5155 = vld [vmem:[#allocation2 + $0xf50] sm:$0xf]
        %v5156 = vld [vmem:[#allocation2 + $0xf54] sm:$0xf]
        %v5157 = vld [vmem:[#allocation2 + $0xf58] sm:$0xf]
        %v5158 = vld [vmem:[#allocation2 + $0xf5c] sm:$0xf]
        %v5159 = vld [vmem:[#allocation2 + $0xf60] sm:$0xf]
        %v5160 = vld [vmem:[#allocation2 + $0xf64] sm:$0xf]
        %v5161 = vld [vmem:[#allocation2 + $0xf68] sm:$0xf]
        %v5162 = vld [vmem:[#allocation2 + $0xf6c] sm:$0xf]
        %v5163 = vld [vmem:[#allocation2 + $0xf70] sm:$0xf]
        %v5164 = vld [vmem:[#allocation2 + $0xf74] sm:$0xf]
        %v5165 = vld [vmem:[#allocation2 + $0xf78] sm:$0xf]
        %v5166 = vld [vmem:[#allocation2 + $0xf7c] sm:$0xf]
        %v5167 = vld [vmem:[#allocation2 + $0xf80] sm:$0xf]
        %v5168 = vld [vmem:[#allocation2 + $0xf84] sm:$0xf]
        %v5169 = vld [vmem:[#allocation2 + $0xf88] sm:$0xf]
        %v5170 = vld [vmem:[#allocation2 + $0xf8c] sm:$0xf]
        %v5171 = vld [vmem:[#allocation2 + $0xf90] sm:$0xf]
        %v5172 = vld [vmem:[#allocation2 + $0xf94] sm:$0xf]
        %v5173 = vld [vmem:[#allocation2 + $0xf98] sm:$0xf]
        %v5174 = vld [vmem:[#allocation2 + $0xf9c] sm:$0xf]
        %v5175 = vld [vmem:[#allocation2 + $0xfa0] sm:$0xf]
        %v5176 = vld [vmem:[#allocation2 + $0xfa4] sm:$0xf]
        %v5177 = vld [vmem:[#allocation2 + $0xfa8] sm:$0xf]
        %v5178 = vld [vmem:[#allocation2 + $0xfac] sm:$0xf]
        %v5179 = vld [vmem:[#allocation2 + $0xfb0] sm:$0xf]
        %v5180 = vld [vmem:[#allocation2 + $0xfb4] sm:$0xf]
        %v5181 = vld [vmem:[#allocation2 + $0xfb8] sm:$0xf]
        %v5182 = vld [vmem:[#allocation2 + $0xfbc] sm:$0xf]
        %v5183 = vld [vmem:[#allocation2 + $0xfc0] sm:$0xf]
        %v5184 = vld [vmem:[#allocation2 + $0xfc4] sm:$0xf]
        %v5185 = vld [vmem:[#allocation2 + $0xfc8] sm:$0xf]
        %v5186 = vld [vmem:[#allocation2 + $0xfcc] sm:$0xf]
        %v5187 = vld [vmem:[#allocation2 + $0xfd0] sm:$0xf]
        %v5188 = vld [vmem:[#allocation2 + $0xfd4] sm:$0xf]
        %v5189 = vld [vmem:[#allocation2 + $0xfd8] sm:$0xf]
        %v5190 = vld [vmem:[#allocation2 + $0xfdc] sm:$0xf]
        %v5191 = vld [vmem:[#allocation2 + $0xfe0] sm:$0xf]
        %v5192 = vld [vmem:[#allocation2 + $0xfe4] sm:$0xf]
        %v5193 = vld [vmem:[#allocation2 + $0xfe8] sm:$0xf]
        %v5194 = vld [vmem:[#allocation2 + $0xfec] sm:$0xf]
        %v5195 = vld [vmem:[#allocation2 + $0xff0] sm:$0xf]
        %v5196 = vld [vmem:[#allocation2 + $0xff4] sm:$0xf]
        %v5197 = vld [vmem:[#allocation2 + $0xff8] sm:$0xf]
        %v5198 = vld [vmem:[#allocation2 + $0xffc] sm:$0xf]
        %v5231 = vunpack.c.l.b16 %v4175
        %v5232 = vunpack.c.l.b16 %v4176
        %v5233 = vunpack.c.l.b16 %v4177
        %v5234 = vunpack.c.l.b16 %v4178
        %v5235 = vunpack.c.l.b16 %v4179
        %v5236 = vunpack.c.l.b16 %v4180
        %v5237 = vunpack.c.l.b16 %v4181
        %v5238 = vunpack.c.l.b16 %v4182
        %v5239 = vunpack.c.l.b16 %v4183
        %v5240 = vunpack.c.l.b16 %v4184
        %v5241 = vunpack.c.l.b16 %v4185
        %v5242 = vunpack.c.l.b16 %v4186
        %v5243 = vunpack.c.l.b16 %v4187
        %v5244 = vunpack.c.l.b16 %v4188
        %v5245 = vunpack.c.l.b16 %v4189
        %v5246 = vunpack.c.l.b16 %v4190
        %v5247 = vunpack.c.l.b16 %v4191
        %v5248 = vunpack.c.l.b16 %v4192
        %v5249 = vunpack.c.l.b16 %v4193
        %v5250 = vunpack.c.l.b16 %v4194
        %v5251 = vunpack.c.l.b16 %v4195
        %v5252 = vunpack.c.l.b16 %v4196
        %v5253 = vunpack.c.l.b16 %v4197
        %v5254 = vunpack.c.l.b16 %v4198
        %v5255 = vunpack.c.l.b16 %v4199
        %v5256 = vunpack.c.l.b16 %v4200
        %v5257 = vunpack.c.l.b16 %v4201
        %v5258 = vunpack.c.l.b16 %v4202
        %v5259 = vunpack.c.l.b16 %v4203
        %v5260 = vunpack.c.l.b16 %v4204
        %v5261 = vunpack.c.l.b16 %v4205
        %v5262 = vunpack.c.l.b16 %v4206
        %v5263 = vpack.c.b16 %v5232, %v5231
        %v5264 = vpack.c.b16 %v5234, %v5233
        %v5265 = vpack.c.b16 %v5236, %v5235
        %v5266 = vpack.c.b16 %v5238, %v5237
        %v5267 = vpack.c.b16 %v5240, %v5239
        %v5268 = vpack.c.b16 %v5242, %v5241
        %v5269 = vpack.c.b16 %v5244, %v5243
        %v5270 = vpack.c.b16 %v5246, %v5245
        %v5271 = vpack.c.b16 %v5248, %v5247
        %v5272 = vpack.c.b16 %v5250, %v5249
        %v5273 = vpack.c.b16 %v5252, %v5251
        %v5274 = vpack.c.b16 %v5254, %v5253
        %v5275 = vpack.c.b16 %v5256, %v5255
        %v5276 = vpack.c.b16 %v5258, %v5257
        %v5277 = vpack.c.b16 %v5260, %v5259
        %v5278 = vpack.c.b16 %v5262, %v5261
        %5295 = vmatprep.subr.bf16.mxu0 0
        %5296 = vmatpush1.bf16.msra.mxu0 %v5263
        %5297 = vmatprep.subr.bf16.mxu0 0
        %5298 = vmatpush1.bf16.msra.mxu0 %v5264
        %5299 = vmatprep.subr.bf16.mxu0 0
        %5300 = vmatpush1.bf16.msra.mxu0 %v5265
        %5301 = vmatprep.subr.bf16.mxu0 0
        %5302 = vmatpush1.bf16.msra.mxu0 %v5266
        %5303 = vmatprep.subr.bf16.mxu0 0
        %5304 = vmatpush1.bf16.msra.mxu0 %v5267
        %5305 = vmatprep.subr.bf16.mxu0 0
        %5306 = vmatpush1.bf16.msra.mxu0 %v5268
        %5307 = vmatprep.subr.bf16.mxu0 0
        %5308 = vmatpush1.bf16.msra.mxu0 %v5269
        %5309 = vmatprep.subr.bf16.mxu0 0
        %5310 = vmatpush1.bf16.msra.mxu0 %v5270
        %5311 = vmatprep.subr.bf16.mxu0 0
        %5312 = vmatpush1.bf16.msra.mxu0 %v5271
        %5313 = vmatprep.subr.bf16.mxu0 0
        %5314 = vmatpush1.bf16.msra.mxu0 %v5272
        %5315 = vmatprep.subr.bf16.mxu0 0
        %5316 = vmatpush1.bf16.msra.mxu0 %v5273
        %5317 = vmatprep.subr.bf16.mxu0 0
        %5318 = vmatpush1.bf16.msra.mxu0 %v5274
        %5319 = vmatprep.subr.bf16.mxu0 0
        %5320 = vmatpush1.bf16.msra.mxu0 %v5275
        %5321 = vmatprep.subr.bf16.mxu0 0
        %5322 = vmatpush1.bf16.msra.mxu0 %v5276
        %5323 = vmatprep.subr.bf16.mxu0 0
        %5324 = vmatpush1.bf16.msra.mxu0 %v5277
        %5325 = vmatprep.subr.bf16.mxu0 0
        %5326 = vmatpush1.bf16.msra.mxu0 %v5278
        %5327 = vmatprep.mubr.bf16.mxu0 %v4112
        %5328 = vmatmul.mubr.bf16.gmra.mrb[0].mxu0 %v4111
        %v5329 = vpop.f32.mrb[0].mxu0
        %v5330 = vadd.f32 0.0, %v5329
        %v5331 = vpop.f32.mrb[0].mxu0
        %v5332 = vpop.f32.mrb[0].mxu0
        %v5333 = vpop.f32.mrb[0].mxu0
        %5334 = vdwg.mxu0
        %v5367 = vunpack.c.l.b16 %v4207
        %v5368 = vunpack.c.l.b16 %v4208
        %v5369 = vunpack.c.l.b16 %v4209
        %v5370 = vunpack.c.l.b16 %v4210
        %v5371 = vunpack.c.l.b16 %v4211
        %v5372 = vunpack.c.l.b16 %v4212
        %v5373 = vunpack.c.l.b16 %v4213
        %v5374 = vunpack.c.l.b16 %v4214
        %v5375 = vunpack.c.l.b16 %v4215
        %v5376 = vunpack.c.l.b16 %v4216
        %v5377 = vunpack.c.l.b16 %v4217
        %v5378 = vunpack.c.l.b16 %v4218
        %v5379 = vunpack.c.l.b16 %v4219
        %v5380 = vunpack.c.l.b16 %v4220
        %v5381 = vunpack.c.l.b16 %v4221
        %v5382 = vunpack.c.l.b16 %v4222
        %v5383 = vunpack.c.l.b16 %v4223
        %v5384 = vunpack.c.l.b16 %v4224
        %v5385 = vunpack.c.l.b16 %v4225
        %v5386 = vunpack.c.l.b16 %v4226
        %v5387 = vunpack.c.l.b16 %v4227
        %v5388 = vunpack.c.l.b16 %v4228
        %v5389 = vunpack.c.l.b16 %v4229
        %v5390 = vunpack.c.l.b16 %v4230
        %v5391 = vunpack.c.l.b16 %v4231
        %v5392 = vunpack.c.l.b16 %v4232
        %v5393 = vunpack.c.l.b16 %v4233
        %v5394 = vunpack.c.l.b16 %v4234
        %v5395 = vunpack.c.l.b16 %v4235
        %v5396 = vunpack.c.l.b16 %v4236
        %v5397 = vunpack.c.l.b16 %v4237
        %v5398 = vunpack.c.l.b16 %v4238
        %v5399 = vpack.c.b16 %v5368, %v5367
        %v5400 = vpack.c.b16 %v5370, %v5369
        %v5401 = vpack.c.b16 %v5372, %v5371
        %v5402 = vpack.c.b16 %v5374, %v5373
        %v5403 = vpack.c.b16 %v5376, %v5375
        %v5404 = vpack.c.b16 %v5378, %v5377
        %v5405 = vpack.c.b16 %v5380, %v5379
        %v5406 = vpack.c.b16 %v5382, %v5381
        %v5407 = vpack.c.b16 %v5384, %v5383
        %v5408 = vpack.c.b16 %v5386, %v5385
        %v5409 = vpack.c.b16 %v5388, %v5387
        %v5410 = vpack.c.b16 %v5390, %v5389
        %v5411 = vpack.c.b16 %v5392, %v5391
        %v5412 = vpack.c.b16 %v5394, %v5393
        %v5413 = vpack.c.b16 %v5396, %v5395
        %v5414 = vpack.c.b16 %v5398, %v5397
        %5431 = vmatprep.subr.bf16.mxu0 0
        %5432 = vmatpush1.bf16.msra.mxu0 %v5399
        %5433 = vmatprep.subr.bf16.mxu0 0
        %5434 = vmatpush1.bf16.msra.mxu0 %v5400
        %5435 = vmatprep.subr.bf16.mxu0 0
        %5436 = vmatpush1.bf16.msra.mxu0 %v5401
        %5437 = vmatprep.subr.bf16.mxu0 0
        %5438 = vmatpush1.bf16.msra.mxu0 %v5402
        %5439 = vmatprep.subr.bf16.mxu0 0
        %5440 = vmatpush1.bf16.msra.mxu0 %v5403
        %5441 = vmatprep.subr.bf16.mxu0 0
        %5442 = vmatpush1.bf16.msra.mxu0 %v5404
        %5443 = vmatprep.subr.bf16.mxu0 0
        %5444 = vmatpush1.bf16.msra.mxu0 %v5405
        %5445 = vmatprep.subr.bf16.mxu0 0
        %5446 = vmatpush1.bf16.msra.mxu0 %v5406
        %5447 = vmatprep.subr.bf16.mxu0 0
        %5448 = vmatpush1.bf16.msra.mxu0 %v5407
        %5449 = vmatprep.subr.bf16.mxu0 0
        %5450 = vmatpush1.bf16.msra.mxu0 %v5408
        %5451 = vmatprep.subr.bf16.mxu0 0
        %5452 = vmatpush1.bf16.msra.mxu0 %v5409
        %5453 = vmatprep.subr.bf16.mxu0 0
        %5454 = vmatpush1.bf16.msra.mxu0 %v5410
        %5455 = vmatprep.subr.bf16.mxu0 0
        %5456 = vmatpush1.bf16.msra.mxu0 %v5411
        %5457 = vmatprep.subr.bf16.mxu0 0
        %5458 = vmatpush1.bf16.msra.mxu0 %v5412
        %5459 = vmatprep.subr.bf16.mxu0 0
        %5460 = vmatpush1.bf16.msra.mxu0 %v5413
        %5461 = vmatprep.subr.bf16.mxu0 0
        %5462 = vmatpush1.bf16.msra.mxu0 %v5414
        %5463 = vmatprep.mubr.bf16.mxu0 %v4114
        %5464 = vmatmul.mubr.bf16.gmra.mrb[0].mxu0 %v4113
        %v5465 = vpop.f32.mrb[0].mxu0
        %v5466 = vadd.f32 0.0, %v5465
        %v5467 = vpop.f32.mrb[0].mxu0
        %v5468 = vpop.f32.mrb[0].mxu0
        %v5469 = vpop.f32.mrb[0].mxu0
        %5470 = vdwg.mxu0
        %v5503 = vunpack.c.l.b16 %v4239
        %v5504 = vunpack.c.l.b16 %v4240
        %v5505 = vunpack.c.l.b16 %v4241
        %v5506 = vunpack.c.l.b16 %v4242
        %v5507 = vunpack.c.l.b16 %v4243
        %v5508 = vunpack.c.l.b16 %v4244
        %v5509 = vunpack.c.l.b16 %v4245
        %v5510 = vunpack.c.l.b16 %v4246
        %v5511 = vunpack.c.l.b16 %v4247
        %v5512 = vunpack.c.l.b16 %v4248
        %v5513 = vunpack.c.l.b16 %v4249
        %v5514 = vunpack.c.l.b16 %v4250
        %v5515 = vunpack.c.l.b16 %v4251
        %v5516 = vunpack.c.l.b16 %v4252
        %v5517 = vunpack.c.l.b16 %v4253
        %v5518 = vunpack.c.l.b16 %v4254
        %v5519 = vunpack.c.l.b16 %v4255
        %v5520 = vunpack.c.l.b16 %v4256
        %v5521 = vunpack.c.l.b16 %v4257
        %v5522 = vunpack.c.l.b16 %v4258
        %v5523 = vunpack.c.l.b16 %v4259
        %v5524 = vunpack.c.l.b16 %v4260
        %v5525 = vunpack.c.l.b16 %v4261
        %v5526 = vunpack.c.l.b16 %v4262
        %v5527 = vunpack.c.l.b16 %v4263
        %v5528 = vunpack.c.l.b16 %v4264
        %v5529 = vunpack.c.l.b16 %v4265
        %v5530 = vunpack.c.l.b16 %v4266
        %v5531 = vunpack.c.l.b16 %v4267
        %v5532 = vunpack.c.l.b16 %v4268
        %v5533 = vunpack.c.l.b16 %v4269
        %v5534 = vunpack.c.l.b16 %v4270
        %v5535 = vpack.c.b16 %v5504, %v5503
        %v5536 = vpack.c.b16 %v5506, %v5505
        %v5537 = vpack.c.b16 %v5508, %v5507
        %v5538 = vpack.c.b16 %v5510, %v5509
        %v5539 = vpack.c.b16 %v5512, %v5511
        %v5540 = vpack.c.b16 %v5514, %v5513
        %v5541 = vpack.c.b16 %v5516, %v5515
        %v5542 = vpack.c.b16 %v5518, %v5517
        %v5543 = vpack.c.b16 %v5520, %v5519
        %v5544 = vpack.c.b16 %v5522, %v5521
        %v5545 = vpack.c.b16 %v5524, %v5523
        %v5546 = vpack.c.b16 %v5526, %v5525
        %v5547 = vpack.c.b16 %v5528, %v5527
        %v5548 = vpack.c.b16 %v5530, %v5529
        %v5549 = vpack.c.b16 %v5532, %v5531
        %v5550 = vpack.c.b16 %v5534, %v5533
        %5567 = vmatprep.subr.bf16.mxu0 0
        %5568 = vmatpush1.bf16.msra.mxu0 %v5535
        %5569 = vmatprep.subr.bf16.mxu0 0
        %5570 = vmatpush1.bf16.msra.mxu0 %v5536
        %5571 = vmatprep.subr.bf16.mxu0 0
        %5572 = vmatpush1.bf16.msra.mxu0 %v5537
        %5573 = vmatprep.subr.bf16.mxu0 0
        %5574 = vmatpush1.bf16.msra.mxu0 %v5538
        %5575 = vmatprep.subr.bf16.mxu0 0
        %5576 = vmatpush1.bf16.msra.mxu0 %v5539
        %5577 = vmatprep.subr.bf16.mxu0 0
        %5578 = vmatpush1.bf16.msra.mxu0 %v5540
        %5579 = vmatprep.subr.bf16.mxu0 0
        %5580 = vmatpush1.bf16.msra.mxu0 %v5541
        %5581 = vmatprep.subr.bf16.mxu0 0
        %5582 = vmatpush1.bf16.msra.mxu0 %v5542
        %5583 = vmatprep.subr.bf16.mxu0 0
        %5584 = vmatpush1.bf16.msra.mxu0 %v5543
        %5585 = vmatprep.subr.bf16.mxu0 0
        %5586 = vmatpush1.bf16.msra.mxu0 %v5544
        %5587 = vmatprep.subr.bf16.mxu0 0
        %5588 = vmatpush1.bf16.msra.mxu0 %v5545
        %5589 = vmatprep.subr.bf16.mxu0 0
        %5590 = vmatpush1.bf16.msra.mxu0 %v5546
        %5591 = vmatprep.subr.bf16.mxu0 0
        %5592 = vmatpush1.bf16.msra.mxu0 %v5547
        %5593 = vmatprep.subr.bf16.mxu0 0
        %5594 = vmatpush1.bf16.msra.mxu0 %v5548
        %5595 = vmatprep.subr.bf16.mxu0 0
        %5596 = vmatpush1.bf16.msra.mxu0 %v5549
        %5597 = vmatprep.subr.bf16.mxu0 0
        %5598 = vmatpush1.bf16.msra.mxu0 %v5550
        %5599 = vmatprep.mubr.bf16.mxu0 %v4116
        %5600 = vmatmul.mubr.bf16.gmra.mrb[0].mxu0 %v4115
        %v5601 = vpop.f32.mrb[0].mxu0
        %v5602 = vadd.f32 0.0, %v5601
        %v5603 = vpop.f32.mrb[0].mxu0
        %v5604 = vpop.f32.mrb[0].mxu0
        %v5605 = vpop.f32.mrb[0].mxu0
        %5606 = vdwg.mxu0
        %v5639 = vunpack.c.l.b16 %v4271
        %v5640 = vunpack.c.l.b16 %v4272
        %v5641 = vunpack.c.l.b16 %v4273
        %v5642 = vunpack.c.l.b16 %v4274
        %v5643 = vunpack.c.l.b16 %v4275
        %v5644 = vunpack.c.l.b16 %v4276
        %v5645 = vunpack.c.l.b16 %v4277
        %v5646 = vunpack.c.l.b16 %v4278
        %v5647 = vunpack.c.l.b16 %v4279
        %v5648 = vunpack.c.l.b16 %v4280
        %v5649 = vunpack.c.l.b16 %v4281
        %v5650 = vunpack.c.l.b16 %v4282
        %v5651 = vunpack.c.l.b16 %v4283
        %v5652 = vunpack.c.l.b16 %v4284
        %v5653 = vunpack.c.l.b16 %v4285
        %v5654 = vunpack.c.l.b16 %v4286
        %v5655 = vunpack.c.l.b16 %v4287
        %v5656 = vunpack.c.l.b16 %v4288
        %v5657 = vunpack.c.l.b16 %v4289
        %v5658 = vunpack.c.l.b16 %v4290
        %v5659 = vunpack.c.l.b16 %v4291
        %v5660 = vunpack.c.l.b16 %v4292
        %v5661 = vunpack.c.l.b16 %v4293
        %v5662 = vunpack.c.l.b16 %v4294
        %v5663 = vunpack.c.l.b16 %v4295
        %v5664 = vunpack.c.l.b16 %v4296
        %v5665 = vunpack.c.l.b16 %v4297
        %v5666 = vunpack.c.l.b16 %v4298
        %v5667 = vunpack.c.l.b16 %v4299
        %v5668 = vunpack.c.l.b16 %v4300
        %v5669 = vunpack.c.l.b16 %v4301
        %v5670 = vunpack.c.l.b16 %v4302
        %v5671 = vpack.c.b16 %v5640, %v5639
        %v5672 = vpack.c.b16 %v5642, %v5641
        %v5673 = vpack.c.b16 %v5644, %v5643
        %v5674 = vpack.c.b16 %v5646, %v5645
        %v5675 = vpack.c.b16 %v5648, %v5647
        %v5676 = vpack.c.b16 %v5650, %v5649
        %v5677 = vpack.c.b16 %v5652, %v5651
        %v5678 = vpack.c.b16 %v5654, %v5653
        %v5679 = vpack.c.b16 %v5656, %v5655
        %v5680 = vpack.c.b16 %v5658, %v5657
        %v5681 = vpack.c.b16 %v5660, %v5659
        %v5682 = vpack.c.b16 %v5662, %v5661
        %v5683 = vpack.c.b16 %v5664, %v5663
        %v5684 = vpack.c.b16 %v5666, %v5665
        %v5685 = vpack.c.b16 %v5668, %v5667
        %v5686 = vpack.c.b16 %v5670, %v5669
        %5703 = vmatprep.subr.bf16.mxu0 0
        %5704 = vmatpush1.bf16.msra.mxu0 %v5671
        %5705 = vmatprep.subr.bf16.mxu0 0
        %5706 = vmatpush1.bf16.msra.mxu0 %v5672
        %5707 = vmatprep.subr.bf16.mxu0 0
        %5708 = vmatpush1.bf16.msra.mxu0 %v5673
        %5709 = vmatprep.subr.bf16.mxu0 0
        %5710 = vmatpush1.bf16.msra.mxu0 %v5674
        %5711 = vmatprep.subr.bf16.mxu0 0
        %5712 = vmatpush1.bf16.msra.mxu0 %v5675
        %5713 = vmatprep.subr.bf16.mxu0 0
        %5714 = vmatpush1.bf16.msra.mxu0 %v5676
        %5715 = vmatprep.subr.bf16.mxu0 0
        %5716 = vmatpush1.bf16.msra.mxu0 %v5677
        %5717 = vmatprep.subr.bf16.mxu0 0
        %5718 = vmatpush1.bf16.msra.mxu0 %v5678
        %5719 = vmatprep.subr.bf16.mxu0 0
        %5720 = vmatpush1.bf16.msra.mxu0 %v5679
        %5721 = vmatprep.subr.bf16.mxu0 0
        %5722 = vmatpush1.bf16.msra.mxu0 %v5680
        %5723 = vmatprep.subr.bf16.mxu0 0
        %5724 = vmatpush1.bf16.msra.mxu0 %v5681
        %5725 = vmatprep.subr.bf16.mxu0 0
        %5726 = vmatpush1.bf16.msra.mxu0 %v5682
        %5727 = vmatprep.subr.bf16.mxu0 0
        %5728 = vmatpush1.bf16.msra.mxu0 %v5683
        %5729 = vmatprep.subr.bf16.mxu0 0
        %5730 = vmatpush1.bf16.msra.mxu0 %v5684
        %5731 = vmatprep.subr.bf16.mxu0 0
        %5732 = vmatpush1.bf16.msra.mxu0 %v5685
        %5733 = vmatprep.subr.bf16.mxu0 0
        %5734 = vmatpush1.bf16.msra.mxu0 %v5686
        %5735 = vmatprep.mubr.bf16.mxu0 %v4118
        %5736 = vmatmul.mubr.bf16.gmra.mrb[0].mxu0 %v4117
        %v5737 = vpop.f32.mrb[0].mxu0
        %v5738 = vadd.f32 0.0, %v5737
        %v5739 = vpop.f32.mrb[0].mxu0
        %v5740 = vpop.f32.mrb[0].mxu0
        %v5741 = vpop.f32.mrb[0].mxu0
        %5742 = vdwg.mxu0
        %v5775 = vunpack.c.l.b16 %v4303
        %v5776 = vunpack.c.l.b16 %v4304
        %v5777 = vunpack.c.l.b16 %v4305
        %v5778 = vunpack.c.l.b16 %v4306
        %v5779 = vunpack.c.l.b16 %v4307
        %v5780 = vunpack.c.l.b16 %v4308
        %v5781 = vunpack.c.l.b16 %v4309
        %v5782 = vunpack.c.l.b16 %v4310
        %v5783 = vunpack.c.l.b16 %v4311
        %v5784 = vunpack.c.l.b16 %v4312
        %v5785 = vunpack.c.l.b16 %v4313
        %v5786 = vunpack.c.l.b16 %v4314
        %v5787 = vunpack.c.l.b16 %v4315
        %v5788 = vunpack.c.l.b16 %v4316
        %v5789 = vunpack.c.l.b16 %v4317
        %v5790 = vunpack.c.l.b16 %v4318
        %v5791 = vunpack.c.l.b16 %v4319
        %v5792 = vunpack.c.l.b16 %v4320
        %v5793 = vunpack.c.l.b16 %v4321
        %v5794 = vunpack.c.l.b16 %v4322
        %v5795 = vunpack.c.l.b16 %v4323
        %v5796 = vunpack.c.l.b16 %v4324
        %v5797 = vunpack.c.l.b16 %v4325
        %v5798 = vunpack.c.l.b16 %v4326
        %v5799 = vunpack.c.l.b16 %v4327
        %v5800 = vunpack.c.l.b16 %v4328
        %v5801 = vunpack.c.l.b16 %v4329
        %v5802 = vunpack.c.l.b16 %v4330
        %v5803 = vunpack.c.l.b16 %v4331
        %v5804 = vunpack.c.l.b16 %v4332
        %v5805 = vunpack.c.l.b16 %v4333
        %v5806 = vunpack.c.l.b16 %v4334
        %v5807 = vpack.c.b16 %v5776, %v5775
        %v5808 = vpack.c.b16 %v5778, %v5777
        %v5809 = vpack.c.b16 %v5780, %v5779
        %v5810 = vpack.c.b16 %v5782, %v5781
        %v5811 = vpack.c.b16 %v5784, %v5783
        %v5812 = vpack.c.b16 %v5786, %v5785
        %v5813 = vpack.c.b16 %v5788, %v5787
        %v5814 = vpack.c.b16 %v5790, %v5789
        %v5815 = vpack.c.b16 %v5792, %v5791
        %v5816 = vpack.c.b16 %v5794, %v5793
        %v5817 = vpack.c.b16 %v5796, %v5795
        %v5818 = vpack.c.b16 %v5798, %v5797
        %v5819 = vpack.c.b16 %v5800, %v5799
        %v5820 = vpack.c.b16 %v5802, %v5801
        %v5821 = vpack.c.b16 %v5804, %v5803
        %v5822 = vpack.c.b16 %v5806, %v5805
        %5839 = vmatprep.subr.bf16.mxu0 0
        %5840 = vmatpush1.bf16.msra.mxu0 %v5807
        %5841 = vmatprep.subr.bf16.mxu0 0
        %5842 = vmatpush1.bf16.msra.mxu0 %v5808
        %5843 = vmatprep.subr.bf16.mxu0 0
        %5844 = vmatpush1.bf16.msra.mxu0 %v5809
        %5845 = vmatprep.subr.bf16.mxu0 0
        %5846 = vmatpush1.bf16.msra.mxu0 %v5810
        %5847 = vmatprep.subr.bf16.mxu0 0
        %5848 = vmatpush1.bf16.msra.mxu0 %v5811
        %5849 = vmatprep.subr.bf16.mxu0 0
        %5850 = vmatpush1.bf16.msra.mxu0 %v5812
        %5851 = vmatprep.subr.bf16.mxu0 0
        %5852 = vmatpush1.bf16.msra.mxu0 %v5813
        %5853 = vmatprep.subr.bf16.mxu0 0
        %5854 = vmatpush1.bf16.msra.mxu0 %v5814
        %5855 = vmatprep.subr.bf16.mxu0 0
        %5856 = vmatpush1.bf16.msra.mxu0 %v5815
        %5857 = vmatprep.subr.bf16.mxu0 0
        %5858 = vmatpush1.bf16.msra.mxu0 %v5816
        %5859 = vmatprep.subr.bf16.mxu0 0
        %5860 = vmatpush1.bf16.msra.mxu0 %v5817
        %5861 = vmatprep.subr.bf16.mxu0 0
        %5862 = vmatpush1.bf16.msra.mxu0 %v5818
        %5863 = vmatprep.subr.bf16.mxu0 0
        %5864 = vmatpush1.bf16.msra.mxu0 %v5819
        %5865 = vmatprep.subr.bf16.mxu0 0
        %5866 = vmatpush1.bf16.msra.mxu0 %v5820
        %5867 = vmatprep.subr.bf16.mxu0 0
        %5868 = vmatpush1.bf16.msra.mxu0 %v5821
        %5869 = vmatprep.subr.bf16.mxu0 0
        %5870 = vmatpush1.bf16.msra.mxu0 %v5822
        %5871 = vmatprep.mubr.bf16.mxu0 %v4120
        %5872 = vmatmul.mubr.bf16.gmra.mrb[0].mxu0 %v4119
        %v5873 = vpop.f32.mrb[0].mxu0
        %v5874 = vadd.f32 0.0, %v5873
        %v5875 = vpop.f32.mrb[0].mxu0
        %v5876 = vpop.f32.mrb[0].mxu0
        %v5877 = vpop.f32.mrb[0].mxu0
        %5878 = vdwg.mxu0
        %v5911 = vunpack.c.l.b16 %v4335
        %v5912 = vunpack.c.l.b16 %v4336
        %v5913 = vunpack.c.l.b16 %v4337
        %v5914 = vunpack.c.l.b16 %v4338
        %v5915 = vunpack.c.l.b16 %v4339
        %v5916 = vunpack.c.l.b16 %v4340
        %v5917 = vunpack.c.l.b16 %v4341
        %v5918 = vunpack.c.l.b16 %v4342
        %v5919 = vunpack.c.l.b16 %v4343
        %v5920 = vunpack.c.l.b16 %v4344
        %v5921 = vunpack.c.l.b16 %v4345
        %v5922 = vunpack.c.l.b16 %v4346
        %v5923 = vunpack.c.l.b16 %v4347
        %v5924 = vunpack.c.l.b16 %v4348
        %v5925 = vunpack.c.l.b16 %v4349
        %v5926 = vunpack.c.l.b16 %v4350
        %v5927 = vunpack.c.l.b16 %v4351
        %v5928 = vunpack.c.l.b16 %v4352
        %v5929 = vunpack.c.l.b16 %v4353
        %v5930 = vunpack.c.l.b16 %v4354
        %v5931 = vunpack.c.l.b16 %v4355
        %v5932 = vunpack.c.l.b16 %v4356
        %v5933 = vunpack.c.l.b16 %v4357
        %v5934 = vunpack.c.l.b16 %v4358
        %v5935 = vunpack.c.l.b16 %v4359
        %v5936 = vunpack.c.l.b16 %v4360
        %v5937 = vunpack.c.l.b16 %v4361
        %v5938 = vunpack.c.l.b16 %v4362
        %v5939 = vunpack.c.l.b16 %v4363
        %v5940 = vunpack.c.l.b16 %v4364
        %v5941 = vunpack.c.l.b16 %v4365
        %v5942 = vunpack.c.l.b16 %v4366
        %v5943 = vpack.c.b16 %v5912, %v5911
        %v5944 = vpack.c.b16 %v5914, %v5913
        %v5945 = vpack.c.b16 %v5916, %v5915
        %v5946 = vpack.c.b16 %v5918, %v5917
        %v5947 = vpack.c.b16 %v5920, %v5919
        %v5948 = vpack.c.b16 %v5922, %v5921
        %v5949 = vpack.c.b16 %v5924, %v5923
        %v5950 = vpack.c.b16 %v5926, %v5925
        %v5951 = vpack.c.b16 %v5928, %v5927
        %v5952 = vpack.c.b16 %v5930, %v5929
        %v5953 = vpack.c.b16 %v5932, %v5931
        %v5954 = vpack.c.b16 %v5934, %v5933
        %v5955 = vpack.c.b16 %v5936, %v5935
        %v5956 = vpack.c.b16 %v5938, %v5937
        %v5957 = vpack.c.b16 %v5940, %v5939
        %v5958 = vpack.c.b16 %v5942, %v5941
        %5975 = vmatprep.subr.bf16.mxu0 0
        %5976 = vmatpush1.bf16.msra.mxu0 %v5943
        %5977 = vmatprep.subr.bf16.mxu0 0
        %5978 = vmatpush1.bf16.msra.mxu0 %v5944
        %5979 = vmatprep.subr.bf16.mxu0 0
        %5980 = vmatpush1.bf16.msra.mxu0 %v5945
        %5981 = vmatprep.subr.bf16.mxu0 0
        %5982 = vmatpush1.bf16.msra.mxu0 %v5946
        %5983 = vmatprep.subr.bf16.mxu0 0
        %5984 = vmatpush1.bf16.msra.mxu0 %v5947
        %5985 = vmatprep.subr.bf16.mxu0 0
        %5986 = vmatpush1.bf16.msra.mxu0 %v5948
        %5987 = vmatprep.subr.bf16.mxu0 0
        %5988 = vmatpush1.bf16.msra.mxu0 %v5949
        %5989 = vmatprep.subr.bf16.mxu0 0
        %5990 = vmatpush1.bf16.msra.mxu0 %v5950
        %5991 = vmatprep.subr.bf16.mxu0 0
        %5992 = vmatpush1.bf16.msra.mxu0 %v5951
        %5993 = vmatprep.subr.bf16.mxu0 0
        %5994 = vmatpush1.bf16.msra.mxu0 %v5952
        %5995 = vmatprep.subr.bf16.mxu0 0
        %5996 = vmatpush1.bf16.msra.mxu0 %v5953
        %5997 = vmatprep.subr.bf16.mxu0 0
        %5998 = vmatpush1.bf16.msra.mxu0 %v5954
        %5999 = vmatprep.subr.bf16.mxu0 0
        %6000 = vmatpush1.bf16.msra.mxu0 %v5955
        %6001 = vmatprep.subr.bf16.mxu0 0
        %6002 = vmatpush1.bf16.msra.mxu0 %v5956
        %6003 = vmatprep.subr.bf16.mxu0 0
        %6004 = vmatpush1.bf16.msra.mxu0 %v5957
        %6005 = vmatprep.subr.bf16.mxu0 0
        %6006 = vmatpush1.bf16.msra.mxu0 %v5958
        %6007 = vmatprep.mubr.bf16.mxu0 %v4122
        %6008 = vmatmul.mubr.bf16.gmra.mrb[0].mxu0 %v4121
        %v6009 = vpop.f32.mrb[0].mxu0
        %v6010 = vadd.f32 0.0, %v6009
        %v6011 = vpop.f32.mrb[0].mxu0
        %v6012 = vpop.f32.mrb[0].mxu0
        %v6013 = vpop.f32.mrb[0].mxu0
        %6014 = vdwg.mxu0
        %v6047 = vunpack.c.l.b16 %v4367
        %v6048 = vunpack.c.l.b16 %v4368
        %v6049 = vunpack.c.l.b16 %v4369
        %v6050 = vunpack.c.l.b16 %v4370
        %v6051 = vunpack.c.l.b16 %v4371
        %v6052 = vunpack.c.l.b16 %v4372
        %v6053 = vunpack.c.l.b16 %v4373
        %v6054 = vunpack.c.l.b16 %v4374
        %v6055 = vunpack.c.l.b16 %v4375
        %v6056 = vunpack.c.l.b16 %v4376
        %v6057 = vunpack.c.l.b16 %v4377
        %v6058 = vunpack.c.l.b16 %v4378
        %v6059 = vunpack.c.l.b16 %v4379
        %v6060 = vunpack.c.l.b16 %v4380
        %v6061 = vunpack.c.l.b16 %v4381
        %v6062 = vunpack.c.l.b16 %v4382
        %v6063 = vunpack.c.l.b16 %v4383
        %v6064 = vunpack.c.l.b16 %v4384
        %v6065 = vunpack.c.l.b16 %v4385
        %v6066 = vunpack.c.l.b16 %v4386
        %v6067 = vunpack.c.l.b16 %v4387
        %v6068 = vunpack.c.l.b16 %v4388
        %v6069 = vunpack.c.l.b16 %v4389
        %v6070 = vunpack.c.l.b16 %v4390
        %v6071 = vunpack.c.l.b16 %v4391
        %v6072 = vunpack.c.l.b16 %v4392
        %v6073 = vunpack.c.l.b16 %v4393
        %v6074 = vunpack.c.l.b16 %v4394
        %v6075 = vunpack.c.l.b16 %v4395
        %v6076 = vunpack.c.l.b16 %v4396
        %v6077 = vunpack.c.l.b16 %v4397
        %v6078 = vunpack.c.l.b16 %v4398
        %v6079 = vpack.c.b16 %v6048, %v6047
        %v6080 = vpack.c.b16 %v6050, %v6049
        %v6081 = vpack.c.b16 %v6052, %v6051
        %v6082 = vpack.c.b16 %v6054, %v6053
        %v6083 = vpack.c.b16 %v6056, %v6055
        %v6084 = vpack.c.b16 %v6058, %v6057
        %v6085 = vpack.c.b16 %v6060, %v6059
        %v6086 = vpack.c.b16 %v6062, %v6061
        %v6087 = vpack.c.b16 %v6064, %v6063
        %v6088 = vpack.c.b16 %v6066, %v6065
        %v6089 = vpack.c.b16 %v6068, %v6067
        %v6090 = vpack.c.b16 %v6070, %v6069
        %v6091 = vpack.c.b16 %v6072, %v6071
        %v6092 = vpack.c.b16 %v6074, %v6073
        %v6093 = vpack.c.b16 %v6076, %v6075
        %v6094 = vpack.c.b16 %v6078, %v6077
        %6111 = vmatprep.subr.bf16.mxu0 0
        %6112 = vmatpush1.bf16.msra.mxu0 %v6079
        %6113 = vmatprep.subr.bf16.mxu0 0
        %6114 = vmatpush1.bf16.msra.mxu0 %v6080
        %6115 = vmatprep.subr.bf16.mxu0 0
        %6116 = vmatpush1.bf16.msra.mxu0 %v6081
        %6117 = vmatprep.subr.bf16.mxu0 0
        %6118 = vmatpush1.bf16.msra.mxu0 %v6082
        %6119 = vmatprep.subr.bf16.mxu0 0
        %6120 = vmatpush1.bf16.msra.mxu0 %v6083
        %6121 = vmatprep.subr.bf16.mxu0 0
        %6122 = vmatpush1.bf16.msra.mxu0 %v6084
        %6123 = vmatprep.subr.bf16.mxu0 0
        %6124 = vmatpush1.bf16.msra.mxu0 %v6085
        %6125 = vmatprep.subr.bf16.mxu0 0
        %6126 = vmatpush1.bf16.msra.mxu0 %v6086
        %6127 = vmatprep.subr.bf16.mxu0 0
        %6128 = vmatpush1.bf16.msra.mxu0 %v6087
        %6129 = vmatprep.subr.bf16.mxu0 0
        %6130 = vmatpush1.bf16.msra.mxu0 %v6088
        %6131 = vmatprep.subr.bf16.mxu0 0
        %6132 = vmatpush1.bf16.msra.mxu0 %v6089
        %6133 = vmatprep.subr.bf16.mxu0 0
        %6134 = vmatpush1.bf16.msra.mxu0 %v6090
        %6135 = vmatprep.subr.bf16.mxu0 0
        %6136 = vmatpush1.bf16.msra.mxu0 %v6091
        %6137 = vmatprep.subr.bf16.mxu0 0
        %6138 = vmatpush1.bf16.msra.mxu0 %v6092
        %6139 = vmatprep.subr.bf16.mxu0 0
        %6140 = vmatpush1.bf16.msra.mxu0 %v6093
        %6141 = vmatprep.subr.bf16.mxu0 0
        %6142 = vmatpush1.bf16.msra.mxu0 %v6094
        %6143 = vmatprep.mubr.bf16.mxu0 %v4124
        %6144 = vmatmul.mubr.bf16.gmra.mrb[0].mxu0 %v4123
        %v6145 = vpop.f32.mrb[0].mxu0
        %v6146 = vadd.f32 0.0, %v6145
        %v6147 = vpop.f32.mrb[0].mxu0
        %v6148 = vpop.f32.mrb[0].mxu0
        %v6149 = vpop.f32.mrb[0].mxu0
        %6150 = vdwg.mxu0
        %v6183 = vunpack.c.l.b16 %v4399
        %v6184 = vunpack.c.l.b16 %v4400
        %v6185 = vunpack.c.l.b16 %v4401
        %v6186 = vunpack.c.l.b16 %v4402
        %v6187 = vunpack.c.l.b16 %v4403
        %v6188 = vunpack.c.l.b16 %v4404
        %v6189 = vunpack.c.l.b16 %v4405
        %v6190 = vunpack.c.l.b16 %v4406
        %v6191 = vunpack.c.l.b16 %v4407
        %v6192 = vunpack.c.l.b16 %v4408
        %v6193 = vunpack.c.l.b16 %v4409
        %v6194 = vunpack.c.l.b16 %v4410
        %v6195 = vunpack.c.l.b16 %v4411
        %v6196 = vunpack.c.l.b16 %v4412
        %v6197 = vunpack.c.l.b16 %v4413
        %v6198 = vunpack.c.l.b16 %v4414
        %v6199 = vunpack.c.l.b16 %v4415
        %v6200 = vunpack.c.l.b16 %v4416
        %v6201 = vunpack.c.l.b16 %v4417
        %v6202 = vunpack.c.l.b16 %v4418
        %v6203 = vunpack.c.l.b16 %v4419
        %v6204 = vunpack.c.l.b16 %v4420
        %v6205 = vunpack.c.l.b16 %v4421
        %v6206 = vunpack.c.l.b16 %v4422
        %v6207 = vunpack.c.l.b16 %v4423
        %v6208 = vunpack.c.l.b16 %v4424
        %v6209 = vunpack.c.l.b16 %v4425
        %v6210 = vunpack.c.l.b16 %v4426
        %v6211 = vunpack.c.l.b16 %v4427
        %v6212 = vunpack.c.l.b16 %v4428
        %v6213 = vunpack.c.l.b16 %v4429
        %v6214 = vunpack.c.l.b16 %v4430
        %v6215 = vpack.c.b16 %v6184, %v6183
        %v6216 = vpack.c.b16 %v6186, %v6185
        %v6217 = vpack.c.b16 %v6188, %v6187
        %v6218 = vpack.c.b16 %v6190, %v6189
        %v6219 = vpack.c.b16 %v6192, %v6191
        %v6220 = vpack.c.b16 %v6194, %v6193
        %v6221 = vpack.c.b16 %v6196, %v6195
        %v6222 = vpack.c.b16 %v6198, %v6197
        %v6223 = vpack.c.b16 %v6200, %v6199
        %v6224 = vpack.c.b16 %v6202, %v6201
        %v6225 = vpack.c.b16 %v6204, %v6203
        %v6226 = vpack.c.b16 %v6206, %v6205
        %v6227 = vpack.c.b16 %v6208, %v6207
        %v6228 = vpack.c.b16 %v6210, %v6209
        %v6229 = vpack.c.b16 %v6212, %v6211
        %v6230 = vpack.c.b16 %v6214, %v6213
        %6247 = vmatprep.subr.bf16.mxu0 0
        %6248 = vmatpush1.bf16.msra.mxu0 %v6215
        %6249 = vmatprep.subr.bf16.mxu0 0
        %6250 = vmatpush1.bf16.msra.mxu0 %v6216
        %6251 = vmatprep.subr.bf16.mxu0 0
        %6252 = vmatpush1.bf16.msra.mxu0 %v6217
        %6253 = vmatprep.subr.bf16.mxu0 0
        %6254 = vmatpush1.bf16.msra.mxu0 %v6218
        %6255 = vmatprep.subr.bf16.mxu0 0
        %6256 = vmatpush1.bf16.msra.mxu0 %v6219
        %6257 = vmatprep.subr.bf16.mxu0 0
        %6258 = vmatpush1.bf16.msra.mxu0 %v6220
        %6259 = vmatprep.subr.bf16.mxu0 0
        %6260 = vmatpush1.bf16.msra.mxu0 %v6221
        %6261 = vmatprep.subr.bf16.mxu0 0
        %6262 = vmatpush1.bf16.msra.mxu0 %v6222
        %6263 = vmatprep.subr.bf16.mxu0 0
        %6264 = vmatpush1.bf16.msra.mxu0 %v6223
        %6265 = vmatprep.subr.bf16.mxu0 0
        %6266 = vmatpush1.bf16.msra.mxu0 %v6224
        %6267 = vmatprep.subr.bf16.mxu0 0
        %6268 = vmatpush1.bf16.msra.mxu0 %v6225
        %6269 = vmatprep.subr.bf16.mxu0 0
        %6270 = vmatpush1.bf16.msra.mxu0 %v6226
        %6271 = vmatprep.subr.bf16.mxu0 0
        %6272 = vmatpush1.bf16.msra.mxu0 %v6227
        %6273 = vmatprep.subr.bf16.mxu0 0
        %6274 = vmatpush1.bf16.msra.mxu0 %v6228
        %6275 = vmatprep.subr.bf16.mxu0 0
        %6276 = vmatpush1.bf16.msra.mxu0 %v6229
        %6277 = vmatprep.subr.bf16.mxu0 0
        %6278 = vmatpush1.bf16.msra.mxu0 %v6230
        %6279 = vmatprep.mubr.bf16.mxu0 %v4126
        %6280 = vmatmul.mubr.bf16.gmra.mrb[0].mxu0 %v4125
        %v6281 = vpop.f32.mrb[0].mxu0
        %v6282 = vadd.f32 0.0, %v6281
        %v6283 = vpop.f32.mrb[0].mxu0
        %v6284 = vpop.f32.mrb[0].mxu0
        %v6285 = vpop.f32.mrb[0].mxu0
        %6286 = vdwg.mxu0
        %v6319 = vunpack.c.l.b16 %v4431
        %v6320 = vunpack.c.l.b16 %v4432
        %v6321 = vunpack.c.l.b16 %v4433
        %v6322 = vunpack.c.l.b16 %v4434
        %v6323 = vunpack.c.l.b16 %v4435
        %v6324 = vunpack.c.l.b16 %v4436
        %v6325 = vunpack.c.l.b16 %v4437
        %v6326 = vunpack.c.l.b16 %v4438
        %v6327 = vunpack.c.l.b16 %v4439
        %v6328 = vunpack.c.l.b16 %v4440
        %v6329 = vunpack.c.l.b16 %v4441
        %v6330 = vunpack.c.l.b16 %v4442
        %v6331 = vunpack.c.l.b16 %v4443
        %v6332 = vunpack.c.l.b16 %v4444
        %v6333 = vunpack.c.l.b16 %v4445
        %v6334 = vunpack.c.l.b16 %v4446
        %v6335 = vunpack.c.l.b16 %v4447
        %v6336 = vunpack.c.l.b16 %v4448
        %v6337 = vunpack.c.l.b16 %v4449
        %v6338 = vunpack.c.l.b16 %v4450
        %v6339 = vunpack.c.l.b16 %v4451
        %v6340 = vunpack.c.l.b16 %v4452
        %v6341 = vunpack.c.l.b16 %v4453
        %v6342 = vunpack.c.l.b16 %v4454
        %v6343 = vunpack.c.l.b16 %v4455
        %v6344 = vunpack.c.l.b16 %v4456
        %v6345 = vunpack.c.l.b16 %v4457
        %v6346 = vunpack.c.l.b16 %v4458
        %v6347 = vunpack.c.l.b16 %v4459
        %v6348 = vunpack.c.l.b16 %v4460
        %v6349 = vunpack.c.l.b16 %v4461
        %v6350 = vunpack.c.l.b16 %v4462
        %v6351 = vpack.c.b16 %v6320, %v6319
        %v6352 = vpack.c.b16 %v6322, %v6321
        %v6353 = vpack.c.b16 %v6324, %v6323
        %v6354 = vpack.c.b16 %v6326, %v6325
        %v6355 = vpack.c.b16 %v6328, %v6327
        %v6356 = vpack.c.b16 %v6330, %v6329
        %v6357 = vpack.c.b16 %v6332, %v6331
        %v6358 = vpack.c.b16 %v6334, %v6333
        %v6359 = vpack.c.b16 %v6336, %v6335
        %v6360 = vpack.c.b16 %v6338, %v6337
        %v6361 = vpack.c.b16 %v6340, %v6339
        %v6362 = vpack.c.b16 %v6342, %v6341
        %v6363 = vpack.c.b16 %v6344, %v6343
        %v6364 = vpack.c.b16 %v6346, %v6345
        %v6365 = vpack.c.b16 %v6348, %v6347
        %v6366 = vpack.c.b16 %v6350, %v6349
        %6383 = vmatprep.subr.bf16.mxu0 0
        %6384 = vmatpush1.bf16.msra.mxu0 %v6351
        %6385 = vmatprep.subr.bf16.mxu0 0
        %6386 = vmatpush1.bf16.msra.mxu0 %v6352
        %6387 = vmatprep.subr.bf16.mxu0 0
        %6388 = vmatpush1.bf16.msra.mxu0 %v6353
        %6389 = vmatprep.subr.bf16.mxu0 0
        %6390 = vmatpush1.bf16.msra.mxu0 %v6354
        %6391 = vmatprep.subr.bf16.mxu0 0
        %6392 = vmatpush1.bf16.msra.mxu0 %v6355
        %6393 = vmatprep.subr.bf16.mxu0 0
        %6394 = vmatpush1.bf16.msra.mxu0 %v6356
        %6395 = vmatprep.subr.bf16.mxu0 0
        %6396 = vmatpush1.bf16.msra.mxu0 %v6357
        %6397 = vmatprep.subr.bf16.mxu0 0
        %6398 = vmatpush1.bf16.msra.mxu0 %v6358
        %6399 = vmatprep.subr.bf16.mxu0 0
        %6400 = vmatpush1.bf16.msra.mxu0 %v6359
        %6401 = vmatprep.subr.bf16.mxu0 0
        %6402 = vmatpush1.bf16.msra.mxu0 %v6360
        %6403 = vmatprep.subr.bf16.mxu0 0
        %6404 = vmatpush1.bf16.msra.mxu0 %v6361
        %6405 = vmatprep.subr.bf16.mxu0 0
        %6406 = vmatpush1.bf16.msra.mxu0 %v6362
        %6407 = vmatprep.subr.bf16.mxu0 0
        %6408 = vmatpush1.bf16.msra.mxu0 %v6363
        %6409 = vmatprep.subr.bf16.mxu0 0
        %6410 = vmatpush1.bf16.msra.mxu0 %v6364
        %6411 = vmatprep.subr.bf16.mxu0 0
        %6412 = vmatpush1.bf16.msra.mxu0 %v6365
        %6413 = vmatprep.subr.bf16.mxu0 0
        %6414 = vmatpush1.bf16.msra.mxu0 %v6366
        %6415 = vmatprep.mubr.bf16.mxu0 %v4128
        %6416 = vmatmul.mubr.bf16.gmra.mrb[0].mxu0 %v4127
        %v6417 = vpop.f32.mrb[0].mxu0
        %v6418 = vadd.f32 0.0, %v6417
        %v6419 = vpop.f32.mrb[0].mxu0
        %v6420 = vpop.f32.mrb[0].mxu0
        %v6421 = vpop.f32.mrb[0].mxu0
        %6422 = vdwg.mxu0
        %v6455 = vunpack.c.l.b16 %v4463
        %v6456 = vunpack.c.l.b16 %v4464
        %v6457 = vunpack.c.l.b16 %v4465
        %v6458 = vunpack.c.l.b16 %v4466
        %v6459 = vunpack.c.l.b16 %v4467
        %v6460 = vunpack.c.l.b16 %v4468
        %v6461 = vunpack.c.l.b16 %v4469
        %v6462 = vunpack.c.l.b16 %v4470
        %v6463 = vunpack.c.l.b16 %v4471
        %v6464 = vunpack.c.l.b16 %v4472
        %v6465 = vunpack.c.l.b16 %v4473
        %v6466 = vunpack.c.l.b16 %v4474
        %v6467 = vunpack.c.l.b16 %v4475
        %v6468 = vunpack.c.l.b16 %v4476
        %v6469 = vunpack.c.l.b16 %v4477
        %v6470 = vunpack.c.l.b16 %v4478
        %v6471 = vunpack.c.l.b16 %v4479
        %v6472 = vunpack.c.l.b16 %v4480
        %v6473 = vunpack.c.l.b16 %v4481
        %v6474 = vunpack.c.l.b16 %v4482
        %v6475 = vunpack.c.l.b16 %v4483
        %v6476 = vunpack.c.l.b16 %v4484
        %v6477 = vunpack.c.l.b16 %v4485
        %v6478 = vunpack.c.l.b16 %v4486
        %v6479 = vunpack.c.l.b16 %v4487
        %v6480 = vunpack.c.l.b16 %v4488
        %v6481 = vunpack.c.l.b16 %v4489
        %v6482 = vunpack.c.l.b16 %v4490
        %v6483 = vunpack.c.l.b16 %v4491
        %v6484 = vunpack.c.l.b16 %v4492
        %v6485 = vunpack.c.l.b16 %v4493
        %v6486 = vunpack.c.l.b16 %v4494
        %v6487 = vpack.c.b16 %v6456, %v6455
        %v6488 = vpack.c.b16 %v6458, %v6457
        %v6489 = vpack.c.b16 %v6460, %v6459
        %v6490 = vpack.c.b16 %v6462, %v6461
        %v6491 = vpack.c.b16 %v6464, %v6463
        %v6492 = vpack.c.b16 %v6466, %v6465
        %v6493 = vpack.c.b16 %v6468, %v6467
        %v6494 = vpack.c.b16 %v6470, %v6469
        %v6495 = vpack.c.b16 %v6472, %v6471
        %v6496 = vpack.c.b16 %v6474, %v6473
        %v6497 = vpack.c.b16 %v6476, %v6475
        %v6498 = vpack.c.b16 %v6478, %v6477
        %v6499 = vpack.c.b16 %v6480, %v6479
        %v6500 = vpack.c.b16 %v6482, %v6481
        %v6501 = vpack.c.b16 %v6484, %v6483
        %v6502 = vpack.c.b16 %v6486, %v6485
        %6519 = vmatprep.subr.bf16.mxu0 0
        %6520 = vmatpush1.bf16.msra.mxu0 %v6487
        %6521 = vmatprep.subr.bf16.mxu0 0
        %6522 = vmatpush1.bf16.msra.mxu0 %v6488
        %6523 = vmatprep.subr.bf16.mxu0 0
        %6524 = vmatpush1.bf16.msra.mxu0 %v6489
        %6525 = vmatprep.subr.bf16.mxu0 0
        %6526 = vmatpush1.bf16.msra.mxu0 %v6490
        %6527 = vmatprep.subr.bf16.mxu0 0
        %6528 = vmatpush1.bf16.msra.mxu0 %v6491
        %6529 = vmatprep.subr.bf16.mxu0 0
        %6530 = vmatpush1.bf16.msra.mxu0 %v6492
        %6531 = vmatprep.subr.bf16.mxu0 0
        %6532 = vmatpush1.bf16.msra.mxu0 %v6493
        %6533 = vmatprep.subr.bf16.mxu0 0
        %6534 = vmatpush1.bf16.msra.mxu0 %v6494
        %6535 = vmatprep.subr.bf16.mxu0 0
        %6536 = vmatpush1.bf16.msra.mxu0 %v6495
        %6537 = vmatprep.subr.bf16.mxu0 0
        %6538 = vmatpush1.bf16.msra.mxu0 %v6496
        %6539 = vmatprep.subr.bf16.mxu0 0
        %6540 = vmatpush1.bf16.msra.mxu0 %v6497
        %6541 = vmatprep.subr.bf16.mxu0 0
        %6542 = vmatpush1.bf16.msra.mxu0 %v6498
        %6543 = vmatprep.subr.bf16.mxu0 0
        %6544 = vmatpush1.bf16.msra.mxu0 %v6499
        %6545 = vmatprep.subr.bf16.mxu0 0
        %6546 = vmatpush1.bf16.msra.mxu0 %v6500
        %6547 = vmatprep.subr.bf16.mxu0 0
        %6548 = vmatpush1.bf16.msra.mxu0 %v6501
        %6549 = vmatprep.subr.bf16.mxu0 0
        %6550 = vmatpush1.bf16.msra.mxu0 %v6502
        %6551 = vmatprep.mubr.bf16.mxu0 %v4130
        %6552 = vmatmul.mubr.bf16.gmra.mrb[0].mxu0 %v4129
        %v6553 = vpop.f32.mrb[0].mxu0
        %v6554 = vadd.f32 0.0, %v6553
        %v6555 = vpop.f32.mrb[0].mxu0
        %v6556 = vpop.f32.mrb[0].mxu0
        %v6557 = vpop.f32.mrb[0].mxu0
        %6558 = vdwg.mxu0
        %v6591 = vunpack.c.l.b16 %v4495
        %v6592 = vunpack.c.l.b16 %v4496
        %v6593 = vunpack.c.l.b16 %v4497
        %v6594 = vunpack.c.l.b16 %v4498
        %v6595 = vunpack.c.l.b16 %v4499
        %v6596 = vunpack.c.l.b16 %v4500
        %v6597 = vunpack.c.l.b16 %v4501
        %v6598 = vunpack.c.l.b16 %v4502
        %v6599 = vunpack.c.l.b16 %v4503
        %v6600 = vunpack.c.l.b16 %v4504
        %v6601 = vunpack.c.l.b16 %v4505
        %v6602 = vunpack.c.l.b16 %v4506
        %v6603 = vunpack.c.l.b16 %v4507
        %v6604 = vunpack.c.l.b16 %v4508
        %v6605 = vunpack.c.l.b16 %v4509
        %v6606 = vunpack.c.l.b16 %v4510
        %v6607 = vunpack.c.l.b16 %v4511
        %v6608 = vunpack.c.l.b16 %v4512
        %v6609 = vunpack.c.l.b16 %v4513
        %v6610 = vunpack.c.l.b16 %v4514
        %v6611 = vunpack.c.l.b16 %v4515
        %v6612 = vunpack.c.l.b16 %v4516
        %v6613 = vunpack.c.l.b16 %v4517
        %v6614 = vunpack.c.l.b16 %v4518
        %v6615 = vunpack.c.l.b16 %v4519
        %v6616 = vunpack.c.l.b16 %v4520
        %v6617 = vunpack.c.l.b16 %v4521
        %v6618 = vunpack.c.l.b16 %v4522
        %v6619 = vunpack.c.l.b16 %v4523
        %v6620 = vunpack.c.l.b16 %v4524
        %v6621 = vunpack.c.l.b16 %v4525
        %v6622 = vunpack.c.l.b16 %v4526
        %v6623 = vpack.c.b16 %v6592, %v6591
        %v6624 = vpack.c.b16 %v6594, %v6593
        %v6625 = vpack.c.b16 %v6596, %v6595
        %v6626 = vpack.c.b16 %v6598, %v6597
        %v6627 = vpack.c.b16 %v6600, %v6599
        %v6628 = vpack.c.b16 %v6602, %v6601
        %v6629 = vpack.c.b16 %v6604, %v6603
        %v6630 = vpack.c.b16 %v6606, %v6605
        %v6631 = vpack.c.b16 %v6608, %v6607
        %v6632 = vpack.c.b16 %v6610, %v6609
        %v6633 = vpack.c.b16 %v6612, %v6611
        %v6634 = vpack.c.b16 %v6614, %v6613
        %v6635 = vpack.c.b16 %v6616, %v6615
        %v6636 = vpack.c.b16 %v6618, %v6617
        %v6637 = vpack.c.b16 %v6620, %v6619
        %v6638 = vpack.c.b16 %v6622, %v6621
        %6655 = vmatprep.subr.bf16.mxu0 0
        %6656 = vmatpush1.bf16.msra.mxu0 %v6623
        %6657 = vmatprep.subr.bf16.mxu0 0
        %6658 = vmatpush1.bf16.msra.mxu0 %v6624
        %6659 = vmatprep.subr.bf16.mxu0 0
        %6660 = vmatpush1.bf16.msra.mxu0 %v6625
        %6661 = vmatprep.subr.bf16.mxu0 0
        %6662 = vmatpush1.bf16.msra.mxu0 %v6626
        %6663 = vmatprep.subr.bf16.mxu0 0
        %6664 = vmatpush1.bf16.msra.mxu0 %v6627
        %6665 = vmatprep.subr.bf16.mxu0 0
        %6666 = vmatpush1.bf16.msra.mxu0 %v6628
        %6667 = vmatprep.subr.bf16.mxu0 0
        %6668 = vmatpush1.bf16.msra.mxu0 %v6629
        %6669 = vmatprep.subr.bf16.mxu0 0
        %6670 = vmatpush1.bf16.msra.mxu0 %v6630
        %6671 = vmatprep.subr.bf16.mxu0 0
        %6672 = vmatpush1.bf16.msra.mxu0 %v6631
        %6673 = vmatprep.subr.bf16.mxu0 0
        %6674 = vmatpush1.bf16.msra.mxu0 %v6632
        %6675 = vmatprep.subr.bf16.mxu0 0
        %6676 = vmatpush1.bf16.msra.mxu0 %v6633
        %6677 = vmatprep.subr.bf16.mxu0 0
        %6678 = vmatpush1.bf16.msra.mxu0 %v6634
        %6679 = vmatprep.subr.bf16.mxu0 0
        %6680 = vmatpush1.bf16.msra.mxu0 %v6635
        %6681 = vmatprep.subr.bf16.mxu0 0
        %6682 = vmatpush1.bf16.msra.mxu0 %v6636
        %6683 = vmatprep.subr.bf16.mxu0 0
        %6684 = vmatpush1.bf16.msra.mxu0 %v6637
        %6685 = vmatprep.subr.bf16.mxu0 0
        %6686 = vmatpush1.bf16.msra.mxu0 %v6638
        %6687 = vmatprep.mubr.bf16.mxu0 %v4132
        %6688 = vmatmul.mubr.bf16.gmra.mrb[0].mxu0 %v4131
        %v6689 = vpop.f32.mrb[0].mxu0
        %v6690 = vadd.f32 0.0, %v6689
        %v6691 = vpop.f32.mrb[0].mxu0
        %v6692 = vpop.f32.mrb[0].mxu0
        %v6693 = vpop.f32.mrb[0].mxu0
        %6694 = vdwg.mxu0
        %v6727 = vunpack.c.l.b16 %v4527
        %v6728 = vunpack.c.l.b16 %v4528
        %v6729 = vunpack.c.l.b16 %v4529
        %v6730 = vunpack.c.l.b16 %v4530
        %v6731 = vunpack.c.l.b16 %v4531
        %v6732 = vunpack.c.l.b16 %v4532
        %v6733 = vunpack.c.l.b16 %v4533
        %v6734 = vunpack.c.l.b16 %v4534
        %v6735 = vunpack.c.l.b16 %v4535
        %v6736 = vunpack.c.l.b16 %v4536
        %v6737 = vunpack.c.l.b16 %v4537
        %v6738 = vunpack.c.l.b16 %v4538
        %v6739 = vunpack.c.l.b16 %v4539
        %v6740 = vunpack.c.l.b16 %v4540
        %v6741 = vunpack.c.l.b16 %v4541
        %v6742 = vunpack.c.l.b16 %v4542
        %v6743 = vunpack.c.l.b16 %v4543
        %v6744 = vunpack.c.l.b16 %v4544
        %v6745 = vunpack.c.l.b16 %v4545
        %v6746 = vunpack.c.l.b16 %v4546
        %v6747 = vunpack.c.l.b16 %v4547
        %v6748 = vunpack.c.l.b16 %v4548
        %v6749 = vunpack.c.l.b16 %v4549
        %v6750 = vunpack.c.l.b16 %v4550
        %v6751 = vunpack.c.l.b16 %v4551
        %v6752 = vunpack.c.l.b16 %v4552
        %v6753 = vunpack.c.l.b16 %v4553
        %v6754 = vunpack.c.l.b16 %v4554
        %v6755 = vunpack.c.l.b16 %v4555
        %v6756 = vunpack.c.l.b16 %v4556
        %v6757 = vunpack.c.l.b16 %v4557
        %v6758 = vunpack.c.l.b16 %v4558
        %v6759 = vpack.c.b16 %v6728, %v6727
        %v6760 = vpack.c.b16 %v6730, %v6729
        %v6761 = vpack.c.b16 %v6732, %v6731
        %v6762 = vpack.c.b16 %v6734, %v6733
        %v6763 = vpack.c.b16 %v6736, %v6735
        %v6764 = vpack.c.b16 %v6738, %v6737
        %v6765 = vpack.c.b16 %v6740, %v6739
        %v6766 = vpack.c.b16 %v6742, %v6741
        %v6767 = vpack.c.b16 %v6744, %v6743
        %v6768 = vpack.c.b16 %v6746, %v6745
        %v6769 = vpack.c.b16 %v6748, %v6747
        %v6770 = vpack.c.b16 %v6750, %v6749
        %v6771 = vpack.c.b16 %v6752, %v6751
        %v6772 = vpack.c.b16 %v6754, %v6753
        %v6773 = vpack.c.b16 %v6756, %v6755
        %v6774 = vpack.c.b16 %v6758, %v6757
        %6791 = vmatprep.subr.bf16.mxu0 0
        %6792 = vmatpush1.bf16.msra.mxu0 %v6759
        %6793 = vmatprep.subr.bf16.mxu0 0
        %6794 = vmatpush1.bf16.msra.mxu0 %v6760
        %6795 = vmatprep.subr.bf16.mxu0 0
        %6796 = vmatpush1.bf16.msra.mxu0 %v6761
        %6797 = vmatprep.subr.bf16.mxu0 0
        %6798 = vmatpush1.bf16.msra.mxu0 %v6762
        %6799 = vmatprep.subr.bf16.mxu0 0
        %6800 = vmatpush1.bf16.msra.mxu0 %v6763
        %6801 = vmatprep.subr.bf16.mxu0 0
        %6802 = vmatpush1.bf16.msra.mxu0 %v6764
        %6803 = vmatprep.subr.bf16.mxu0 0
        %6804 = vmatpush1.bf16.msra.mxu0 %v6765
        %6805 = vmatprep.subr.bf16.mxu0 0
        %6806 = vmatpush1.bf16.msra.mxu0 %v6766
        %6807 = vmatprep.subr.bf16.mxu0 0
        %6808 = vmatpush1.bf16.msra.mxu0 %v6767
        %6809 = vmatprep.subr.bf16.mxu0 0
        %6810 = vmatpush1.bf16.msra.mxu0 %v6768
        %6811 = vmatprep.subr.bf16.mxu0 0
        %6812 = vmatpush1.bf16.msra.mxu0 %v6769
        %6813 = vmatprep.subr.bf16.mxu0 0
        %6814 = vmatpush1.bf16.msra.mxu0 %v6770
        %6815 = vmatprep.subr.bf16.mxu0 0
        %6816 = vmatpush1.bf16.msra.mxu0 %v6771
        %6817 = vmatprep.subr.bf16.mxu0 0
        %6818 = vmatpush1.bf16.msra.mxu0 %v6772
        %6819 = vmatprep.subr.bf16.mxu0 0
        %6820 = vmatpush1.bf16.msra.mxu0 %v6773
        %6821 = vmatprep.subr.bf16.mxu0 0
        %6822 = vmatpush1.bf16.msra.mxu0 %v6774
        %6823 = vmatprep.mubr.bf16.mxu0 %v4134
        %6824 = vmatmul.mubr.bf16.gmra.mrb[0].mxu0 %v4133
        %v6825 = vpop.f32.mrb[0].mxu0
        %v6826 = vadd.f32 0.0, %v6825
        %v6827 = vpop.f32.mrb[0].mxu0
        %v6828 = vpop.f32.mrb[0].mxu0
        %v6829 = vpop.f32.mrb[0].mxu0
        %6830 = vdwg.mxu0
        %v6863 = vunpack.c.l.b16 %v4559
        %v6864 = vunpack.c.l.b16 %v4560
        %v6865 = vunpack.c.l.b16 %v4561
        %v6866 = vunpack.c.l.b16 %v4562
        %v6867 = vunpack.c.l.b16 %v4563
        %v6868 = vunpack.c.l.b16 %v4564
        %v6869 = vunpack.c.l.b16 %v4565
        %v6870 = vunpack.c.l.b16 %v4566
        %v6871 = vunpack.c.l.b16 %v4567
        %v6872 = vunpack.c.l.b16 %v4568
        %v6873 = vunpack.c.l.b16 %v4569
        %v6874 = vunpack.c.l.b16 %v4570
        %v6875 = vunpack.c.l.b16 %v4571
        %v6876 = vunpack.c.l.b16 %v4572
        %v6877 = vunpack.c.l.b16 %v4573
        %v6878 = vunpack.c.l.b16 %v4574
        %v6879 = vunpack.c.l.b16 %v4575
        %v6880 = vunpack.c.l.b16 %v4576
        %v6881 = vunpack.c.l.b16 %v4577
        %v6882 = vunpack.c.l.b16 %v4578
        %v6883 = vunpack.c.l.b16 %v4579
        %v6884 = vunpack.c.l.b16 %v4580
        %v6885 = vunpack.c.l.b16 %v4581
        %v6886 = vunpack.c.l.b16 %v4582
        %v6887 = vunpack.c.l.b16 %v4583
        %v6888 = vunpack.c.l.b16 %v4584
        %v6889 = vunpack.c.l.b16 %v4585
        %v6890 = vunpack.c.l.b16 %v4586
        %v6891 = vunpack.c.l.b16 %v4587
        %v6892 = vunpack.c.l.b16 %v4588
        %v6893 = vunpack.c.l.b16 %v4589
        %v6894 = vunpack.c.l.b16 %v4590
        %v6895 = vpack.c.b16 %v6864, %v6863
        %v6896 = vpack.c.b16 %v6866, %v6865
        %v6897 = vpack.c.b16 %v6868, %v6867
        %v6898 = vpack.c.b16 %v6870, %v6869
        %v6899 = vpack.c.b16 %v6872, %v6871
        %v6900 = vpack.c.b16 %v6874, %v6873
        %v6901 = vpack.c.b16 %v6876, %v6875
        %v6902 = vpack.c.b16 %v6878, %v6877
        %v6903 = vpack.c.b16 %v6880, %v6879
        %v6904 = vpack.c.b16 %v6882, %v6881
        %v6905 = vpack.c.b16 %v6884, %v6883
        %v6906 = vpack.c.b16 %v6886, %v6885
        %v6907 = vpack.c.b16 %v6888, %v6887
        %v6908 = vpack.c.b16 %v6890, %v6889
        %v6909 = vpack.c.b16 %v6892, %v6891
        %v6910 = vpack.c.b16 %v6894, %v6893
        %6927 = vmatprep.subr.bf16.mxu0 0
        %6928 = vmatpush1.bf16.msra.mxu0 %v6895
        %6929 = vmatprep.subr.bf16.mxu0 0
        %6930 = vmatpush1.bf16.msra.mxu0 %v6896
        %6931 = vmatprep.subr.bf16.mxu0 0
        %6932 = vmatpush1.bf16.msra.mxu0 %v6897
        %6933 = vmatprep.subr.bf16.mxu0 0
        %6934 = vmatpush1.bf16.msra.mxu0 %v6898
        %6935 = vmatprep.subr.bf16.mxu0 0
        %6936 = vmatpush1.bf16.msra.mxu0 %v6899
        %6937 = vmatprep.subr.bf16.mxu0 0
        %6938 = vmatpush1.bf16.msra.mxu0 %v6900
        %6939 = vmatprep.subr.bf16.mxu0 0
        %6940 = vmatpush1.bf16.msra.mxu0 %v6901
        %6941 = vmatprep.subr.bf16.mxu0 0
        %6942 = vmatpush1.bf16.msra.mxu0 %v6902
        %6943 = vmatprep.subr.bf16.mxu0 0
        %6944 = vmatpush1.bf16.msra.mxu0 %v6903
        %6945 = vmatprep.subr.bf16.mxu0 0
        %6946 = vmatpush1.bf16.msra.mxu0 %v6904
        %6947 = vmatprep.subr.bf16.mxu0 0
        %6948 = vmatpush1.bf16.msra.mxu0 %v6905
        %6949 = vmatprep.subr.bf16.mxu0 0
        %6950 = vmatpush1.bf16.msra.mxu0 %v6906
        %6951 = vmatprep.subr.bf16.mxu0 0
        %6952 = vmatpush1.bf16.msra.mxu0 %v6907
        %6953 = vmatprep.subr.bf16.mxu0 0
        %6954 = vmatpush1.bf16.msra.mxu0 %v6908
        %6955 = vmatprep.subr.bf16.mxu0 0
        %6956 = vmatpush1.bf16.msra.mxu0 %v6909
        %6957 = vmatprep.subr.bf16.mxu0 0
        %6958 = vmatpush1.bf16.msra.mxu0 %v6910
        %6959 = vmatprep.mubr.bf16.mxu0 %v4136
        %6960 = vmatmul.mubr.bf16.gmra.mrb[0].mxu0 %v4135
        %v6961 = vpop.f32.mrb[0].mxu0
        %v6962 = vadd.f32 0.0, %v6961
        %v6963 = vpop.f32.mrb[0].mxu0
        %v6964 = vpop.f32.mrb[0].mxu0
        %v6965 = vpop.f32.mrb[0].mxu0
        %6966 = vdwg.mxu0
        %v6999 = vunpack.c.l.b16 %v4591
        %v7000 = vunpack.c.l.b16 %v4592
        %v7001 = vunpack.c.l.b16 %v4593
        %v7002 = vunpack.c.l.b16 %v4594
        %v7003 = vunpack.c.l.b16 %v4595
        %v7004 = vunpack.c.l.b16 %v4596
        %v7005 = vunpack.c.l.b16 %v4597
        %v7006 = vunpack.c.l.b16 %v4598
        %v7007 = vunpack.c.l.b16 %v4599
        %v7008 = vunpack.c.l.b16 %v4600
        %v7009 = vunpack.c.l.b16 %v4601
        %v7010 = vunpack.c.l.b16 %v4602
        %v7011 = vunpack.c.l.b16 %v4603
        %v7012 = vunpack.c.l.b16 %v4604
        %v7013 = vunpack.c.l.b16 %v4605
        %v7014 = vunpack.c.l.b16 %v4606
        %v7015 = vunpack.c.l.b16 %v4607
        %v7016 = vunpack.c.l.b16 %v4608
        %v7017 = vunpack.c.l.b16 %v4609
        %v7018 = vunpack.c.l.b16 %v4610
        %v7019 = vunpack.c.l.b16 %v4611
        %v7020 = vunpack.c.l.b16 %v4612
        %v7021 = vunpack.c.l.b16 %v4613
        %v7022 = vunpack.c.l.b16 %v4614
        %v7023 = vunpack.c.l.b16 %v4615
        %v7024 = vunpack.c.l.b16 %v4616
        %v7025 = vunpack.c.l.b16 %v4617
        %v7026 = vunpack.c.l.b16 %v4618
        %v7027 = vunpack.c.l.b16 %v4619
        %v7028 = vunpack.c.l.b16 %v4620
        %v7029 = vunpack.c.l.b16 %v4621
        %v7030 = vunpack.c.l.b16 %v4622
        %v7031 = vpack.c.b16 %v7000, %v6999
        %v7032 = vpack.c.b16 %v7002, %v7001
        %v7033 = vpack.c.b16 %v7004, %v7003
        %v7034 = vpack.c.b16 %v7006, %v7005
        %v7035 = vpack.c.b16 %v7008, %v7007
        %v7036 = vpack.c.b16 %v7010, %v7009
        %v7037 = vpack.c.b16 %v7012, %v7011
        %v7038 = vpack.c.b16 %v7014, %v7013
        %v7039 = vpack.c.b16 %v7016, %v7015
        %v7040 = vpack.c.b16 %v7018, %v7017
        %v7041 = vpack.c.b16 %v7020, %v7019
        %v7042 = vpack.c.b16 %v7022, %v7021
        %v7043 = vpack.c.b16 %v7024, %v7023
        %v7044 = vpack.c.b16 %v7026, %v7025
        %v7045 = vpack.c.b16 %v7028, %v7027
        %v7046 = vpack.c.b16 %v7030, %v7029
        %7063 = vmatprep.subr.bf16.mxu0 0
        %7064 = vmatpush1.bf16.msra.mxu0 %v7031
        %7065 = vmatprep.subr.bf16.mxu0 0
        %7066 = vmatpush1.bf16.msra.mxu0 %v7032
        %7067 = vmatprep.subr.bf16.mxu0 0
        %7068 = vmatpush1.bf16.msra.mxu0 %v7033
        %7069 = vmatprep.subr.bf16.mxu0 0
        %7070 = vmatpush1.bf16.msra.mxu0 %v7034
        %7071 = vmatprep.subr.bf16.mxu0 0
        %7072 = vmatpush1.bf16.msra.mxu0 %v7035
        %7073 = vmatprep.subr.bf16.mxu0 0
        %7074 = vmatpush1.bf16.msra.mxu0 %v7036
        %7075 = vmatprep.subr.bf16.mxu0 0
        %7076 = vmatpush1.bf16.msra.mxu0 %v7037
        %7077 = vmatprep.subr.bf16.mxu0 0
        %7078 = vmatpush1.bf16.msra.mxu0 %v7038
        %7079 = vmatprep.subr.bf16.mxu0 0
        %7080 = vmatpush1.bf16.msra.mxu0 %v7039
        %7081 = vmatprep.subr.bf16.mxu0 0
        %7082 = vmatpush1.bf16.msra.mxu0 %v7040
        %7083 = vmatprep.subr.bf16.mxu0 0
        %7084 = vmatpush1.bf16.msra.mxu0 %v7041
        %7085 = vmatprep.subr.bf16.mxu0 0
        %7086 = vmatpush1.bf16.msra.mxu0 %v7042
        %7087 = vmatprep.subr.bf16.mxu0 0
        %7088 = vmatpush1.bf16.msra.mxu0 %v7043
        %7089 = vmatprep.subr.bf16.mxu0 0
        %7090 = vmatpush1.bf16.msra.mxu0 %v7044
        %7091 = vmatprep.subr.bf16.mxu0 0
        %7092 = vmatpush1.bf16.msra.mxu0 %v7045
        %7093 = vmatprep.subr.bf16.mxu0 0
        %7094 = vmatpush1.bf16.msra.mxu0 %v7046
        %7095 = vmatprep.mubr.bf16.mxu0 %v4138
        %7096 = vmatmul.mubr.bf16.gmra.mrb[0].mxu0 %v4137
        %v7097 = vpop.f32.mrb[0].mxu0
        %v7098 = vadd.f32 0.0, %v7097
        %v7099 = vpop.f32.mrb[0].mxu0
        %v7100 = vpop.f32.mrb[0].mxu0
        %v7101 = vpop.f32.mrb[0].mxu0
        %7102 = vdwg.mxu0
        %v7135 = vunpack.c.l.b16 %v4623
        %v7136 = vunpack.c.l.b16 %v4624
        %v7137 = vunpack.c.l.b16 %v4625
        %v7138 = vunpack.c.l.b16 %v4626
        %v7139 = vunpack.c.l.b16 %v4627
        %v7140 = vunpack.c.l.b16 %v4628
        %v7141 = vunpack.c.l.b16 %v4629
        %v7142 = vunpack.c.l.b16 %v4630
        %v7143 = vunpack.c.l.b16 %v4631
        %v7144 = vunpack.c.l.b16 %v4632
        %v7145 = vunpack.c.l.b16 %v4633
        %v7146 = vunpack.c.l.b16 %v4634
        %v7147 = vunpack.c.l.b16 %v4635
        %v7148 = vunpack.c.l.b16 %v4636
        %v7149 = vunpack.c.l.b16 %v4637
        %v7150 = vunpack.c.l.b16 %v4638
        %v7151 = vunpack.c.l.b16 %v4639
        %v7152 = vunpack.c.l.b16 %v4640
        %v7153 = vunpack.c.l.b16 %v4641
        %v7154 = vunpack.c.l.b16 %v4642
        %v7155 = vunpack.c.l.b16 %v4643
        %v7156 = vunpack.c.l.b16 %v4644
        %v7157 = vunpack.c.l.b16 %v4645
        %v7158 = vunpack.c.l.b16 %v4646
        %v7159 = vunpack.c.l.b16 %v4647
        %v7160 = vunpack.c.l.b16 %v4648
        %v7161 = vunpack.c.l.b16 %v4649
        %v7162 = vunpack.c.l.b16 %v4650
        %v7163 = vunpack.c.l.b16 %v4651
        %v7164 = vunpack.c.l.b16 %v4652
        %v7165 = vunpack.c.l.b16 %v4653
        %v7166 = vunpack.c.l.b16 %v4654
        %v7167 = vpack.c.b16 %v7136, %v7135
        %v7168 = vpack.c.b16 %v7138, %v7137
        %v7169 = vpack.c.b16 %v7140, %v7139
        %v7170 = vpack.c.b16 %v7142, %v7141
        %v7171 = vpack.c.b16 %v7144, %v7143
        %v7172 = vpack.c.b16 %v7146, %v7145
        %v7173 = vpack.c.b16 %v7148, %v7147
        %v7174 = vpack.c.b16 %v7150, %v7149
        %v7175 = vpack.c.b16 %v7152, %v7151
        %v7176 = vpack.c.b16 %v7154, %v7153
        %v7177 = vpack.c.b16 %v7156, %v7155
        %v7178 = vpack.c.b16 %v7158, %v7157
        %v7179 = vpack.c.b16 %v7160, %v7159
        %v7180 = vpack.c.b16 %v7162, %v7161
        %v7181 = vpack.c.b16 %v7164, %v7163
        %v7182 = vpack.c.b16 %v7166, %v7165
        %7199 = vmatprep.subr.bf16.mxu0 0
        %7200 = vmatpush1.bf16.msra.mxu0 %v7167
        %7201 = vmatprep.subr.bf16.mxu0 0
        %7202 = vmatpush1.bf16.msra.mxu0 %v7168
        %7203 = vmatprep.subr.bf16.mxu0 0
        %7204 = vmatpush1.bf16.msra.mxu0 %v7169
        %7205 = vmatprep.subr.bf16.mxu0 0
        %7206 = vmatpush1.bf16.msra.mxu0 %v7170
        %7207 = vmatprep.subr.bf16.mxu0 0
        %7208 = vmatpush1.bf16.msra.mxu0 %v7171
        %7209 = vmatprep.subr.bf16.mxu0 0
        %7210 = vmatpush1.bf16.msra.mxu0 %v7172
        %7211 = vmatprep.subr.bf16.mxu0 0
        %7212 = vmatpush1.bf16.msra.mxu0 %v7173
        %7213 = vmatprep.subr.bf16.mxu0 0
        %7214 = vmatpush1.bf16.msra.mxu0 %v7174
        %7215 = vmatprep.subr.bf16.mxu0 0
        %7216 = vmatpush1.bf16.msra.mxu0 %v7175
        %7217 = vmatprep.subr.bf16.mxu0 0
        %7218 = vmatpush1.bf16.msra.mxu0 %v7176
        %7219 = vmatprep.subr.bf16.mxu0 0
        %7220 = vmatpush1.bf16.msra.mxu0 %v7177
        %7221 = vmatprep.subr.bf16.mxu0 0
        %7222 = vmatpush1.bf16.msra.mxu0 %v7178
        %7223 = vmatprep.subr.bf16.mxu0 0
        %7224 = vmatpush1.bf16.msra.mxu0 %v7179
        %7225 = vmatprep.subr.bf16.mxu0 0
        %7226 = vmatpush1.bf16.msra.mxu0 %v7180
        %7227 = vmatprep.subr.bf16.mxu0 0
        %7228 = vmatpush1.bf16.msra.mxu0 %v7181
        %7229 = vmatprep.subr.bf16.mxu0 0
        %7230 = vmatpush1.bf16.msra.mxu0 %v7182
        %7231 = vmatprep.mubr.bf16.mxu0 %v4140
        %7232 = vmatmul.mubr.bf16.gmra.mrb[0].mxu0 %v4139
        %v7233 = vpop.f32.mrb[0].mxu0
        %v7234 = vadd.f32 0.0, %v7233
        %v7235 = vpop.f32.mrb[0].mxu0
        %v7236 = vpop.f32.mrb[0].mxu0
        %v7237 = vpop.f32.mrb[0].mxu0
        %7238 = vdwg.mxu0
        %v7271 = vunpack.c.l.b16 %v4655
        %v7272 = vunpack.c.l.b16 %v4656
        %v7273 = vunpack.c.l.b16 %v4657
        %v7274 = vunpack.c.l.b16 %v4658
        %v7275 = vunpack.c.l.b16 %v4659
        %v7276 = vunpack.c.l.b16 %v4660
        %v7277 = vunpack.c.l.b16 %v4661
        %v7278 = vunpack.c.l.b16 %v4662
        %v7279 = vunpack.c.l.b16 %v4663
        %v7280 = vunpack.c.l.b16 %v4664
        %v7281 = vunpack.c.l.b16 %v4665
        %v7282 = vunpack.c.l.b16 %v4666
        %v7283 = vunpack.c.l.b16 %v4667
        %v7284 = vunpack.c.l.b16 %v4668
        %v7285 = vunpack.c.l.b16 %v4669
        %v7286 = vunpack.c.l.b16 %v4670
        %v7287 = vunpack.c.l.b16 %v4671
        %v7288 = vunpack.c.l.b16 %v4672
        %v7289 = vunpack.c.l.b16 %v4673
        %v7290 = vunpack.c.l.b16 %v4674
        %v7291 = vunpack.c.l.b16 %v4675
        %v7292 = vunpack.c.l.b16 %v4676
        %v7293 = vunpack.c.l.b16 %v4677
        %v7294 = vunpack.c.l.b16 %v4678
        %v7295 = vunpack.c.l.b16 %v4679
        %v7296 = vunpack.c.l.b16 %v4680
        %v7297 = vunpack.c.l.b16 %v4681
        %v7298 = vunpack.c.l.b16 %v4682
        %v7299 = vunpack.c.l.b16 %v4683
        %v7300 = vunpack.c.l.b16 %v4684
        %v7301 = vunpack.c.l.b16 %v4685
        %v7302 = vunpack.c.l.b16 %v4686
        %v7303 = vpack.c.b16 %v7272, %v7271
        %v7304 = vpack.c.b16 %v7274, %v7273
        %v7305 = vpack.c.b16 %v7276, %v7275
        %v7306 = vpack.c.b16 %v7278, %v7277
        %v7307 = vpack.c.b16 %v7280, %v7279
        %v7308 = vpack.c.b16 %v7282, %v7281
        %v7309 = vpack.c.b16 %v7284, %v7283
        %v7310 = vpack.c.b16 %v7286, %v7285
        %v7311 = vpack.c.b16 %v7288, %v7287
        %v7312 = vpack.c.b16 %v7290, %v7289
        %v7313 = vpack.c.b16 %v7292, %v7291
        %v7314 = vpack.c.b16 %v7294, %v7293
        %v7315 = vpack.c.b16 %v7296, %v7295
        %v7316 = vpack.c.b16 %v7298, %v7297
        %v7317 = vpack.c.b16 %v7300, %v7299
        %v7318 = vpack.c.b16 %v7302, %v7301
        %7335 = vmatprep.subr.bf16.mxu0 0
        %7336 = vmatpush1.bf16.msra.mxu0 %v7303
        %7337 = vmatprep.subr.bf16.mxu0 0
        %7338 = vmatpush1.bf16.msra.mxu0 %v7304
        %7339 = vmatprep.subr.bf16.mxu0 0
        %7340 = vmatpush1.bf16.msra.mxu0 %v7305
        %7341 = vmatprep.subr.bf16.mxu0 0
        %7342 = vmatpush1.bf16.msra.mxu0 %v7306
        %7343 = vmatprep.subr.bf16.mxu0 0
        %7344 = vmatpush1.bf16.msra.mxu0 %v7307
        %7345 = vmatprep.subr.bf16.mxu0 0
        %7346 = vmatpush1.bf16.msra.mxu0 %v7308
        %7347 = vmatprep.subr.bf16.mxu0 0
        %7348 = vmatpush1.bf16.msra.mxu0 %v7309
        %7349 = vmatprep.subr.bf16.mxu0 0
        %7350 = vmatpush1.bf16.msra.mxu0 %v7310
        %7351 = vmatprep.subr.bf16.mxu0 0
        %7352 = vmatpush1.bf16.msra.mxu0 %v7311
        %7353 = vmatprep.subr.bf16.mxu0 0
        %7354 = vmatpush1.bf16.msra.mxu0 %v7312
        %7355 = vmatprep.subr.bf16.mxu0 0
        %7356 = vmatpush1.bf16.msra.mxu0 %v7313
        %7357 = vmatprep.subr.bf16.mxu0 0
        %7358 = vmatpush1.bf16.msra.mxu0 %v7314
        %7359 = vmatprep.subr.bf16.mxu0 0
        %7360 = vmatpush1.bf16.msra.mxu0 %v7315
        %7361 = vmatprep.subr.bf16.mxu0 0
        %7362 = vmatpush1.bf16.msra.mxu0 %v7316
        %7363 = vmatprep.subr.bf16.mxu0 0
        %7364 = vmatpush1.bf16.msra.mxu0 %v7317
        %7365 = vmatprep.subr.bf16.mxu0 0
        %7366 = vmatpush1.bf16.msra.mxu0 %v7318
        %7367 = vmatprep.mubr.bf16.mxu0 %v4142
        %7368 = vmatmul.mubr.bf16.gmra.mrb[0].mxu0 %v4141
        %v7369 = vpop.f32.mrb[0].mxu0
        %v7370 = vadd.f32 0.0, %v7369
        %v7371 = vpop.f32.mrb[0].mxu0
        %v7372 = vpop.f32.mrb[0].mxu0
        %v7373 = vpop.f32.mrb[0].mxu0
        %7374 = vdwg.mxu0
        %v7407 = vunpack.c.l.b16 %v4687
        %v7408 = vunpack.c.l.b16 %v4688
        %v7409 = vunpack.c.l.b16 %v4689
        %v7410 = vunpack.c.l.b16 %v4690
        %v7411 = vunpack.c.l.b16 %v4691
        %v7412 = vunpack.c.l.b16 %v4692
        %v7413 = vunpack.c.l.b16 %v4693
        %v7414 = vunpack.c.l.b16 %v4694
        %v7415 = vunpack.c.l.b16 %v4695
        %v7416 = vunpack.c.l.b16 %v4696
        %v7417 = vunpack.c.l.b16 %v4697
        %v7418 = vunpack.c.l.b16 %v4698
        %v7419 = vunpack.c.l.b16 %v4699
        %v7420 = vunpack.c.l.b16 %v4700
        %v7421 = vunpack.c.l.b16 %v4701
        %v7422 = vunpack.c.l.b16 %v4702
        %v7423 = vunpack.c.l.b16 %v4703
        %v7424 = vunpack.c.l.b16 %v4704
        %v7425 = vunpack.c.l.b16 %v4705
        %v7426 = vunpack.c.l.b16 %v4706
        %v7427 = vunpack.c.l.b16 %v4707
        %v7428 = vunpack.c.l.b16 %v4708
        %v7429 = vunpack.c.l.b16 %v4709
        %v7430 = vunpack.c.l.b16 %v4710
        %v7431 = vunpack.c.l.b16 %v4711
        %v7432 = vunpack.c.l.b16 %v4712
        %v7433 = vunpack.c.l.b16 %v4713
        %v7434 = vunpack.c.l.b16 %v4714
        %v7435 = vunpack.c.l.b16 %v4715
        %v7436 = vunpack.c.l.b16 %v4716
        %v7437 = vunpack.c.l.b16 %v4717
        %v7438 = vunpack.c.l.b16 %v4718
        %v7439 = vpack.c.b16 %v7408, %v7407
        %v7440 = vpack.c.b16 %v7410, %v7409
        %v7441 = vpack.c.b16 %v7412, %v7411
        %v7442 = vpack.c.b16 %v7414, %v7413
        %v7443 = vpack.c.b16 %v7416, %v7415
        %v7444 = vpack.c.b16 %v7418, %v7417
        %v7445 = vpack.c.b16 %v7420, %v7419
        %v7446 = vpack.c.b16 %v7422, %v7421
        %v7447 = vpack.c.b16 %v7424, %v7423
        %v7448 = vpack.c.b16 %v7426, %v7425
        %v7449 = vpack.c.b16 %v7428, %v7427
        %v7450 = vpack.c.b16 %v7430, %v7429
        %v7451 = vpack.c.b16 %v7432, %v7431
        %v7452 = vpack.c.b16 %v7434, %v7433
        %v7453 = vpack.c.b16 %v7436, %v7435
        %v7454 = vpack.c.b16 %v7438, %v7437
        %7471 = vmatprep.subr.bf16.mxu0 0
        %7472 = vmatpush1.bf16.msra.mxu0 %v7439
        %7473 = vmatprep.subr.bf16.mxu0 0
        %7474 = vmatpush1.bf16.msra.mxu0 %v7440
        %7475 = vmatprep.subr.bf16.mxu0 0
        %7476 = vmatpush1.bf16.msra.mxu0 %v7441
        %7477 = vmatprep.subr.bf16.mxu0 0
        %7478 = vmatpush1.bf16.msra.mxu0 %v7442
        %7479 = vmatprep.subr.bf16.mxu0 0
        %7480 = vmatpush1.bf16.msra.mxu0 %v7443
        %7481 = vmatprep.subr.bf16.mxu0 0
        %7482 = vmatpush1.bf16.msra.mxu0 %v7444
        %7483 = vmatprep.subr.bf16.mxu0 0
        %7484 = vmatpush1.bf16.msra.mxu0 %v7445
        %7485 = vmatprep.subr.bf16.mxu0 0
        %7486 = vmatpush1.bf16.msra.mxu0 %v7446
        %7487 = vmatprep.subr.bf16.mxu0 0
        %7488 = vmatpush1.bf16.msra.mxu0 %v7447
        %7489 = vmatprep.subr.bf16.mxu0 0
        %7490 = vmatpush1.bf16.msra.mxu0 %v7448
        %7491 = vmatprep.subr.bf16.mxu0 0
        %7492 = vmatpush1.bf16.msra.mxu0 %v7449
        %7493 = vmatprep.subr.bf16.mxu0 0
        %7494 = vmatpush1.bf16.msra.mxu0 %v7450
        %7495 = vmatprep.subr.bf16.mxu0 0
        %7496 = vmatpush1.bf16.msra.mxu0 %v7451
        %7497 = vmatprep.subr.bf16.mxu0 0
        %7498 = vmatpush1.bf16.msra.mxu0 %v7452
        %7499 = vmatprep.subr.bf16.mxu0 0
        %7500 = vmatpush1.bf16.msra.mxu0 %v7453
        %7501 = vmatprep.subr.bf16.mxu0 0
        %7502 = vmatpush1.bf16.msra.mxu0 %v7454
        %7503 = vmatprep.mubr.bf16.mxu0 %v4144
        %7504 = vmatmul.mubr.bf16.gmra.mrb[0].mxu0 %v4143
        %v7505 = vpop.f32.mrb[0].mxu0
        %v7506 = vadd.f32 0.0, %v7505
        %v7507 = vpop.f32.mrb[0].mxu0
        %v7508 = vpop.f32.mrb[0].mxu0
        %v7509 = vpop.f32.mrb[0].mxu0
        %7510 = vdwg.mxu0
        %v7543 = vunpack.c.l.b16 %v4719
        %v7544 = vunpack.c.l.b16 %v4720
        %v7545 = vunpack.c.l.b16 %v4721
        %v7546 = vunpack.c.l.b16 %v4722
        %v7547 = vunpack.c.l.b16 %v4723
        %v7548 = vunpack.c.l.b16 %v4724
        %v7549 = vunpack.c.l.b16 %v4725
        %v7550 = vunpack.c.l.b16 %v4726
        %v7551 = vunpack.c.l.b16 %v4727
        %v7552 = vunpack.c.l.b16 %v4728
        %v7553 = vunpack.c.l.b16 %v4729
        %v7554 = vunpack.c.l.b16 %v4730
        %v7555 = vunpack.c.l.b16 %v4731
        %v7556 = vunpack.c.l.b16 %v4732
        %v7557 = vunpack.c.l.b16 %v4733
        %v7558 = vunpack.c.l.b16 %v4734
        %v7559 = vunpack.c.l.b16 %v4735
        %v7560 = vunpack.c.l.b16 %v4736
        %v7561 = vunpack.c.l.b16 %v4737
        %v7562 = vunpack.c.l.b16 %v4738
        %v7563 = vunpack.c.l.b16 %v4739
        %v7564 = vunpack.c.l.b16 %v4740
        %v7565 = vunpack.c.l.b16 %v4741
        %v7566 = vunpack.c.l.b16 %v4742
        %v7567 = vunpack.c.l.b16 %v4743
        %v7568 = vunpack.c.l.b16 %v4744
        %v7569 = vunpack.c.l.b16 %v4745
        %v7570 = vunpack.c.l.b16 %v4746
        %v7571 = vunpack.c.l.b16 %v4747
        %v7572 = vunpack.c.l.b16 %v4748
        %v7573 = vunpack.c.l.b16 %v4749
        %v7574 = vunpack.c.l.b16 %v4750
        %v7575 = vpack.c.b16 %v7544, %v7543
        %v7576 = vpack.c.b16 %v7546, %v7545
        %v7577 = vpack.c.b16 %v7548, %v7547
        %v7578 = vpack.c.b16 %v7550, %v7549
        %v7579 = vpack.c.b16 %v7552, %v7551
        %v7580 = vpack.c.b16 %v7554, %v7553
        %v7581 = vpack.c.b16 %v7556, %v7555
        %v7582 = vpack.c.b16 %v7558, %v7557
        %v7583 = vpack.c.b16 %v7560, %v7559
        %v7584 = vpack.c.b16 %v7562, %v7561
        %v7585 = vpack.c.b16 %v7564, %v7563
        %v7586 = vpack.c.b16 %v7566, %v7565
        %v7587 = vpack.c.b16 %v7568, %v7567
        %v7588 = vpack.c.b16 %v7570, %v7569
        %v7589 = vpack.c.b16 %v7572, %v7571
        %v7590 = vpack.c.b16 %v7574, %v7573
        %7607 = vmatprep.subr.bf16.mxu0 0
        %7608 = vmatpush1.bf16.msra.mxu0 %v7575
        %7609 = vmatprep.subr.bf16.mxu0 0
        %7610 = vmatpush1.bf16.msra.mxu0 %v7576
        %7611 = vmatprep.subr.bf16.mxu0 0
        %7612 = vmatpush1.bf16.msra.mxu0 %v7577
        %7613 = vmatprep.subr.bf16.mxu0 0
        %7614 = vmatpush1.bf16.msra.mxu0 %v7578
        %7615 = vmatprep.subr.bf16.mxu0 0
        %7616 = vmatpush1.bf16.msra.mxu0 %v7579
        %7617 = vmatprep.subr.bf16.mxu0 0
        %7618 = vmatpush1.bf16.msra.mxu0 %v7580
        %7619 = vmatprep.subr.bf16.mxu0 0
        %7620 = vmatpush1.bf16.msra.mxu0 %v7581
        %7621 = vmatprep.subr.bf16.mxu0 0
        %7622 = vmatpush1.bf16.msra.mxu0 %v7582
        %7623 = vmatprep.subr.bf16.mxu0 0
        %7624 = vmatpush1.bf16.msra.mxu0 %v7583
        %7625 = vmatprep.subr.bf16.mxu0 0
        %7626 = vmatpush1.bf16.msra.mxu0 %v7584
        %7627 = vmatprep.subr.bf16.mxu0 0
        %7628 = vmatpush1.bf16.msra.mxu0 %v7585
        %7629 = vmatprep.subr.bf16.mxu0 0
        %7630 = vmatpush1.bf16.msra.mxu0 %v7586
        %7631 = vmatprep.subr.bf16.mxu0 0
        %7632 = vmatpush1.bf16.msra.mxu0 %v7587
        %7633 = vmatprep.subr.bf16.mxu0 0
        %7634 = vmatpush1.bf16.msra.mxu0 %v7588
        %7635 = vmatprep.subr.bf16.mxu0 0
        %7636 = vmatpush1.bf16.msra.mxu0 %v7589
        %7637 = vmatprep.subr.bf16.mxu0 0
        %7638 = vmatpush1.bf16.msra.mxu0 %v7590
        %7639 = vmatprep.mubr.bf16.mxu0 %v4146
        %7640 = vmatmul.mubr.bf16.gmra.mrb[0].mxu0 %v4145
        %v7641 = vpop.f32.mrb[0].mxu0
        %v7642 = vadd.f32 0.0, %v7641
        %v7643 = vpop.f32.mrb[0].mxu0
        %v7644 = vpop.f32.mrb[0].mxu0
        %v7645 = vpop.f32.mrb[0].mxu0
        %7646 = vdwg.mxu0
        %v7679 = vunpack.c.l.b16 %v4751
        %v7680 = vunpack.c.l.b16 %v4752
        %v7681 = vunpack.c.l.b16 %v4753
        %v7682 = vunpack.c.l.b16 %v4754
        %v7683 = vunpack.c.l.b16 %v4755
        %v7684 = vunpack.c.l.b16 %v4756
        %v7685 = vunpack.c.l.b16 %v4757
        %v7686 = vunpack.c.l.b16 %v4758
        %v7687 = vunpack.c.l.b16 %v4759
        %v7688 = vunpack.c.l.b16 %v4760
        %v7689 = vunpack.c.l.b16 %v4761
        %v7690 = vunpack.c.l.b16 %v4762
        %v7691 = vunpack.c.l.b16 %v4763
        %v7692 = vunpack.c.l.b16 %v4764
        %v7693 = vunpack.c.l.b16 %v4765
        %v7694 = vunpack.c.l.b16 %v4766
        %v7695 = vunpack.c.l.b16 %v4767
        %v7696 = vunpack.c.l.b16 %v4768
        %v7697 = vunpack.c.l.b16 %v4769
        %v7698 = vunpack.c.l.b16 %v4770
        %v7699 = vunpack.c.l.b16 %v4771
        %v7700 = vunpack.c.l.b16 %v4772
        %v7701 = vunpack.c.l.b16 %v4773
        %v7702 = vunpack.c.l.b16 %v4774
        %v7703 = vunpack.c.l.b16 %v4775
        %v7704 = vunpack.c.l.b16 %v4776
        %v7705 = vunpack.c.l.b16 %v4777
        %v7706 = vunpack.c.l.b16 %v4778
        %v7707 = vunpack.c.l.b16 %v4779
        %v7708 = vunpack.c.l.b16 %v4780
        %v7709 = vunpack.c.l.b16 %v4781
        %v7710 = vunpack.c.l.b16 %v4782
        %v7711 = vpack.c.b16 %v7680, %v7679
        %v7712 = vpack.c.b16 %v7682, %v7681
        %v7713 = vpack.c.b16 %v7684, %v7683
        %v7714 = vpack.c.b16 %v7686, %v7685
        %v7715 = vpack.c.b16 %v7688, %v7687
        %v7716 = vpack.c.b16 %v7690, %v7689
        %v7717 = vpack.c.b16 %v7692, %v7691
        %v7718 = vpack.c.b16 %v7694, %v7693
        %v7719 = vpack.c.b16 %v7696, %v7695
        %v7720 = vpack.c.b16 %v7698, %v7697
        %v7721 = vpack.c.b16 %v7700, %v7699
        %v7722 = vpack.c.b16 %v7702, %v7701
        %v7723 = vpack.c.b16 %v7704, %v7703
        %v7724 = vpack.c.b16 %v7706, %v7705
        %v7725 = vpack.c.b16 %v7708, %v7707
        %v7726 = vpack.c.b16 %v7710, %v7709
        %7743 = vmatprep.subr.bf16.mxu0 0
        %7744 = vmatpush1.bf16.msra.mxu0 %v7711
        %7745 = vmatprep.subr.bf16.mxu0 0
        %7746 = vmatpush1.bf16.msra.mxu0 %v7712
        %7747 = vmatprep.subr.bf16.mxu0 0
        %7748 = vmatpush1.bf16.msra.mxu0 %v7713
        %7749 = vmatprep.subr.bf16.mxu0 0
        %7750 = vmatpush1.bf16.msra.mxu0 %v7714
        %7751 = vmatprep.subr.bf16.mxu0 0
        %7752 = vmatpush1.bf16.msra.mxu0 %v7715
        %7753 = vmatprep.subr.bf16.mxu0 0
        %7754 = vmatpush1.bf16.msra.mxu0 %v7716
        %7755 = vmatprep.subr.bf16.mxu0 0
        %7756 = vmatpush1.bf16.msra.mxu0 %v7717
        %7757 = vmatprep.subr.bf16.mxu0 0
        %7758 = vmatpush1.bf16.msra.mxu0 %v7718
        %7759 = vmatprep.subr.bf16.mxu0 0
        %7760 = vmatpush1.bf16.msra.mxu0 %v7719
        %7761 = vmatprep.subr.bf16.mxu0 0
        %7762 = vmatpush1.bf16.msra.mxu0 %v7720
        %7763 = vmatprep.subr.bf16.mxu0 0
        %7764 = vmatpush1.bf16.msra.mxu0 %v7721
        %7765 = vmatprep.subr.bf16.mxu0 0
        %7766 = vmatpush1.bf16.msra.mxu0 %v7722
        %7767 = vmatprep.subr.bf16.mxu0 0
        %7768 = vmatpush1.bf16.msra.mxu0 %v7723
        %7769 = vmatprep.subr.bf16.mxu0 0
        %7770 = vmatpush1.bf16.msra.mxu0 %v7724
        %7771 = vmatprep.subr.bf16.mxu0 0
        %7772 = vmatpush1.bf16.msra.mxu0 %v7725
        %7773 = vmatprep.subr.bf16.mxu0 0
        %7774 = vmatpush1.bf16.msra.mxu0 %v7726
        %7775 = vmatprep.mubr.bf16.mxu0 %v4148
        %7776 = vmatmul.mubr.bf16.gmra.mrb[0].mxu0 %v4147
        %v7777 = vpop.f32.mrb[0].mxu0
        %v7778 = vadd.f32 0.0, %v7777
        %v7779 = vpop.f32.mrb[0].mxu0
        %v7780 = vpop.f32.mrb[0].mxu0
        %v7781 = vpop.f32.mrb[0].mxu0
        %7782 = vdwg.mxu0
        %v7815 = vunpack.c.l.b16 %v4783
        %v7816 = vunpack.c.l.b16 %v4784
        %v7817 = vunpack.c.l.b16 %v4785
        %v7818 = vunpack.c.l.b16 %v4786
        %v7819 = vunpack.c.l.b16 %v4787
        %v7820 = vunpack.c.l.b16 %v4788
        %v7821 = vunpack.c.l.b16 %v4789
        %v7822 = vunpack.c.l.b16 %v4790
        %v7823 = vunpack.c.l.b16 %v4791
        %v7824 = vunpack.c.l.b16 %v4792
        %v7825 = vunpack.c.l.b16 %v4793
        %v7826 = vunpack.c.l.b16 %v4794
        %v7827 = vunpack.c.l.b16 %v4795
        %v7828 = vunpack.c.l.b16 %v4796
        %v7829 = vunpack.c.l.b16 %v4797
        %v7830 = vunpack.c.l.b16 %v4798
        %v7831 = vunpack.c.l.b16 %v4799
        %v7832 = vunpack.c.l.b16 %v4800
        %v7833 = vunpack.c.l.b16 %v4801
        %v7834 = vunpack.c.l.b16 %v4802
        %v7835 = vunpack.c.l.b16 %v4803
        %v7836 = vunpack.c.l.b16 %v4804
        %v7837 = vunpack.c.l.b16 %v4805
        %v7838 = vunpack.c.l.b16 %v4806
        %v7839 = vunpack.c.l.b16 %v4807
        %v7840 = vunpack.c.l.b16 %v4808
        %v7841 = vunpack.c.l.b16 %v4809
        %v7842 = vunpack.c.l.b16 %v4810
        %v7843 = vunpack.c.l.b16 %v4811
        %v7844 = vunpack.c.l.b16 %v4812
        %v7845 = vunpack.c.l.b16 %v4813
        %v7846 = vunpack.c.l.b16 %v4814
        %v7847 = vpack.c.b16 %v7816, %v7815
        %v7848 = vpack.c.b16 %v7818, %v7817
        %v7849 = vpack.c.b16 %v7820, %v7819
        %v7850 = vpack.c.b16 %v7822, %v7821
        %v7851 = vpack.c.b16 %v7824, %v7823
        %v7852 = vpack.c.b16 %v7826, %v7825
        %v7853 = vpack.c.b16 %v7828, %v7827
        %v7854 = vpack.c.b16 %v7830, %v7829
        %v7855 = vpack.c.b16 %v7832, %v7831
        %v7856 = vpack.c.b16 %v7834, %v7833
        %v7857 = vpack.c.b16 %v7836, %v7835
        %v7858 = vpack.c.b16 %v7838, %v7837
        %v7859 = vpack.c.b16 %v7840, %v7839
        %v7860 = vpack.c.b16 %v7842, %v7841
        %v7861 = vpack.c.b16 %v7844, %v7843
        %v7862 = vpack.c.b16 %v7846, %v7845
        %7879 = vmatprep.subr.bf16.mxu0 0
        %7880 = vmatpush1.bf16.msra.mxu0 %v7847
        %7881 = vmatprep.subr.bf16.mxu0 0
        %7882 = vmatpush1.bf16.msra.mxu0 %v7848
        %7883 = vmatprep.subr.bf16.mxu0 0
        %7884 = vmatpush1.bf16.msra.mxu0 %v7849
        %7885 = vmatprep.subr.bf16.mxu0 0
        %7886 = vmatpush1.bf16.msra.mxu0 %v7850
        %7887 = vmatprep.subr.bf16.mxu0 0
        %7888 = vmatpush1.bf16.msra.mxu0 %v7851
        %7889 = vmatprep.subr.bf16.mxu0 0
        %7890 = vmatpush1.bf16.msra.mxu0 %v7852
        %7891 = vmatprep.subr.bf16.mxu0 0
        %7892 = vmatpush1.bf16.msra.mxu0 %v7853
        %7893 = vmatprep.subr.bf16.mxu0 0
        %7894 = vmatpush1.bf16.msra.mxu0 %v7854
        %7895 = vmatprep.subr.bf16.mxu0 0
        %7896 = vmatpush1.bf16.msra.mxu0 %v7855
        %7897 = vmatprep.subr.bf16.mxu0 0
        %7898 = vmatpush1.bf16.msra.mxu0 %v7856
        %7899 = vmatprep.subr.bf16.mxu0 0
        %7900 = vmatpush1.bf16.msra.mxu0 %v7857
        %7901 = vmatprep.subr.bf16.mxu0 0
        %7902 = vmatpush1.bf16.msra.mxu0 %v7858
        %7903 = vmatprep.subr.bf16.mxu0 0
        %7904 = vmatpush1.bf16.msra.mxu0 %v7859
        %7905 = vmatprep.subr.bf16.mxu0 0
        %7906 = vmatpush1.bf16.msra.mxu0 %v7860
        %7907 = vmatprep.subr.bf16.mxu0 0
        %7908 = vmatpush1.bf16.msra.mxu0 %v7861
        %7909 = vmatprep.subr.bf16.mxu0 0
        %7910 = vmatpush1.bf16.msra.mxu0 %v7862
        %7911 = vmatprep.mubr.bf16.mxu0 %v4150
        %7912 = vmatmul.mubr.bf16.gmra.mrb[0].mxu0 %v4149
        %v7913 = vpop.f32.mrb[0].mxu0
        %v7914 = vadd.f32 0.0, %v7913
        %v7915 = vpop.f32.mrb[0].mxu0
        %v7916 = vpop.f32.mrb[0].mxu0
        %v7917 = vpop.f32.mrb[0].mxu0
        %7918 = vdwg.mxu0
        %v7951 = vunpack.c.l.b16 %v4815
        %v7952 = vunpack.c.l.b16 %v4816
        %v7953 = vunpack.c.l.b16 %v4817
        %v7954 = vunpack.c.l.b16 %v4818
        %v7955 = vunpack.c.l.b16 %v4819
        %v7956 = vunpack.c.l.b16 %v4820
        %v7957 = vunpack.c.l.b16 %v4821
        %v7958 = vunpack.c.l.b16 %v4822
        %v7959 = vunpack.c.l.b16 %v4823
        %v7960 = vunpack.c.l.b16 %v4824
        %v7961 = vunpack.c.l.b16 %v4825
        %v7962 = vunpack.c.l.b16 %v4826
        %v7963 = vunpack.c.l.b16 %v4827
        %v7964 = vunpack.c.l.b16 %v4828
        %v7965 = vunpack.c.l.b16 %v4829
        %v7966 = vunpack.c.l.b16 %v4830
        %v7967 = vunpack.c.l.b16 %v4831
        %v7968 = vunpack.c.l.b16 %v4832
        %v7969 = vunpack.c.l.b16 %v4833
        %v7970 = vunpack.c.l.b16 %v4834
        %v7971 = vunpack.c.l.b16 %v4835
        %v7972 = vunpack.c.l.b16 %v4836
        %v7973 = vunpack.c.l.b16 %v4837
        %v7974 = vunpack.c.l.b16 %v4838
        %v7975 = vunpack.c.l.b16 %v4839
        %v7976 = vunpack.c.l.b16 %v4840
        %v7977 = vunpack.c.l.b16 %v4841
        %v7978 = vunpack.c.l.b16 %v4842
        %v7979 = vunpack.c.l.b16 %v4843
        %v7980 = vunpack.c.l.b16 %v4844
        %v7981 = vunpack.c.l.b16 %v4845
        %v7982 = vunpack.c.l.b16 %v4846
        %v7983 = vpack.c.b16 %v7952, %v7951
        %v7984 = vpack.c.b16 %v7954, %v7953
        %v7985 = vpack.c.b16 %v7956, %v7955
        %v7986 = vpack.c.b16 %v7958, %v7957
        %v7987 = vpack.c.b16 %v7960, %v7959
        %v7988 = vpack.c.b16 %v7962, %v7961
        %v7989 = vpack.c.b16 %v7964, %v7963
        %v7990 = vpack.c.b16 %v7966, %v7965
        %v7991 = vpack.c.b16 %v7968, %v7967
        %v7992 = vpack.c.b16 %v7970, %v7969
        %v7993 = vpack.c.b16 %v7972, %v7971
        %v7994 = vpack.c.b16 %v7974, %v7973
        %v7995 = vpack.c.b16 %v7976, %v7975
        %v7996 = vpack.c.b16 %v7978, %v7977
        %v7997 = vpack.c.b16 %v7980, %v7979
        %v7998 = vpack.c.b16 %v7982, %v7981
        %8015 = vmatprep.subr.bf16.mxu0 0
        %8016 = vmatpush1.bf16.msra.mxu0 %v7983
        %8017 = vmatprep.subr.bf16.mxu0 0
        %8018 = vmatpush1.bf16.msra.mxu0 %v7984
        %8019 = vmatprep.subr.bf16.mxu0 0
        %8020 = vmatpush1.bf16.msra.mxu0 %v7985
        %8021 = vmatprep.subr.bf16.mxu0 0
        %8022 = vmatpush1.bf16.msra.mxu0 %v7986
        %8023 = vmatprep.subr.bf16.mxu0 0
        %8024 = vmatpush1.bf16.msra.mxu0 %v7987
        %8025 = vmatprep.subr.bf16.mxu0 0
        %8026 = vmatpush1.bf16.msra.mxu0 %v7988
        %8027 = vmatprep.subr.bf16.mxu0 0
        %8028 = vmatpush1.bf16.msra.mxu0 %v7989
        %8029 = vmatprep.subr.bf16.mxu0 0
        %8030 = vmatpush1.bf16.msra.mxu0 %v7990
        %8031 = vmatprep.subr.bf16.mxu0 0
        %8032 = vmatpush1.bf16.msra.mxu0 %v7991
        %8033 = vmatprep.subr.bf16.mxu0 0
        %8034 = vmatpush1.bf16.msra.mxu0 %v7992
        %8035 = vmatprep.subr.bf16.mxu0 0
        %8036 = vmatpush1.bf16.msra.mxu0 %v7993
        %8037 = vmatprep.subr.bf16.mxu0 0
        %8038 = vmatpush1.bf16.msra.mxu0 %v7994
        %8039 = vmatprep.subr.bf16.mxu0 0
        %8040 = vmatpush1.bf16.msra.mxu0 %v7995
        %8041 = vmatprep.subr.bf16.mxu0 0
        %8042 = vmatpush1.bf16.msra.mxu0 %v7996
        %8043 = vmatprep.subr.bf16.mxu0 0
        %8044 = vmatpush1.bf16.msra.mxu0 %v7997
        %8045 = vmatprep.subr.bf16.mxu0 0
        %8046 = vmatpush1.bf16.msra.mxu0 %v7998
        %8047 = vmatprep.mubr.bf16.mxu0 %v4152
        %8048 = vmatmul.mubr.bf16.gmra.mrb[0].mxu0 %v4151
        %v8049 = vpop.f32.mrb[0].mxu0
        %v8050 = vadd.f32 0.0, %v8049
        %v8051 = vpop.f32.mrb[0].mxu0
        %v8052 = vpop.f32.mrb[0].mxu0
        %v8053 = vpop.f32.mrb[0].mxu0
        %8054 = vdwg.mxu0
        %v8087 = vunpack.c.l.b16 %v4847
        %v8088 = vunpack.c.l.b16 %v4848
        %v8089 = vunpack.c.l.b16 %v4849
        %v8090 = vunpack.c.l.b16 %v4850
        %v8091 = vunpack.c.l.b16 %v4851
        %v8092 = vunpack.c.l.b16 %v4852
        %v8093 = vunpack.c.l.b16 %v4853
        %v8094 = vunpack.c.l.b16 %v4854
        %v8095 = vunpack.c.l.b16 %v4855
        %v8096 = vunpack.c.l.b16 %v4856
        %v8097 = vunpack.c.l.b16 %v4857
        %v8098 = vunpack.c.l.b16 %v4858
        %v8099 = vunpack.c.l.b16 %v4859
        %v8100 = vunpack.c.l.b16 %v4860
        %v8101 = vunpack.c.l.b16 %v4861
        %v8102 = vunpack.c.l.b16 %v4862
        %v8103 = vunpack.c.l.b16 %v4863
        %v8104 = vunpack.c.l.b16 %v4864
        %v8105 = vunpack.c.l.b16 %v4865
        %v8106 = vunpack.c.l.b16 %v4866
        %v8107 = vunpack.c.l.b16 %v4867
        %v8108 = vunpack.c.l.b16 %v4868
        %v8109 = vunpack.c.l.b16 %v4869
        %v8110 = vunpack.c.l.b16 %v4870
        %v8111 = vunpack.c.l.b16 %v4871
        %v8112 = vunpack.c.l.b16 %v4872
        %v8113 = vunpack.c.l.b16 %v4873
        %v8114 = vunpack.c.l.b16 %v4874
        %v8115 = vunpack.c.l.b16 %v4875
        %v8116 = vunpack.c.l.b16 %v4876
        %v8117 = vunpack.c.l.b16 %v4877
        %v8118 = vunpack.c.l.b16 %v4878
        %v8119 = vpack.c.b16 %v8088, %v8087
        %v8120 = vpack.c.b16 %v8090, %v8089
        %v8121 = vpack.c.b16 %v8092, %v8091
        %v8122 = vpack.c.b16 %v8094, %v8093
        %v8123 = vpack.c.b16 %v8096, %v8095
        %v8124 = vpack.c.b16 %v8098, %v8097
        %v8125 = vpack.c.b16 %v8100, %v8099
        %v8126 = vpack.c.b16 %v8102, %v8101
        %v8127 = vpack.c.b16 %v8104, %v8103
        %v8128 = vpack.c.b16 %v8106, %v8105
        %v8129 = vpack.c.b16 %v8108, %v8107
        %v8130 = vpack.c.b16 %v8110, %v8109
        %v8131 = vpack.c.b16 %v8112, %v8111
        %v8132 = vpack.c.b16 %v8114, %v8113
        %v8133 = vpack.c.b16 %v8116, %v8115
        %v8134 = vpack.c.b16 %v8118, %v8117
        %8151 = vmatprep.subr.bf16.mxu0 0
        %8152 = vmatpush1.bf16.msra.mxu0 %v8119
        %8153 = vmatprep.subr.bf16.mxu0 0
        %8154 = vmatpush1.bf16.msra.mxu0 %v8120
        %8155 = vmatprep.subr.bf16.mxu0 0
        %8156 = vmatpush1.bf16.msra.mxu0 %v8121
        %8157 = vmatprep.subr.bf16.mxu0 0
        %8158 = vmatpush1.bf16.msra.mxu0 %v8122
        %8159 = vmatprep.subr.bf16.mxu0 0
        %8160 = vmatpush1.bf16.msra.mxu0 %v8123
        %8161 = vmatprep.subr.bf16.mxu0 0
        %8162 = vmatpush1.bf16.msra.mxu0 %v8124
        %8163 = vmatprep.subr.bf16.mxu0 0
        %8164 = vmatpush1.bf16.msra.mxu0 %v8125
        %8165 = vmatprep.subr.bf16.mxu0 0
        %8166 = vmatpush1.bf16.msra.mxu0 %v8126
        %8167 = vmatprep.subr.bf16.mxu0 0
        %8168 = vmatpush1.bf16.msra.mxu0 %v8127
        %8169 = vmatprep.subr.bf16.mxu0 0
        %8170 = vmatpush1.bf16.msra.mxu0 %v8128
        %8171 = vmatprep.subr.bf16.mxu0 0
        %8172 = vmatpush1.bf16.msra.mxu0 %v8129
        %8173 = vmatprep.subr.bf16.mxu0 0
        %8174 = vmatpush1.bf16.msra.mxu0 %v8130
        %8175 = vmatprep.subr.bf16.mxu0 0
        %8176 = vmatpush1.bf16.msra.mxu0 %v8131
        %8177 = vmatprep.subr.bf16.mxu0 0
        %8178 = vmatpush1.bf16.msra.mxu0 %v8132
        %8179 = vmatprep.subr.bf16.mxu0 0
        %8180 = vmatpush1.bf16.msra.mxu0 %v8133
        %8181 = vmatprep.subr.bf16.mxu0 0
        %8182 = vmatpush1.bf16.msra.mxu0 %v8134
        %8183 = vmatprep.mubr.bf16.mxu0 %v4154
        %8184 = vmatmul.mubr.bf16.gmra.mrb[0].mxu0 %v4153
        %v8185 = vpop.f32.mrb[0].mxu0
        %v8186 = vadd.f32 0.0, %v8185
        %v8187 = vpop.f32.mrb[0].mxu0
        %v8188 = vpop.f32.mrb[0].mxu0
        %v8189 = vpop.f32.mrb[0].mxu0
        %8190 = vdwg.mxu0
        %v8223 = vunpack.c.l.b16 %v4879
        %v8224 = vunpack.c.l.b16 %v4880
        %v8225 = vunpack.c.l.b16 %v4881
        %v8226 = vunpack.c.l.b16 %v4882
        %v8227 = vunpack.c.l.b16 %v4883
        %v8228 = vunpack.c.l.b16 %v4884
        %v8229 = vunpack.c.l.b16 %v4885
        %v8230 = vunpack.c.l.b16 %v4886
        %v8231 = vunpack.c.l.b16 %v4887
        %v8232 = vunpack.c.l.b16 %v4888
        %v8233 = vunpack.c.l.b16 %v4889
        %v8234 = vunpack.c.l.b16 %v4890
        %v8235 = vunpack.c.l.b16 %v4891
        %v8236 = vunpack.c.l.b16 %v4892
        %v8237 = vunpack.c.l.b16 %v4893
        %v8238 = vunpack.c.l.b16 %v4894
        %v8239 = vunpack.c.l.b16 %v4895
        %v8240 = vunpack.c.l.b16 %v4896
        %v8241 = vunpack.c.l.b16 %v4897
        %v8242 = vunpack.c.l.b16 %v4898
        %v8243 = vunpack.c.l.b16 %v4899
        %v8244 = vunpack.c.l.b16 %v4900
        %v8245 = vunpack.c.l.b16 %v4901
        %v8246 = vunpack.c.l.b16 %v4902
        %v8247 = vunpack.c.l.b16 %v4903
        %v8248 = vunpack.c.l.b16 %v4904
        %v8249 = vunpack.c.l.b16 %v4905
        %v8250 = vunpack.c.l.b16 %v4906
        %v8251 = vunpack.c.l.b16 %v4907
        %v8252 = vunpack.c.l.b16 %v4908
        %v8253 = vunpack.c.l.b16 %v4909
        %v8254 = vunpack.c.l.b16 %v4910
        %v8255 = vpack.c.b16 %v8224, %v8223
        %v8256 = vpack.c.b16 %v8226, %v8225
        %v8257 = vpack.c.b16 %v8228, %v8227
        %v8258 = vpack.c.b16 %v8230, %v8229
        %v8259 = vpack.c.b16 %v8232, %v8231
        %v8260 = vpack.c.b16 %v8234, %v8233
        %v8261 = vpack.c.b16 %v8236, %v8235
        %v8262 = vpack.c.b16 %v8238, %v8237
        %v8263 = vpack.c.b16 %v8240, %v8239
        %v8264 = vpack.c.b16 %v8242, %v8241
        %v8265 = vpack.c.b16 %v8244, %v8243
        %v8266 = vpack.c.b16 %v8246, %v8245
        %v8267 = vpack.c.b16 %v8248, %v8247
        %v8268 = vpack.c.b16 %v8250, %v8249
        %v8269 = vpack.c.b16 %v8252, %v8251
        %v8270 = vpack.c.b16 %v8254, %v8253
        %8287 = vmatprep.subr.bf16.mxu0 0
        %8288 = vmatpush1.bf16.msra.mxu0 %v8255
        %8289 = vmatprep.subr.bf16.mxu0 0
        %8290 = vmatpush1.bf16.msra.mxu0 %v8256
        %8291 = vmatprep.subr.bf16.mxu0 0
        %8292 = vmatpush1.bf16.msra.mxu0 %v8257
        %8293 = vmatprep.subr.bf16.mxu0 0
        %8294 = vmatpush1.bf16.msra.mxu0 %v8258
        %8295 = vmatprep.subr.bf16.mxu0 0
        %8296 = vmatpush1.bf16.msra.mxu0 %v8259
        %8297 = vmatprep.subr.bf16.mxu0 0
        %8298 = vmatpush1.bf16.msra.mxu0 %v8260
        %8299 = vmatprep.subr.bf16.mxu0 0
        %8300 = vmatpush1.bf16.msra.mxu0 %v8261
        %8301 = vmatprep.subr.bf16.mxu0 0
        %8302 = vmatpush1.bf16.msra.mxu0 %v8262
        %8303 = vmatprep.subr.bf16.mxu0 0
        %8304 = vmatpush1.bf16.msra.mxu0 %v8263
        %8305 = vmatprep.subr.bf16.mxu0 0
        %8306 = vmatpush1.bf16.msra.mxu0 %v8264
        %8307 = vmatprep.subr.bf16.mxu0 0
        %8308 = vmatpush1.bf16.msra.mxu0 %v8265
        %8309 = vmatprep.subr.bf16.mxu0 0
        %8310 = vmatpush1.bf16.msra.mxu0 %v8266
        %8311 = vmatprep.subr.bf16.mxu0 0
        %8312 = vmatpush1.bf16.msra.mxu0 %v8267
        %8313 = vmatprep.subr.bf16.mxu0 0
        %8314 = vmatpush1.bf16.msra.mxu0 %v8268
        %8315 = vmatprep.subr.bf16.mxu0 0
        %8316 = vmatpush1.bf16.msra.mxu0 %v8269
        %8317 = vmatprep.subr.bf16.mxu0 0
        %8318 = vmatpush1.bf16.msra.mxu0 %v8270
        %8319 = vmatprep.mubr.bf16.mxu0 %v4156
        %8320 = vmatmul.mubr.bf16.gmra.mrb[0].mxu0 %v4155
        %v8321 = vpop.f32.mrb[0].mxu0
        %v8322 = vadd.f32 0.0, %v8321
        %v8323 = vpop.f32.mrb[0].mxu0
        %v8324 = vpop.f32.mrb[0].mxu0
        %v8325 = vpop.f32.mrb[0].mxu0
        %8326 = vdwg.mxu0
        %v8359 = vunpack.c.l.b16 %v4911
        %v8360 = vunpack.c.l.b16 %v4912
        %v8361 = vunpack.c.l.b16 %v4913
        %v8362 = vunpack.c.l.b16 %v4914
        %v8363 = vunpack.c.l.b16 %v4915
        %v8364 = vunpack.c.l.b16 %v4916
        %v8365 = vunpack.c.l.b16 %v4917
        %v8366 = vunpack.c.l.b16 %v4918
        %v8367 = vunpack.c.l.b16 %v4919
        %v8368 = vunpack.c.l.b16 %v4920
        %v8369 = vunpack.c.l.b16 %v4921
        %v8370 = vunpack.c.l.b16 %v4922
        %v8371 = vunpack.c.l.b16 %v4923
        %v8372 = vunpack.c.l.b16 %v4924
        %v8373 = vunpack.c.l.b16 %v4925
        %v8374 = vunpack.c.l.b16 %v4926
        %v8375 = vunpack.c.l.b16 %v4927
        %v8376 = vunpack.c.l.b16 %v4928
        %v8377 = vunpack.c.l.b16 %v4929
        %v8378 = vunpack.c.l.b16 %v4930
        %v8379 = vunpack.c.l.b16 %v4931
        %v8380 = vunpack.c.l.b16 %v4932
        %v8381 = vunpack.c.l.b16 %v4933
        %v8382 = vunpack.c.l.b16 %v4934
        %v8383 = vunpack.c.l.b16 %v4935
        %v8384 = vunpack.c.l.b16 %v4936
        %v8385 = vunpack.c.l.b16 %v4937
        %v8386 = vunpack.c.l.b16 %v4938
        %v8387 = vunpack.c.l.b16 %v4939
        %v8388 = vunpack.c.l.b16 %v4940
        %v8389 = vunpack.c.l.b16 %v4941
        %v8390 = vunpack.c.l.b16 %v4942
        %v8391 = vpack.c.b16 %v8360, %v8359
        %v8392 = vpack.c.b16 %v8362, %v8361
        %v8393 = vpack.c.b16 %v8364, %v8363
        %v8394 = vpack.c.b16 %v8366, %v8365
        %v8395 = vpack.c.b16 %v8368, %v8367
        %v8396 = vpack.c.b16 %v8370, %v8369
        %v8397 = vpack.c.b16 %v8372, %v8371
        %v8398 = vpack.c.b16 %v8374, %v8373
        %v8399 = vpack.c.b16 %v8376, %v8375
        %v8400 = vpack.c.b16 %v8378, %v8377
        %v8401 = vpack.c.b16 %v8380, %v8379
        %v8402 = vpack.c.b16 %v8382, %v8381
        %v8403 = vpack.c.b16 %v8384, %v8383
        %v8404 = vpack.c.b16 %v8386, %v8385
        %v8405 = vpack.c.b16 %v8388, %v8387
        %v8406 = vpack.c.b16 %v8390, %v8389
        %8423 = vmatprep.subr.bf16.mxu0 0
        %8424 = vmatpush1.bf16.msra.mxu0 %v8391
        %8425 = vmatprep.subr.bf16.mxu0 0
        %8426 = vmatpush1.bf16.msra.mxu0 %v8392
        %8427 = vmatprep.subr.bf16.mxu0 0
        %8428 = vmatpush1.bf16.msra.mxu0 %v8393
        %8429 = vmatprep.subr.bf16.mxu0 0
        %8430 = vmatpush1.bf16.msra.mxu0 %v8394
        %8431 = vmatprep.subr.bf16.mxu0 0
        %8432 = vmatpush1.bf16.msra.mxu0 %v8395
        %8433 = vmatprep.subr.bf16.mxu0 0
        %8434 = vmatpush1.bf16.msra.mxu0 %v8396
        %8435 = vmatprep.subr.bf16.mxu0 0
        %8436 = vmatpush1.bf16.msra.mxu0 %v8397
        %8437 = vmatprep.subr.bf16.mxu0 0
        %8438 = vmatpush1.bf16.msra.mxu0 %v8398
        %8439 = vmatprep.subr.bf16.mxu0 0
        %8440 = vmatpush1.bf16.msra.mxu0 %v8399
        %8441 = vmatprep.subr.bf16.mxu0 0
        %8442 = vmatpush1.bf16.msra.mxu0 %v8400
        %8443 = vmatprep.subr.bf16.mxu0 0
        %8444 = vmatpush1.bf16.msra.mxu0 %v8401
        %8445 = vmatprep.subr.bf16.mxu0 0
        %8446 = vmatpush1.bf16.msra.mxu0 %v8402
        %8447 = vmatprep.subr.bf16.mxu0 0
        %8448 = vmatpush1.bf16.msra.mxu0 %v8403
        %8449 = vmatprep.subr.bf16.mxu0 0
        %8450 = vmatpush1.bf16.msra.mxu0 %v8404
        %8451 = vmatprep.subr.bf16.mxu0 0
        %8452 = vmatpush1.bf16.msra.mxu0 %v8405
        %8453 = vmatprep.subr.bf16.mxu0 0
        %8454 = vmatpush1.bf16.msra.mxu0 %v8406
        %8455 = vmatprep.mubr.bf16.mxu0 %v4158
        %8456 = vmatmul.mubr.bf16.gmra.mrb[0].mxu0 %v4157
        %v8457 = vpop.f32.mrb[0].mxu0
        %v8458 = vadd.f32 0.0, %v8457
        %v8459 = vpop.f32.mrb[0].mxu0
        %v8460 = vpop.f32.mrb[0].mxu0
        %v8461 = vpop.f32.mrb[0].mxu0
        %8462 = vdwg.mxu0
        %v8495 = vunpack.c.l.b16 %v4943
        %v8496 = vunpack.c.l.b16 %v4944
        %v8497 = vunpack.c.l.b16 %v4945
        %v8498 = vunpack.c.l.b16 %v4946
        %v8499 = vunpack.c.l.b16 %v4947
        %v8500 = vunpack.c.l.b16 %v4948
        %v8501 = vunpack.c.l.b16 %v4949
        %v8502 = vunpack.c.l.b16 %v4950
        %v8503 = vunpack.c.l.b16 %v4951
        %v8504 = vunpack.c.l.b16 %v4952
        %v8505 = vunpack.c.l.b16 %v4953
        %v8506 = vunpack.c.l.b16 %v4954
        %v8507 = vunpack.c.l.b16 %v4955
        %v8508 = vunpack.c.l.b16 %v4956
        %v8509 = vunpack.c.l.b16 %v4957
        %v8510 = vunpack.c.l.b16 %v4958
        %v8511 = vunpack.c.l.b16 %v4959
        %v8512 = vunpack.c.l.b16 %v4960
        %v8513 = vunpack.c.l.b16 %v4961
        %v8514 = vunpack.c.l.b16 %v4962
        %v8515 = vunpack.c.l.b16 %v4963
        %v8516 = vunpack.c.l.b16 %v4964
        %v8517 = vunpack.c.l.b16 %v4965
        %v8518 = vunpack.c.l.b16 %v4966
        %v8519 = vunpack.c.l.b16 %v4967
        %v8520 = vunpack.c.l.b16 %v4968
        %v8521 = vunpack.c.l.b16 %v4969
        %v8522 = vunpack.c.l.b16 %v4970
        %v8523 = vunpack.c.l.b16 %v4971
        %v8524 = vunpack.c.l.b16 %v4972
        %v8525 = vunpack.c.l.b16 %v4973
        %v8526 = vunpack.c.l.b16 %v4974
        %v8527 = vpack.c.b16 %v8496, %v8495
        %v8528 = vpack.c.b16 %v8498, %v8497
        %v8529 = vpack.c.b16 %v8500, %v8499
        %v8530 = vpack.c.b16 %v8502, %v8501
        %v8531 = vpack.c.b16 %v8504, %v8503
        %v8532 = vpack.c.b16 %v8506, %v8505
        %v8533 = vpack.c.b16 %v8508, %v8507
        %v8534 = vpack.c.b16 %v8510, %v8509
        %v8535 = vpack.c.b16 %v8512, %v8511
        %v8536 = vpack.c.b16 %v8514, %v8513
        %v8537 = vpack.c.b16 %v8516, %v8515
        %v8538 = vpack.c.b16 %v8518, %v8517
        %v8539 = vpack.c.b16 %v8520, %v8519
        %v8540 = vpack.c.b16 %v8522, %v8521
        %v8541 = vpack.c.b16 %v8524, %v8523
        %v8542 = vpack.c.b16 %v8526, %v8525
        %8559 = vmatprep.subr.bf16.mxu0 0
        %8560 = vmatpush1.bf16.msra.mxu0 %v8527
        %8561 = vmatprep.subr.bf16.mxu0 0
        %8562 = vmatpush1.bf16.msra.mxu0 %v8528
        %8563 = vmatprep.subr.bf16.mxu0 0
        %8564 = vmatpush1.bf16.msra.mxu0 %v8529
        %8565 = vmatprep.subr.bf16.mxu0 0
        %8566 = vmatpush1.bf16.msra.mxu0 %v8530
        %8567 = vmatprep.subr.bf16.mxu0 0
        %8568 = vmatpush1.bf16.msra.mxu0 %v8531
        %8569 = vmatprep.subr.bf16.mxu0 0
        %8570 = vmatpush1.bf16.msra.mxu0 %v8532
        %8571 = vmatprep.subr.bf16.mxu0 0
        %8572 = vmatpush1.bf16.msra.mxu0 %v8533
        %8573 = vmatprep.subr.bf16.mxu0 0
        %8574 = vmatpush1.bf16.msra.mxu0 %v8534
        %8575 = vmatprep.subr.bf16.mxu0 0
        %8576 = vmatpush1.bf16.msra.mxu0 %v8535
        %8577 = vmatprep.subr.bf16.mxu0 0
        %8578 = vmatpush1.bf16.msra.mxu0 %v8536
        %8579 = vmatprep.subr.bf16.mxu0 0
        %8580 = vmatpush1.bf16.msra.mxu0 %v8537
        %8581 = vmatprep.subr.bf16.mxu0 0
        %8582 = vmatpush1.bf16.msra.mxu0 %v8538
        %8583 = vmatprep.subr.bf16.mxu0 0
        %8584 = vmatpush1.bf16.msra.mxu0 %v8539
        %8585 = vmatprep.subr.bf16.mxu0 0
        %8586 = vmatpush1.bf16.msra.mxu0 %v8540
        %8587 = vmatprep.subr.bf16.mxu0 0
        %8588 = vmatpush1.bf16.msra.mxu0 %v8541
        %8589 = vmatprep.subr.bf16.mxu0 0
        %8590 = vmatpush1.bf16.msra.mxu0 %v8542
        %8591 = vmatprep.mubr.bf16.mxu0 %v4160
        %8592 = vmatmul.mubr.bf16.gmra.mrb[0].mxu0 %v4159
        %v8593 = vpop.f32.mrb[0].mxu0
        %v8594 = vadd.f32 0.0, %v8593
        %v8595 = vpop.f32.mrb[0].mxu0
        %v8596 = vpop.f32.mrb[0].mxu0
        %v8597 = vpop.f32.mrb[0].mxu0
        %8598 = vdwg.mxu0
        %v8631 = vunpack.c.l.b16 %v4975
        %v8632 = vunpack.c.l.b16 %v4976
        %v8633 = vunpack.c.l.b16 %v4977
        %v8634 = vunpack.c.l.b16 %v4978
        %v8635 = vunpack.c.l.b16 %v4979
        %v8636 = vunpack.c.l.b16 %v4980
        %v8637 = vunpack.c.l.b16 %v4981
        %v8638 = vunpack.c.l.b16 %v4982
        %v8639 = vunpack.c.l.b16 %v4983
        %v8640 = vunpack.c.l.b16 %v4984
        %v8641 = vunpack.c.l.b16 %v4985
        %v8642 = vunpack.c.l.b16 %v4986
        %v8643 = vunpack.c.l.b16 %v4987
        %v8644 = vunpack.c.l.b16 %v4988
        %v8645 = vunpack.c.l.b16 %v4989
        %v8646 = vunpack.c.l.b16 %v4990
        %v8647 = vunpack.c.l.b16 %v4991
        %v8648 = vunpack.c.l.b16 %v4992
        %v8649 = vunpack.c.l.b16 %v4993
        %v8650 = vunpack.c.l.b16 %v4994
        %v8651 = vunpack.c.l.b16 %v4995
        %v8652 = vunpack.c.l.b16 %v4996
        %v8653 = vunpack.c.l.b16 %v4997
        %v8654 = vunpack.c.l.b16 %v4998
        %v8655 = vunpack.c.l.b16 %v4999
        %v8656 = vunpack.c.l.b16 %v5000
        %v8657 = vunpack.c.l.b16 %v5001
        %v8658 = vunpack.c.l.b16 %v5002
        %v8659 = vunpack.c.l.b16 %v5003
        %v8660 = vunpack.c.l.b16 %v5004
        %v8661 = vunpack.c.l.b16 %v5005
        %v8662 = vunpack.c.l.b16 %v5006
        %v8663 = vpack.c.b16 %v8632, %v8631
        %v8664 = vpack.c.b16 %v8634, %v8633
        %v8665 = vpack.c.b16 %v8636, %v8635
        %v8666 = vpack.c.b16 %v8638, %v8637
        %v8667 = vpack.c.b16 %v8640, %v8639
        %v8668 = vpack.c.b16 %v8642, %v8641
        %v8669 = vpack.c.b16 %v8644, %v8643
        %v8670 = vpack.c.b16 %v8646, %v8645
        %v8671 = vpack.c.b16 %v8648, %v8647
        %v8672 = vpack.c.b16 %v8650, %v8649
        %v8673 = vpack.c.b16 %v8652, %v8651
        %v8674 = vpack.c.b16 %v8654, %v8653
        %v8675 = vpack.c.b16 %v8656, %v8655
        %v8676 = vpack.c.b16 %v8658, %v8657
        %v8677 = vpack.c.b16 %v8660, %v8659
        %v8678 = vpack.c.b16 %v8662, %v8661
        %8695 = vmatprep.subr.bf16.mxu0 0
        %8696 = vmatpush1.bf16.msra.mxu0 %v8663
        %8697 = vmatprep.subr.bf16.mxu0 0
        %8698 = vmatpush1.bf16.msra.mxu0 %v8664
        %8699 = vmatprep.subr.bf16.mxu0 0
        %8700 = vmatpush1.bf16.msra.mxu0 %v8665
        %8701 = vmatprep.subr.bf16.mxu0 0
        %8702 = vmatpush1.bf16.msra.mxu0 %v8666
        %8703 = vmatprep.subr.bf16.mxu0 0
        %8704 = vmatpush1.bf16.msra.mxu0 %v8667
        %8705 = vmatprep.subr.bf16.mxu0 0
        %8706 = vmatpush1.bf16.msra.mxu0 %v8668
        %8707 = vmatprep.subr.bf16.mxu0 0
        %8708 = vmatpush1.bf16.msra.mxu0 %v8669
        %8709 = vmatprep.subr.bf16.mxu0 0
        %8710 = vmatpush1.bf16.msra.mxu0 %v8670
        %8711 = vmatprep.subr.bf16.mxu0 0
        %8712 = vmatpush1.bf16.msra.mxu0 %v8671
        %8713 = vmatprep.subr.bf16.mxu0 0
        %8714 = vmatpush1.bf16.msra.mxu0 %v8672
        %8715 = vmatprep.subr.bf16.mxu0 0
        %8716 = vmatpush1.bf16.msra.mxu0 %v8673
        %8717 = vmatprep.subr.bf16.mxu0 0
        %8718 = vmatpush1.bf16.msra.mxu0 %v8674
        %8719 = vmatprep.subr.bf16.mxu0 0
        %8720 = vmatpush1.bf16.msra.mxu0 %v8675
        %8721 = vmatprep.subr.bf16.mxu0 0
        %8722 = vmatpush1.bf16.msra.mxu0 %v8676
        %8723 = vmatprep.subr.bf16.mxu0 0
        %8724 = vmatpush1.bf16.msra.mxu0 %v8677
        %8725 = vmatprep.subr.bf16.mxu0 0
        %8726 = vmatpush1.bf16.msra.mxu0 %v8678
        %8727 = vmatprep.mubr.bf16.mxu0 %v4162
        %8728 = vmatmul.mubr.bf16.gmra.mrb[0].mxu0 %v4161
        %v8729 = vpop.f32.mrb[0].mxu0
        %v8730 = vadd.f32 0.0, %v8729
        %v8731 = vpop.f32.mrb[0].mxu0
        %v8732 = vpop.f32.mrb[0].mxu0
        %v8733 = vpop.f32.mrb[0].mxu0
        %8734 = vdwg.mxu0
        %v8767 = vunpack.c.l.b16 %v5007
        %v8768 = vunpack.c.l.b16 %v5008
        %v8769 = vunpack.c.l.b16 %v5009
        %v8770 = vunpack.c.l.b16 %v5010
        %v8771 = vunpack.c.l.b16 %v5011
        %v8772 = vunpack.c.l.b16 %v5012
        %v8773 = vunpack.c.l.b16 %v5013
        %v8774 = vunpack.c.l.b16 %v5014
        %v8775 = vunpack.c.l.b16 %v5015
        %v8776 = vunpack.c.l.b16 %v5016
        %v8777 = vunpack.c.l.b16 %v5017
        %v8778 = vunpack.c.l.b16 %v5018
        %v8779 = vunpack.c.l.b16 %v5019
        %v8780 = vunpack.c.l.b16 %v5020
        %v8781 = vunpack.c.l.b16 %v5021
        %v8782 = vunpack.c.l.b16 %v5022
        %v8783 = vunpack.c.l.b16 %v5023
        %v8784 = vunpack.c.l.b16 %v5024
        %v8785 = vunpack.c.l.b16 %v5025
        %v8786 = vunpack.c.l.b16 %v5026
        %v8787 = vunpack.c.l.b16 %v5027
        %v8788 = vunpack.c.l.b16 %v5028
        %v8789 = vunpack.c.l.b16 %v5029
        %v8790 = vunpack.c.l.b16 %v5030
        %v8791 = vunpack.c.l.b16 %v5031
        %v8792 = vunpack.c.l.b16 %v5032
        %v8793 = vunpack.c.l.b16 %v5033
        %v8794 = vunpack.c.l.b16 %v5034
        %v8795 = vunpack.c.l.b16 %v5035
        %v8796 = vunpack.c.l.b16 %v5036
        %v8797 = vunpack.c.l.b16 %v5037
        %v8798 = vunpack.c.l.b16 %v5038
        %v8799 = vpack.c.b16 %v8768, %v8767
        %v8800 = vpack.c.b16 %v8770, %v8769
        %v8801 = vpack.c.b16 %v8772, %v8771
        %v8802 = vpack.c.b16 %v8774, %v8773
        %v8803 = vpack.c.b16 %v8776, %v8775
        %v8804 = vpack.c.b16 %v8778, %v8777
        %v8805 = vpack.c.b16 %v8780, %v8779
        %v8806 = vpack.c.b16 %v8782, %v8781
        %v8807 = vpack.c.b16 %v8784, %v8783
        %v8808 = vpack.c.b16 %v8786, %v8785
        %v8809 = vpack.c.b16 %v8788, %v8787
        %v8810 = vpack.c.b16 %v8790, %v8789
        %v8811 = vpack.c.b16 %v8792, %v8791
        %v8812 = vpack.c.b16 %v8794, %v8793
        %v8813 = vpack.c.b16 %v8796, %v8795
        %v8814 = vpack.c.b16 %v8798, %v8797
        %8831 = vmatprep.subr.bf16.mxu0 0
        %8832 = vmatpush1.bf16.msra.mxu0 %v8799
        %8833 = vmatprep.subr.bf16.mxu0 0
        %8834 = vmatpush1.bf16.msra.mxu0 %v8800
        %8835 = vmatprep.subr.bf16.mxu0 0
        %8836 = vmatpush1.bf16.msra.mxu0 %v8801
        %8837 = vmatprep.subr.bf16.mxu0 0
        %8838 = vmatpush1.bf16.msra.mxu0 %v8802
        %8839 = vmatprep.subr.bf16.mxu0 0
        %8840 = vmatpush1.bf16.msra.mxu0 %v8803
        %8841 = vmatprep.subr.bf16.mxu0 0
        %8842 = vmatpush1.bf16.msra.mxu0 %v8804
        %8843 = vmatprep.subr.bf16.mxu0 0
        %8844 = vmatpush1.bf16.msra.mxu0 %v8805
        %8845 = vmatprep.subr.bf16.mxu0 0
        %8846 = vmatpush1.bf16.msra.mxu0 %v8806
        %8847 = vmatprep.subr.bf16.mxu0 0
        %8848 = vmatpush1.bf16.msra.mxu0 %v8807
        %8849 = vmatprep.subr.bf16.mxu0 0
        %8850 = vmatpush1.bf16.msra.mxu0 %v8808
        %8851 = vmatprep.subr.bf16.mxu0 0
        %8852 = vmatpush1.bf16.msra.mxu0 %v8809
        %8853 = vmatprep.subr.bf16.mxu0 0
        %8854 = vmatpush1.bf16.msra.mxu0 %v8810
        %8855 = vmatprep.subr.bf16.mxu0 0
        %8856 = vmatpush1.bf16.msra.mxu0 %v8811
        %8857 = vmatprep.subr.bf16.mxu0 0
        %8858 = vmatpush1.bf16.msra.mxu0 %v8812
        %8859 = vmatprep.subr.bf16.mxu0 0
        %8860 = vmatpush1.bf16.msra.mxu0 %v8813
        %8861 = vmatprep.subr.bf16.mxu0 0
        %8862 = vmatpush1.bf16.msra.mxu0 %v8814
        %8863 = vmatprep.mubr.bf16.mxu0 %v4164
        %8864 = vmatmul.mubr.bf16.gmra.mrb[0].mxu0 %v4163
        %v8865 = vpop.f32.mrb[0].mxu0
        %v8866 = vadd.f32 0.0, %v8865
        %v8867 = vpop.f32.mrb[0].mxu0
        %v8868 = vpop.f32.mrb[0].mxu0
        %v8869 = vpop.f32.mrb[0].mxu0
        %8870 = vdwg.mxu0
        %v8903 = vunpack.c.l.b16 %v5039
        %v8904 = vunpack.c.l.b16 %v5040
        %v8905 = vunpack.c.l.b16 %v5041
        %v8906 = vunpack.c.l.b16 %v5042
        %v8907 = vunpack.c.l.b16 %v5043
        %v8908 = vunpack.c.l.b16 %v5044
        %v8909 = vunpack.c.l.b16 %v5045
        %v8910 = vunpack.c.l.b16 %v5046
        %v8911 = vunpack.c.l.b16 %v5047
        %v8912 = vunpack.c.l.b16 %v5048
        %v8913 = vunpack.c.l.b16 %v5049
        %v8914 = vunpack.c.l.b16 %v5050
        %v8915 = vunpack.c.l.b16 %v5051
        %v8916 = vunpack.c.l.b16 %v5052
        %v8917 = vunpack.c.l.b16 %v5053
        %v8918 = vunpack.c.l.b16 %v5054
        %v8919 = vunpack.c.l.b16 %v5055
        %v8920 = vunpack.c.l.b16 %v5056
        %v8921 = vunpack.c.l.b16 %v5057
        %v8922 = vunpack.c.l.b16 %v5058
        %v8923 = vunpack.c.l.b16 %v5059
        %v8924 = vunpack.c.l.b16 %v5060
        %v8925 = vunpack.c.l.b16 %v5061
        %v8926 = vunpack.c.l.b16 %v5062
        %v8927 = vunpack.c.l.b16 %v5063
        %v8928 = vunpack.c.l.b16 %v5064
        %v8929 = vunpack.c.l.b16 %v5065
        %v8930 = vunpack.c.l.b16 %v5066
        %v8931 = vunpack.c.l.b16 %v5067
        %v8932 = vunpack.c.l.b16 %v5068
        %v8933 = vunpack.c.l.b16 %v5069
        %v8934 = vunpack.c.l.b16 %v5070
        %v8935 = vpack.c.b16 %v8904, %v8903
        %v8936 = vpack.c.b16 %v8906, %v8905
        %v8937 = vpack.c.b16 %v8908, %v8907
        %v8938 = vpack.c.b16 %v8910, %v8909
        %v8939 = vpack.c.b16 %v8912, %v8911
        %v8940 = vpack.c.b16 %v8914, %v8913
        %v8941 = vpack.c.b16 %v8916, %v8915
        %v8942 = vpack.c.b16 %v8918, %v8917
        %v8943 = vpack.c.b16 %v8920, %v8919
        %v8944 = vpack.c.b16 %v8922, %v8921
        %v8945 = vpack.c.b16 %v8924, %v8923
        %v8946 = vpack.c.b16 %v8926, %v8925
        %v8947 = vpack.c.b16 %v8928, %v8927
        %v8948 = vpack.c.b16 %v8930, %v8929
        %v8949 = vpack.c.b16 %v8932, %v8931
        %v8950 = vpack.c.b16 %v8934, %v8933
        %8967 = vmatprep.subr.bf16.mxu0 0
        %8968 = vmatpush1.bf16.msra.mxu0 %v8935
        %8969 = vmatprep.subr.bf16.mxu0 0
        %8970 = vmatpush1.bf16.msra.mxu0 %v8936
        %8971 = vmatprep.subr.bf16.mxu0 0
        %8972 = vmatpush1.bf16.msra.mxu0 %v8937
        %8973 = vmatprep.subr.bf16.mxu0 0
        %8974 = vmatpush1.bf16.msra.mxu0 %v8938
        %8975 = vmatprep.subr.bf16.mxu0 0
        %8976 = vmatpush1.bf16.msra.mxu0 %v8939
        %8977 = vmatprep.subr.bf16.mxu0 0
        %8978 = vmatpush1.bf16.msra.mxu0 %v8940
        %8979 = vmatprep.subr.bf16.mxu0 0
        %8980 = vmatpush1.bf16.msra.mxu0 %v8941
        %8981 = vmatprep.subr.bf16.mxu0 0
        %8982 = vmatpush1.bf16.msra.mxu0 %v8942
        %8983 = vmatprep.subr.bf16.mxu0 0
        %8984 = vmatpush1.bf16.msra.mxu0 %v8943
        %8985 = vmatprep.subr.bf16.mxu0 0
        %8986 = vmatpush1.bf16.msra.mxu0 %v8944
        %8987 = vmatprep.subr.bf16.mxu0 0
        %8988 = vmatpush1.bf16.msra.mxu0 %v8945
        %8989 = vmatprep.subr.bf16.mxu0 0
        %8990 = vmatpush1.bf16.msra.mxu0 %v8946
        %8991 = vmatprep.subr.bf16.mxu0 0
        %8992 = vmatpush1.bf16.msra.mxu0 %v8947
        %8993 = vmatprep.subr.bf16.mxu0 0
        %8994 = vmatpush1.bf16.msra.mxu0 %v8948
        %8995 = vmatprep.subr.bf16.mxu0 0
        %8996 = vmatpush1.bf16.msra.mxu0 %v8949
        %8997 = vmatprep.subr.bf16.mxu0 0
        %8998 = vmatpush1.bf16.msra.mxu0 %v8950
        %8999 = vmatprep.mubr.bf16.mxu0 %v4166
        %9000 = vmatmul.mubr.bf16.gmra.mrb[0].mxu0 %v4165
        %v9001 = vpop.f32.mrb[0].mxu0
        %v9002 = vadd.f32 0.0, %v9001
        %v9003 = vpop.f32.mrb[0].mxu0
        %v9004 = vpop.f32.mrb[0].mxu0
        %v9005 = vpop.f32.mrb[0].mxu0
        %9006 = vdwg.mxu0
        %v9039 = vunpack.c.l.b16 %v5071
        %v9040 = vunpack.c.l.b16 %v5072
        %v9041 = vunpack.c.l.b16 %v5073
        %v9042 = vunpack.c.l.b16 %v5074
        %v9043 = vunpack.c.l.b16 %v5075
        %v9044 = vunpack.c.l.b16 %v5076
        %v9045 = vunpack.c.l.b16 %v5077
        %v9046 = vunpack.c.l.b16 %v5078
        %v9047 = vunpack.c.l.b16 %v5079
        %v9048 = vunpack.c.l.b16 %v5080
        %v9049 = vunpack.c.l.b16 %v5081
        %v9050 = vunpack.c.l.b16 %v5082
        %v9051 = vunpack.c.l.b16 %v5083
        %v9052 = vunpack.c.l.b16 %v5084
        %v9053 = vunpack.c.l.b16 %v5085
        %v9054 = vunpack.c.l.b16 %v5086
        %v9055 = vunpack.c.l.b16 %v5087
        %v9056 = vunpack.c.l.b16 %v5088
        %v9057 = vunpack.c.l.b16 %v5089
        %v9058 = vunpack.c.l.b16 %v5090
        %v9059 = vunpack.c.l.b16 %v5091
        %v9060 = vunpack.c.l.b16 %v5092
        %v9061 = vunpack.c.l.b16 %v5093
        %v9062 = vunpack.c.l.b16 %v5094
        %v9063 = vunpack.c.l.b16 %v5095
        %v9064 = vunpack.c.l.b16 %v5096
        %v9065 = vunpack.c.l.b16 %v5097
        %v9066 = vunpack.c.l.b16 %v5098
        %v9067 = vunpack.c.l.b16 %v5099
        %v9068 = vunpack.c.l.b16 %v5100
        %v9069 = vunpack.c.l.b16 %v5101
        %v9070 = vunpack.c.l.b16 %v5102
        %v9071 = vpack.c.b16 %v9040, %v9039
        %v9072 = vpack.c.b16 %v9042, %v9041
        %v9073 = vpack.c.b16 %v9044, %v9043
        %v9074 = vpack.c.b16 %v9046, %v9045
        %v9075 = vpack.c.b16 %v9048, %v9047
        %v9076 = vpack.c.b16 %v9050, %v9049
        %v9077 = vpack.c.b16 %v9052, %v9051
        %v9078 = vpack.c.b16 %v9054, %v9053
        %v9079 = vpack.c.b16 %v9056, %v9055
        %v9080 = vpack.c.b16 %v9058, %v9057
        %v9081 = vpack.c.b16 %v9060, %v9059
        %v9082 = vpack.c.b16 %v9062, %v9061
        %v9083 = vpack.c.b16 %v9064, %v9063
        %v9084 = vpack.c.b16 %v9066, %v9065
        %v9085 = vpack.c.b16 %v9068, %v9067
        %v9086 = vpack.c.b16 %v9070, %v9069
        %9103 = vmatprep.subr.bf16.mxu0 0
        %9104 = vmatpush1.bf16.msra.mxu0 %v9071
        %9105 = vmatprep.subr.bf16.mxu0 0
        %9106 = vmatpush1.bf16.msra.mxu0 %v9072
        %9107 = vmatprep.subr.bf16.mxu0 0
        %9108 = vmatpush1.bf16.msra.mxu0 %v9073
        %9109 = vmatprep.subr.bf16.mxu0 0
        %9110 = vmatpush1.bf16.msra.mxu0 %v9074
        %9111 = vmatprep.subr.bf16.mxu0 0
        %9112 = vmatpush1.bf16.msra.mxu0 %v9075
        %9113 = vmatprep.subr.bf16.mxu0 0
        %9114 = vmatpush1.bf16.msra.mxu0 %v9076
        %9115 = vmatprep.subr.bf16.mxu0 0
        %9116 = vmatpush1.bf16.msra.mxu0 %v9077
        %9117 = vmatprep.subr.bf16.mxu0 0
        %9118 = vmatpush1.bf16.msra.mxu0 %v9078
        %9119 = vmatprep.subr.bf16.mxu0 0
        %9120 = vmatpush1.bf16.msra.mxu0 %v9079
        %9121 = vmatprep.subr.bf16.mxu0 0
        %9122 = vmatpush1.bf16.msra.mxu0 %v9080
        %9123 = vmatprep.subr.bf16.mxu0 0
        %9124 = vmatpush1.bf16.msra.mxu0 %v9081
        %9125 = vmatprep.subr.bf16.mxu0 0
        %9126 = vmatpush1.bf16.msra.mxu0 %v9082
        %9127 = vmatprep.subr.bf16.mxu0 0
        %9128 = vmatpush1.bf16.msra.mxu0 %v9083
        %9129 = vmatprep.subr.bf16.mxu0 0
        %9130 = vmatpush1.bf16.msra.mxu0 %v9084
        %9131 = vmatprep.subr.bf16.mxu0 0
        %9132 = vmatpush1.bf16.msra.mxu0 %v9085
        %9133 = vmatprep.subr.bf16.mxu0 0
        %9134 = vmatpush1.bf16.msra.mxu0 %v9086
        %9135 = vmatprep.mubr.bf16.mxu0 %v4168
        %9136 = vmatmul.mubr.bf16.gmra.mrb[0].mxu0 %v4167
        %v9137 = vpop.f32.mrb[0].mxu0
        %v9138 = vadd.f32 0.0, %v9137
        %v9139 = vpop.f32.mrb[0].mxu0
        %v9140 = vpop.f32.mrb[0].mxu0
        %v9141 = vpop.f32.mrb[0].mxu0
        %9142 = vdwg.mxu0
        %v9175 = vunpack.c.l.b16 %v5103
        %v9176 = vunpack.c.l.b16 %v5104
        %v9177 = vunpack.c.l.b16 %v5105
        %v9178 = vunpack.c.l.b16 %v5106
        %v9179 = vunpack.c.l.b16 %v5107
        %v9180 = vunpack.c.l.b16 %v5108
        %v9181 = vunpack.c.l.b16 %v5109
        %v9182 = vunpack.c.l.b16 %v5110
        %v9183 = vunpack.c.l.b16 %v5111
        %v9184 = vunpack.c.l.b16 %v5112
        %v9185 = vunpack.c.l.b16 %v5113
        %v9186 = vunpack.c.l.b16 %v5114
        %v9187 = vunpack.c.l.b16 %v5115
        %v9188 = vunpack.c.l.b16 %v5116
        %v9189 = vunpack.c.l.b16 %v5117
        %v9190 = vunpack.c.l.b16 %v5118
        %v9191 = vunpack.c.l.b16 %v5119
        %v9192 = vunpack.c.l.b16 %v5120
        %v9193 = vunpack.c.l.b16 %v5121
        %v9194 = vunpack.c.l.b16 %v5122
        %v9195 = vunpack.c.l.b16 %v5123
        %v9196 = vunpack.c.l.b16 %v5124
        %v9197 = vunpack.c.l.b16 %v5125
        %v9198 = vunpack.c.l.b16 %v5126
        %v9199 = vunpack.c.l.b16 %v5127
        %v9200 = vunpack.c.l.b16 %v5128
        %v9201 = vunpack.c.l.b16 %v5129
        %v9202 = vunpack.c.l.b16 %v5130
        %v9203 = vunpack.c.l.b16 %v5131
        %v9204 = vunpack.c.l.b16 %v5132
        %v9205 = vunpack.c.l.b16 %v5133
        %v9206 = vunpack.c.l.b16 %v5134
        %v9207 = vpack.c.b16 %v9176, %v9175
        %v9208 = vpack.c.b16 %v9178, %v9177
        %v9209 = vpack.c.b16 %v9180, %v9179
        %v9210 = vpack.c.b16 %v9182, %v9181
        %v9211 = vpack.c.b16 %v9184, %v9183
        %v9212 = vpack.c.b16 %v9186, %v9185
        %v9213 = vpack.c.b16 %v9188, %v9187
        %v9214 = vpack.c.b16 %v9190, %v9189
        %v9215 = vpack.c.b16 %v9192, %v9191
        %v9216 = vpack.c.b16 %v9194, %v9193
        %v9217 = vpack.c.b16 %v9196, %v9195
        %v9218 = vpack.c.b16 %v9198, %v9197
        %v9219 = vpack.c.b16 %v9200, %v9199
        %v9220 = vpack.c.b16 %v9202, %v9201
        %v9221 = vpack.c.b16 %v9204, %v9203
        %v9222 = vpack.c.b16 %v9206, %v9205
        %9239 = vmatprep.subr.bf16.mxu0 0
        %9240 = vmatpush1.bf16.msra.mxu0 %v9207
        %9241 = vmatprep.subr.bf16.mxu0 0
        %9242 = vmatpush1.bf16.msra.mxu0 %v9208
        %9243 = vmatprep.subr.bf16.mxu0 0
        %9244 = vmatpush1.bf16.msra.mxu0 %v9209
        %9245 = vmatprep.subr.bf16.mxu0 0
        %9246 = vmatpush1.bf16.msra.mxu0 %v9210
        %9247 = vmatprep.subr.bf16.mxu0 0
        %9248 = vmatpush1.bf16.msra.mxu0 %v9211
        %9249 = vmatprep.subr.bf16.mxu0 0
        %9250 = vmatpush1.bf16.msra.mxu0 %v9212
        %9251 = vmatprep.subr.bf16.mxu0 0
        %9252 = vmatpush1.bf16.msra.mxu0 %v9213
        %9253 = vmatprep.subr.bf16.mxu0 0
        %9254 = vmatpush1.bf16.msra.mxu0 %v9214
        %9255 = vmatprep.subr.bf16.mxu0 0
        %9256 = vmatpush1.bf16.msra.mxu0 %v9215
        %9257 = vmatprep.subr.bf16.mxu0 0
        %9258 = vmatpush1.bf16.msra.mxu0 %v9216
        %9259 = vmatprep.subr.bf16.mxu0 0
        %9260 = vmatpush1.bf16.msra.mxu0 %v9217
        %9261 = vmatprep.subr.bf16.mxu0 0
        %9262 = vmatpush1.bf16.msra.mxu0 %v9218
        %9263 = vmatprep.subr.bf16.mxu0 0
        %9264 = vmatpush1.bf16.msra.mxu0 %v9219
        %9265 = vmatprep.subr.bf16.mxu0 0
        %9266 = vmatpush1.bf16.msra.mxu0 %v9220
        %9267 = vmatprep.subr.bf16.mxu0 0
        %9268 = vmatpush1.bf16.msra.mxu0 %v9221
        %9269 = vmatprep.subr.bf16.mxu0 0
        %9270 = vmatpush1.bf16.msra.mxu0 %v9222
        %9271 = vmatprep.mubr.bf16.mxu0 %v4170
        %9272 = vmatmul.mubr.bf16.gmra.mrb[0].mxu0 %v4169
        %v9273 = vpop.f32.mrb[0].mxu0
        %v9274 = vadd.f32 0.0, %v9273
        %v9275 = vpop.f32.mrb[0].mxu0
        %v9276 = vpop.f32.mrb[0].mxu0
        %v9277 = vpop.f32.mrb[0].mxu0
        %9278 = vdwg.mxu0
        %v9311 = vunpack.c.l.b16 %v5135
        %v9312 = vunpack.c.l.b16 %v5136
        %v9313 = vunpack.c.l.b16 %v5137
        %v9314 = vunpack.c.l.b16 %v5138
        %v9315 = vunpack.c.l.b16 %v5139
        %v9316 = vunpack.c.l.b16 %v5140
        %v9317 = vunpack.c.l.b16 %v5141
        %v9318 = vunpack.c.l.b16 %v5142
        %v9319 = vunpack.c.l.b16 %v5143
        %v9320 = vunpack.c.l.b16 %v5144
        %v9321 = vunpack.c.l.b16 %v5145
        %v9322 = vunpack.c.l.b16 %v5146
        %v9323 = vunpack.c.l.b16 %v5147
        %v9324 = vunpack.c.l.b16 %v5148
        %v9325 = vunpack.c.l.b16 %v5149
        %v9326 = vunpack.c.l.b16 %v5150
        %v9327 = vunpack.c.l.b16 %v5151
        %v9328 = vunpack.c.l.b16 %v5152
        %v9329 = vunpack.c.l.b16 %v5153
        %v9330 = vunpack.c.l.b16 %v5154
        %v9331 = vunpack.c.l.b16 %v5155
        %v9332 = vunpack.c.l.b16 %v5156
        %v9333 = vunpack.c.l.b16 %v5157
        %v9334 = vunpack.c.l.b16 %v5158
        %v9335 = vunpack.c.l.b16 %v5159
        %v9336 = vunpack.c.l.b16 %v5160
        %v9337 = vunpack.c.l.b16 %v5161
        %v9338 = vunpack.c.l.b16 %v5162
        %v9339 = vunpack.c.l.b16 %v5163
        %v9340 = vunpack.c.l.b16 %v5164
        %v9341 = vunpack.c.l.b16 %v5165
        %v9342 = vunpack.c.l.b16 %v5166
        %v9343 = vpack.c.b16 %v9312, %v9311
        %v9344 = vpack.c.b16 %v9314, %v9313
        %v9345 = vpack.c.b16 %v9316, %v9315
        %v9346 = vpack.c.b16 %v9318, %v9317
        %v9347 = vpack.c.b16 %v9320, %v9319
        %v9348 = vpack.c.b16 %v9322, %v9321
        %v9349 = vpack.c.b16 %v9324, %v9323
        %v9350 = vpack.c.b16 %v9326, %v9325
        %v9351 = vpack.c.b16 %v9328, %v9327
        %v9352 = vpack.c.b16 %v9330, %v9329
        %v9353 = vpack.c.b16 %v9332, %v9331
        %v9354 = vpack.c.b16 %v9334, %v9333
        %v9355 = vpack.c.b16 %v9336, %v9335
        %v9356 = vpack.c.b16 %v9338, %v9337
        %v9357 = vpack.c.b16 %v9340, %v9339
        %v9358 = vpack.c.b16 %v9342, %v9341
        %9375 = vmatprep.subr.bf16.mxu0 0
        %9376 = vmatpush1.bf16.msra.mxu0 %v9343
        %9377 = vmatprep.subr.bf16.mxu0 0
        %9378 = vmatpush1.bf16.msra.mxu0 %v9344
        %9379 = vmatprep.subr.bf16.mxu0 0
        %9380 = vmatpush1.bf16.msra.mxu0 %v9345
        %9381 = vmatprep.subr.bf16.mxu0 0
        %9382 = vmatpush1.bf16.msra.mxu0 %v9346
        %9383 = vmatprep.subr.bf16.mxu0 0
        %9384 = vmatpush1.bf16.msra.mxu0 %v9347
        %9385 = vmatprep.subr.bf16.mxu0 0
        %9386 = vmatpush1.bf16.msra.mxu0 %v9348
        %9387 = vmatprep.subr.bf16.mxu0 0
        %9388 = vmatpush1.bf16.msra.mxu0 %v9349
        %9389 = vmatprep.subr.bf16.mxu0 0
        %9390 = vmatpush1.bf16.msra.mxu0 %v9350
        %9391 = vmatprep.subr.bf16.mxu0 0
        %9392 = vmatpush1.bf16.msra.mxu0 %v9351
        %9393 = vmatprep.subr.bf16.mxu0 0
        %9394 = vmatpush1.bf16.msra.mxu0 %v9352
        %9395 = vmatprep.subr.bf16.mxu0 0
        %9396 = vmatpush1.bf16.msra.mxu0 %v9353
        %9397 = vmatprep.subr.bf16.mxu0 0
        %9398 = vmatpush1.bf16.msra.mxu0 %v9354
        %9399 = vmatprep.subr.bf16.mxu0 0
        %9400 = vmatpush1.bf16.msra.mxu0 %v9355
        %9401 = vmatprep.subr.bf16.mxu0 0
        %9402 = vmatpush1.bf16.msra.mxu0 %v9356
        %9403 = vmatprep.subr.bf16.mxu0 0
        %9404 = vmatpush1.bf16.msra.mxu0 %v9357
        %9405 = vmatprep.subr.bf16.mxu0 0
        %9406 = vmatpush1.bf16.msra.mxu0 %v9358
        %9407 = vmatprep.mubr.bf16.mxu0 %v4172
        %9408 = vmatmul.mubr.bf16.gmra.mrb[0].mxu0 %v4171
        %v9409 = vpop.f32.mrb[0].mxu0
        %v9410 = vadd.f32 0.0, %v9409
        %v9411 = vpop.f32.mrb[0].mxu0
        %v9412 = vpop.f32.mrb[0].mxu0
        %v9413 = vpop.f32.mrb[0].mxu0
        %9414 = vdwg.mxu0
        %v9447 = vunpack.c.l.b16 %v5167
        %v9448 = vunpack.c.l.b16 %v5168
        %v9449 = vunpack.c.l.b16 %v5169
        %v9450 = vunpack.c.l.b16 %v5170
        %v9451 = vunpack.c.l.b16 %v5171
        %v9452 = vunpack.c.l.b16 %v5172
        %v9453 = vunpack.c.l.b16 %v5173
        %v9454 = vunpack.c.l.b16 %v5174
        %v9455 = vunpack.c.l.b16 %v5175
        %v9456 = vunpack.c.l.b16 %v5176
        %v9457 = vunpack.c.l.b16 %v5177
        %v9458 = vunpack.c.l.b16 %v5178
        %v9459 = vunpack.c.l.b16 %v5179
        %v9460 = vunpack.c.l.b16 %v5180
        %v9461 = vunpack.c.l.b16 %v5181
        %v9462 = vunpack.c.l.b16 %v5182
        %v9463 = vunpack.c.l.b16 %v5183
        %v9464 = vunpack.c.l.b16 %v5184
        %v9465 = vunpack.c.l.b16 %v5185
        %v9466 = vunpack.c.l.b16 %v5186
        %v9467 = vunpack.c.l.b16 %v5187
        %v9468 = vunpack.c.l.b16 %v5188
        %v9469 = vunpack.c.l.b16 %v5189
        %v9470 = vunpack.c.l.b16 %v5190
        %v9471 = vunpack.c.l.b16 %v5191
        %v9472 = vunpack.c.l.b16 %v5192
        %v9473 = vunpack.c.l.b16 %v5193
        %v9474 = vunpack.c.l.b16 %v5194
        %v9475 = vunpack.c.l.b16 %v5195
        %v9476 = vunpack.c.l.b16 %v5196
        %v9477 = vunpack.c.l.b16 %v5197
        %v9478 = vunpack.c.l.b16 %v5198
        %v9479 = vpack.c.b16 %v9448, %v9447
        %v9480 = vpack.c.b16 %v9450, %v9449
        %v9481 = vpack.c.b16 %v9452, %v9451
        %v9482 = vpack.c.b16 %v9454, %v9453
        %v9483 = vpack.c.b16 %v9456, %v9455
        %v9484 = vpack.c.b16 %v9458, %v9457
        %v9485 = vpack.c.b16 %v9460, %v9459
        %v9486 = vpack.c.b16 %v9462, %v9461
        %v9487 = vpack.c.b16 %v9464, %v9463
        %v9488 = vpack.c.b16 %v9466, %v9465
        %v9489 = vpack.c.b16 %v9468, %v9467
        %v9490 = vpack.c.b16 %v9470, %v9469
        %v9491 = vpack.c.b16 %v9472, %v9471
        %v9492 = vpack.c.b16 %v9474, %v9473
        %v9493 = vpack.c.b16 %v9476, %v9475
        %v9494 = vpack.c.b16 %v9478, %v9477
        %9511 = vmatprep.subr.bf16.mxu0 0
        %9512 = vmatpush1.bf16.msra.mxu0 %v9479
        %9513 = vmatprep.subr.bf16.mxu0 0
        %9514 = vmatpush1.bf16.msra.mxu0 %v9480
        %9515 = vmatprep.subr.bf16.mxu0 0
        %9516 = vmatpush1.bf16.msra.mxu0 %v9481
        %9517 = vmatprep.subr.bf16.mxu0 0
        %9518 = vmatpush1.bf16.msra.mxu0 %v9482
        %9519 = vmatprep.subr.bf16.mxu0 0
        %9520 = vmatpush1.bf16.msra.mxu0 %v9483
        %9521 = vmatprep.subr.bf16.mxu0 0
        %9522 = vmatpush1.bf16.msra.mxu0 %v9484
        %9523 = vmatprep.subr.bf16.mxu0 0
        %9524 = vmatpush1.bf16.msra.mxu0 %v9485
        %9525 = vmatprep.subr.bf16.mxu0 0
        %9526 = vmatpush1.bf16.msra.mxu0 %v9486
        %9527 = vmatprep.subr.bf16.mxu0 0
        %9528 = vmatpush1.bf16.msra.mxu0 %v9487
        %9529 = vmatprep.subr.bf16.mxu0 0
        %9530 = vmatpush1.bf16.msra.mxu0 %v9488
        %9531 = vmatprep.subr.bf16.mxu0 0
        %9532 = vmatpush1.bf16.msra.mxu0 %v9489
        %9533 = vmatprep.subr.bf16.mxu0 0
        %9534 = vmatpush1.bf16.msra.mxu0 %v9490
        %9535 = vmatprep.subr.bf16.mxu0 0
        %9536 = vmatpush1.bf16.msra.mxu0 %v9491
        %9537 = vmatprep.subr.bf16.mxu0 0
        %9538 = vmatpush1.bf16.msra.mxu0 %v9492
        %9539 = vmatprep.subr.bf16.mxu0 0
        %9540 = vmatpush1.bf16.msra.mxu0 %v9493
        %9541 = vmatprep.subr.bf16.mxu0 0
        %9542 = vmatpush1.bf16.msra.mxu0 %v9494
        %9543 = vmatprep.mubr.bf16.mxu0 %v4174
        %9544 = vmatmul.mubr.bf16.gmra.mrb[0].mxu0 %v4173
        %v9545 = vpop.f32.mrb[0].mxu0
        %v9546 = vadd.f32 0.0, %v9545
        %v9547 = vpop.f32.mrb[0].mxu0
        %v9548 = vpop.f32.mrb[0].mxu0
        %v9549 = vpop.f32.mrb[0].mxu0
        %9550 = vdwg.mxu0
        %v9551 = vadd.f32 %v5330, %v5466
        %v9552 = vadd.f32 %v9551, %v5602
        %v9553 = vadd.f32 %v9552, %v5738
        %v9554 = vadd.f32 %v9553, %v5874
        %v9555 = vadd.f32 %v9554, %v6010
        %v9556 = vadd.f32 %v9555, %v6146
        %v9557 = vadd.f32 %v9556, %v6282
        %v9558 = vadd.f32 %v9557, %v6418
        %v9559 = vadd.f32 %v9558, %v6554
        %v9560 = vadd.f32 %v9559, %v6690
        %v9561 = vadd.f32 %v9560, %v6826
        %v9562 = vadd.f32 %v9561, %v6962
        %v9563 = vadd.f32 %v9562, %v7098
        %v9564 = vadd.f32 %v9563, %v7234
        %v9565 = vadd.f32 %v9564, %v7370
        %v9566 = vadd.f32 %v9565, %v7506
        %v9567 = vadd.f32 %v9566, %v7642
        %v9568 = vadd.f32 %v9567, %v7778
        %v9569 = vadd.f32 %v9568, %v7914
        %v9570 = vadd.f32 %v9569, %v8050
        %v9571 = vadd.f32 %v9570, %v8186
        %v9572 = vadd.f32 %v9571, %v8322
        %v9573 = vadd.f32 %v9572, %v8458
        %v9574 = vadd.f32 %v9573, %v8594
        %v9575 = vadd.f32 %v9574, %v8730
        %v9576 = vadd.f32 %v9575, %v8866
        %v9577 = vadd.f32 %v9576, %v9002
        %v9578 = vadd.f32 %v9577, %v9138
        %v9579 = vadd.f32 %v9578, %v9274
        %v9580 = vadd.f32 %v9579, %v9410
        %v9581 = vadd.f32 %v9580, %v9546
        %v9582 = vld [vmem:[#allocation5] sm:$0x1]
        %v9584 = vlaneseq
        %v9585 = vshrl.u32 %v9584, 7
        %v9586 = vsub.s32 0, %v9585
        %v9587 = vrot.slane %v9582, %v9586
        %v9589 = vadd.f32 %v9581, %v9587
        %v9590 = vmax.f32 %v9589, 0.0
        %v9591 = vld [vmem:[%s5] sm:$0xff]
        %v9592 = vld [vmem:[%s5 + $0x8] sm:$0xff]
        %v9593 = vld [vmem:[%s5 + $0x10] sm:$0xff]
        %v9594 = vld [vmem:[%s5 + $0x18] sm:$0xff]
        %v9595 = vld [vmem:[%s5 + $0x20] sm:$0xff]
        %v9596 = vld [vmem:[%s5 + $0x28] sm:$0xff]
        %v9597 = vld [vmem:[%s5 + $0x30] sm:$0xff]
        %v9598 = vld [vmem:[%s5 + $0x38] sm:$0xff]
        %v9599 = vld [vmem:[%s5 + $0x40] sm:$0xff]
        %v9600 = vld [vmem:[%s5 + $0x48] sm:$0xff]
        %v9601 = vld [vmem:[%s5 + $0x50] sm:$0xff]
        %v9602 = vld [vmem:[%s5 + $0x58] sm:$0xff]
        %v9603 = vld [vmem:[%s5 + $0x60] sm:$0xff]
        %v9604 = vld [vmem:[%s5 + $0x68] sm:$0xff]
        %v9605 = vld [vmem:[%s5 + $0x70] sm:$0xff]
        %v9606 = vld [vmem:[%s5 + $0x78] sm:$0xff]
        %v9607 = vld [vmem:[#allocation7] sm:$0x1]
        %v9609 = vlaneseq
        %v9610 = vshrl.u32 %v9609, 7
        %v9611 = vsub.s32 0, %v9610
        %v9612 = vrot.slane %v9607, %v9611
        %9614 = vmatprep.subr.mxu0 0.0
        %9615 = vmatpush1.msra.mxu0 %v9591
        %9616 = vmatprep.subr.mxu0 0.0
        %9617 = vmatpush1.msra.mxu0 %v9592
        %9618 = vmatprep.subr.mxu0 0.0
        %9619 = vmatpush1.msra.mxu0 %v9593
        %9620 = vmatprep.subr.mxu0 0.0
        %9621 = vmatpush1.msra.mxu0 %v9594
        %9622 = vmatprep.subr.mxu0 0.0
        %9623 = vmatpush1.msra.mxu0 %v9595
        %9624 = vmatprep.subr.mxu0 0.0
        %9625 = vmatpush1.msra.mxu0 %v9596
        %9626 = vmatprep.subr.mxu0 0.0
        %9627 = vmatpush1.msra.mxu0 %v9597
        %9628 = vmatprep.subr.mxu0 0.0
        %9629 = vmatpush1.msra.mxu0 %v9598
        %9630 = vmatprep.subr.mxu0 0.0
        %9631 = vmatpush1.msra.mxu0 %v9599
        %9632 = vmatprep.subr.mxu0 0.0
        %9633 = vmatpush1.msra.mxu0 %v9600
        %9634 = vmatprep.subr.mxu0 0.0
        %9635 = vmatpush1.msra.mxu0 %v9601
        %9636 = vmatprep.subr.mxu0 0.0
        %9637 = vmatpush1.msra.mxu0 %v9602
        %9638 = vmatprep.subr.mxu0 0.0
        %9639 = vmatpush1.msra.mxu0 %v9603
        %9640 = vmatprep.subr.mxu0 0.0
        %9641 = vmatpush1.msra.mxu0 %v9604
        %9642 = vmatprep.subr.mxu0 0.0
        %9643 = vmatpush1.msra.mxu0 %v9605
        %9644 = vmatprep.subr.mxu0 0.0
        %9645 = vmatpush1.msra.mxu0 %v9606
        %9646 = vmatprep.subr.mxu0 0.0
        %9647 = vmatpush1.msra.mxu0 0.0
        %9648 = vmatprep.subr.mxu0 0.0
        %9649 = vmatpush1.msra.mxu0 0.0
        %9650 = vmatprep.subr.mxu0 0.0
        %9651 = vmatpush1.msra.mxu0 0.0
        %9652 = vmatprep.subr.mxu0 0.0
        %9653 = vmatpush1.msra.mxu0 0.0
        %9654 = vmatprep.subr.mxu0 0.0
        %9655 = vmatpush1.msra.mxu0 0.0
        %9656 = vmatprep.subr.mxu0 0.0
        %9657 = vmatpush1.msra.mxu0 0.0
        %9658 = vmatprep.subr.mxu0 0.0
        %9659 = vmatpush1.msra.mxu0 0.0
        %9660 = vmatprep.subr.mxu0 0.0
        %9661 = vmatpush1.msra.mxu0 0.0
        %9662 = vmatprep.subr.mxu0 0.0
        %9663 = vmatpush1.msra.mxu0 0.0
        %9664 = vmatprep.subr.mxu0 0.0
        %9665 = vmatpush1.msra.mxu0 0.0
        %9666 = vmatprep.subr.mxu0 0.0
        %9667 = vmatpush1.msra.mxu0 0.0
        %9668 = vmatprep.subr.mxu0 0.0
        %9669 = vmatpush1.msra.mxu0 0.0
        %9670 = vmatprep.subr.mxu0 0.0
        %9671 = vmatpush1.msra.mxu0 0.0
        %9672 = vmatprep.subr.mxu0 0.0
        %9673 = vmatpush1.msra.mxu0 0.0
        %9674 = vmatprep.subr.mxu0 0.0
        %9675 = vmatpush1.msra.mxu0 0.0
        %9676 = vmatprep.subr.mxu0 0.0
        %9677 = vmatpush1.msra.mxu0 0.0
        %9678 = vmatprep.mubr.f32.mxu0 0.0
        %9679 = vmatmul.mubr.f32.gmra.mrb[0].mxu0 %v9590
        %v9680 = vpop.f32.mrb[0].mxu0
        %v9681 = vadd.f32 %v9612, %v9680
        %v9682 = vpop.f32.mrb[0].mxu0
        %9683 = vdwg.mxu0
        %vm9684 = vcmask 80896
        %9685 = vst.msk [vmem:[%s311] sm:$0xff] %vm9684, %v9681
        %s9686 = sand.u32 %s183, 1
        %s9687 = scalar_lea.sflag [#allocation4], %s9686
        %s9688 = sand.u32 %s183, 1
        %s9689 = smul.addr %s9688, 8
        %s9690 = scalar_lea.vmem [#allocation8], %s9689
        // Predicated region
        $region61: #{tpu_custom_call.1} parent=47 // pred_check
          %p9691 = pneg %p193
        $region62: #{tpu_custom_call.1} parent=47 // pred_check_branch
          %9693 = sbr.rel (%p9691) target = $region64
        $region63: #{tpu_custom_call.1} parent=47 // pred_region
          %s9695 = ssub.s32 128, 128
          %9696 = vsyncadd %s9687, %s9695
          %s9697 = smul.addr %s23, 128
          %s9698 = scalar_lea.hbm %s7, %s9697
          %s9700 = sshll.u32 %s9690, 4
          %s9701 = int_to_ptr.vmem [resolvable:$true] %s9700
          %9703 = dma.vmem_to_hbm [thread:$0]  %s9701, 128, %s9698, %s9687
        $region64: #{tpu_custom_call.1} parent=47 // pred_fallthru
          _
      $region48: #{tpu_custom_call.1} parent=5 // pred_fallthru
        _
      %p9704 = scmp.le.s32.totalorder 2, %s18
      // Predicated region
      $region65: #{tpu_custom_call.1} parent=5 // pred_check
        %p9705 = pneg %p9704
      $region66: #{tpu_custom_call.1} parent=5 // pred_check_branch
        %9707 = sbr.rel (%p9705) target = $region68
      $region67: #{tpu_custom_call.1} parent=5 // pred_region
        %s9708 = ssub.s32 %s18, 2
        // Predicated region
        $region69: #{tpu_custom_call.1} parent=67 // pred_check
          %p9709 = pneg %p199
        $region70: #{tpu_custom_call.1} parent=67 // pred_check_branch
          %9711 = sbr.rel (%p9709) target = $region72
        $region71: #{tpu_custom_call.1} parent=67 // pred_region
          %s9712 = sand.u32 %s184, 1
          %s9713 = scalar_lea.sflag [#allocation4], %s9712
          %s9714 = sand.u32 %s184, 1
          %s9715 = smul.addr %s9714, 8
          %s9716 = scalar_lea.vmem [#allocation8], %s9715
          %9717 = dma.done %s9713, 128
        $region72: #{tpu_custom_call.1} parent=67 // pred_fallthru
          _
      $region68: #{tpu_custom_call.1} parent=5 // pred_fallthru
        _
    $region6: #{tpu_custom_call.1} parent=1 // loop_footer
      %s22 = sadd.s32 1, %s18
    $region7: #{tpu_custom_call.1} parent=1 // loop_footer_branch
      %17 = sbr.rel target = $region3
    $region8: #{tpu_custom_call.1} parent=1 // loop_exit
      _
    %9718 = vsyncpa [#allocation3], 1
    %s9719 = scalar_lea.sflag [#allocation3], 1
    %9720 = vsyncpa %s9719, 1
    %9721 = vsyncpa [#allocation6], 1
    %9722 = vsyncpa [#allocation4], 1
    %s9723 = scalar_lea.sflag [#allocation4], 1
    %9724 = vsyncpa %s9723, 1

</llo_original>
